<compile_context>
chip_gen: v7x
topology: tpu7x:2x2x1
jax: 0.10.0
libtpu: 0.0.40
codegen_flags: <defaults>
</compile_context>

<pallas_src>
import functools

import jax
import jax.numpy as jnp
from jax import lax
from jax.experimental import pallas as pl
from jax.experimental.pallas import tpu as pltpu


# ---------------------------------------------------------------------------
# Pallas kernel: one grid step = one image in the guard-pixel layout.
# Row p of every per-image tensor is padded position (p // Wp, p % Wp) of the
# (H+2, W+2) zero-padded image; rows >= Hp*Wp are alignment padding.  Guard /
# padding rows of the output hold garbage and are stripped by the wrapper.
# ---------------------------------------------------------------------------
def _double_conv_kernel(x1_ref, w1_ref, b1_ref, w2_ref, b2_ref, mask_ref,
                        o_ref, pad_ref, acc_ref, *, Wp, R, Cp, L):
    # Zero the lead/tail halo rows of the layer-2 scratch; the [L, L+R) body is
    # fully rewritten below.  L is a multiple of 8 so these stores are aligned.
    halo = jnp.zeros((L, Cp), jnp.bfloat16)
    pad_ref[0:L, :] = halo
    pad_ref[L + R:L + R + L, :] = halo

    # ---- layer 1: conv3x3 + folded-BN + ReLU as ONE bf16 MXU matmul on the
    # wrapper-built im2col input, then zero the guard/padding rows so they act
    # as conv-2's zero padding (bias/ReLU would otherwise make them nonzero).
    h = jnp.dot(x1_ref[...], w1_ref[...], preferred_element_type=jnp.float32)
    h = jnp.maximum(h + b1_ref[...], 0.0) * mask_ref[...]
    pad_ref[L:L + R, :] = h.astype(jnp.bfloat16)

    # ---- layer 2: conv3x3 + folded-BN + ReLU as 9 shifted [R,Cp]x[Cp,Cp]
    # bf16 matmuls accumulated into an explicit f32 VMEM accumulator.  Every
    # shifted read is valid (guard pixels are zero) -> no masks.
    for t in range(9):
        dy, dx = t // 3 - 1, t % 3 - 1
        d = dy * Wp + dx
        src = pad_ref[L + d:L + d + R, :]
        contrib = jnp.dot(src, w2_ref[t], preferred_element_type=jnp.float32)
        if t == 0:
            acc_ref[...] = contrib
        else:
            acc_ref[...] += contrib

    o_ref[...] = jnp.maximum(acc_ref[...] + b2_ref[...], 0.0)


# ---------------------------------------------------------------------------
# Wrapper-side helpers (BN folding, weight layout, im2col) -- cheap XLA work.
# ---------------------------------------------------------------------------
def _fold_conv_bn(w, cb, gamma, beta, mean, var, eps=1e-5):
    # BN(conv(x)) = s*(W@x + cb) + (beta - s*mean),  s = gamma/sqrt(var+eps)
    s = gamma / jnp.sqrt(var + eps)                  # [out]
    w_f = w * s[:, None, None, None]                 # [out, in, 3, 3]
    b_f = (cb - mean) * s + beta                     # [out]
    return w_f, b_f


def _layer1_weights(w_f, b_f, k1p, cp):
    # OIHW -> single [9*in, out] im2col weight matrix, zero-padded to [k1p, cp]
    out_c, in_c = w_f.shape[0], w_f.shape[1]
    wmat = jnp.transpose(w_f, (2, 3, 1, 0)).reshape(9 * in_c, out_c)
    wmat = jnp.pad(wmat, ((0, k1p - 9 * in_c), (0, cp - out_c)))
    bias = jnp.pad(b_f, (0, cp - out_c))[None, :]
    return wmat.astype(jnp.bfloat16), bias.astype(jnp.float32)


def _layer2_taps(w_f, b_f, cp):
    # OIHW -> [9, in, out] tap matrices, zero-padded to [9, cp, cp]
    out_c, in_c = w_f.shape[0], w_f.shape[1]
    taps = jnp.transpose(w_f, (2, 3, 1, 0)).reshape(9, in_c, out_c)
    taps = jnp.pad(taps, ((0, 0), (0, cp - in_c), (0, cp - out_c)))
    bias = jnp.pad(b_f, (0, cp - out_c))[None, :]
    return taps.astype(jnp.bfloat16), bias.astype(jnp.float32)


def _im2col_padded(x_nchw, R, k1p):
    # im2col patches for EVERY padded position (guard rows included; their
    # layer-1 output is masked to zero in the kernel). -> [B*R, k1p] bf16
    B, Cin, H, W = x_nchw.shape
    Hp, Wp = H + 2, W + 2
    x_nhwc = jnp.transpose(x_nchw, (0, 2, 3, 1))
    # first ring = the conv's own zero padding; second ring keeps patches
    # centred on guard pixels in-bounds (those rows are discarded anyway).
    xpp = jnp.pad(x_nhwc, ((0, 0), (2, 2), (2, 2), (0, 0)))
    cols = [xpp[:, ky:ky + Hp, kx:kx + Wp, :]
            for ky in range(3) for kx in range(3)]
    patches = jnp.concatenate(cols, axis=-1).reshape(B, Hp * Wp, 9 * Cin)
    patches = jnp.pad(patches, ((0, 0), (0, R - Hp * Wp), (0, k1p - 9 * Cin)))
    return patches.reshape(B * R, k1p).astype(jnp.bfloat16)


def _interior_mask(H, W, R):
    # (R,1) f32: 1.0 at interior-pixel rows, 0.0 at guard / alignment-pad rows
    Hp, Wp = H + 2, W + 2
    m = jnp.zeros((Hp, Wp), jnp.float32).at[1:H + 1, 1:W + 1].set(1.0)
    m = jnp.pad(m.reshape(Hp * Wp), (0, R - Hp * Wp))
    return m.reshape(R, 1)


def doubleconv_pallas(x_nchw, raw_params):
    (w1, cb1, g1, be1, m1, v1, w2, cb2, g2, be2, m2, v2) = raw_params
    B, Cin, H, W = x_nchw.shape
    Cout = w1.shape[0]
    Hp, Wp = H + 2, W + 2

    Cp = 128 * pl.cdiv(Cout, 128)        # lane-dense output channels
    K1p = 128 * pl.cdiv(9 * Cin, 128)    # lane-dense layer-1 im2col contraction
    R = 8 * pl.cdiv(Hp * Wp, 8)          # per-image padded-row count (8-aligned)
    L = 8 * pl.cdiv(Wp + 1, 8)           # scratch halo >= largest tap shift

    w1f, b1f = _fold_conv_bn(w1, cb1, g1, be1, m1, v1)
    w2f, b2f = _fold_conv_bn(w2, cb2, g2, be2, m2, v2)
    w1m, b1m = _layer1_weights(w1f, b1f, K1p, Cp)
    w2t, b2t = _layer2_taps(w2f, b2f, Cp)

    x1 = _im2col_padded(x_nchw, R, K1p)       # [B*R, K1p] bf16
    mask = _interior_mask(H, W, R)            # [R, 1]   f32

    kernel = functools.partial(_double_conv_kernel, Wp=Wp, R=R, Cp=Cp, L=L)

    out2d = pl.pallas_call(
        kernel,
        out_shape=jax.ShapeDtypeStruct((B * R, Cp), jnp.float32),
        grid_spec=pltpu.PrefetchScalarGridSpec(
            num_scalar_prefetch=0,
            grid=(B,),                                        # one image / step
            in_specs=[
                pl.BlockSpec((R, K1p), lambda b: (b, 0)),         # im2col x
                pl.BlockSpec((K1p, Cp), lambda b: (0, 0)),        # w1 (resident)
                pl.BlockSpec((1, Cp), lambda b: (0, 0)),          # b1
                pl.BlockSpec((9, Cp, Cp), lambda b: (0, 0, 0)),   # w2 taps (resident)
                pl.BlockSpec((1, Cp), lambda b: (0, 0)),          # b2
                pl.BlockSpec((R, 1), lambda b: (0, 0)),           # interior mask
            ],
            out_specs=pl.BlockSpec((R, Cp), lambda b: (b, 0)),
            scratch_shapes=[
                pltpu.VMEM((L + R + L, Cp), jnp.bfloat16),   # haloed layer-2 input
                pltpu.VMEM((R, Cp), jnp.float32),            # layer-2 f32 accumulator
            ],
        ),
        compiler_params=pltpu.CompilerParams(
            dimension_semantics=("parallel",),   # images independent -> both v7x TCs
            vmem_limit_bytes=32 * 1024 * 1024,
        ),
    )(x1, w1m, b1m, w2t, b2t, mask)

    # strip alignment padding, guard ring and channel padding; back to NCHW
    out = out2d.reshape(B, R, Cp)[:, :Hp * Wp, :Cout].reshape(B, Hp, Wp, Cout)
    out = out[:, 1:H + 1, 1:W + 1, :]
    return jnp.transpose(out, (0, 3, 1, 2))


# ---------------------------------------------------------------------------
# deterministic raw parameters (Conv2d weight+bias and BatchNorm running stats)
# ---------------------------------------------------------------------------
def make_params(key, in_ch, out_ch):
    ks = jax.random.split(key, 12)

    def bn(k0, k1, k2, k3, n):
        gamma = 1.0 + 0.1 * jax.random.normal(k0, (n,), jnp.float32)
        beta = 0.1 * jax.random.normal(k1, (n,), jnp.float32)
        mean = 0.1 * jax.random.normal(k2, (n,), jnp.float32)
        var = 0.5 + jnp.abs(jax.random.normal(k3, (n,), jnp.float32))
        return gamma, beta, mean, var

    w1 = 0.1 * jax.random.normal(ks[0], (out_ch, in_ch, 3, 3), jnp.float32)
    cb1 = 0.05 * jax.random.normal(ks[1], (out_ch,), jnp.float32)
    g1, be1, m1, v1 = bn(ks[2], ks[3], ks[4], ks[5], out_ch)

    w2 = 0.1 * jax.random.normal(ks[6], (out_ch, out_ch, 3, 3), jnp.float32)
    cb2 = 0.05 * jax.random.normal(ks[7], (out_ch,), jnp.float32)
    g2, be2, m2, v2 = bn(ks[8], ks[9], ks[10], ks[11], out_ch)

    return (w1, cb1, g1, be1, m1, v1, w2, cb2, g2, be2, m2, v2)


# ---------------------------------------------------------------------------
# pure-JAX reference (NCHW, unfused conv -> BN(running stats) -> ReLU, twice)
# ---------------------------------------------------------------------------
def doubleconv_ref(x, raw_params, eps=1e-5):
    (w1, cb1, g1, be1, m1, v1, w2, cb2, g2, be2, m2, v2) = raw_params

    def block(x, w, cb, gamma, beta, mean, var):
        y = lax.conv_general_dilated(
            x, w, (1, 1), ((1, 1), (1, 1)),
            dimension_numbers=('NCHW', 'OIHW', 'NCHW'),
            precision=lax.Precision.HIGHEST)
        y = y + cb[None, :, None, None]
        y = ((y - mean[None, :, None, None])
             / jnp.sqrt(var[None, :, None, None] + eps)
             * gamma[None, :, None, None] + beta[None, :, None, None])
        return jnp.maximum(y, 0.0)

    h = block(x, w1, cb1, g1, be1, m1, v1)
    return block(h, w2, cb2, g2, be2, m2, v2)


if __name__ == "__main__":
    # DoubleConv(in_ch=4, out_ch=32, img_size=16) on a batch of 2
    B, in_ch, out_ch, H, W = 2, 4, 32, 16, 16

    key = jax.random.PRNGKey(0)
    kx, kp = jax.random.split(key)
    x = jax.random.normal(kx, (B, in_ch, H, W), jnp.float32)
    params = make_params(kp, in_ch, out_ch)

    out = doubleconv_pallas(x, params)
    out = jax.block_until_ready(out)

    ref = doubleconv_ref(x, params)
    ref = jax.block_until_ready(ref)

    assert out.shape == (B, out_ch, H, W)
    # bf16 MXU operands (f32 accumulation) through two stacked convs:
    # tolerance relaxed vs the pure-f32 version (expected max |err| ~2-3e-2).
    max_err = float(jnp.max(jnp.abs(out - ref)))
    assert max_err < 1e-1, f"mismatch vs reference: {max_err}"

    print("KERNEL_OK")
</pallas_src>

<mosaic_0001>
module attributes {stable_mosaic.version = 11 : i64} {
  func.func @_double_conv_kernel(%arg0: i32, %arg1: memref<328x128xbf16, #tpu.memory_space<vmem>>, %arg2: memref<128x128xbf16, #tpu.memory_space<vmem>>, %arg3: memref<1x128xf32, #tpu.memory_space<vmem>>, %arg4: memref<9x128x128xbf16, #tpu.memory_space<vmem>>, %arg5: memref<1x128xf32, #tpu.memory_space<vmem>>, %arg6: memref<328x1xf32, #tpu.memory_space<vmem>>, %arg7: memref<328x128xf32, #tpu.memory_space<vmem>>, %arg8: memref<376x128xbf16, #tpu.memory_space<vmem>>, %arg9: memref<328x128xf32, #tpu.memory_space<vmem>>) attributes {dimension_semantics = [#tpu.dimension_semantics<parallel>], iteration_bounds = array<i64: 2>, scalar_prefetch = 0 : i64, scratch_operands = 2 : i64, tpu.core_type = #tpu.core_type<tc>, window_params = [{transform_indices = @transform_0, window_bounds = array<i64: 328, 128>}, {pipeline_mode = #tpu.pipeline_mode<synchronous>, transform_indices = @transform_1, window_bounds = array<i64: 128, 128>}, {pipeline_mode = #tpu.pipeline_mode<synchronous>, transform_indices = @transform_2, window_bounds = array<i64: 1, 128>}, {pipeline_mode = #tpu.pipeline_mode<synchronous>, transform_indices = @transform_3, window_bounds = array<i64: 9, 128, 128>}, {pipeline_mode = #tpu.pipeline_mode<synchronous>, transform_indices = @transform_4, window_bounds = array<i64: 1, 128>}, {pipeline_mode = #tpu.pipeline_mode<synchronous>, transform_indices = @transform_5, window_bounds = array<i64: 328, 1>}, {transform_indices = @transform_6, window_bounds = array<i64: 328, 128>}]} {
    %cst = arith.constant 0.000000e+00 : bf16
    %0 = vector.broadcast %cst : bf16 to vector<24x128xbf16>
    %c0 = arith.constant 0 : index
    %c0_0 = arith.constant 0 : index
    %1 = vector.load %arg8[%c0, %c0_0] : memref<376x128xbf16, #tpu.memory_space<vmem>>, vector<24x128xbf16>
    tpu.vector_store %arg8[%c0, %c0_0], %0 {strides = array<i32>} : memref<376x128xbf16, #tpu.memory_space<vmem>>, vector<24x128xbf16>,
    %c352 = arith.constant 352 : index
    %c0_1 = arith.constant 0 : index
    %2 = vector.load %arg8[%c352, %c0_1] : memref<376x128xbf16, #tpu.memory_space<vmem>>, vector<24x128xbf16>
    tpu.vector_store %arg8[%c352, %c0_1], %0 {strides = array<i32>} : memref<376x128xbf16, #tpu.memory_space<vmem>>, vector<24x128xbf16>,
    %c0_2 = arith.constant 0 : index
    %c0_3 = arith.constant 0 : index
    %3 = vector.load %arg1[%c0_2, %c0_3] : memref<328x128xbf16, #tpu.memory_space<vmem>>, vector<328x128xbf16>
    %c0_4 = arith.constant 0 : index
    %c0_5 = arith.constant 0 : index
    %4 = vector.load %arg2[%c0_4, %c0_5] : memref<128x128xbf16, #tpu.memory_space<vmem>>, vector<128x128xbf16>
    %cst_6 = arith.constant dense<0.000000e+00> : vector<328x128xf32>
    %5 = tpu.matmul %3, %4, %cst_6 {dimension_numbers = #tpu.dot_dimension_numbers<[1], [0], [0], [1], [0, 0, 1, 1], [], []>} : vector<328x128xbf16>, vector<128x128xbf16>, vector<328x128xf32> -> vector<328x128xf32>
    %c0_7 = arith.constant 0 : index
    %c0_8 = arith.constant 0 : index
    %6 = vector.load %arg3[%c0_7, %c0_8] : memref<1x128xf32, #tpu.memory_space<vmem>>, vector<1x128xf32>
    %7 = vector.broadcast %6 : vector<1x128xf32> to vector<328x128xf32>
    %8 = arith.addf %5, %7 : vector<328x128xf32>
    %cst_9 = arith.constant 0.000000e+00 : f32
    %9 = vector.broadcast %cst_9 : f32 to vector<328x128xf32>
    %10 = arith.maximumf %8, %9 : vector<328x128xf32>
    %c0_10 = arith.constant 0 : index
    %c0_11 = arith.constant 0 : index
    %11 = vector.load %arg6[%c0_10, %c0_11] : memref<328x1xf32, #tpu.memory_space<vmem>>, vector<328x1xf32>
    %12 = vector.broadcast %11 : vector<328x1xf32> to vector<328x128xf32>
    %13 = arith.mulf %10, %12 : vector<328x128xf32>
    %14 = arith.truncf %13 : vector<328x128xf32> to vector<328x128xbf16>
    %c24 = arith.constant 24 : index
    %c0_12 = arith.constant 0 : index
    %15 = vector.load %arg8[%c24, %c0_12] : memref<376x128xbf16, #tpu.memory_space<vmem>>, vector<328x128xbf16>
    tpu.vector_store %arg8[%c24, %c0_12], %14 {strides = array<i32>} : memref<376x128xbf16, #tpu.memory_space<vmem>>, vector<328x128xbf16>,
    %c5 = arith.constant 5 : index
    %c0_13 = arith.constant 0 : index
    %16 = vector.load %arg8[%c5, %c0_13] : memref<376x128xbf16, #tpu.memory_space<vmem>>, vector<328x128xbf16>
    %c0_14 = arith.constant 0 : index
    %c0_15 = arith.constant 0 : index
    %c0_16 = arith.constant 0 : index
    %17 = vector.load %arg4[%c0_14, %c0_15, %c0_16] : memref<9x128x128xbf16, #tpu.memory_space<vmem>>, vector<1x128x128xbf16>
    %18 = vector.shape_cast %17 : vector<1x128x128xbf16> to vector<128x128xbf16>
    %cst_17 = arith.constant dense<0.000000e+00> : vector<328x128xf32>
    %19 = tpu.matmul %16, %18, %cst_17 {dimension_numbers = #tpu.dot_dimension_numbers<[1], [0], [0], [1], [0, 0, 1, 1], [], []>} : vector<328x128xbf16>, vector<128x128xbf16>, vector<328x128xf32> -> vector<328x128xf32>
    %c0_18 = arith.constant 0 : index
    %c0_19 = arith.constant 0 : index
    %20 = vector.load %arg9[%c0_18, %c0_19] : memref<328x128xf32, #tpu.memory_space<vmem>>, vector<328x128xf32>
    tpu.vector_store %arg9[%c0_18, %c0_19], %19 {strides = array<i32>} : memref<328x128xf32, #tpu.memory_space<vmem>>, vector<328x128xf32>,
    %c6 = arith.constant 6 : index
    %c0_20 = arith.constant 0 : index
    %21 = vector.load %arg8[%c6, %c0_20] : memref<376x128xbf16, #tpu.memory_space<vmem>>, vector<328x128xbf16>
    %c1 = arith.constant 1 : index
    %c0_21 = arith.constant 0 : index
    %c0_22 = arith.constant 0 : index
    %22 = vector.load %arg4[%c1, %c0_21, %c0_22] : memref<9x128x128xbf16, #tpu.memory_space<vmem>>, vector<1x128x128xbf16>
    %23 = vector.shape_cast %22 : vector<1x128x128xbf16> to vector<128x128xbf16>
    %cst_23 = arith.constant dense<0.000000e+00> : vector<328x128xf32>
    %24 = tpu.matmul %21, %23, %cst_23 {dimension_numbers = #tpu.dot_dimension_numbers<[1], [0], [0], [1], [0, 0, 1, 1], [], []>} : vector<328x128xbf16>, vector<128x128xbf16>, vector<328x128xf32> -> vector<328x128xf32>
    %c0_24 = arith.constant 0 : index
    %c0_25 = arith.constant 0 : index
    %25 = vector.load %arg9[%c0_24, %c0_25] : memref<328x128xf32, #tpu.memory_space<vmem>>, vector<328x128xf32>
    %26 = arith.addf %25, %24 : vector<328x128xf32>
    %c0_26 = arith.constant 0 : index
    %c0_27 = arith.constant 0 : index
    %27 = vector.load %arg9[%c0_26, %c0_27] : memref<328x128xf32, #tpu.memory_space<vmem>>, vector<328x128xf32>
    tpu.vector_store %arg9[%c0_26, %c0_27], %26 {strides = array<i32>} : memref<328x128xf32, #tpu.memory_space<vmem>>, vector<328x128xf32>,
    %c7 = arith.constant 7 : index
    %c0_28 = arith.constant 0 : index
    %28 = vector.load %arg8[%c7, %c0_28] : memref<376x128xbf16, #tpu.memory_space<vmem>>, vector<328x128xbf16>
    %c2 = arith.constant 2 : index
    %c0_29 = arith.constant 0 : index
    %c0_30 = arith.constant 0 : index
    %29 = vector.load %arg4[%c2, %c0_29, %c0_30] : memref<9x128x128xbf16, #tpu.memory_space<vmem>>, vector<1x128x128xbf16>
    %30 = vector.shape_cast %29 : vector<1x128x128xbf16> to vector<128x128xbf16>
    %cst_31 = arith.constant dense<0.000000e+00> : vector<328x128xf32>
    %31 = tpu.matmul %28, %30, %cst_31 {dimension_numbers = #tpu.dot_dimension_numbers<[1], [0], [0], [1], [0, 0, 1, 1], [], []>} : vector<328x128xbf16>, vector<128x128xbf16>, vector<328x128xf32> -> vector<328x128xf32>
    %c0_32 = arith.constant 0 : index
    %c0_33 = arith.constant 0 : index
    %32 = vector.load %arg9[%c0_32, %c0_33] : memref<328x128xf32, #tpu.memory_space<vmem>>, vector<328x128xf32>
    %33 = arith.addf %32, %31 : vector<328x128xf32>
    %c0_34 = arith.constant 0 : index
    %c0_35 = arith.constant 0 : index
    %34 = vector.load %arg9[%c0_34, %c0_35] : memref<328x128xf32, #tpu.memory_space<vmem>>, vector<328x128xf32>
    tpu.vector_store %arg9[%c0_34, %c0_35], %33 {strides = array<i32>} : memref<328x128xf32, #tpu.memory_space<vmem>>, vector<328x128xf32>,
    %c23 = arith.constant 23 : index
    %c0_36 = arith.constant 0 : index
    %35 = vector.load %arg8[%c23, %c0_36] : memref<376x128xbf16, #tpu.memory_space<vmem>>, vector<328x128xbf16>
    %c3 = arith.constant 3 : index
    %c0_37 = arith.constant 0 : index
    %c0_38 = arith.constant 0 : index
    %36 = vector.load %arg4[%c3, %c0_37, %c0_38] : memref<9x128x128xbf16, #tpu.memory_space<vmem>>, vector<1x128x128xbf16>
    %37 = vector.shape_cast %36 : vector<1x128x128xbf16> to vector<128x128xbf16>
    %cst_39 = arith.constant dense<0.000000e+00> : vector<328x128xf32>
    %38 = tpu.matmul %35, %37, %cst_39 {dimension_numbers = #tpu.dot_dimension_numbers<[1], [0], [0], [1], [0, 0, 1, 1], [], []>} : vector<328x128xbf16>, vector<128x128xbf16>, vector<328x128xf32> -> vector<328x128xf32>
    %c0_40 = arith.constant 0 : index
    %c0_41 = arith.constant 0 : index
    %39 = vector.load %arg9[%c0_40, %c0_41] : memref<328x128xf32, #tpu.memory_space<vmem>>, vector<328x128xf32>
    %40 = arith.addf %39, %38 : vector<328x128xf32>
    %c0_42 = arith.constant 0 : index
    %c0_43 = arith.constant 0 : index
    %41 = vector.load %arg9[%c0_42, %c0_43] : memref<328x128xf32, #tpu.memory_space<vmem>>, vector<328x128xf32>
    tpu.vector_store %arg9[%c0_42, %c0_43], %40 {strides = array<i32>} : memref<328x128xf32, #tpu.memory_space<vmem>>, vector<328x128xf32>,
    %c24_44 = arith.constant 24 : index
    %c0_45 = arith.constant 0 : index
    %42 = vector.load %arg8[%c24_44, %c0_45] : memref<376x128xbf16, #tpu.memory_space<vmem>>, vector<328x128xbf16>
    %c4 = arith.constant 4 : index
    %c0_46 = arith.constant 0 : index
    %c0_47 = arith.constant 0 : index
    %43 = vector.load %arg4[%c4, %c0_46, %c0_47] : memref<9x128x128xbf16, #tpu.memory_space<vmem>>, vector<1x128x128xbf16>
    %44 = vector.shape_cast %43 : vector<1x128x128xbf16> to vector<128x128xbf16>
    %cst_48 = arith.constant dense<0.000000e+00> : vector<328x128xf32>
    %45 = tpu.matmul %42, %44, %cst_48 {dimension_numbers = #tpu.dot_dimension_numbers<[1], [0], [0], [1], [0, 0, 1, 1], [], []>} : vector<328x128xbf16>, vector<128x128xbf16>, vector<328x128xf32> -> vector<328x128xf32>
    %c0_49 = arith.constant 0 : index
    %c0_50 = arith.constant 0 : index
    %46 = vector.load %arg9[%c0_49, %c0_50] : memref<328x128xf32, #tpu.memory_space<vmem>>, vector<328x128xf32>
    %47 = arith.addf %46, %45 : vector<328x128xf32>
    %c0_51 = arith.constant 0 : index
    %c0_52 = arith.constant 0 : index
    %48 = vector.load %arg9[%c0_51, %c0_52] : memref<328x128xf32, #tpu.memory_space<vmem>>, vector<328x128xf32>
    tpu.vector_store %arg9[%c0_51, %c0_52], %47 {strides = array<i32>} : memref<328x128xf32, #tpu.memory_space<vmem>>, vector<328x128xf32>,
    %c25 = arith.constant 25 : index
    %c0_53 = arith.constant 0 : index
    %49 = vector.load %arg8[%c25, %c0_53] : memref<376x128xbf16, #tpu.memory_space<vmem>>, vector<328x128xbf16>
    %c5_54 = arith.constant 5 : index
    %c0_55 = arith.constant 0 : index
    %c0_56 = arith.constant 0 : index
    %50 = vector.load %arg4[%c5_54, %c0_55, %c0_56] : memref<9x128x128xbf16, #tpu.memory_space<vmem>>, vector<1x128x128xbf16>
    %51 = vector.shape_cast %50 : vector<1x128x128xbf16> to vector<128x128xbf16>
    %cst_57 = arith.constant dense<0.000000e+00> : vector<328x128xf32>
    %52 = tpu.matmul %49, %51, %cst_57 {dimension_numbers = #tpu.dot_dimension_numbers<[1], [0], [0], [1], [0, 0, 1, 1], [], []>} : vector<328x128xbf16>, vector<128x128xbf16>, vector<328x128xf32> -> vector<328x128xf32>
    %c0_58 = arith.constant 0 : index
    %c0_59 = arith.constant 0 : index
    %53 = vector.load %arg9[%c0_58, %c0_59] : memref<328x128xf32, #tpu.memory_space<vmem>>, vector<328x128xf32>
    %54 = arith.addf %53, %52 : vector<328x128xf32>
    %c0_60 = arith.constant 0 : index
    %c0_61 = arith.constant 0 : index
    %55 = vector.load %arg9[%c0_60, %c0_61] : memref<328x128xf32, #tpu.memory_space<vmem>>, vector<328x128xf32>
    tpu.vector_store %arg9[%c0_60, %c0_61], %54 {strides = array<i32>} : memref<328x128xf32, #tpu.memory_space<vmem>>, vector<328x128xf32>,
    %c41 = arith.constant 41 : index
    %c0_62 = arith.constant 0 : index
    %56 = vector.load %arg8[%c41, %c0_62] : memref<376x128xbf16, #tpu.memory_space<vmem>>, vector<328x128xbf16>
    %c6_63 = arith.constant 6 : index
    %c0_64 = arith.constant 0 : index
    %c0_65 = arith.constant 0 : index
    %57 = vector.load %arg4[%c6_63, %c0_64, %c0_65] : memref<9x128x128xbf16, #tpu.memory_space<vmem>>, vector<1x128x128xbf16>
    %58 = vector.shape_cast %57 : vector<1x128x128xbf16> to vector<128x128xbf16>
    %cst_66 = arith.constant dense<0.000000e+00> : vector<328x128xf32>
    %59 = tpu.matmul %56, %58, %cst_66 {dimension_numbers = #tpu.dot_dimension_numbers<[1], [0], [0], [1], [0, 0, 1, 1], [], []>} : vector<328x128xbf16>, vector<128x128xbf16>, vector<328x128xf32> -> vector<328x128xf32>
    %c0_67 = arith.constant 0 : index
    %c0_68 = arith.constant 0 : index
    %60 = vector.load %arg9[%c0_67, %c0_68] : memref<328x128xf32, #tpu.memory_space<vmem>>, vector<328x128xf32>
    %61 = arith.addf %60, %59 : vector<328x128xf32>
    %c0_69 = arith.constant 0 : index
    %c0_70 = arith.constant 0 : index
    %62 = vector.load %arg9[%c0_69, %c0_70] : memref<328x128xf32, #tpu.memory_space<vmem>>, vector<328x128xf32>
    tpu.vector_store %arg9[%c0_69, %c0_70], %61 {strides = array<i32>} : memref<328x128xf32, #tpu.memory_space<vmem>>, vector<328x128xf32>,
    %c42 = arith.constant 42 : index
    %c0_71 = arith.constant 0 : index
    %63 = vector.load %arg8[%c42, %c0_71] : memref<376x128xbf16, #tpu.memory_space<vmem>>, vector<328x128xbf16>
    %c7_72 = arith.constant 7 : index
    %c0_73 = arith.constant 0 : index
    %c0_74 = arith.constant 0 : index
    %64 = vector.load %arg4[%c7_72, %c0_73, %c0_74] : memref<9x128x128xbf16, #tpu.memory_space<vmem>>, vector<1x128x128xbf16>
    %65 = vector.shape_cast %64 : vector<1x128x128xbf16> to vector<128x128xbf16>
    %cst_75 = arith.constant dense<0.000000e+00> : vector<328x128xf32>
    %66 = tpu.matmul %63, %65, %cst_75 {dimension_numbers = #tpu.dot_dimension_numbers<[1], [0], [0], [1], [0, 0, 1, 1], [], []>} : vector<328x128xbf16>, vector<128x128xbf16>, vector<328x128xf32> -> vector<328x128xf32>
    %c0_76 = arith.constant 0 : index
    %c0_77 = arith.constant 0 : index
    %67 = vector.load %arg9[%c0_76, %c0_77] : memref<328x128xf32, #tpu.memory_space<vmem>>, vector<328x128xf32>
    %68 = arith.addf %67, %66 : vector<328x128xf32>
    %c0_78 = arith.constant 0 : index
    %c0_79 = arith.constant 0 : index
    %69 = vector.load %arg9[%c0_78, %c0_79] : memref<328x128xf32, #tpu.memory_space<vmem>>, vector<328x128xf32>
    tpu.vector_store %arg9[%c0_78, %c0_79], %68 {strides = array<i32>} : memref<328x128xf32, #tpu.memory_space<vmem>>, vector<328x128xf32>,
    %c43 = arith.constant 43 : index
    %c0_80 = arith.constant 0 : index
    %70 = vector.load %arg8[%c43, %c0_80] : memref<376x128xbf16, #tpu.memory_space<vmem>>, vector<328x128xbf16>
    %c8 = arith.constant 8 : index
    %c0_81 = arith.constant 0 : index
    %c0_82 = arith.constant 0 : index
    %71 = vector.load %arg4[%c8, %c0_81, %c0_82] : memref<9x128x128xbf16, #tpu.memory_space<vmem>>, vector<1x128x128xbf16>
    %72 = vector.shape_cast %71 : vector<1x128x128xbf16> to vector<128x128xbf16>
    %cst_83 = arith.constant dense<0.000000e+00> : vector<328x128xf32>
    %73 = tpu.matmul %70, %72, %cst_83 {dimension_numbers = #tpu.dot_dimension_numbers<[1], [0], [0], [1], [0, 0, 1, 1], [], []>} : vector<328x128xbf16>, vector<128x128xbf16>, vector<328x128xf32> -> vector<328x128xf32>
    %c0_84 = arith.constant 0 : index
    %c0_85 = arith.constant 0 : index
    %74 = vector.load %arg9[%c0_84, %c0_85] : memref<328x128xf32, #tpu.memory_space<vmem>>, vector<328x128xf32>
    %75 = arith.addf %74, %73 : vector<328x128xf32>
    %c0_86 = arith.constant 0 : index
    %c0_87 = arith.constant 0 : index
    %76 = vector.load %arg9[%c0_86, %c0_87] : memref<328x128xf32, #tpu.memory_space<vmem>>, vector<328x128xf32>
    tpu.vector_store %arg9[%c0_86, %c0_87], %75 {strides = array<i32>} : memref<328x128xf32, #tpu.memory_space<vmem>>, vector<328x128xf32>,
    %c0_88 = arith.constant 0 : index
    %c0_89 = arith.constant 0 : index
    %77 = vector.load %arg9[%c0_88, %c0_89] : memref<328x128xf32, #tpu.memory_space<vmem>>, vector<328x128xf32>
    %c0_90 = arith.constant 0 : index
    %c0_91 = arith.constant 0 : index
    %78 = vector.load %arg5[%c0_90, %c0_91] : memref<1x128xf32, #tpu.memory_space<vmem>>, vector<1x128xf32>
    %79 = vector.broadcast %78 : vector<1x128xf32> to vector<328x128xf32>
    %80 = arith.addf %77, %79 : vector<328x128xf32>
    %cst_92 = arith.constant 0.000000e+00 : f32
    %81 = vector.broadcast %cst_92 : f32 to vector<328x128xf32>
    %82 = arith.maximumf %80, %81 : vector<328x128xf32>
    %c0_93 = arith.constant 0 : index
    %c0_94 = arith.constant 0 : index
    %83 = vector.load %arg7[%c0_93, %c0_94] : memref<328x128xf32, #tpu.memory_space<vmem>>, vector<328x128xf32>
    tpu.vector_store %arg7[%c0_93, %c0_94], %82 {strides = array<i32>} : memref<328x128xf32, #tpu.memory_space<vmem>>, vector<328x128xf32>,
    return
  }
  func.func @transform_0(%arg0: i32) -> (i32, i32) {
    %c0_i32 = arith.constant 0 : i32
    %c0_i32_0 = arith.constant 0 : i32
    return %arg0, %c0_i32 : i32, i32
  }
  func.func @transform_1(%arg0: i32) -> (i32, i32) {
    %c0_i32 = arith.constant 0 : i32
    %c0_i32_0 = arith.constant 0 : i32
    %c0_i32_1 = arith.constant 0 : i32
    return %c0_i32, %c0_i32_0 : i32, i32
  }
  func.func @transform_2(%arg0: i32) -> (i32, i32) {
    %c0_i32 = arith.constant 0 : i32
    %c0_i32_0 = arith.constant 0 : i32
    %c0_i32_1 = arith.constant 0 : i32
    return %c0_i32, %c0_i32_0 : i32, i32
  }
  func.func @transform_3(%arg0: i32) -> (i32, i32, i32) {
    %c0_i32 = arith.constant 0 : i32
    %c0_i32_0 = arith.constant 0 : i32
    %c0_i32_1 = arith.constant 0 : i32
    %c0_i32_2 = arith.constant 0 : i32
    return %c0_i32, %c0_i32_0, %c0_i32_1 : i32, i32, i32
  }
  func.func @transform_4(%arg0: i32) -> (i32, i32) {
    %c0_i32 = arith.constant 0 : i32
    %c0_i32_0 = arith.constant 0 : i32
    %c0_i32_1 = arith.constant 0 : i32
    return %c0_i32, %c0_i32_0 : i32, i32
  }
  func.func @transform_5(%arg0: i32) -> (i32, i32) {
    %c0_i32 = arith.constant 0 : i32
    %c0_i32_0 = arith.constant 0 : i32
    %c0_i32_1 = arith.constant 0 : i32
    return %c0_i32, %c0_i32_0 : i32, i32
  }
  func.func @transform_6(%arg0: i32) -> (i32, i32) {
    %c0_i32 = arith.constant 0 : i32
    %c0_i32_0 = arith.constant 0 : i32
    return %arg0, %c0_i32 : i32, i32
  }
}

</mosaic_0001>

<llo_original>
// kernel: tpu_custom_call.1
$region0: #{tpu_custom_call.1}
  #allocation0 [shape = 'u32[]', space=smem, size = 0x4, offset = 0x4, fixed_abs, tag = 'smem constant byte address 0x4 - core index']
  #allocation1 [shape = 'u32[144,128]{1,0:T(1,128)}', space=vmem, size = 0x12000, scoped, tag = 'internal scratch']
  #allocation2 [shape = 'bf16[376,128]{1,0:T(8,128)(2,1)}', space=vmem, size = 0x17800, scoped, tag = 'scratch operand']
  #allocation3 [shape = 'f32[328,128]{1,0:T(8,128)}', space=vmem, size = 0x29000, scoped, tag = 'scratch operand']
  %s0 = inlined_call_operand.vmem [shape: bf16[656,128], index: 0, kind: input, shape index: {}]
  %s1 = inlined_call_operand.hbm [shape: bf16[128,128], index: 1, kind: input, shape index: {}]
  %s2 = inlined_call_operand.vmem [shape: f32[1,128], index: 2, kind: input, shape index: {}]
  %s3 = inlined_call_operand.hbm [shape: bf16[9,128,128], index: 3, kind: input, shape index: {}]
  %s4 = inlined_call_operand.vmem [shape: f32[1,128], index: 4, kind: input, shape index: {}]
  %s5 = inlined_call_operand.vmem [shape: f32[328,1], index: 5, kind: input, shape index: {}]
  %s6 = inlined_call_operand.hbm [shape: f32[656,128], index: 6, kind: output, shape index: {}]
  %s7 = sld [smem:[#allocation0]]
  $region65: #{tpu_custom_call.1} parent=0
    _
  %s9 = ssub.s32 1, %s7
  %s10 = scalar_select 0, %s9, %s7
  $region1: #{tpu_custom_call.1} parent=0
    #allocation4 [shape = 'u8[32768]{0}', space=vmem, size = 0x8000, scoped, tag = 'input window, operand 1, single buffered']
    #allocation5 [shape = 's32[2]{0}', space=sflag, size = 0x8, scoped, tag = 'scoped memory for tpu_custom_call.1']
    #allocation6 [shape = 's32[2]{0}', space=sflag, size = 0x8, scoped, tag = 'scoped memory for tpu_custom_call.1']
    #allocation7 [shape = 'u8[294912]{0}', space=vmem, size = 0x48000, scoped, tag = 'input window, operand 3, single buffered']
    #allocation8 [shape = 's32[1]{0}', space=sflag, size = 0x4, scoped, tag = 'scoped memory for tpu_custom_call.1']
    #allocation9 [shape = 'u8[335872]{0}', space=vmem, size = 0x52000, scoped, tag = 'output window, operand 0']
    %11 = vsyncpa [#allocation5], 0
    %12 = vsyncpa [#allocation8], 0
    %13 = vsyncpa [#allocation6], 0
    %s14 = scalar_lea.sflag [#allocation6], 1
    %15 = vsyncpa %s14, 0
    loop: start=0, step=1, limit=4
    $region2: #{tpu_custom_call.1} parent=1 // loop_pre_header
      _
    $region3: #{tpu_custom_call.1} parent=1 // loop_header
      %s17 = sphi 0, %s21
      %p18 = scmp.ge.s32.totalorder %s17, 4
      %s27 = sphi 0, %s29
      %s30 = sphi 0, %s27
      %s31 = sphi 0, %s30
      %s47 = sphi 0, %s31
      %s51 = sphi 0, %s51
      %s53 = sphi 0, %s51
      %s54 = sphi 0, %s53
      %s68 = sphi 0, %s54
      %s72 = sphi 0, %s72
      %s74 = sphi 0, %s72
      %s75 = sphi 0, %s74
      %s89 = sphi 0, %s75
      %s93 = sphi 0, %s93
      %s95 = sphi 0, %s93
      %s96 = sphi 0, %s95
      %s110 = sphi 0, %s96
      %s114 = sphi 0, %s114
      %s116 = sphi 0, %s114
      %s117 = sphi 0, %s116
      %s131 = sphi 0, %s117
      %s135 = sphi 0, %s135
      %s137 = sphi 0, %s135
      %s138 = sphi 0, %s137
      %s152 = sphi 0, %s138
      %s158 = sphi 0, %s160
      %s161 = sphi 0, %s158
      %s162 = sphi 0, %s161
      %s178 = sphi 0, %s162
    $region4: #{tpu_custom_call.1} parent=1 // loop_header_branch
      %20 = sbr.rel (%p18) target = $region8
    $region5: #{tpu_custom_call.1} parent=1 // loop_body
      %s22 = ssub.s32 %s17, 1
      %s23 = ssub.s32 %s17, 2
      %s24 = sadd.s32 %s17, 1
      %s25 = ssub.s32 %s17, %s24
      %p26 = scmp.eq.s32.totalorder %s25, 0
      %s28 = sadd.s32 %s27, 1
      %s29 = scalar_select %p26, %s27, %s28
      %p32 = pneg %p26
      %p33 = scmp.eq.s32.totalorder %s17, 1
      %p34 = por %p32, %p33
      %p35 = scmp.ne.s32.totalorder %s27, %s30
      %p36 = scmp.eq.s32.totalorder %s17, 0
      %p37 = por %p35, %p36
      %p38 = scmp.ne.s32.totalorder %s27, %s30
      %p39 = scmp.eq.s32.totalorder %s22, 1
      %p40 = por %p38, %p39
      %p41 = scmp.ne.s32.totalorder %s30, %s31
      %p42 = scmp.eq.s32.totalorder %s22, 0
      %p43 = por %p41, %p42
      %p44 = scmp.ne.s32.totalorder %s30, %s31
      %p45 = scmp.eq.s32.totalorder %s23, 1
      %p46 = por %p44, %p45
      %p48 = scmp.ne.s32.totalorder %s31, %s47
      %p49 = scmp.eq.s32.totalorder %s23, 0
      %p50 = por %p48, %p49
      %s52 = sadd.s32 %s51, 1
      %p55 = scmp.eq.s32.totalorder %s17, 1
      %p56 = scmp.ne.s32.totalorder %s51, %s53
      %p57 = scmp.eq.s32.totalorder %s17, 0
      %p58 = por %p56, %p57
      %p59 = scmp.ne.s32.totalorder %s51, %s53
      %p60 = scmp.eq.s32.totalorder %s22, 1
      %p61 = por %p59, %p60
      %p62 = scmp.ne.s32.totalorder %s53, %s54
      %p63 = scmp.eq.s32.totalorder %s22, 0
      %p64 = por %p62, %p63
      %p65 = scmp.ne.s32.totalorder %s53, %s54
      %p66 = scmp.eq.s32.totalorder %s23, 1
      %p67 = por %p65, %p66
      %p69 = scmp.ne.s32.totalorder %s54, %s68
      %p70 = scmp.eq.s32.totalorder %s23, 0
      %p71 = por %p69, %p70
      %s73 = sadd.s32 %s72, 1
      %p76 = scmp.eq.s32.totalorder %s17, 1
      %p77 = scmp.ne.s32.totalorder %s72, %s74
      %p78 = scmp.eq.s32.totalorder %s17, 0
      %p79 = por %p77, %p78
      %p80 = scmp.ne.s32.totalorder %s72, %s74
      %p81 = scmp.eq.s32.totalorder %s22, 1
      %p82 = por %p80, %p81
      %p83 = scmp.ne.s32.totalorder %s74, %s75
      %p84 = scmp.eq.s32.totalorder %s22, 0
      %p85 = por %p83, %p84
      %p86 = scmp.ne.s32.totalorder %s74, %s75
      %p87 = scmp.eq.s32.totalorder %s23, 1
      %p88 = por %p86, %p87
      %p90 = scmp.ne.s32.totalorder %s75, %s89
      %p91 = scmp.eq.s32.totalorder %s23, 0
      %p92 = por %p90, %p91
      %s94 = sadd.s32 %s93, 1
      %p97 = scmp.eq.s32.totalorder %s17, 1
      %p98 = scmp.ne.s32.totalorder %s93, %s95
      %p99 = scmp.eq.s32.totalorder %s17, 0
      %p100 = por %p98, %p99
      %p101 = scmp.ne.s32.totalorder %s93, %s95
      %p102 = scmp.eq.s32.totalorder %s22, 1
      %p103 = por %p101, %p102
      %p104 = scmp.ne.s32.totalorder %s95, %s96
      %p105 = scmp.eq.s32.totalorder %s22, 0
      %p106 = por %p104, %p105
      %p107 = scmp.ne.s32.totalorder %s95, %s96
      %p108 = scmp.eq.s32.totalorder %s23, 1
      %p109 = por %p107, %p108
      %p111 = scmp.ne.s32.totalorder %s96, %s110
      %p112 = scmp.eq.s32.totalorder %s23, 0
      %p113 = por %p111, %p112
      %s115 = sadd.s32 %s114, 1
      %p118 = scmp.eq.s32.totalorder %s17, 1
      %p119 = scmp.ne.s32.totalorder %s114, %s116
      %p120 = scmp.eq.s32.totalorder %s17, 0
      %p121 = por %p119, %p120
      %p122 = scmp.ne.s32.totalorder %s114, %s116
      %p123 = scmp.eq.s32.totalorder %s22, 1
      %p124 = por %p122, %p123
      %p125 = scmp.ne.s32.totalorder %s116, %s117
      %p126 = scmp.eq.s32.totalorder %s22, 0
      %p127 = por %p125, %p126
      %p128 = scmp.ne.s32.totalorder %s116, %s117
      %p129 = scmp.eq.s32.totalorder %s23, 1
      %p130 = por %p128, %p129
      %p132 = scmp.ne.s32.totalorder %s117, %s131
      %p133 = scmp.eq.s32.totalorder %s23, 0
      %p134 = por %p132, %p133
      %s136 = sadd.s32 %s135, 1
      %p139 = scmp.eq.s32.totalorder %s17, 1
      %p140 = scmp.ne.s32.totalorder %s135, %s137
      %p141 = scmp.eq.s32.totalorder %s17, 0
      %p142 = por %p140, %p141
      %p143 = scmp.ne.s32.totalorder %s135, %s137
      %p144 = scmp.eq.s32.totalorder %s22, 1
      %p145 = por %p143, %p144
      %p146 = scmp.ne.s32.totalorder %s137, %s138
      %p147 = scmp.eq.s32.totalorder %s22, 0
      %p148 = por %p146, %p147
      %p149 = scmp.ne.s32.totalorder %s137, %s138
      %p150 = scmp.eq.s32.totalorder %s23, 1
      %p151 = por %p149, %p150
      %p153 = scmp.ne.s32.totalorder %s138, %s152
      %p154 = scmp.eq.s32.totalorder %s23, 0
      %p155 = por %p153, %p154
      %s156 = ssub.s32 %s17, %s24
      %p157 = scmp.eq.s32.totalorder %s156, 0
      %s159 = sadd.s32 %s158, 1
      %s160 = scalar_select %p157, %s158, %s159
      %p163 = pneg %p157
      %p164 = scmp.eq.s32.totalorder %s17, 1
      %p165 = por %p163, %p164
      %p166 = scmp.ne.s32.totalorder %s158, %s161
      %p167 = scmp.eq.s32.totalorder %s17, 0
      %p168 = por %p166, %p167
      %p169 = scmp.ne.s32.totalorder %s158, %s161
      %p170 = scmp.eq.s32.totalorder %s22, 1
      %p171 = por %p169, %p170
      %p172 = scmp.ne.s32.totalorder %s161, %s162
      %p173 = scmp.eq.s32.totalorder %s22, 0
      %p174 = por %p172, %p173
      %p175 = scmp.ne.s32.totalorder %s161, %s162
      %p176 = scmp.eq.s32.totalorder %s23, 1
      %p177 = por %p175, %p176
      %p179 = scmp.ne.s32.totalorder %s162, %s178
      %p180 = scmp.eq.s32.totalorder %s23, 0
      %p181 = por %p179, %p180
      %p182 = scmp.le.s32.totalorder 1, %s17
      %p183 = scmp.lt.s32.totalorder %s17, 3
      %p184 = pnand %p182, %p183
      %p185 = pneg %p184
      // Predicated region
      $region9: #{tpu_custom_call.1} parent=5 // pred_check
        _
      $region10: #{tpu_custom_call.1} parent=5 // pred_check_branch
        %187 = sbr.rel (%p184) target = $region12
      $region11: #{tpu_custom_call.1} parent=5 // pred_region
        %s188 = ssub.s32 %s17, 1
        // Predicated region
        $region13: #{tpu_custom_call.1} parent=11 // pred_check
          %p189 = pneg %p64
        $region14: #{tpu_custom_call.1} parent=11 // pred_check_branch
          %191 = sbr.rel (%p189) target = $region16
        $region15: #{tpu_custom_call.1} parent=11 // pred_region
          %s193 = ssub.s32 1024, 1024
          %194 = vsyncadd [#allocation5], %s193
          %s195 = sshll.u32 [#allocation4], 4
          %s196 = int_to_ptr.vmem [resolvable:$true] %s195
          %201 = dma.hbm_to_vmem [thread:$0]  %s1, 1024, %s196, [#allocation5], 64, 64, 4
        $region16: #{tpu_custom_call.1} parent=11 // pred_fallthru
          _
        // Predicated region
        $region17: #{tpu_custom_call.1} parent=11 // pred_check
          %p202 = pneg %p85
        $region18: #{tpu_custom_call.1} parent=11 // pred_check_branch
          %204 = sbr.rel (%p202) target = $region20
        $region19: #{tpu_custom_call.1} parent=11 // pred_region
          _
        $region20: #{tpu_custom_call.1} parent=11 // pred_fallthru
          _
        // Predicated region
        $region21: #{tpu_custom_call.1} parent=11 // pred_check
          %p205 = pneg %p106
        $region22: #{tpu_custom_call.1} parent=11 // pred_check_branch
          %207 = sbr.rel (%p205) target = $region24
        $region23: #{tpu_custom_call.1} parent=11 // pred_region
          %s209 = ssub.s32 9216, 9216
          %210 = vsyncadd [#allocation8], %s209
          %s211 = sshll.u32 [#allocation7], 4
          %s212 = int_to_ptr.vmem [resolvable:$true] %s211
          %217 = dma.hbm_to_vmem [thread:$0]  %s3, 9216, %s212, [#allocation8], 64, 64, 4
        $region24: #{tpu_custom_call.1} parent=11 // pred_fallthru
          _
        // Predicated region
        $region25: #{tpu_custom_call.1} parent=11 // pred_check
          %p218 = pneg %p127
        $region26: #{tpu_custom_call.1} parent=11 // pred_check_branch
          %220 = sbr.rel (%p218) target = $region28
        $region27: #{tpu_custom_call.1} parent=11 // pred_region
          _
        $region28: #{tpu_custom_call.1} parent=11 // pred_fallthru
          _
        // Predicated region
        $region29: #{tpu_custom_call.1} parent=11 // pred_check
          %p221 = pneg %p148
        $region30: #{tpu_custom_call.1} parent=11 // pred_check_branch
          %223 = sbr.rel (%p221) target = $region32
        $region31: #{tpu_custom_call.1} parent=11 // pred_region
          _
        $region32: #{tpu_custom_call.1} parent=11 // pred_fallthru
          _
      $region12: #{tpu_custom_call.1} parent=5 // pred_fallthru
        _
      %p224 = scmp.lt.s32.totalorder %s17, 2
      // Predicated region
      $region33: #{tpu_custom_call.1} parent=5 // pred_check
        %p225 = pneg %p224
      $region34: #{tpu_custom_call.1} parent=5 // pred_check_branch
        %227 = sbr.rel (%p225) target = $region36
      $region35: #{tpu_custom_call.1} parent=5 // pred_region
        // Predicated region
        $region37: #{tpu_custom_call.1} parent=35 // pred_check
          %p228 = pneg %p37
        $region38: #{tpu_custom_call.1} parent=35 // pred_check_branch
          %230 = sbr.rel (%p228) target = $region40
        $region39: #{tpu_custom_call.1} parent=35 // pred_region
          %s231 = smul.u32 41, %s17
          %p232 = scmp.lt.s32.totalorder %s231, 81
          %s233 = scalar_select %p232, %s231, 81
          %s234 = smul.addr %s233, 4
          %s235 = scalar_lea.vmem %s0, %s234
          %s236 = smul.u32 41, %s17
        $region40: #{tpu_custom_call.1} parent=35 // pred_fallthru
          _
      $region36: #{tpu_custom_call.1} parent=5 // pred_fallthru
        _
      %p237 = scmp.le.s32.totalorder 1, %s17
      %p238 = scmp.lt.s32.totalorder %s17, 3
      %p239 = pnand %p237, %p238
      %p240 = pneg %p239
      // Predicated region
      $region41: #{tpu_custom_call.1} parent=5 // pred_check
        _
      $region42: #{tpu_custom_call.1} parent=5 // pred_check_branch
        %242 = sbr.rel (%p239) target = $region44
      $region43: #{tpu_custom_call.1} parent=5 // pred_region
        %s243 = ssub.s32 %s17, 1
        // Predicated region
        $region45: #{tpu_custom_call.1} parent=43 // pred_check
          %p244 = pneg %p64
        $region46: #{tpu_custom_call.1} parent=43 // pred_check_branch
          %246 = sbr.rel (%p244) target = $region48
        $region47: #{tpu_custom_call.1} parent=43 // pred_region
          %247 = dma.done [#allocation5], 1024
        $region48: #{tpu_custom_call.1} parent=43 // pred_fallthru
          _
        // Predicated region
        $region49: #{tpu_custom_call.1} parent=43 // pred_check
          %p248 = pneg %p106
        $region50: #{tpu_custom_call.1} parent=43 // pred_check_branch
          %250 = sbr.rel (%p248) target = $region52
        $region51: #{tpu_custom_call.1} parent=43 // pred_region
          %251 = dma.done [#allocation8], 9216
        $region52: #{tpu_custom_call.1} parent=43 // pred_fallthru
          _
        %s252 = smul.u32 41, %s22
        %p253 = scmp.lt.s32.totalorder %s252, 81
        %s254 = scalar_select %p253, %s252, 81
        %s255 = smul.addr %s254, 4
        %s256 = scalar_lea.vmem %s0, %s255
        %p257 = pneg %p43
        %p258 = pneg %p40
        %p259 = pneg %p64
        %p260 = pneg %p61
        %p261 = pneg %p85
        %p262 = pneg %p82
        %p263 = pneg %p106
        %p264 = pneg %p103
        %p265 = pneg %p127
        %p266 = pneg %p124
        %p267 = pneg %p148
        %p268 = pneg %p145
        %p269 = pneg %p174
        %p270 = pneg %p171
        %s271 = sand.u32 %s161, 1
        %s272 = scalar_lea.sflag [#allocation6], %s271
        %s273 = sand.u32 %s161, 1
        %s274 = smul.addr %s273, 328
        %s275 = scalar_lea.vmem [#allocation9], %s274
        %s276 = smul.u32 41, %s22
        %p277 = scmp.lt.s32.totalorder %s276, 81
        %s278 = scalar_select %p277, %s276, 81
        %s279 = smul.addr %s278, 4
        %s280 = scalar_lea.vmem %s0, %s279
        %s281 = smul.u32 41, %s22
        %s282 = smul.u32 41, %s22
        %284 = vst [vmem:[#allocation2] sm:$0xf] 0
        %285 = vst [vmem:[#allocation2 + $0x4] sm:$0xf] 0
        %286 = vst [vmem:[#allocation2 + $0x8] sm:$0xf] 0
        %287 = vst [vmem:[#allocation2 + $0xb0] sm:$0xf] 0
        %288 = vst [vmem:[#allocation2 + $0xb4] sm:$0xf] 0
        %289 = vst [vmem:[#allocation2 + $0xb8] sm:$0xf] 0
        %v290 = vld [vmem:[%s280] sm:$0xf]
        %v291 = vld [vmem:[%s280 + $0x4] sm:$0xf]
        %v292 = vld [vmem:[%s280 + $0x8] sm:$0xf]
        %v293 = vld [vmem:[%s280 + $0xc] sm:$0xf]
        %v294 = vld [vmem:[%s280 + $0x10] sm:$0xf]
        %v295 = vld [vmem:[%s280 + $0x14] sm:$0xf]
        %v296 = vld [vmem:[%s280 + $0x18] sm:$0xf]
        %v297 = vld [vmem:[%s280 + $0x1c] sm:$0xf]
        %v298 = vld [vmem:[%s280 + $0x20] sm:$0xf]
        %v299 = vld [vmem:[%s280 + $0x24] sm:$0xf]
        %v300 = vld [vmem:[%s280 + $0x28] sm:$0xf]
        %v301 = vld [vmem:[%s280 + $0x2c] sm:$0xf]
        %v302 = vld [vmem:[%s280 + $0x30] sm:$0xf]
        %v303 = vld [vmem:[%s280 + $0x34] sm:$0xf]
        %v304 = vld [vmem:[%s280 + $0x38] sm:$0xf]
        %v305 = vld [vmem:[%s280 + $0x3c] sm:$0xf]
        %v306 = vld [vmem:[%s280 + $0x40] sm:$0xf]
        %v307 = vld [vmem:[%s280 + $0x44] sm:$0xf]
        %v308 = vld [vmem:[%s280 + $0x48] sm:$0xf]
        %v309 = vld [vmem:[%s280 + $0x4c] sm:$0xf]
        %v310 = vld [vmem:[%s280 + $0x50] sm:$0xf]
        %v311 = vld [vmem:[%s280 + $0x54] sm:$0xf]
        %v312 = vld [vmem:[%s280 + $0x58] sm:$0xf]
        %v313 = vld [vmem:[%s280 + $0x5c] sm:$0xf]
        %v314 = vld [vmem:[%s280 + $0x60] sm:$0xf]
        %v315 = vld [vmem:[%s280 + $0x64] sm:$0xf]
        %v316 = vld [vmem:[%s280 + $0x68] sm:$0xf]
        %v317 = vld [vmem:[%s280 + $0x6c] sm:$0xf]
        %v318 = vld [vmem:[%s280 + $0x70] sm:$0xf]
        %v319 = vld [vmem:[%s280 + $0x74] sm:$0xf]
        %v320 = vld [vmem:[%s280 + $0x78] sm:$0xf]
        %v321 = vld [vmem:[%s280 + $0x7c] sm:$0xf]
        %v322 = vld [vmem:[%s280 + $0x80] sm:$0xf]
        %v323 = vld [vmem:[%s280 + $0x84] sm:$0xf]
        %v324 = vld [vmem:[%s280 + $0x88] sm:$0xf]
        %v325 = vld [vmem:[%s280 + $0x8c] sm:$0xf]
        %v326 = vld [vmem:[%s280 + $0x90] sm:$0xf]
        %v327 = vld [vmem:[%s280 + $0x94] sm:$0xf]
        %v328 = vld [vmem:[%s280 + $0x98] sm:$0xf]
        %v329 = vld [vmem:[%s280 + $0x9c] sm:$0xf]
        %v330 = vld [vmem:[%s280 + $0xa0] sm:$0xf]
        %v331 = vld [vmem:[#allocation4] sm:$0xf]
        %v332 = vld [vmem:[#allocation4 + $0x4] sm:$0xf]
        %v333 = vld [vmem:[#allocation4 + $0x8] sm:$0xf]
        %v334 = vld [vmem:[#allocation4 + $0xc] sm:$0xf]
        %v335 = vld [vmem:[#allocation4 + $0x10] sm:$0xf]
        %v336 = vld [vmem:[#allocation4 + $0x14] sm:$0xf]
        %v337 = vld [vmem:[#allocation4 + $0x18] sm:$0xf]
        %v338 = vld [vmem:[#allocation4 + $0x1c] sm:$0xf]
        %v339 = vld [vmem:[#allocation4 + $0x20] sm:$0xf]
        %v340 = vld [vmem:[#allocation4 + $0x24] sm:$0xf]
        %v341 = vld [vmem:[#allocation4 + $0x28] sm:$0xf]
        %v342 = vld [vmem:[#allocation4 + $0x2c] sm:$0xf]
        %v343 = vld [vmem:[#allocation4 + $0x30] sm:$0xf]
        %v344 = vld [vmem:[#allocation4 + $0x34] sm:$0xf]
        %v345 = vld [vmem:[#allocation4 + $0x38] sm:$0xf]
        %v346 = vld [vmem:[#allocation4 + $0x3c] sm:$0xf]
        %v347 = vld [vmem:[%s2] sm:$0x1]
        %v349 = vlaneseq
        %v350 = vshrl.u32 %v349, 7
        %v351 = vsub.s32 0, %v350
        %v352 = vrot.slane %v347, %v351
        %v395 = vunpack.c.l.b16 %v290
        %v396 = vunpack.c.l.b16 %v291
        %v397 = vunpack.c.l.b16 %v292
        %v398 = vunpack.c.l.b16 %v293
        %v399 = vunpack.c.l.b16 %v294
        %v400 = vunpack.c.l.b16 %v295
        %v401 = vunpack.c.l.b16 %v296
        %v402 = vunpack.c.l.b16 %v297
        %v403 = vunpack.c.l.b16 %v298
        %v404 = vunpack.c.l.b16 %v299
        %v405 = vunpack.c.l.b16 %v300
        %v406 = vunpack.c.l.b16 %v301
        %v407 = vunpack.c.l.b16 %v302
        %v408 = vunpack.c.l.b16 %v303
        %v409 = vunpack.c.l.b16 %v304
        %v410 = vunpack.c.l.b16 %v305
        %v411 = vunpack.c.l.b16 %v306
        %v412 = vunpack.c.l.b16 %v307
        %v413 = vunpack.c.l.b16 %v308
        %v414 = vunpack.c.l.b16 %v309
        %v415 = vunpack.c.l.b16 %v310
        %v416 = vunpack.c.l.b16 %v311
        %v417 = vunpack.c.l.b16 %v312
        %v418 = vunpack.c.l.b16 %v313
        %v419 = vunpack.c.l.b16 %v314
        %v420 = vunpack.c.l.b16 %v315
        %v421 = vunpack.c.l.b16 %v316
        %v422 = vunpack.c.l.b16 %v317
        %v423 = vunpack.c.l.b16 %v318
        %v424 = vunpack.c.l.b16 %v319
        %v425 = vunpack.c.l.b16 %v320
        %v426 = vunpack.c.l.b16 %v321
        %v427 = vunpack.c.l.b16 %v322
        %v428 = vunpack.c.l.b16 %v323
        %v429 = vunpack.c.l.b16 %v324
        %v430 = vunpack.c.l.b16 %v325
        %v431 = vunpack.c.l.b16 %v326
        %v432 = vunpack.c.l.b16 %v327
        %v433 = vunpack.c.l.b16 %v328
        %v434 = vunpack.c.l.b16 %v329
        %v435 = vunpack.c.l.b16 %v330
        %v436 = vpack.c.b16 %v396, %v395
        %v437 = vpack.c.b16 %v398, %v397
        %v438 = vpack.c.b16 %v400, %v399
        %v439 = vpack.c.b16 %v402, %v401
        %v440 = vpack.c.b16 %v404, %v403
        %v441 = vpack.c.b16 %v406, %v405
        %v442 = vpack.c.b16 %v408, %v407
        %v443 = vpack.c.b16 %v410, %v409
        %v444 = vpack.c.b16 %v412, %v411
        %v445 = vpack.c.b16 %v414, %v413
        %v446 = vpack.c.b16 %v416, %v415
        %v447 = vpack.c.b16 %v418, %v417
        %v448 = vpack.c.b16 %v420, %v419
        %v449 = vpack.c.b16 %v422, %v421
        %v450 = vpack.c.b16 %v424, %v423
        %v451 = vpack.c.b16 %v426, %v425
        %v452 = vpack.c.b16 %v428, %v427
        %v453 = vpack.c.b16 %v430, %v429
        %v454 = vpack.c.b16 %v432, %v431
        %v455 = vpack.c.b16 %v434, %v433
        %v456 = vpack.c.b16 %v435, %v435
        %v494 = vunpack.c.l.b16 %v331
        %v495 = vunpack.c.l.b16 %v332
        %v496 = vunpack.c.l.b16 %v333
        %v497 = vunpack.c.l.b16 %v334
        %v498 = vunpack.c.l.b16 %v335
        %v499 = vunpack.c.l.b16 %v336
        %v500 = vunpack.c.l.b16 %v337
        %v501 = vunpack.c.l.b16 %v338
        %v502 = vunpack.c.l.b16 %v339
        %v503 = vunpack.c.l.b16 %v340
        %v504 = vunpack.c.l.b16 %v341
        %v505 = vunpack.c.l.b16 %v342
        %v506 = vunpack.c.l.b16 %v343
        %v507 = vunpack.c.l.b16 %v344
        %v508 = vunpack.c.l.b16 %v345
        %v509 = vunpack.c.l.b16 %v346
        %v510 = vpack.c.b16 %v495, %v494
        %v511 = vpack.c.b16 %v497, %v496
        %v512 = vpack.c.b16 %v499, %v498
        %v513 = vpack.c.b16 %v501, %v500
        %v514 = vpack.c.b16 %v503, %v502
        %v515 = vpack.c.b16 %v505, %v504
        %v516 = vpack.c.b16 %v507, %v506
        %v517 = vpack.c.b16 %v509, %v508
        %526 = vmatprep.subr.bf16.mxu0 0
        %527 = vmatpush1.bf16.msra.mxu0 %v510
        %528 = vmatprep.subr.bf16.mxu0 0
        %529 = vmatpush1.bf16.msra.mxu0 %v511
        %530 = vmatprep.subr.bf16.mxu0 0
        %531 = vmatpush1.bf16.msra.mxu0 %v512
        %532 = vmatprep.subr.bf16.mxu0 0
        %533 = vmatpush1.bf16.msra.mxu0 %v513
        %534 = vmatprep.subr.bf16.mxu0 0
        %535 = vmatpush1.bf16.msra.mxu0 %v514
        %536 = vmatprep.subr.bf16.mxu0 0
        %537 = vmatpush1.bf16.msra.mxu0 %v515
        %538 = vmatprep.subr.bf16.mxu0 0
        %539 = vmatpush1.bf16.msra.mxu0 %v516
        %540 = vmatprep.subr.bf16.mxu0 0
        %541 = vmatpush1.bf16.msra.mxu0 %v517
        %542 = vmatprep.subr.bf16.mxu0 0
        %543 = vmatpush1.bf16.msra.mxu0 0
        %544 = vmatprep.subr.bf16.mxu0 0
        %545 = vmatpush1.bf16.msra.mxu0 0
        %546 = vmatprep.subr.bf16.mxu0 0
        %547 = vmatpush1.bf16.msra.mxu0 0
        %548 = vmatprep.subr.bf16.mxu0 0
        %549 = vmatpush1.bf16.msra.mxu0 0
        %550 = vmatprep.subr.bf16.mxu0 0
        %551 = vmatpush1.bf16.msra.mxu0 0
        %552 = vmatprep.subr.bf16.mxu0 0
        %553 = vmatpush1.bf16.msra.mxu0 0
        %554 = vmatprep.subr.bf16.mxu0 0
        %555 = vmatpush1.bf16.msra.mxu0 0
        %556 = vmatprep.subr.bf16.mxu0 0
        %557 = vmatpush1.bf16.msra.mxu0 0
        %558 = vmatprep.mubr.bf16.mxu0 0
        %559 = vmatmul.mubr.bf16.gmra.mrb[0].mxu0 %v436
        %v560 = vpop.f32.mrb[0].mxu0
        %v561 = vadd.f32 %v352, %v560
        %v562 = vpop.f32.mrb[0].mxu0
        %v563 = vpop.f32.mrb[0].mxu0
        %v564 = vadd.f32 %v352, %v563
        %v565 = vpop.f32.mrb[0].mxu0
        %566 = vmatprep.mubr.bf16.mxu0 0
        %567 = vmatmul.mubr.bf16.gmra.mrb[0].mxu0 %v437
        %v568 = vpop.f32.mrb[0].mxu0
        %v569 = vadd.f32 %v352, %v568
        %v570 = vpop.f32.mrb[0].mxu0
        %v571 = vpop.f32.mrb[0].mxu0
        %v572 = vadd.f32 %v352, %v571
        %v573 = vpop.f32.mrb[0].mxu0
        %574 = vmatprep.mubr.bf16.mxu0 0
        %575 = vmatmul.mubr.bf16.gmra.mrb[0].mxu0 %v438
        %v576 = vpop.f32.mrb[0].mxu0
        %v577 = vadd.f32 %v352, %v576
        %v578 = vpop.f32.mrb[0].mxu0
        %v579 = vpop.f32.mrb[0].mxu0
        %v580 = vadd.f32 %v352, %v579
        %v581 = vpop.f32.mrb[0].mxu0
        %582 = vmatprep.mubr.bf16.mxu0 0
        %583 = vmatmul.mubr.bf16.gmra.mrb[0].mxu0 %v439
        %v584 = vpop.f32.mrb[0].mxu0
        %v585 = vadd.f32 %v352, %v584
        %v586 = vpop.f32.mrb[0].mxu0
        %v587 = vpop.f32.mrb[0].mxu0
        %v588 = vadd.f32 %v352, %v587
        %v589 = vpop.f32.mrb[0].mxu0
        %590 = vmatprep.mubr.bf16.mxu0 0
        %591 = vmatmul.mubr.bf16.gmra.mrb[0].mxu0 %v440
        %v592 = vpop.f32.mrb[0].mxu0
        %v593 = vadd.f32 %v352, %v592
        %v594 = vpop.f32.mrb[0].mxu0
        %v595 = vpop.f32.mrb[0].mxu0
        %v596 = vadd.f32 %v352, %v595
        %v597 = vpop.f32.mrb[0].mxu0
        %598 = vmatprep.mubr.bf16.mxu0 0
        %599 = vmatmul.mubr.bf16.gmra.mrb[0].mxu0 %v441
        %v600 = vpop.f32.mrb[0].mxu0
        %v601 = vadd.f32 %v352, %v600
        %v602 = vpop.f32.mrb[0].mxu0
        %v603 = vpop.f32.mrb[0].mxu0
        %v604 = vadd.f32 %v352, %v603
        %v605 = vpop.f32.mrb[0].mxu0
        %606 = vmatprep.mubr.bf16.mxu0 0
        %607 = vmatmul.mubr.bf16.gmra.mrb[0].mxu0 %v442
        %v608 = vpop.f32.mrb[0].mxu0
        %v609 = vadd.f32 %v352, %v608
        %v610 = vpop.f32.mrb[0].mxu0
        %v611 = vpop.f32.mrb[0].mxu0
        %v612 = vadd.f32 %v352, %v611
        %v613 = vpop.f32.mrb[0].mxu0
        %614 = vmatprep.mubr.bf16.mxu0 0
        %615 = vmatmul.mubr.bf16.gmra.mrb[0].mxu0 %v443
        %v616 = vpop.f32.mrb[0].mxu0
        %v617 = vadd.f32 %v352, %v616
        %v618 = vpop.f32.mrb[0].mxu0
        %v619 = vpop.f32.mrb[0].mxu0
        %v620 = vadd.f32 %v352, %v619
        %v621 = vpop.f32.mrb[0].mxu0
        %622 = vmatprep.mubr.bf16.mxu0 0
        %623 = vmatmul.mubr.bf16.gmra.mrb[0].mxu0 %v444
        %v624 = vpop.f32.mrb[0].mxu0
        %v625 = vadd.f32 %v352, %v624
        %v626 = vpop.f32.mrb[0].mxu0
        %v627 = vpop.f32.mrb[0].mxu0
        %v628 = vadd.f32 %v352, %v627
        %v629 = vpop.f32.mrb[0].mxu0
        %630 = vmatprep.mubr.bf16.mxu0 0
        %631 = vmatmul.mubr.bf16.gmra.mrb[0].mxu0 %v445
        %v632 = vpop.f32.mrb[0].mxu0
        %v633 = vadd.f32 %v352, %v632
        %v634 = vpop.f32.mrb[0].mxu0
        %v635 = vpop.f32.mrb[0].mxu0
        %v636 = vadd.f32 %v352, %v635
        %v637 = vpop.f32.mrb[0].mxu0
        %638 = vmatprep.mubr.bf16.mxu0 0
        %639 = vmatmul.mubr.bf16.gmra.mrb[0].mxu0 %v446
        %v640 = vpop.f32.mrb[0].mxu0
        %v641 = vadd.f32 %v352, %v640
        %v642 = vpop.f32.mrb[0].mxu0
        %v643 = vpop.f32.mrb[0].mxu0
        %v644 = vadd.f32 %v352, %v643
        %v645 = vpop.f32.mrb[0].mxu0
        %646 = vmatprep.mubr.bf16.mxu0 0
        %647 = vmatmul.mubr.bf16.gmra.mrb[0].mxu0 %v447
        %v648 = vpop.f32.mrb[0].mxu0
        %v649 = vadd.f32 %v352, %v648
        %v650 = vpop.f32.mrb[0].mxu0
        %v651 = vpop.f32.mrb[0].mxu0
        %v652 = vadd.f32 %v352, %v651
        %v653 = vpop.f32.mrb[0].mxu0
        %654 = vmatprep.mubr.bf16.mxu0 0
        %655 = vmatmul.mubr.bf16.gmra.mrb[0].mxu0 %v448
        %v656 = vpop.f32.mrb[0].mxu0
        %v657 = vadd.f32 %v352, %v656
        %v658 = vpop.f32.mrb[0].mxu0
        %v659 = vpop.f32.mrb[0].mxu0
        %v660 = vadd.f32 %v352, %v659
        %v661 = vpop.f32.mrb[0].mxu0
        %662 = vmatprep.mubr.bf16.mxu0 0
        %663 = vmatmul.mubr.bf16.gmra.mrb[0].mxu0 %v449
        %v664 = vpop.f32.mrb[0].mxu0
        %v665 = vadd.f32 %v352, %v664
        %v666 = vpop.f32.mrb[0].mxu0
        %v667 = vpop.f32.mrb[0].mxu0
        %v668 = vadd.f32 %v352, %v667
        %v669 = vpop.f32.mrb[0].mxu0
        %670 = vmatprep.mubr.bf16.mxu0 0
        %671 = vmatmul.mubr.bf16.gmra.mrb[0].mxu0 %v450
        %v672 = vpop.f32.mrb[0].mxu0
        %v673 = vadd.f32 %v352, %v672
        %v674 = vpop.f32.mrb[0].mxu0
        %v675 = vpop.f32.mrb[0].mxu0
        %v676 = vadd.f32 %v352, %v675
        %v677 = vpop.f32.mrb[0].mxu0
        %678 = vmatprep.mubr.bf16.mxu0 0
        %679 = vmatmul.mubr.bf16.gmra.mrb[0].mxu0 %v451
        %v680 = vpop.f32.mrb[0].mxu0
        %v681 = vadd.f32 %v352, %v680
        %v682 = vpop.f32.mrb[0].mxu0
        %v683 = vpop.f32.mrb[0].mxu0
        %v684 = vadd.f32 %v352, %v683
        %v685 = vpop.f32.mrb[0].mxu0
        %686 = vmatprep.mubr.bf16.mxu0 0
        %687 = vmatmul.mubr.bf16.gmra.mrb[0].mxu0 %v452
        %v688 = vpop.f32.mrb[0].mxu0
        %v689 = vadd.f32 %v352, %v688
        %v690 = vpop.f32.mrb[0].mxu0
        %v691 = vpop.f32.mrb[0].mxu0
        %v692 = vadd.f32 %v352, %v691
        %v693 = vpop.f32.mrb[0].mxu0
        %694 = vmatprep.mubr.bf16.mxu0 0
        %695 = vmatmul.mubr.bf16.gmra.mrb[0].mxu0 %v453
        %v696 = vpop.f32.mrb[0].mxu0
        %v697 = vadd.f32 %v352, %v696
        %v698 = vpop.f32.mrb[0].mxu0
        %v699 = vpop.f32.mrb[0].mxu0
        %v700 = vadd.f32 %v352, %v699
        %v701 = vpop.f32.mrb[0].mxu0
        %702 = vmatprep.mubr.bf16.mxu0 0
        %703 = vmatmul.mubr.bf16.gmra.mrb[0].mxu0 %v454
        %v704 = vpop.f32.mrb[0].mxu0
        %v705 = vadd.f32 %v352, %v704
        %v706 = vpop.f32.mrb[0].mxu0
        %v707 = vpop.f32.mrb[0].mxu0
        %v708 = vadd.f32 %v352, %v707
        %v709 = vpop.f32.mrb[0].mxu0
        %710 = vmatprep.mubr.bf16.mxu0 0
        %711 = vmatmul.mubr.bf16.gmra.mrb[0].mxu0 %v455
        %v712 = vpop.f32.mrb[0].mxu0
        %v713 = vadd.f32 %v352, %v712
        %v714 = vpop.f32.mrb[0].mxu0
        %v715 = vpop.f32.mrb[0].mxu0
        %v716 = vadd.f32 %v352, %v715
        %v717 = vpop.f32.mrb[0].mxu0
        %718 = vmatprep.mubr.bf16.mxu0 0
        %719 = vmatmul.mubr.bf16.gmra.mrb[0].mxu0 %v456
        %v720 = vpop.f32.mrb[0].mxu0
        %v721 = vadd.f32 %v352, %v720
        %v722 = vpop.f32.mrb[0].mxu0
        %v723 = vpop.f32.mrb[0].mxu0
        %v724 = vpop.f32.mrb[0].mxu0
        %725 = vdwg.mxu0
        %v726 = vmax.f32 %v561, 0.0
        %v727 = vmax.f32 %v564, 0.0
        %v728 = vmax.f32 %v569, 0.0
        %v729 = vmax.f32 %v572, 0.0
        %v730 = vmax.f32 %v577, 0.0
        %v731 = vmax.f32 %v580, 0.0
        %v732 = vmax.f32 %v585, 0.0
        %v733 = vmax.f32 %v588, 0.0
        %v734 = vmax.f32 %v593, 0.0
        %v735 = vmax.f32 %v596, 0.0
        %v736 = vmax.f32 %v601, 0.0
        %v737 = vmax.f32 %v604, 0.0
        %v738 = vmax.f32 %v609, 0.0
        %v739 = vmax.f32 %v612, 0.0
        %v740 = vmax.f32 %v617, 0.0
        %v741 = vmax.f32 %v620, 0.0
        %v742 = vmax.f32 %v625, 0.0
        %v743 = vmax.f32 %v628, 0.0
        %v744 = vmax.f32 %v633, 0.0
        %v745 = vmax.f32 %v636, 0.0
        %v746 = vmax.f32 %v641, 0.0
        %v747 = vmax.f32 %v644, 0.0
        %v748 = vmax.f32 %v649, 0.0
        %v749 = vmax.f32 %v652, 0.0
        %v750 = vmax.f32 %v657, 0.0
        %v751 = vmax.f32 %v660, 0.0
        %v752 = vmax.f32 %v665, 0.0
        %v753 = vmax.f32 %v668, 0.0
        %v754 = vmax.f32 %v673, 0.0
        %v755 = vmax.f32 %v676, 0.0
        %v756 = vmax.f32 %v681, 0.0
        %v757 = vmax.f32 %v684, 0.0
        %v758 = vmax.f32 %v689, 0.0
        %v759 = vmax.f32 %v692, 0.0
        %v760 = vmax.f32 %v697, 0.0
        %v761 = vmax.f32 %v700, 0.0
        %v762 = vmax.f32 %v705, 0.0
        %v763 = vmax.f32 %v708, 0.0
        %v764 = vmax.f32 %v713, 0.0
        %v765 = vmax.f32 %v716, 0.0
        %v766 = vmax.f32 %v721, 0.0
        %v767 = vld [vmem:[%s5] sm:$0xff]
        %v768 = vld [vmem:[%s5 + $0x8] sm:$0xff]
        %v769 = vld [vmem:[%s5 + $0x10] sm:$0xff]
        %v770 = vld [vmem:[%s5 + $0x18] sm:$0xff]
        %v771 = vld [vmem:[%s5 + $0x20] sm:$0xff]
        %v772 = vld [vmem:[%s5 + $0x28] sm:$0xff]
        %v773 = vld [vmem:[%s5 + $0x30] sm:$0xff]
        %v774 = vld [vmem:[%s5 + $0x38] sm:$0xff]
        %v775 = vld [vmem:[%s5 + $0x40] sm:$0xff]
        %v776 = vld [vmem:[%s5 + $0x48] sm:$0xff]
        %v777 = vld [vmem:[%s5 + $0x50] sm:$0xff]
        %v778 = vld [vmem:[%s5 + $0x58] sm:$0xff]
        %v779 = vld [vmem:[%s5 + $0x60] sm:$0xff]
        %v780 = vld [vmem:[%s5 + $0x68] sm:$0xff]
        %v781 = vld [vmem:[%s5 + $0x70] sm:$0xff]
        %v782 = vld [vmem:[%s5 + $0x78] sm:$0xff]
        %v783 = vld [vmem:[%s5 + $0x80] sm:$0xff]
        %v784 = vld [vmem:[%s5 + $0x88] sm:$0xff]
        %v785 = vld [vmem:[%s5 + $0x90] sm:$0xff]
        %v786 = vld [vmem:[%s5 + $0x98] sm:$0xff]
        %v787 = vld [vmem:[%s5 + $0xa0] sm:$0xff]
        %v788 = vld [vmem:[%s5 + $0xa8] sm:$0xff]
        %v789 = vld [vmem:[%s5 + $0xb0] sm:$0xff]
        %v790 = vld [vmem:[%s5 + $0xb8] sm:$0xff]
        %v791 = vld [vmem:[%s5 + $0xc0] sm:$0xff]
        %v792 = vld [vmem:[%s5 + $0xc8] sm:$0xff]
        %v793 = vld [vmem:[%s5 + $0xd0] sm:$0xff]
        %v794 = vld [vmem:[%s5 + $0xd8] sm:$0xff]
        %v795 = vld [vmem:[%s5 + $0xe0] sm:$0xff]
        %v796 = vld [vmem:[%s5 + $0xe8] sm:$0xff]
        %v797 = vld [vmem:[%s5 + $0xf0] sm:$0xff]
        %v798 = vld [vmem:[%s5 + $0xf8] sm:$0xff]
        %v799 = vld [vmem:[%s5 + $0x100] sm:$0xff]
        %v800 = vld [vmem:[%s5 + $0x108] sm:$0xff]
        %v801 = vld [vmem:[%s5 + $0x110] sm:$0xff]
        %v802 = vld [vmem:[%s5 + $0x118] sm:$0xff]
        %v803 = vld [vmem:[%s5 + $0x120] sm:$0xff]
        %v804 = vld [vmem:[%s5 + $0x128] sm:$0xff]
        %v805 = vld [vmem:[%s5 + $0x130] sm:$0xff]
        %v806 = vld [vmem:[%s5 + $0x138] sm:$0xff]
        %v807 = vld [vmem:[%s5 + $0x140] sm:$0xff]
        %809 = vset.pattern.permute.xlu0 0
        %810 = vperm.xlu0 %809, %v767
        %v811 = vpop.permute.xlu0 %810
        %814 = vset.pattern.permute.xlu0 0
        %815 = vperm.xlu0 %814, %v768
        %v816 = vpop.permute.xlu0 %815
        %819 = vset.pattern.permute.xlu0 0
        %820 = vperm.xlu0 %819, %v769
        %v821 = vpop.permute.xlu0 %820
        %824 = vset.pattern.permute.xlu0 0
        %825 = vperm.xlu0 %824, %v770
        %v826 = vpop.permute.xlu0 %825
        %829 = vset.pattern.permute.xlu0 0
        %830 = vperm.xlu0 %829, %v771
        %v831 = vpop.permute.xlu0 %830
        %834 = vset.pattern.permute.xlu0 0
        %835 = vperm.xlu0 %834, %v772
        %v836 = vpop.permute.xlu0 %835
        %839 = vset.pattern.permute.xlu0 0
        %840 = vperm.xlu0 %839, %v773
        %v841 = vpop.permute.xlu0 %840
        %844 = vset.pattern.permute.xlu0 0
        %845 = vperm.xlu0 %844, %v774
        %v846 = vpop.permute.xlu0 %845
        %849 = vset.pattern.permute.xlu0 0
        %850 = vperm.xlu0 %849, %v775
        %v851 = vpop.permute.xlu0 %850
        %854 = vset.pattern.permute.xlu0 0
        %855 = vperm.xlu0 %854, %v776
        %v856 = vpop.permute.xlu0 %855
        %859 = vset.pattern.permute.xlu0 0
        %860 = vperm.xlu0 %859, %v777
        %v861 = vpop.permute.xlu0 %860
        %864 = vset.pattern.permute.xlu0 0
        %865 = vperm.xlu0 %864, %v778
        %v866 = vpop.permute.xlu0 %865
        %869 = vset.pattern.permute.xlu0 0
        %870 = vperm.xlu0 %869, %v779
        %v871 = vpop.permute.xlu0 %870
        %874 = vset.pattern.permute.xlu0 0
        %875 = vperm.xlu0 %874, %v780
        %v876 = vpop.permute.xlu0 %875
        %879 = vset.pattern.permute.xlu0 0
        %880 = vperm.xlu0 %879, %v781
        %v881 = vpop.permute.xlu0 %880
        %884 = vset.pattern.permute.xlu0 0
        %885 = vperm.xlu0 %884, %v782
        %v886 = vpop.permute.xlu0 %885
        %889 = vset.pattern.permute.xlu0 0
        %890 = vperm.xlu0 %889, %v783
        %v891 = vpop.permute.xlu0 %890
        %894 = vset.pattern.permute.xlu0 0
        %895 = vperm.xlu0 %894, %v784
        %v896 = vpop.permute.xlu0 %895
        %899 = vset.pattern.permute.xlu0 0
        %900 = vperm.xlu0 %899, %v785
        %v901 = vpop.permute.xlu0 %900
        %904 = vset.pattern.permute.xlu0 0
        %905 = vperm.xlu0 %904, %v786
        %v906 = vpop.permute.xlu0 %905
        %909 = vset.pattern.permute.xlu0 0
        %910 = vperm.xlu0 %909, %v787
        %v911 = vpop.permute.xlu0 %910
        %914 = vset.pattern.permute.xlu0 0
        %915 = vperm.xlu0 %914, %v788
        %v916 = vpop.permute.xlu0 %915
        %919 = vset.pattern.permute.xlu0 0
        %920 = vperm.xlu0 %919, %v789
        %v921 = vpop.permute.xlu0 %920
        %924 = vset.pattern.permute.xlu0 0
        %925 = vperm.xlu0 %924, %v790
        %v926 = vpop.permute.xlu0 %925
        %929 = vset.pattern.permute.xlu0 0
        %930 = vperm.xlu0 %929, %v791
        %v931 = vpop.permute.xlu0 %930
        %934 = vset.pattern.permute.xlu0 0
        %935 = vperm.xlu0 %934, %v792
        %v936 = vpop.permute.xlu0 %935
        %939 = vset.pattern.permute.xlu0 0
        %940 = vperm.xlu0 %939, %v793
        %v941 = vpop.permute.xlu0 %940
        %944 = vset.pattern.permute.xlu0 0
        %945 = vperm.xlu0 %944, %v794
        %v946 = vpop.permute.xlu0 %945
        %949 = vset.pattern.permute.xlu0 0
        %950 = vperm.xlu0 %949, %v795
        %v951 = vpop.permute.xlu0 %950
        %954 = vset.pattern.permute.xlu0 0
        %955 = vperm.xlu0 %954, %v796
        %v956 = vpop.permute.xlu0 %955
        %959 = vset.pattern.permute.xlu0 0
        %960 = vperm.xlu0 %959, %v797
        %v961 = vpop.permute.xlu0 %960
        %964 = vset.pattern.permute.xlu0 0
        %965 = vperm.xlu0 %964, %v798
        %v966 = vpop.permute.xlu0 %965
        %969 = vset.pattern.permute.xlu0 0
        %970 = vperm.xlu0 %969, %v799
        %v971 = vpop.permute.xlu0 %970
        %974 = vset.pattern.permute.xlu0 0
        %975 = vperm.xlu0 %974, %v800
        %v976 = vpop.permute.xlu0 %975
        %979 = vset.pattern.permute.xlu0 0
        %980 = vperm.xlu0 %979, %v801
        %v981 = vpop.permute.xlu0 %980
        %984 = vset.pattern.permute.xlu0 0
        %985 = vperm.xlu0 %984, %v802
        %v986 = vpop.permute.xlu0 %985
        %989 = vset.pattern.permute.xlu0 0
        %990 = vperm.xlu0 %989, %v803
        %v991 = vpop.permute.xlu0 %990
        %994 = vset.pattern.permute.xlu0 0
        %995 = vperm.xlu0 %994, %v804
        %v996 = vpop.permute.xlu0 %995
        %999 = vset.pattern.permute.xlu0 0
        %1000 = vperm.xlu0 %999, %v805
        %v1001 = vpop.permute.xlu0 %1000
        %1004 = vset.pattern.permute.xlu0 0
        %1005 = vperm.xlu0 %1004, %v806
        %v1006 = vpop.permute.xlu0 %1005
        %1009 = vset.pattern.permute.xlu0 0
        %1010 = vperm.xlu0 %1009, %v807
        %v1011 = vpop.permute.xlu0 %1010
        %v1013 = vmul.f32 %v726, %v811
        %v1014 = vmul.f32 %v727, %v816
        %v1015 = vmul.f32 %v728, %v821
        %v1016 = vmul.f32 %v729, %v826
        %v1017 = vmul.f32 %v730, %v831
        %v1018 = vmul.f32 %v731, %v836
        %v1019 = vmul.f32 %v732, %v841
        %v1020 = vmul.f32 %v733, %v846
        %v1021 = vmul.f32 %v734, %v851
        %v1022 = vmul.f32 %v735, %v856
        %v1023 = vmul.f32 %v736, %v861
        %v1024 = vmul.f32 %v737, %v866
        %v1025 = vmul.f32 %v738, %v871
        %v1026 = vmul.f32 %v739, %v876
        %v1027 = vmul.f32 %v740, %v881
        %v1028 = vmul.f32 %v741, %v886
        %v1029 = vmul.f32 %v742, %v891
        %v1030 = vmul.f32 %v743, %v896
        %v1031 = vmul.f32 %v744, %v901
        %v1032 = vmul.f32 %v745, %v906
        %v1033 = vmul.f32 %v746, %v911
        %v1034 = vmul.f32 %v747, %v916
        %v1035 = vmul.f32 %v748, %v921
        %v1036 = vmul.f32 %v749, %v926
        %v1037 = vmul.f32 %v750, %v931
        %v1038 = vmul.f32 %v751, %v936
        %v1039 = vmul.f32 %v752, %v941
        %v1040 = vmul.f32 %v753, %v946
        %v1041 = vmul.f32 %v754, %v951
        %v1042 = vmul.f32 %v755, %v956
        %v1043 = vmul.f32 %v756, %v961
        %v1044 = vmul.f32 %v757, %v966
        %v1045 = vmul.f32 %v758, %v971
        %v1046 = vmul.f32 %v759, %v976
        %v1047 = vmul.f32 %v760, %v981
        %v1048 = vmul.f32 %v761, %v986
        %v1049 = vmul.f32 %v762, %v991
        %v1050 = vmul.f32 %v763, %v996
        %v1051 = vmul.f32 %v764, %v1001
        %v1052 = vmul.f32 %v765, %v1006
        %v1053 = vmul.f32 %v766, %v1011
        %v1054 = vpack.c.bf16 %v1014, %v1013
        %v1055 = vpack.c.bf16 %v1016, %v1015
        %v1056 = vpack.c.bf16 %v1018, %v1017
        %v1057 = vpack.c.bf16 %v1020, %v1019
        %v1058 = vpack.c.bf16 %v1022, %v1021
        %v1059 = vpack.c.bf16 %v1024, %v1023
        %v1060 = vpack.c.bf16 %v1026, %v1025
        %v1061 = vpack.c.bf16 %v1028, %v1027
        %v1062 = vpack.c.bf16 %v1030, %v1029
        %v1063 = vpack.c.bf16 %v1032, %v1031
        %v1064 = vpack.c.bf16 %v1034, %v1033
        %v1065 = vpack.c.bf16 %v1036, %v1035
        %v1066 = vpack.c.bf16 %v1038, %v1037
        %v1067 = vpack.c.bf16 %v1040, %v1039
        %v1068 = vpack.c.bf16 %v1042, %v1041
        %v1069 = vpack.c.bf16 %v1044, %v1043
        %v1070 = vpack.c.bf16 %v1046, %v1045
        %v1071 = vpack.c.bf16 %v1048, %v1047
        %v1072 = vpack.c.bf16 %v1050, %v1049
        %v1073 = vpack.c.bf16 %v1052, %v1051
        %v1074 = vpack.c.bf16 %v1053, %v1053
        %v1096 = vunpack.c.l.b16 %v1054
        %v1097 = vunpack.c.h.b16 %v1054
        %v1098 = vunpack.c.l.b16 %v1055
        %v1099 = vunpack.c.h.b16 %v1055
        %v1100 = vunpack.c.l.b16 %v1056
        %v1101 = vunpack.c.h.b16 %v1056
        %v1102 = vunpack.c.l.b16 %v1057
        %v1103 = vunpack.c.h.b16 %v1057
        %v1104 = vunpack.c.l.b16 %v1058
        %v1105 = vunpack.c.h.b16 %v1058
        %v1106 = vunpack.c.l.b16 %v1059
        %v1107 = vunpack.c.h.b16 %v1059
        %v1108 = vunpack.c.l.b16 %v1060
        %v1109 = vunpack.c.h.b16 %v1060
        %v1110 = vunpack.c.l.b16 %v1061
        %v1111 = vunpack.c.h.b16 %v1061
        %v1112 = vunpack.c.l.b16 %v1062
        %v1113 = vunpack.c.h.b16 %v1062
        %v1114 = vunpack.c.l.b16 %v1063
        %v1115 = vunpack.c.h.b16 %v1063
        %v1116 = vunpack.c.l.b16 %v1064
        %v1117 = vunpack.c.h.b16 %v1064
        %v1118 = vunpack.c.l.b16 %v1065
        %v1119 = vunpack.c.h.b16 %v1065
        %v1120 = vunpack.c.l.b16 %v1066
        %v1121 = vunpack.c.h.b16 %v1066
        %v1122 = vunpack.c.l.b16 %v1067
        %v1123 = vunpack.c.h.b16 %v1067
        %v1124 = vunpack.c.l.b16 %v1068
        %v1125 = vunpack.c.h.b16 %v1068
        %v1126 = vunpack.c.l.b16 %v1069
        %v1127 = vunpack.c.h.b16 %v1069
        %v1128 = vunpack.c.l.b16 %v1070
        %v1129 = vunpack.c.h.b16 %v1070
        %v1130 = vunpack.c.l.b16 %v1071
        %v1131 = vunpack.c.h.b16 %v1071
        %v1132 = vunpack.c.l.b16 %v1072
        %v1133 = vunpack.c.h.b16 %v1072
        %v1134 = vunpack.c.l.b16 %v1073
        %v1135 = vunpack.c.h.b16 %v1073
        %v1136 = vunpack.c.l.b16 %v1074
        %v1137 = vpack.c.b16 %v1096, %v1096
        %v1138 = vpack.c.b16 %v1097, %v1097
        %v1139 = vpack.c.b16 %v1098, %v1098
        %v1140 = vpack.c.b16 %v1099, %v1099
        %v1141 = vpack.c.b16 %v1100, %v1100
        %v1142 = vpack.c.b16 %v1101, %v1101
        %v1143 = vpack.c.b16 %v1102, %v1102
        %v1144 = vpack.c.b16 %v1103, %v1103
        %v1145 = vpack.c.b16 %v1104, %v1104
        %v1146 = vpack.c.b16 %v1105, %v1105
        %v1147 = vpack.c.b16 %v1106, %v1106
        %v1148 = vpack.c.b16 %v1107, %v1107
        %v1149 = vpack.c.b16 %v1108, %v1108
        %v1150 = vpack.c.b16 %v1109, %v1109
        %v1151 = vpack.c.b16 %v1110, %v1110
        %v1152 = vpack.c.b16 %v1111, %v1111
        %v1153 = vpack.c.b16 %v1112, %v1112
        %v1154 = vpack.c.b16 %v1113, %v1113
        %v1155 = vpack.c.b16 %v1114, %v1114
        %v1156 = vpack.c.b16 %v1115, %v1115
        %v1157 = vpack.c.b16 %v1116, %v1116
        %v1158 = vpack.c.b16 %v1117, %v1117
        %v1159 = vpack.c.b16 %v1118, %v1118
        %v1160 = vpack.c.b16 %v1119, %v1119
        %v1161 = vpack.c.b16 %v1120, %v1120
        %v1162 = vpack.c.b16 %v1121, %v1121
        %v1163 = vpack.c.b16 %v1122, %v1122
        %v1164 = vpack.c.b16 %v1123, %v1123
        %v1165 = vpack.c.b16 %v1124, %v1124
        %v1166 = vpack.c.b16 %v1125, %v1125
        %v1167 = vpack.c.b16 %v1126, %v1126
        %v1168 = vpack.c.b16 %v1127, %v1127
        %v1169 = vpack.c.b16 %v1128, %v1128
        %v1170 = vpack.c.b16 %v1129, %v1129
        %v1171 = vpack.c.b16 %v1130, %v1130
        %v1172 = vpack.c.b16 %v1131, %v1131
        %v1173 = vpack.c.b16 %v1132, %v1132
        %v1174 = vpack.c.b16 %v1133, %v1133
        %v1175 = vpack.c.b16 %v1134, %v1134
        %v1176 = vpack.c.b16 %v1135, %v1135
        %v1177 = vpack.c.b16 %v1136, %v1136
        %1219 = vst [vmem:[#allocation2 + $0xc] sm:$0xf] %v1137
        %1220 = vst [vmem:[#allocation2 + $0x10] sm:$0xf] %v1138
        %1221 = vst [vmem:[#allocation2 + $0x14] sm:$0xf] %v1139
        %1222 = vst [vmem:[#allocation2 + $0x18] sm:$0xf] %v1140
        %1223 = vst [vmem:[#allocation2 + $0x1c] sm:$0xf] %v1141
        %1224 = vst [vmem:[#allocation2 + $0x20] sm:$0xf] %v1142
        %1225 = vst [vmem:[#allocation2 + $0x24] sm:$0xf] %v1143
        %1226 = vst [vmem:[#allocation2 + $0x28] sm:$0xf] %v1144
        %1227 = vst [vmem:[#allocation2 + $0x2c] sm:$0xf] %v1145
        %1228 = vst [vmem:[#allocation2 + $0x30] sm:$0xf] %v1146
        %1229 = vst [vmem:[#allocation2 + $0x34] sm:$0xf] %v1147
        %1230 = vst [vmem:[#allocation2 + $0x38] sm:$0xf] %v1148
        %1231 = vst [vmem:[#allocation2 + $0x3c] sm:$0xf] %v1149
        %1232 = vst [vmem:[#allocation2 + $0x40] sm:$0xf] %v1150
        %1233 = vst [vmem:[#allocation2 + $0x44] sm:$0xf] %v1151
        %1234 = vst [vmem:[#allocation2 + $0x48] sm:$0xf] %v1152
        %1235 = vst [vmem:[#allocation2 + $0x4c] sm:$0xf] %v1153
        %1236 = vst [vmem:[#allocation2 + $0x50] sm:$0xf] %v1154
        %1237 = vst [vmem:[#allocation2 + $0x54] sm:$0xf] %v1155
        %1238 = vst [vmem:[#allocation2 + $0x58] sm:$0xf] %v1156
        %1239 = vst [vmem:[#allocation2 + $0x5c] sm:$0xf] %v1157
        %1240 = vst [vmem:[#allocation2 + $0x60] sm:$0xf] %v1158
        %1241 = vst [vmem:[#allocation2 + $0x64] sm:$0xf] %v1159
        %1242 = vst [vmem:[#allocation2 + $0x68] sm:$0xf] %v1160
        %1243 = vst [vmem:[#allocation2 + $0x6c] sm:$0xf] %v1161
        %1244 = vst [vmem:[#allocation2 + $0x70] sm:$0xf] %v1162
        %1245 = vst [vmem:[#allocation2 + $0x74] sm:$0xf] %v1163
        %1246 = vst [vmem:[#allocation2 + $0x78] sm:$0xf] %v1164
        %1247 = vst [vmem:[#allocation2 + $0x7c] sm:$0xf] %v1165
        %1248 = vst [vmem:[#allocation2 + $0x80] sm:$0xf] %v1166
        %1249 = vst [vmem:[#allocation2 + $0x84] sm:$0xf] %v1167
        %1250 = vst [vmem:[#allocation2 + $0x88] sm:$0xf] %v1168
        %1251 = vst [vmem:[#allocation2 + $0x8c] sm:$0xf] %v1169
        %1252 = vst [vmem:[#allocation2 + $0x90] sm:$0xf] %v1170
        %1253 = vst [vmem:[#allocation2 + $0x94] sm:$0xf] %v1171
        %1254 = vst [vmem:[#allocation2 + $0x98] sm:$0xf] %v1172
        %1255 = vst [vmem:[#allocation2 + $0x9c] sm:$0xf] %v1173
        %1256 = vst [vmem:[#allocation2 + $0xa0] sm:$0xf] %v1174
        %1257 = vst [vmem:[#allocation2 + $0xa4] sm:$0xf] %v1175
        %1258 = vst [vmem:[#allocation2 + $0xa8] sm:$0xf] %v1176
        %1259 = vst [vmem:[#allocation2 + $0xac] sm:$0xf] %v1177
        %v1260 = vld [vmem:[#allocation2] sm:$0xc]
        %v1261 = vld [vmem:[#allocation2 + $0x4] sm:$0xf]
        %v1262 = vld [vmem:[#allocation2 + $0x8] sm:$0xf]
        %v1263 = vld [vmem:[#allocation2 + $0xc] sm:$0xf]
        %v1264 = vld [vmem:[#allocation2 + $0x10] sm:$0xf]
        %v1265 = vld [vmem:[#allocation2 + $0x14] sm:$0xf]
        %v1266 = vld [vmem:[#allocation2 + $0x18] sm:$0xf]
        %v1267 = vld [vmem:[#allocation2 + $0x1c] sm:$0xf]
        %v1268 = vld [vmem:[#allocation2 + $0x20] sm:$0xf]
        %v1269 = vld [vmem:[#allocation2 + $0x24] sm:$0xf]
        %v1270 = vld [vmem:[#allocation2 + $0x28] sm:$0xf]
        %v1271 = vld [vmem:[#allocation2 + $0x2c] sm:$0xf]
        %v1272 = vld [vmem:[#allocation2 + $0x30] sm:$0xf]
        %v1273 = vld [vmem:[#allocation2 + $0x34] sm:$0xf]
        %v1274 = vld [vmem:[#allocation2 + $0x38] sm:$0xf]
        %v1275 = vld [vmem:[#allocation2 + $0x3c] sm:$0xf]
        %v1276 = vld [vmem:[#allocation2 + $0x40] sm:$0xf]
        %v1277 = vld [vmem:[#allocation2 + $0x44] sm:$0xf]
        %v1278 = vld [vmem:[#allocation2 + $0x48] sm:$0xf]
        %v1279 = vld [vmem:[#allocation2 + $0x4c] sm:$0xf]
        %v1280 = vld [vmem:[#allocation2 + $0x50] sm:$0xf]
        %v1281 = vld [vmem:[#allocation2 + $0x54] sm:$0xf]
        %v1282 = vld [vmem:[#allocation2 + $0x58] sm:$0xf]
        %v1283 = vld [vmem:[#allocation2 + $0x5c] sm:$0xf]
        %v1284 = vld [vmem:[#allocation2 + $0x60] sm:$0xf]
        %v1285 = vld [vmem:[#allocation2 + $0x64] sm:$0xf]
        %v1286 = vld [vmem:[#allocation2 + $0x68] sm:$0xf]
        %v1287 = vld [vmem:[#allocation2 + $0x6c] sm:$0xf]
        %v1288 = vld [vmem:[#allocation2 + $0x70] sm:$0xf]
        %v1289 = vld [vmem:[#allocation2 + $0x74] sm:$0xf]
        %v1290 = vld [vmem:[#allocation2 + $0x78] sm:$0xf]
        %v1291 = vld [vmem:[#allocation2 + $0x7c] sm:$0xf]
        %v1292 = vld [vmem:[#allocation2 + $0x80] sm:$0xf]
        %v1293 = vld [vmem:[#allocation2 + $0x84] sm:$0xf]
        %v1294 = vld [vmem:[#allocation2 + $0x88] sm:$0xf]
        %v1295 = vld [vmem:[#allocation2 + $0x8c] sm:$0xf]
        %v1296 = vld [vmem:[#allocation2 + $0x90] sm:$0xf]
        %v1297 = vld [vmem:[#allocation2 + $0x94] sm:$0xf]
        %v1298 = vld [vmem:[#allocation2 + $0x98] sm:$0xf]
        %v1299 = vld [vmem:[#allocation2 + $0x9c] sm:$0xf]
        %v1300 = vld [vmem:[#allocation2 + $0xa0] sm:$0xf]
        %v1301 = vld [vmem:[#allocation2 + $0xa4] sm:$0x7]
        %v1302 = vld [vmem:[#allocation7] sm:$0xf]
        %v1303 = vld [vmem:[#allocation7 + $0x4] sm:$0xf]
        %v1304 = vld [vmem:[#allocation7 + $0x8] sm:$0xf]
        %v1305 = vld [vmem:[#allocation7 + $0xc] sm:$0xf]
        %v1306 = vld [vmem:[#allocation7 + $0x10] sm:$0xf]
        %v1307 = vld [vmem:[#allocation7 + $0x14] sm:$0xf]
        %v1308 = vld [vmem:[#allocation7 + $0x18] sm:$0xf]
        %v1309 = vld [vmem:[#allocation7 + $0x1c] sm:$0xf]
        %v1310 = vld [vmem:[#allocation7 + $0x20] sm:$0xf]
        %v1311 = vld [vmem:[#allocation7 + $0x24] sm:$0xf]
        %v1312 = vld [vmem:[#allocation7 + $0x28] sm:$0xf]
        %v1313 = vld [vmem:[#allocation7 + $0x2c] sm:$0xf]
        %v1314 = vld [vmem:[#allocation7 + $0x30] sm:$0xf]
        %v1315 = vld [vmem:[#allocation7 + $0x34] sm:$0xf]
        %v1316 = vld [vmem:[#allocation7 + $0x38] sm:$0xf]
        %v1317 = vld [vmem:[#allocation7 + $0x3c] sm:$0xf]
        %v1360 = vunpack.c.l.b16 %v1260
        %v1361 = vunpack.c.l.b16 %v1261
        %v1362 = vunpack.c.l.b16 %v1262
        %v1363 = vunpack.c.l.b16 %v1263
        %v1364 = vunpack.c.l.b16 %v1264
        %v1365 = vunpack.c.l.b16 %v1265
        %v1366 = vunpack.c.l.b16 %v1266
        %v1367 = vunpack.c.l.b16 %v1267
        %v1368 = vunpack.c.l.b16 %v1268
        %v1369 = vunpack.c.l.b16 %v1269
        %v1370 = vunpack.c.l.b16 %v1270
        %v1371 = vunpack.c.l.b16 %v1271
        %v1372 = vunpack.c.l.b16 %v1272
        %v1373 = vunpack.c.l.b16 %v1273
        %v1374 = vunpack.c.l.b16 %v1274
        %v1375 = vunpack.c.l.b16 %v1275
        %v1376 = vunpack.c.l.b16 %v1276
        %v1377 = vunpack.c.l.b16 %v1277
        %v1378 = vunpack.c.l.b16 %v1278
        %v1379 = vunpack.c.l.b16 %v1279
        %v1380 = vunpack.c.l.b16 %v1280
        %v1381 = vunpack.c.l.b16 %v1281
        %v1382 = vunpack.c.l.b16 %v1282
        %v1383 = vunpack.c.l.b16 %v1283
        %v1384 = vunpack.c.l.b16 %v1284
        %v1385 = vunpack.c.l.b16 %v1285
        %v1386 = vunpack.c.l.b16 %v1286
        %v1387 = vunpack.c.l.b16 %v1287
        %v1388 = vunpack.c.l.b16 %v1288
        %v1389 = vunpack.c.l.b16 %v1289
        %v1390 = vunpack.c.l.b16 %v1290
        %v1391 = vunpack.c.l.b16 %v1291
        %v1392 = vunpack.c.l.b16 %v1292
        %v1393 = vunpack.c.l.b16 %v1293
        %v1394 = vunpack.c.l.b16 %v1294
        %v1395 = vunpack.c.l.b16 %v1295
        %v1396 = vunpack.c.l.b16 %v1296
        %v1397 = vunpack.c.l.b16 %v1297
        %v1398 = vunpack.c.l.b16 %v1298
        %v1399 = vunpack.c.l.b16 %v1299
        %v1400 = vunpack.c.l.b16 %v1300
        %v1401 = vunpack.c.l.b16 %v1301
        %v1402 = vpack.c.b16 %v1361, %v1360
        %v1403 = vpack.c.b16 %v1363, %v1362
        %v1404 = vpack.c.b16 %v1365, %v1364
        %v1405 = vpack.c.b16 %v1367, %v1366
        %v1406 = vpack.c.b16 %v1369, %v1368
        %v1407 = vpack.c.b16 %v1371, %v1370
        %v1408 = vpack.c.b16 %v1373, %v1372
        %v1409 = vpack.c.b16 %v1375, %v1374
        %v1410 = vpack.c.b16 %v1377, %v1376
        %v1411 = vpack.c.b16 %v1379, %v1378
        %v1412 = vpack.c.b16 %v1381, %v1380
        %v1413 = vpack.c.b16 %v1383, %v1382
        %v1414 = vpack.c.b16 %v1385, %v1384
        %v1415 = vpack.c.b16 %v1387, %v1386
        %v1416 = vpack.c.b16 %v1389, %v1388
        %v1417 = vpack.c.b16 %v1391, %v1390
        %v1418 = vpack.c.b16 %v1393, %v1392
        %v1419 = vpack.c.b16 %v1395, %v1394
        %v1420 = vpack.c.b16 %v1397, %v1396
        %v1421 = vpack.c.b16 %v1399, %v1398
        %v1422 = vpack.c.b16 %v1401, %v1400
        %vm1423 = vsmask.f32 5376
        %v1425 = vshrl.u32 %v1402, 16
        %v1427 = vrot.slane %v1425, 2
        %v1428 = vshll.u32 %v1402, 16
        %v1430 = vrot.slane %v1428, 3
        %v1431 = vor.u32 %v1427, %v1430
        %v1433 = vshrl.u32 %v1403, 16
        %v1435 = vrot.slane %v1433, 2
        %v1436 = vshll.u32 %v1403, 16
        %v1438 = vrot.slane %v1436, 3
        %v1439 = vor.u32 %v1435, %v1438
        %v1440 = vsel %vm1423, %v1431, %v1439
        %v1442 = vshrl.u32 %v1404, 16
        %v1444 = vrot.slane %v1442, 2
        %v1445 = vshll.u32 %v1404, 16
        %v1447 = vrot.slane %v1445, 3
        %v1448 = vor.u32 %v1444, %v1447
        %v1449 = vsel %vm1423, %v1439, %v1448
        %v1451 = vshrl.u32 %v1405, 16
        %v1453 = vrot.slane %v1451, 2
        %v1454 = vshll.u32 %v1405, 16
        %v1456 = vrot.slane %v1454, 3
        %v1457 = vor.u32 %v1453, %v1456
        %v1458 = vsel %vm1423, %v1448, %v1457
        %v1460 = vshrl.u32 %v1406, 16
        %v1462 = vrot.slane %v1460, 2
        %v1463 = vshll.u32 %v1406, 16
        %v1465 = vrot.slane %v1463, 3
        %v1466 = vor.u32 %v1462, %v1465
        %v1467 = vsel %vm1423, %v1457, %v1466
        %v1469 = vshrl.u32 %v1407, 16
        %v1471 = vrot.slane %v1469, 2
        %v1472 = vshll.u32 %v1407, 16
        %v1474 = vrot.slane %v1472, 3
        %v1475 = vor.u32 %v1471, %v1474
        %v1476 = vsel %vm1423, %v1466, %v1475
        %v1478 = vshrl.u32 %v1408, 16
        %v1480 = vrot.slane %v1478, 2
        %v1481 = vshll.u32 %v1408, 16
        %v1483 = vrot.slane %v1481, 3
        %v1484 = vor.u32 %v1480, %v1483
        %v1485 = vsel %vm1423, %v1475, %v1484
        %v1487 = vshrl.u32 %v1409, 16
        %v1489 = vrot.slane %v1487, 2
        %v1490 = vshll.u32 %v1409, 16
        %v1492 = vrot.slane %v1490, 3
        %v1493 = vor.u32 %v1489, %v1492
        %v1494 = vsel %vm1423, %v1484, %v1493
        %v1496 = vshrl.u32 %v1410, 16
        %v1498 = vrot.slane %v1496, 2
        %v1499 = vshll.u32 %v1410, 16
        %v1501 = vrot.slane %v1499, 3
        %v1502 = vor.u32 %v1498, %v1501
        %v1503 = vsel %vm1423, %v1493, %v1502
        %v1505 = vshrl.u32 %v1411, 16
        %v1507 = vrot.slane %v1505, 2
        %v1508 = vshll.u32 %v1411, 16
        %v1510 = vrot.slane %v1508, 3
        %v1511 = vor.u32 %v1507, %v1510
        %v1512 = vsel %vm1423, %v1502, %v1511
        %v1514 = vshrl.u32 %v1412, 16
        %v1516 = vrot.slane %v1514, 2
        %v1517 = vshll.u32 %v1412, 16
        %v1519 = vrot.slane %v1517, 3
        %v1520 = vor.u32 %v1516, %v1519
        %v1521 = vsel %vm1423, %v1511, %v1520
        %v1523 = vshrl.u32 %v1413, 16
        %v1525 = vrot.slane %v1523, 2
        %v1526 = vshll.u32 %v1413, 16
        %v1528 = vrot.slane %v1526, 3
        %v1529 = vor.u32 %v1525, %v1528
        %v1530 = vsel %vm1423, %v1520, %v1529
        %v1532 = vshrl.u32 %v1414, 16
        %v1534 = vrot.slane %v1532, 2
        %v1535 = vshll.u32 %v1414, 16
        %v1537 = vrot.slane %v1535, 3
        %v1538 = vor.u32 %v1534, %v1537
        %v1539 = vsel %vm1423, %v1529, %v1538
        %v1541 = vshrl.u32 %v1415, 16
        %v1543 = vrot.slane %v1541, 2
        %v1544 = vshll.u32 %v1415, 16
        %v1546 = vrot.slane %v1544, 3
        %v1547 = vor.u32 %v1543, %v1546
        %v1548 = vsel %vm1423, %v1538, %v1547
        %v1550 = vshrl.u32 %v1416, 16
        %v1552 = vrot.slane %v1550, 2
        %v1553 = vshll.u32 %v1416, 16
        %v1555 = vrot.slane %v1553, 3
        %v1556 = vor.u32 %v1552, %v1555
        %v1557 = vsel %vm1423, %v1547, %v1556
        %v1559 = vshrl.u32 %v1417, 16
        %v1561 = vrot.slane %v1559, 2
        %v1562 = vshll.u32 %v1417, 16
        %v1564 = vrot.slane %v1562, 3
        %v1565 = vor.u32 %v1561, %v1564
        %v1566 = vsel %vm1423, %v1556, %v1565
        %v1568 = vshrl.u32 %v1418, 16
        %v1570 = vrot.slane %v1568, 2
        %v1571 = vshll.u32 %v1418, 16
        %v1573 = vrot.slane %v1571, 3
        %v1574 = vor.u32 %v1570, %v1573
        %v1575 = vsel %vm1423, %v1565, %v1574
        %v1577 = vshrl.u32 %v1419, 16
        %v1579 = vrot.slane %v1577, 2
        %v1580 = vshll.u32 %v1419, 16
        %v1582 = vrot.slane %v1580, 3
        %v1583 = vor.u32 %v1579, %v1582
        %v1584 = vsel %vm1423, %v1574, %v1583
        %v1586 = vshrl.u32 %v1420, 16
        %v1588 = vrot.slane %v1586, 2
        %v1589 = vshll.u32 %v1420, 16
        %v1591 = vrot.slane %v1589, 3
        %v1592 = vor.u32 %v1588, %v1591
        %v1593 = vsel %vm1423, %v1583, %v1592
        %v1595 = vshrl.u32 %v1421, 16
        %v1597 = vrot.slane %v1595, 2
        %v1598 = vshll.u32 %v1421, 16
        %v1600 = vrot.slane %v1598, 3
        %v1601 = vor.u32 %v1597, %v1600
        %v1602 = vsel %vm1423, %v1592, %v1601
        %v1604 = vshrl.u32 %v1422, 16
        %v1606 = vrot.slane %v1604, 2
        %v1607 = vshll.u32 %v1422, 16
        %v1609 = vrot.slane %v1607, 3
        %v1610 = vor.u32 %v1606, %v1609
        %v1611 = vsel %vm1423, %v1601, %v1610
        %v1649 = vunpack.c.l.b16 %v1302
        %v1650 = vunpack.c.l.b16 %v1303
        %v1651 = vunpack.c.l.b16 %v1304
        %v1652 = vunpack.c.l.b16 %v1305
        %v1653 = vunpack.c.l.b16 %v1306
        %v1654 = vunpack.c.l.b16 %v1307
        %v1655 = vunpack.c.l.b16 %v1308
        %v1656 = vunpack.c.l.b16 %v1309
        %v1657 = vunpack.c.l.b16 %v1310
        %v1658 = vunpack.c.l.b16 %v1311
        %v1659 = vunpack.c.l.b16 %v1312
        %v1660 = vunpack.c.l.b16 %v1313
        %v1661 = vunpack.c.l.b16 %v1314
        %v1662 = vunpack.c.l.b16 %v1315
        %v1663 = vunpack.c.l.b16 %v1316
        %v1664 = vunpack.c.l.b16 %v1317
        %v1665 = vpack.c.b16 %v1650, %v1649
        %v1666 = vpack.c.b16 %v1652, %v1651
        %v1667 = vpack.c.b16 %v1654, %v1653
        %v1668 = vpack.c.b16 %v1656, %v1655
        %v1669 = vpack.c.b16 %v1658, %v1657
        %v1670 = vpack.c.b16 %v1660, %v1659
        %v1671 = vpack.c.b16 %v1662, %v1661
        %v1672 = vpack.c.b16 %v1664, %v1663
        %1681 = vmatprep.subr.bf16.mxu0 0
        %1682 = vmatpush1.bf16.msra.mxu0 %v1665
        %1683 = vmatprep.subr.bf16.mxu0 0
        %1684 = vmatpush1.bf16.msra.mxu0 %v1666
        %1685 = vmatprep.subr.bf16.mxu0 0
        %1686 = vmatpush1.bf16.msra.mxu0 %v1667
        %1687 = vmatprep.subr.bf16.mxu0 0
        %1688 = vmatpush1.bf16.msra.mxu0 %v1668
        %1689 = vmatprep.subr.bf16.mxu0 0
        %1690 = vmatpush1.bf16.msra.mxu0 %v1669
        %1691 = vmatprep.subr.bf16.mxu0 0
        %1692 = vmatpush1.bf16.msra.mxu0 %v1670
        %1693 = vmatprep.subr.bf16.mxu0 0
        %1694 = vmatpush1.bf16.msra.mxu0 %v1671
        %1695 = vmatprep.subr.bf16.mxu0 0
        %1696 = vmatpush1.bf16.msra.mxu0 %v1672
        %1697 = vmatprep.subr.bf16.mxu0 0
        %1698 = vmatpush1.bf16.msra.mxu0 0
        %1699 = vmatprep.subr.bf16.mxu0 0
        %1700 = vmatpush1.bf16.msra.mxu0 0
        %1701 = vmatprep.subr.bf16.mxu0 0
        %1702 = vmatpush1.bf16.msra.mxu0 0
        %1703 = vmatprep.subr.bf16.mxu0 0
        %1704 = vmatpush1.bf16.msra.mxu0 0
        %1705 = vmatprep.subr.bf16.mxu0 0
        %1706 = vmatpush1.bf16.msra.mxu0 0
        %1707 = vmatprep.subr.bf16.mxu0 0
        %1708 = vmatpush1.bf16.msra.mxu0 0
        %1709 = vmatprep.subr.bf16.mxu0 0
        %1710 = vmatpush1.bf16.msra.mxu0 0
        %1711 = vmatprep.subr.bf16.mxu0 0
        %1712 = vmatpush1.bf16.msra.mxu0 0
        %1713 = vmatprep.mubr.bf16.mxu0 0
        %1714 = vmatmul.mubr.bf16.gmra.mrb[0].mxu0 %v1440
        %v1715 = vpop.f32.mrb[0].mxu0
        %v1716 = vadd.f32 0.0, %v1715
        %v1717 = vpop.f32.mrb[0].mxu0
        %v1718 = vpop.f32.mrb[0].mxu0
        %v1719 = vadd.f32 0.0, %v1718
        %v1720 = vpop.f32.mrb[0].mxu0
        %1721 = vmatprep.mubr.bf16.mxu0 0
        %1722 = vmatmul.mubr.bf16.gmra.mrb[0].mxu0 %v1449
        %v1723 = vpop.f32.mrb[0].mxu0
        %v1724 = vadd.f32 0.0, %v1723
        %v1725 = vpop.f32.mrb[0].mxu0
        %v1726 = vpop.f32.mrb[0].mxu0
        %v1727 = vadd.f32 0.0, %v1726
        %v1728 = vpop.f32.mrb[0].mxu0
        %1729 = vmatprep.mubr.bf16.mxu0 0
        %1730 = vmatmul.mubr.bf16.gmra.mrb[0].mxu0 %v1458
        %v1731 = vpop.f32.mrb[0].mxu0
        %v1732 = vadd.f32 0.0, %v1731
        %v1733 = vpop.f32.mrb[0].mxu0
        %v1734 = vpop.f32.mrb[0].mxu0
        %v1735 = vadd.f32 0.0, %v1734
        %v1736 = vpop.f32.mrb[0].mxu0
        %1737 = vmatprep.mubr.bf16.mxu0 0
        %1738 = vmatmul.mubr.bf16.gmra.mrb[0].mxu0 %v1467
        %v1739 = vpop.f32.mrb[0].mxu0
        %v1740 = vadd.f32 0.0, %v1739
        %v1741 = vpop.f32.mrb[0].mxu0
        %v1742 = vpop.f32.mrb[0].mxu0
        %v1743 = vadd.f32 0.0, %v1742
        %v1744 = vpop.f32.mrb[0].mxu0
        %1745 = vmatprep.mubr.bf16.mxu0 0
        %1746 = vmatmul.mubr.bf16.gmra.mrb[0].mxu0 %v1476
        %v1747 = vpop.f32.mrb[0].mxu0
        %v1748 = vadd.f32 0.0, %v1747
        %v1749 = vpop.f32.mrb[0].mxu0
        %v1750 = vpop.f32.mrb[0].mxu0
        %v1751 = vadd.f32 0.0, %v1750
        %v1752 = vpop.f32.mrb[0].mxu0
        %1753 = vmatprep.mubr.bf16.mxu0 0
        %1754 = vmatmul.mubr.bf16.gmra.mrb[0].mxu0 %v1485
        %v1755 = vpop.f32.mrb[0].mxu0
        %v1756 = vadd.f32 0.0, %v1755
        %v1757 = vpop.f32.mrb[0].mxu0
        %v1758 = vpop.f32.mrb[0].mxu0
        %v1759 = vadd.f32 0.0, %v1758
        %v1760 = vpop.f32.mrb[0].mxu0
        %1761 = vmatprep.mubr.bf16.mxu0 0
        %1762 = vmatmul.mubr.bf16.gmra.mrb[0].mxu0 %v1494
        %v1763 = vpop.f32.mrb[0].mxu0
        %v1764 = vadd.f32 0.0, %v1763
        %v1765 = vpop.f32.mrb[0].mxu0
        %v1766 = vpop.f32.mrb[0].mxu0
        %v1767 = vadd.f32 0.0, %v1766
        %v1768 = vpop.f32.mrb[0].mxu0
        %1769 = vmatprep.mubr.bf16.mxu0 0
        %1770 = vmatmul.mubr.bf16.gmra.mrb[0].mxu0 %v1503
        %v1771 = vpop.f32.mrb[0].mxu0
        %v1772 = vadd.f32 0.0, %v1771
        %v1773 = vpop.f32.mrb[0].mxu0
        %v1774 = vpop.f32.mrb[0].mxu0
        %v1775 = vadd.f32 0.0, %v1774
        %v1776 = vpop.f32.mrb[0].mxu0
        %1777 = vmatprep.mubr.bf16.mxu0 0
        %1778 = vmatmul.mubr.bf16.gmra.mrb[0].mxu0 %v1512
        %v1779 = vpop.f32.mrb[0].mxu0
        %v1780 = vadd.f32 0.0, %v1779
        %v1781 = vpop.f32.mrb[0].mxu0
        %v1782 = vpop.f32.mrb[0].mxu0
        %v1783 = vadd.f32 0.0, %v1782
        %v1784 = vpop.f32.mrb[0].mxu0
        %1785 = vmatprep.mubr.bf16.mxu0 0
        %1786 = vmatmul.mubr.bf16.gmra.mrb[0].mxu0 %v1521
        %v1787 = vpop.f32.mrb[0].mxu0
        %v1788 = vadd.f32 0.0, %v1787
        %v1789 = vpop.f32.mrb[0].mxu0
        %v1790 = vpop.f32.mrb[0].mxu0
        %v1791 = vadd.f32 0.0, %v1790
        %v1792 = vpop.f32.mrb[0].mxu0
        %1793 = vmatprep.mubr.bf16.mxu0 0
        %1794 = vmatmul.mubr.bf16.gmra.mrb[0].mxu0 %v1530
        %v1795 = vpop.f32.mrb[0].mxu0
        %v1796 = vadd.f32 0.0, %v1795
        %v1797 = vpop.f32.mrb[0].mxu0
        %v1798 = vpop.f32.mrb[0].mxu0
        %v1799 = vadd.f32 0.0, %v1798
        %v1800 = vpop.f32.mrb[0].mxu0
        %1801 = vmatprep.mubr.bf16.mxu0 0
        %1802 = vmatmul.mubr.bf16.gmra.mrb[0].mxu0 %v1539
        %v1803 = vpop.f32.mrb[0].mxu0
        %v1804 = vadd.f32 0.0, %v1803
        %v1805 = vpop.f32.mrb[0].mxu0
        %v1806 = vpop.f32.mrb[0].mxu0
        %v1807 = vadd.f32 0.0, %v1806
        %v1808 = vpop.f32.mrb[0].mxu0
        %1809 = vmatprep.mubr.bf16.mxu0 0
        %1810 = vmatmul.mubr.bf16.gmra.mrb[0].mxu0 %v1548
        %v1811 = vpop.f32.mrb[0].mxu0
        %v1812 = vadd.f32 0.0, %v1811
        %v1813 = vpop.f32.mrb[0].mxu0
        %v1814 = vpop.f32.mrb[0].mxu0
        %v1815 = vadd.f32 0.0, %v1814
        %v1816 = vpop.f32.mrb[0].mxu0
        %1817 = vmatprep.mubr.bf16.mxu0 0
        %1818 = vmatmul.mubr.bf16.gmra.mrb[0].mxu0 %v1557
        %v1819 = vpop.f32.mrb[0].mxu0
        %v1820 = vadd.f32 0.0, %v1819
        %v1821 = vpop.f32.mrb[0].mxu0
        %v1822 = vpop.f32.mrb[0].mxu0
        %v1823 = vadd.f32 0.0, %v1822
        %v1824 = vpop.f32.mrb[0].mxu0
        %1825 = vmatprep.mubr.bf16.mxu0 0
        %1826 = vmatmul.mubr.bf16.gmra.mrb[0].mxu0 %v1566
        %v1827 = vpop.f32.mrb[0].mxu0
        %v1828 = vadd.f32 0.0, %v1827
        %v1829 = vpop.f32.mrb[0].mxu0
        %v1830 = vpop.f32.mrb[0].mxu0
        %v1831 = vadd.f32 0.0, %v1830
        %v1832 = vpop.f32.mrb[0].mxu0
        %1833 = vmatprep.mubr.bf16.mxu0 0
        %1834 = vmatmul.mubr.bf16.gmra.mrb[0].mxu0 %v1575
        %v1835 = vpop.f32.mrb[0].mxu0
        %v1836 = vadd.f32 0.0, %v1835
        %v1837 = vpop.f32.mrb[0].mxu0
        %v1838 = vpop.f32.mrb[0].mxu0
        %v1839 = vadd.f32 0.0, %v1838
        %v1840 = vpop.f32.mrb[0].mxu0
        %1841 = vmatprep.mubr.bf16.mxu0 0
        %1842 = vmatmul.mubr.bf16.gmra.mrb[0].mxu0 %v1584
        %v1843 = vpop.f32.mrb[0].mxu0
        %v1844 = vadd.f32 0.0, %v1843
        %v1845 = vpop.f32.mrb[0].mxu0
        %v1846 = vpop.f32.mrb[0].mxu0
        %v1847 = vadd.f32 0.0, %v1846
        %v1848 = vpop.f32.mrb[0].mxu0
        %1849 = vmatprep.mubr.bf16.mxu0 0
        %1850 = vmatmul.mubr.bf16.gmra.mrb[0].mxu0 %v1593
        %v1851 = vpop.f32.mrb[0].mxu0
        %v1852 = vadd.f32 0.0, %v1851
        %v1853 = vpop.f32.mrb[0].mxu0
        %v1854 = vpop.f32.mrb[0].mxu0
        %v1855 = vadd.f32 0.0, %v1854
        %v1856 = vpop.f32.mrb[0].mxu0
        %1857 = vmatprep.mubr.bf16.mxu0 0
        %1858 = vmatmul.mubr.bf16.gmra.mrb[0].mxu0 %v1602
        %v1859 = vpop.f32.mrb[0].mxu0
        %v1860 = vadd.f32 0.0, %v1859
        %v1861 = vpop.f32.mrb[0].mxu0
        %v1862 = vpop.f32.mrb[0].mxu0
        %v1863 = vadd.f32 0.0, %v1862
        %v1864 = vpop.f32.mrb[0].mxu0
        %1865 = vmatprep.mubr.bf16.mxu0 0
        %1866 = vmatmul.mubr.bf16.gmra.mrb[0].mxu0 %v1611
        %v1867 = vpop.f32.mrb[0].mxu0
        %v1868 = vadd.f32 0.0, %v1867
        %v1869 = vpop.f32.mrb[0].mxu0
        %v1870 = vpop.f32.mrb[0].mxu0
        %v1871 = vadd.f32 0.0, %v1870
        %v1872 = vpop.f32.mrb[0].mxu0
        %1873 = vmatprep.mubr.bf16.mxu0 0
        %1874 = vmatmul.mubr.bf16.gmra.mrb[0].mxu0 %v1610
        %v1875 = vpop.f32.mrb[0].mxu0
        %v1876 = vadd.f32 0.0, %v1875
        %v1877 = vpop.f32.mrb[0].mxu0
        %v1878 = vpop.f32.mrb[0].mxu0
        %v1879 = vpop.f32.mrb[0].mxu0
        %1880 = vdwg.mxu0
        %1881 = vst [vmem:[#allocation3] sm:$0xff] %v1716
        %1882 = vst [vmem:[#allocation3 + $0x8] sm:$0xff] %v1719
        %1883 = vst [vmem:[#allocation3 + $0x10] sm:$0xff] %v1724
        %1884 = vst [vmem:[#allocation3 + $0x18] sm:$0xff] %v1727
        %1885 = vst [vmem:[#allocation3 + $0x20] sm:$0xff] %v1732
        %1886 = vst [vmem:[#allocation3 + $0x28] sm:$0xff] %v1735
        %1887 = vst [vmem:[#allocation3 + $0x30] sm:$0xff] %v1740
        %1888 = vst [vmem:[#allocation3 + $0x38] sm:$0xff] %v1743
        %1889 = vst [vmem:[#allocation3 + $0x40] sm:$0xff] %v1748
        %1890 = vst [vmem:[#allocation3 + $0x48] sm:$0xff] %v1751
        %1891 = vst [vmem:[#allocation3 + $0x50] sm:$0xff] %v1756
        %1892 = vst [vmem:[#allocation3 + $0x58] sm:$0xff] %v1759
        %1893 = vst [vmem:[#allocation3 + $0x60] sm:$0xff] %v1764
        %1894 = vst [vmem:[#allocation3 + $0x68] sm:$0xff] %v1767
        %1895 = vst [vmem:[#allocation3 + $0x70] sm:$0xff] %v1772
        %1896 = vst [vmem:[#allocation3 + $0x78] sm:$0xff] %v1775
        %1897 = vst [vmem:[#allocation3 + $0x80] sm:$0xff] %v1780
        %1898 = vst [vmem:[#allocation3 + $0x88] sm:$0xff] %v1783
        %1899 = vst [vmem:[#allocation3 + $0x90] sm:$0xff] %v1788
        %1900 = vst [vmem:[#allocation3 + $0x98] sm:$0xff] %v1791
        %1901 = vst [vmem:[#allocation3 + $0xa0] sm:$0xff] %v1796
        %1902 = vst [vmem:[#allocation3 + $0xa8] sm:$0xff] %v1799
        %1903 = vst [vmem:[#allocation3 + $0xb0] sm:$0xff] %v1804
        %1904 = vst [vmem:[#allocation3 + $0xb8] sm:$0xff] %v1807
        %1905 = vst [vmem:[#allocation3 + $0xc0] sm:$0xff] %v1812
        %1906 = vst [vmem:[#allocation3 + $0xc8] sm:$0xff] %v1815
        %1907 = vst [vmem:[#allocation3 + $0xd0] sm:$0xff] %v1820
        %1908 = vst [vmem:[#allocation3 + $0xd8] sm:$0xff] %v1823
        %1909 = vst [vmem:[#allocation3 + $0xe0] sm:$0xff] %v1828
        %1910 = vst [vmem:[#allocation3 + $0xe8] sm:$0xff] %v1831
        %1911 = vst [vmem:[#allocation3 + $0xf0] sm:$0xff] %v1836
        %1912 = vst [vmem:[#allocation3 + $0xf8] sm:$0xff] %v1839
        %1913 = vst [vmem:[#allocation3 + $0x100] sm:$0xff] %v1844
        %1914 = vst [vmem:[#allocation3 + $0x108] sm:$0xff] %v1847
        %1915 = vst [vmem:[#allocation3 + $0x110] sm:$0xff] %v1852
        %1916 = vst [vmem:[#allocation3 + $0x118] sm:$0xff] %v1855
        %1917 = vst [vmem:[#allocation3 + $0x120] sm:$0xff] %v1860
        %1918 = vst [vmem:[#allocation3 + $0x128] sm:$0xff] %v1863
        %1919 = vst [vmem:[#allocation3 + $0x130] sm:$0xff] %v1868
        %1920 = vst [vmem:[#allocation3 + $0x138] sm:$0xff] %v1871
        %1921 = vst [vmem:[#allocation3 + $0x140] sm:$0xff] %v1876
        %v1922 = vld [vmem:[#allocation2] sm:$0x8]
        %v1923 = vld [vmem:[#allocation2 + $0x4] sm:$0xf]
        %v1924 = vld [vmem:[#allocation2 + $0x8] sm:$0xf]
        %v1925 = vld [vmem:[#allocation2 + $0xc] sm:$0xf]
        %v1926 = vld [vmem:[#allocation2 + $0x10] sm:$0xf]
        %v1927 = vld [vmem:[#allocation2 + $0x14] sm:$0xf]
        %v1928 = vld [vmem:[#allocation2 + $0x18] sm:$0xf]
        %v1929 = vld [vmem:[#allocation2 + $0x1c] sm:$0xf]
        %v1930 = vld [vmem:[#allocation2 + $0x20] sm:$0xf]
        %v1931 = vld [vmem:[#allocation2 + $0x24] sm:$0xf]
        %v1932 = vld [vmem:[#allocation2 + $0x28] sm:$0xf]
        %v1933 = vld [vmem:[#allocation2 + $0x2c] sm:$0xf]
        %v1934 = vld [vmem:[#allocation2 + $0x30] sm:$0xf]
        %v1935 = vld [vmem:[#allocation2 + $0x34] sm:$0xf]
        %v1936 = vld [vmem:[#allocation2 + $0x38] sm:$0xf]
        %v1937 = vld [vmem:[#allocation2 + $0x3c] sm:$0xf]
        %v1938 = vld [vmem:[#allocation2 + $0x40] sm:$0xf]
        %v1939 = vld [vmem:[#allocation2 + $0x44] sm:$0xf]
        %v1940 = vld [vmem:[#allocation2 + $0x48] sm:$0xf]
        %v1941 = vld [vmem:[#allocation2 + $0x4c] sm:$0xf]
        %v1942 = vld [vmem:[#allocation2 + $0x50] sm:$0xf]
        %v1943 = vld [vmem:[#allocation2 + $0x54] sm:$0xf]
        %v1944 = vld [vmem:[#allocation2 + $0x58] sm:$0xf]
        %v1945 = vld [vmem:[#allocation2 + $0x5c] sm:$0xf]
        %v1946 = vld [vmem:[#allocation2 + $0x60] sm:$0xf]
        %v1947 = vld [vmem:[#allocation2 + $0x64] sm:$0xf]
        %v1948 = vld [vmem:[#allocation2 + $0x68] sm:$0xf]
        %v1949 = vld [vmem:[#allocation2 + $0x6c] sm:$0xf]
        %v1950 = vld [vmem:[#allocation2 + $0x70] sm:$0xf]
        %v1951 = vld [vmem:[#allocation2 + $0x74] sm:$0xf]
        %v1952 = vld [vmem:[#allocation2 + $0x78] sm:$0xf]
        %v1953 = vld [vmem:[#allocation2 + $0x7c] sm:$0xf]
        %v1954 = vld [vmem:[#allocation2 + $0x80] sm:$0xf]
        %v1955 = vld [vmem:[#allocation2 + $0x84] sm:$0xf]
        %v1956 = vld [vmem:[#allocation2 + $0x88] sm:$0xf]
        %v1957 = vld [vmem:[#allocation2 + $0x8c] sm:$0xf]
        %v1958 = vld [vmem:[#allocation2 + $0x90] sm:$0xf]
        %v1959 = vld [vmem:[#allocation2 + $0x94] sm:$0xf]
        %v1960 = vld [vmem:[#allocation2 + $0x98] sm:$0xf]
        %v1961 = vld [vmem:[#allocation2 + $0x9c] sm:$0xf]
        %v1962 = vld [vmem:[#allocation2 + $0xa0] sm:$0xf]
        %v1963 = vld [vmem:[#allocation2 + $0xa4] sm:$0x7]
        %s1964 = scalar_lea.vmem [#allocation7], 64
        %v1965 = vld [vmem:[%s1964] sm:$0xf]
        %v1966 = vld [vmem:[%s1964 + $0x4] sm:$0xf]
        %v1967 = vld [vmem:[%s1964 + $0x8] sm:$0xf]
        %v1968 = vld [vmem:[%s1964 + $0xc] sm:$0xf]
        %v1969 = vld [vmem:[%s1964 + $0x10] sm:$0xf]
        %v1970 = vld [vmem:[%s1964 + $0x14] sm:$0xf]
        %v1971 = vld [vmem:[%s1964 + $0x18] sm:$0xf]
        %v1972 = vld [vmem:[%s1964 + $0x1c] sm:$0xf]
        %v1973 = vld [vmem:[%s1964 + $0x20] sm:$0xf]
        %v1974 = vld [vmem:[%s1964 + $0x24] sm:$0xf]
        %v1975 = vld [vmem:[%s1964 + $0x28] sm:$0xf]
        %v1976 = vld [vmem:[%s1964 + $0x2c] sm:$0xf]
        %v1977 = vld [vmem:[%s1964 + $0x30] sm:$0xf]
        %v1978 = vld [vmem:[%s1964 + $0x34] sm:$0xf]
        %v1979 = vld [vmem:[%s1964 + $0x38] sm:$0xf]
        %v1980 = vld [vmem:[%s1964 + $0x3c] sm:$0xf]
        %v2023 = vunpack.c.l.b16 %v1922
        %v2024 = vunpack.c.l.b16 %v1923
        %v2025 = vunpack.c.l.b16 %v1924
        %v2026 = vunpack.c.l.b16 %v1925
        %v2027 = vunpack.c.l.b16 %v1926
        %v2028 = vunpack.c.l.b16 %v1927
        %v2029 = vunpack.c.l.b16 %v1928
        %v2030 = vunpack.c.l.b16 %v1929
        %v2031 = vunpack.c.l.b16 %v1930
        %v2032 = vunpack.c.l.b16 %v1931
        %v2033 = vunpack.c.l.b16 %v1932
        %v2034 = vunpack.c.l.b16 %v1933
        %v2035 = vunpack.c.l.b16 %v1934
        %v2036 = vunpack.c.l.b16 %v1935
        %v2037 = vunpack.c.l.b16 %v1936
        %v2038 = vunpack.c.l.b16 %v1937
        %v2039 = vunpack.c.l.b16 %v1938
        %v2040 = vunpack.c.l.b16 %v1939
        %v2041 = vunpack.c.l.b16 %v1940
        %v2042 = vunpack.c.l.b16 %v1941
        %v2043 = vunpack.c.l.b16 %v1942
        %v2044 = vunpack.c.l.b16 %v1943
        %v2045 = vunpack.c.l.b16 %v1944
        %v2046 = vunpack.c.l.b16 %v1945
        %v2047 = vunpack.c.l.b16 %v1946
        %v2048 = vunpack.c.l.b16 %v1947
        %v2049 = vunpack.c.l.b16 %v1948
        %v2050 = vunpack.c.l.b16 %v1949
        %v2051 = vunpack.c.l.b16 %v1950
        %v2052 = vunpack.c.l.b16 %v1951
        %v2053 = vunpack.c.l.b16 %v1952
        %v2054 = vunpack.c.l.b16 %v1953
        %v2055 = vunpack.c.l.b16 %v1954
        %v2056 = vunpack.c.l.b16 %v1955
        %v2057 = vunpack.c.l.b16 %v1956
        %v2058 = vunpack.c.l.b16 %v1957
        %v2059 = vunpack.c.l.b16 %v1958
        %v2060 = vunpack.c.l.b16 %v1959
        %v2061 = vunpack.c.l.b16 %v1960
        %v2062 = vunpack.c.l.b16 %v1961
        %v2063 = vunpack.c.l.b16 %v1962
        %v2064 = vunpack.c.l.b16 %v1963
        %v2065 = vpack.c.b16 %v2024, %v2023
        %v2066 = vpack.c.b16 %v2026, %v2025
        %v2067 = vpack.c.b16 %v2028, %v2027
        %v2068 = vpack.c.b16 %v2030, %v2029
        %v2069 = vpack.c.b16 %v2032, %v2031
        %v2070 = vpack.c.b16 %v2034, %v2033
        %v2071 = vpack.c.b16 %v2036, %v2035
        %v2072 = vpack.c.b16 %v2038, %v2037
        %v2073 = vpack.c.b16 %v2040, %v2039
        %v2074 = vpack.c.b16 %v2042, %v2041
        %v2075 = vpack.c.b16 %v2044, %v2043
        %v2076 = vpack.c.b16 %v2046, %v2045
        %v2077 = vpack.c.b16 %v2048, %v2047
        %v2078 = vpack.c.b16 %v2050, %v2049
        %v2079 = vpack.c.b16 %v2052, %v2051
        %v2080 = vpack.c.b16 %v2054, %v2053
        %v2081 = vpack.c.b16 %v2056, %v2055
        %v2082 = vpack.c.b16 %v2058, %v2057
        %v2083 = vpack.c.b16 %v2060, %v2059
        %v2084 = vpack.c.b16 %v2062, %v2061
        %v2085 = vpack.c.b16 %v2064, %v2063
        %vm2086 = vcmask 1044480
        %v2087 = vrot.slane %v2065, 3
        %v2088 = vrot.slane %v2066, 3
        %v2089 = vsel %vm2086, %v2087, %v2088
        %v2090 = vrot.slane %v2067, 3
        %v2091 = vsel %vm2086, %v2088, %v2090
        %v2092 = vrot.slane %v2068, 3
        %v2093 = vsel %vm2086, %v2090, %v2092
        %v2094 = vrot.slane %v2069, 3
        %v2095 = vsel %vm2086, %v2092, %v2094
        %v2096 = vrot.slane %v2070, 3
        %v2097 = vsel %vm2086, %v2094, %v2096
        %v2098 = vrot.slane %v2071, 3
        %v2099 = vsel %vm2086, %v2096, %v2098
        %v2100 = vrot.slane %v2072, 3
        %v2101 = vsel %vm2086, %v2098, %v2100
        %v2102 = vrot.slane %v2073, 3
        %v2103 = vsel %vm2086, %v2100, %v2102
        %v2104 = vrot.slane %v2074, 3
        %v2105 = vsel %vm2086, %v2102, %v2104
        %v2106 = vrot.slane %v2075, 3
        %v2107 = vsel %vm2086, %v2104, %v2106
        %v2108 = vrot.slane %v2076, 3
        %v2109 = vsel %vm2086, %v2106, %v2108
        %v2110 = vrot.slane %v2077, 3
        %v2111 = vsel %vm2086, %v2108, %v2110
        %v2112 = vrot.slane %v2078, 3
        %v2113 = vsel %vm2086, %v2110, %v2112
        %v2114 = vrot.slane %v2079, 3
        %v2115 = vsel %vm2086, %v2112, %v2114
        %v2116 = vrot.slane %v2080, 3
        %v2117 = vsel %vm2086, %v2114, %v2116
        %v2118 = vrot.slane %v2081, 3
        %v2119 = vsel %vm2086, %v2116, %v2118
        %v2120 = vrot.slane %v2082, 3
        %v2121 = vsel %vm2086, %v2118, %v2120
        %v2122 = vrot.slane %v2083, 3
        %v2123 = vsel %vm2086, %v2120, %v2122
        %v2124 = vrot.slane %v2084, 3
        %v2125 = vsel %vm2086, %v2122, %v2124
        %v2126 = vrot.slane %v2085, 3
        %v2127 = vsel %vm2086, %v2124, %v2126
        %v2165 = vunpack.c.l.b16 %v1965
        %v2166 = vunpack.c.l.b16 %v1966
        %v2167 = vunpack.c.l.b16 %v1967
        %v2168 = vunpack.c.l.b16 %v1968
        %v2169 = vunpack.c.l.b16 %v1969
        %v2170 = vunpack.c.l.b16 %v1970
        %v2171 = vunpack.c.l.b16 %v1971
        %v2172 = vunpack.c.l.b16 %v1972
        %v2173 = vunpack.c.l.b16 %v1973
        %v2174 = vunpack.c.l.b16 %v1974
        %v2175 = vunpack.c.l.b16 %v1975
        %v2176 = vunpack.c.l.b16 %v1976
        %v2177 = vunpack.c.l.b16 %v1977
        %v2178 = vunpack.c.l.b16 %v1978
        %v2179 = vunpack.c.l.b16 %v1979
        %v2180 = vunpack.c.l.b16 %v1980
        %v2181 = vpack.c.b16 %v2166, %v2165
        %v2182 = vpack.c.b16 %v2168, %v2167
        %v2183 = vpack.c.b16 %v2170, %v2169
        %v2184 = vpack.c.b16 %v2172, %v2171
        %v2185 = vpack.c.b16 %v2174, %v2173
        %v2186 = vpack.c.b16 %v2176, %v2175
        %v2187 = vpack.c.b16 %v2178, %v2177
        %v2188 = vpack.c.b16 %v2180, %v2179
        %2197 = vmatprep.subr.bf16.mxu0 0
        %2198 = vmatpush1.bf16.msra.mxu0 %v2181
        %2199 = vmatprep.subr.bf16.mxu0 0
        %2200 = vmatpush1.bf16.msra.mxu0 %v2182
        %2201 = vmatprep.subr.bf16.mxu0 0
        %2202 = vmatpush1.bf16.msra.mxu0 %v2183
        %2203 = vmatprep.subr.bf16.mxu0 0
        %2204 = vmatpush1.bf16.msra.mxu0 %v2184
        %2205 = vmatprep.subr.bf16.mxu0 0
        %2206 = vmatpush1.bf16.msra.mxu0 %v2185
        %2207 = vmatprep.subr.bf16.mxu0 0
        %2208 = vmatpush1.bf16.msra.mxu0 %v2186
        %2209 = vmatprep.subr.bf16.mxu0 0
        %2210 = vmatpush1.bf16.msra.mxu0 %v2187
        %2211 = vmatprep.subr.bf16.mxu0 0
        %2212 = vmatpush1.bf16.msra.mxu0 %v2188
        %2213 = vmatprep.subr.bf16.mxu0 0
        %2214 = vmatpush1.bf16.msra.mxu0 0
        %2215 = vmatprep.subr.bf16.mxu0 0
        %2216 = vmatpush1.bf16.msra.mxu0 0
        %2217 = vmatprep.subr.bf16.mxu0 0
        %2218 = vmatpush1.bf16.msra.mxu0 0
        %2219 = vmatprep.subr.bf16.mxu0 0
        %2220 = vmatpush1.bf16.msra.mxu0 0
        %2221 = vmatprep.subr.bf16.mxu0 0
        %2222 = vmatpush1.bf16.msra.mxu0 0
        %2223 = vmatprep.subr.bf16.mxu0 0
        %2224 = vmatpush1.bf16.msra.mxu0 0
        %2225 = vmatprep.subr.bf16.mxu0 0
        %2226 = vmatpush1.bf16.msra.mxu0 0
        %2227 = vmatprep.subr.bf16.mxu0 0
        %2228 = vmatpush1.bf16.msra.mxu0 0
        %2229 = vmatprep.mubr.bf16.mxu0 0
        %2230 = vmatmul.mubr.bf16.gmra.mrb[0].mxu0 %v2089
        %v2231 = vpop.f32.mrb[0].mxu0
        %v2232 = vadd.f32 0.0, %v2231
        %v2233 = vpop.f32.mrb[0].mxu0
        %v2234 = vpop.f32.mrb[0].mxu0
        %v2235 = vadd.f32 0.0, %v2234
        %v2236 = vpop.f32.mrb[0].mxu0
        %2237 = vmatprep.mubr.bf16.mxu0 0
        %2238 = vmatmul.mubr.bf16.gmra.mrb[0].mxu0 %v2091
        %v2239 = vpop.f32.mrb[0].mxu0
        %v2240 = vadd.f32 0.0, %v2239
        %v2241 = vpop.f32.mrb[0].mxu0
        %v2242 = vpop.f32.mrb[0].mxu0
        %v2243 = vadd.f32 0.0, %v2242
        %v2244 = vpop.f32.mrb[0].mxu0
        %2245 = vmatprep.mubr.bf16.mxu0 0
        %2246 = vmatmul.mubr.bf16.gmra.mrb[0].mxu0 %v2093
        %v2247 = vpop.f32.mrb[0].mxu0
        %v2248 = vadd.f32 0.0, %v2247
        %v2249 = vpop.f32.mrb[0].mxu0
        %v2250 = vpop.f32.mrb[0].mxu0
        %v2251 = vadd.f32 0.0, %v2250
        %v2252 = vpop.f32.mrb[0].mxu0
        %2253 = vmatprep.mubr.bf16.mxu0 0
        %2254 = vmatmul.mubr.bf16.gmra.mrb[0].mxu0 %v2095
        %v2255 = vpop.f32.mrb[0].mxu0
        %v2256 = vadd.f32 0.0, %v2255
        %v2257 = vpop.f32.mrb[0].mxu0
        %v2258 = vpop.f32.mrb[0].mxu0
        %v2259 = vadd.f32 0.0, %v2258
        %v2260 = vpop.f32.mrb[0].mxu0
        %2261 = vmatprep.mubr.bf16.mxu0 0
        %2262 = vmatmul.mubr.bf16.gmra.mrb[0].mxu0 %v2097
        %v2263 = vpop.f32.mrb[0].mxu0
        %v2264 = vadd.f32 0.0, %v2263
        %v2265 = vpop.f32.mrb[0].mxu0
        %v2266 = vpop.f32.mrb[0].mxu0
        %v2267 = vadd.f32 0.0, %v2266
        %v2268 = vpop.f32.mrb[0].mxu0
        %2269 = vmatprep.mubr.bf16.mxu0 0
        %2270 = vmatmul.mubr.bf16.gmra.mrb[0].mxu0 %v2099
        %v2271 = vpop.f32.mrb[0].mxu0
        %v2272 = vadd.f32 0.0, %v2271
        %v2273 = vpop.f32.mrb[0].mxu0
        %v2274 = vpop.f32.mrb[0].mxu0
        %v2275 = vadd.f32 0.0, %v2274
        %v2276 = vpop.f32.mrb[0].mxu0
        %2277 = vmatprep.mubr.bf16.mxu0 0
        %2278 = vmatmul.mubr.bf16.gmra.mrb[0].mxu0 %v2101
        %v2279 = vpop.f32.mrb[0].mxu0
        %v2280 = vadd.f32 0.0, %v2279
        %v2281 = vpop.f32.mrb[0].mxu0
        %v2282 = vpop.f32.mrb[0].mxu0
        %v2283 = vadd.f32 0.0, %v2282
        %v2284 = vpop.f32.mrb[0].mxu0
        %2285 = vmatprep.mubr.bf16.mxu0 0
        %2286 = vmatmul.mubr.bf16.gmra.mrb[0].mxu0 %v2103
        %v2287 = vpop.f32.mrb[0].mxu0
        %v2288 = vadd.f32 0.0, %v2287
        %v2289 = vpop.f32.mrb[0].mxu0
        %v2290 = vpop.f32.mrb[0].mxu0
        %v2291 = vadd.f32 0.0, %v2290
        %v2292 = vpop.f32.mrb[0].mxu0
        %2293 = vmatprep.mubr.bf16.mxu0 0
        %2294 = vmatmul.mubr.bf16.gmra.mrb[0].mxu0 %v2105
        %v2295 = vpop.f32.mrb[0].mxu0
        %v2296 = vadd.f32 0.0, %v2295
        %v2297 = vpop.f32.mrb[0].mxu0
        %v2298 = vpop.f32.mrb[0].mxu0
        %v2299 = vadd.f32 0.0, %v2298
        %v2300 = vpop.f32.mrb[0].mxu0
        %2301 = vmatprep.mubr.bf16.mxu0 0
        %2302 = vmatmul.mubr.bf16.gmra.mrb[0].mxu0 %v2107
        %v2303 = vpop.f32.mrb[0].mxu0
        %v2304 = vadd.f32 0.0, %v2303
        %v2305 = vpop.f32.mrb[0].mxu0
        %v2306 = vpop.f32.mrb[0].mxu0
        %v2307 = vadd.f32 0.0, %v2306
        %v2308 = vpop.f32.mrb[0].mxu0
        %2309 = vmatprep.mubr.bf16.mxu0 0
        %2310 = vmatmul.mubr.bf16.gmra.mrb[0].mxu0 %v2109
        %v2311 = vpop.f32.mrb[0].mxu0
        %v2312 = vadd.f32 0.0, %v2311
        %v2313 = vpop.f32.mrb[0].mxu0
        %v2314 = vpop.f32.mrb[0].mxu0
        %v2315 = vadd.f32 0.0, %v2314
        %v2316 = vpop.f32.mrb[0].mxu0
        %2317 = vmatprep.mubr.bf16.mxu0 0
        %2318 = vmatmul.mubr.bf16.gmra.mrb[0].mxu0 %v2111
        %v2319 = vpop.f32.mrb[0].mxu0
        %v2320 = vadd.f32 0.0, %v2319
        %v2321 = vpop.f32.mrb[0].mxu0
        %v2322 = vpop.f32.mrb[0].mxu0
        %v2323 = vadd.f32 0.0, %v2322
        %v2324 = vpop.f32.mrb[0].mxu0
        %2325 = vmatprep.mubr.bf16.mxu0 0
        %2326 = vmatmul.mubr.bf16.gmra.mrb[0].mxu0 %v2113
        %v2327 = vpop.f32.mrb[0].mxu0
        %v2328 = vadd.f32 0.0, %v2327
        %v2329 = vpop.f32.mrb[0].mxu0
        %v2330 = vpop.f32.mrb[0].mxu0
        %v2331 = vadd.f32 0.0, %v2330
        %v2332 = vpop.f32.mrb[0].mxu0
        %2333 = vmatprep.mubr.bf16.mxu0 0
        %2334 = vmatmul.mubr.bf16.gmra.mrb[0].mxu0 %v2115
        %v2335 = vpop.f32.mrb[0].mxu0
        %v2336 = vadd.f32 0.0, %v2335
        %v2337 = vpop.f32.mrb[0].mxu0
        %v2338 = vpop.f32.mrb[0].mxu0
        %v2339 = vadd.f32 0.0, %v2338
        %v2340 = vpop.f32.mrb[0].mxu0
        %2341 = vmatprep.mubr.bf16.mxu0 0
        %2342 = vmatmul.mubr.bf16.gmra.mrb[0].mxu0 %v2117
        %v2343 = vpop.f32.mrb[0].mxu0
        %v2344 = vadd.f32 0.0, %v2343
        %v2345 = vpop.f32.mrb[0].mxu0
        %v2346 = vpop.f32.mrb[0].mxu0
        %v2347 = vadd.f32 0.0, %v2346
        %v2348 = vpop.f32.mrb[0].mxu0
        %2349 = vmatprep.mubr.bf16.mxu0 0
        %2350 = vmatmul.mubr.bf16.gmra.mrb[0].mxu0 %v2119
        %v2351 = vpop.f32.mrb[0].mxu0
        %v2352 = vadd.f32 0.0, %v2351
        %v2353 = vpop.f32.mrb[0].mxu0
        %v2354 = vpop.f32.mrb[0].mxu0
        %v2355 = vadd.f32 0.0, %v2354
        %v2356 = vpop.f32.mrb[0].mxu0
        %2357 = vmatprep.mubr.bf16.mxu0 0
        %2358 = vmatmul.mubr.bf16.gmra.mrb[0].mxu0 %v2121
        %v2359 = vpop.f32.mrb[0].mxu0
        %v2360 = vadd.f32 0.0, %v2359
        %v2361 = vpop.f32.mrb[0].mxu0
        %v2362 = vpop.f32.mrb[0].mxu0
        %v2363 = vadd.f32 0.0, %v2362
        %v2364 = vpop.f32.mrb[0].mxu0
        %2365 = vmatprep.mubr.bf16.mxu0 0
        %2366 = vmatmul.mubr.bf16.gmra.mrb[0].mxu0 %v2123
        %v2367 = vpop.f32.mrb[0].mxu0
        %v2368 = vadd.f32 0.0, %v2367
        %v2369 = vpop.f32.mrb[0].mxu0
        %v2370 = vpop.f32.mrb[0].mxu0
        %v2371 = vadd.f32 0.0, %v2370
        %v2372 = vpop.f32.mrb[0].mxu0
        %2373 = vmatprep.mubr.bf16.mxu0 0
        %2374 = vmatmul.mubr.bf16.gmra.mrb[0].mxu0 %v2125
        %v2375 = vpop.f32.mrb[0].mxu0
        %v2376 = vadd.f32 0.0, %v2375
        %v2377 = vpop.f32.mrb[0].mxu0
        %v2378 = vpop.f32.mrb[0].mxu0
        %v2379 = vadd.f32 0.0, %v2378
        %v2380 = vpop.f32.mrb[0].mxu0
        %2381 = vmatprep.mubr.bf16.mxu0 0
        %2382 = vmatmul.mubr.bf16.gmra.mrb[0].mxu0 %v2127
        %v2383 = vpop.f32.mrb[0].mxu0
        %v2384 = vadd.f32 0.0, %v2383
        %v2385 = vpop.f32.mrb[0].mxu0
        %v2386 = vpop.f32.mrb[0].mxu0
        %v2387 = vadd.f32 0.0, %v2386
        %v2388 = vpop.f32.mrb[0].mxu0
        %2389 = vmatprep.mubr.bf16.mxu0 0
        %2390 = vmatmul.mubr.bf16.gmra.mrb[0].mxu0 %v2126
        %v2391 = vpop.f32.mrb[0].mxu0
        %v2392 = vadd.f32 0.0, %v2391
        %v2393 = vpop.f32.mrb[0].mxu0
        %v2394 = vpop.f32.mrb[0].mxu0
        %v2395 = vpop.f32.mrb[0].mxu0
        %2396 = vdwg.mxu0
        %v2397 = vld [vmem:[#allocation3] sm:$0xff]
        %v2398 = vld [vmem:[#allocation3 + $0x8] sm:$0xff]
        %v2399 = vld [vmem:[#allocation3 + $0x10] sm:$0xff]
        %v2400 = vld [vmem:[#allocation3 + $0x18] sm:$0xff]
        %v2401 = vld [vmem:[#allocation3 + $0x20] sm:$0xff]
        %v2402 = vld [vmem:[#allocation3 + $0x28] sm:$0xff]
        %v2403 = vld [vmem:[#allocation3 + $0x30] sm:$0xff]
        %v2404 = vld [vmem:[#allocation3 + $0x38] sm:$0xff]
        %v2405 = vld [vmem:[#allocation3 + $0x40] sm:$0xff]
        %v2406 = vld [vmem:[#allocation3 + $0x48] sm:$0xff]
        %v2407 = vld [vmem:[#allocation3 + $0x50] sm:$0xff]
        %v2408 = vld [vmem:[#allocation3 + $0x58] sm:$0xff]
        %v2409 = vld [vmem:[#allocation3 + $0x60] sm:$0xff]
        %v2410 = vld [vmem:[#allocation3 + $0x68] sm:$0xff]
        %v2411 = vld [vmem:[#allocation3 + $0x70] sm:$0xff]
        %v2412 = vld [vmem:[#allocation3 + $0x78] sm:$0xff]
        %v2413 = vld [vmem:[#allocation3 + $0x80] sm:$0xff]
        %v2414 = vld [vmem:[#allocation3 + $0x88] sm:$0xff]
        %v2415 = vld [vmem:[#allocation3 + $0x90] sm:$0xff]
        %v2416 = vld [vmem:[#allocation3 + $0x98] sm:$0xff]
        %v2417 = vld [vmem:[#allocation3 + $0xa0] sm:$0xff]
        %v2418 = vld [vmem:[#allocation3 + $0xa8] sm:$0xff]
        %v2419 = vld [vmem:[#allocation3 + $0xb0] sm:$0xff]
        %v2420 = vld [vmem:[#allocation3 + $0xb8] sm:$0xff]
        %v2421 = vld [vmem:[#allocation3 + $0xc0] sm:$0xff]
        %v2422 = vld [vmem:[#allocation3 + $0xc8] sm:$0xff]
        %v2423 = vld [vmem:[#allocation3 + $0xd0] sm:$0xff]
        %v2424 = vld [vmem:[#allocation3 + $0xd8] sm:$0xff]
        %v2425 = vld [vmem:[#allocation3 + $0xe0] sm:$0xff]
        %v2426 = vld [vmem:[#allocation3 + $0xe8] sm:$0xff]
        %v2427 = vld [vmem:[#allocation3 + $0xf0] sm:$0xff]
        %v2428 = vld [vmem:[#allocation3 + $0xf8] sm:$0xff]
        %v2429 = vld [vmem:[#allocation3 + $0x100] sm:$0xff]
        %v2430 = vld [vmem:[#allocation3 + $0x108] sm:$0xff]
        %v2431 = vld [vmem:[#allocation3 + $0x110] sm:$0xff]
        %v2432 = vld [vmem:[#allocation3 + $0x118] sm:$0xff]
        %v2433 = vld [vmem:[#allocation3 + $0x120] sm:$0xff]
        %v2434 = vld [vmem:[#allocation3 + $0x128] sm:$0xff]
        %v2435 = vld [vmem:[#allocation3 + $0x130] sm:$0xff]
        %v2436 = vld [vmem:[#allocation3 + $0x138] sm:$0xff]
        %v2437 = vld [vmem:[#allocation3 + $0x140] sm:$0xff]
        %v2438 = vadd.f32 %v2397, %v2232
        %v2439 = vadd.f32 %v2398, %v2235
        %v2440 = vadd.f32 %v2399, %v2240
        %v2441 = vadd.f32 %v2400, %v2243
        %v2442 = vadd.f32 %v2401, %v2248
        %v2443 = vadd.f32 %v2402, %v2251
        %v2444 = vadd.f32 %v2403, %v2256
        %v2445 = vadd.f32 %v2404, %v2259
        %v2446 = vadd.f32 %v2405, %v2264
        %v2447 = vadd.f32 %v2406, %v2267
        %v2448 = vadd.f32 %v2407, %v2272
        %v2449 = vadd.f32 %v2408, %v2275
        %v2450 = vadd.f32 %v2409, %v2280
        %v2451 = vadd.f32 %v2410, %v2283
        %v2452 = vadd.f32 %v2411, %v2288
        %v2453 = vadd.f32 %v2412, %v2291
        %v2454 = vadd.f32 %v2413, %v2296
        %v2455 = vadd.f32 %v2414, %v2299
        %v2456 = vadd.f32 %v2415, %v2304
        %v2457 = vadd.f32 %v2416, %v2307
        %v2458 = vadd.f32 %v2417, %v2312
        %v2459 = vadd.f32 %v2418, %v2315
        %v2460 = vadd.f32 %v2419, %v2320
        %v2461 = vadd.f32 %v2420, %v2323
        %v2462 = vadd.f32 %v2421, %v2328
        %v2463 = vadd.f32 %v2422, %v2331
        %v2464 = vadd.f32 %v2423, %v2336
        %v2465 = vadd.f32 %v2424, %v2339
        %v2466 = vadd.f32 %v2425, %v2344
        %v2467 = vadd.f32 %v2426, %v2347
        %v2468 = vadd.f32 %v2427, %v2352
        %v2469 = vadd.f32 %v2428, %v2355
        %v2470 = vadd.f32 %v2429, %v2360
        %v2471 = vadd.f32 %v2430, %v2363
        %v2472 = vadd.f32 %v2431, %v2368
        %v2473 = vadd.f32 %v2432, %v2371
        %v2474 = vadd.f32 %v2433, %v2376
        %v2475 = vadd.f32 %v2434, %v2379
        %v2476 = vadd.f32 %v2435, %v2384
        %v2477 = vadd.f32 %v2436, %v2387
        %v2478 = vadd.f32 %v2437, %v2392
        %2479 = vst [vmem:[#allocation3] sm:$0xff] %v2438
        %2480 = vst [vmem:[#allocation3 + $0x8] sm:$0xff] %v2439
        %2481 = vst [vmem:[#allocation3 + $0x10] sm:$0xff] %v2440
        %2482 = vst [vmem:[#allocation3 + $0x18] sm:$0xff] %v2441
        %2483 = vst [vmem:[#allocation3 + $0x20] sm:$0xff] %v2442
        %2484 = vst [vmem:[#allocation3 + $0x28] sm:$0xff] %v2443
        %2485 = vst [vmem:[#allocation3 + $0x30] sm:$0xff] %v2444
        %2486 = vst [vmem:[#allocation3 + $0x38] sm:$0xff] %v2445
        %2487 = vst [vmem:[#allocation3 + $0x40] sm:$0xff] %v2446
        %2488 = vst [vmem:[#allocation3 + $0x48] sm:$0xff] %v2447
        %2489 = vst [vmem:[#allocation3 + $0x50] sm:$0xff] %v2448
        %2490 = vst [vmem:[#allocation3 + $0x58] sm:$0xff] %v2449
        %2491 = vst [vmem:[#allocation3 + $0x60] sm:$0xff] %v2450
        %2492 = vst [vmem:[#allocation3 + $0x68] sm:$0xff] %v2451
        %2493 = vst [vmem:[#allocation3 + $0x70] sm:$0xff] %v2452
        %2494 = vst [vmem:[#allocation3 + $0x78] sm:$0xff] %v2453
        %2495 = vst [vmem:[#allocation3 + $0x80] sm:$0xff] %v2454
        %2496 = vst [vmem:[#allocation3 + $0x88] sm:$0xff] %v2455
        %2497 = vst [vmem:[#allocation3 + $0x90] sm:$0xff] %v2456
        %2498 = vst [vmem:[#allocation3 + $0x98] sm:$0xff] %v2457
        %2499 = vst [vmem:[#allocation3 + $0xa0] sm:$0xff] %v2458
        %2500 = vst [vmem:[#allocation3 + $0xa8] sm:$0xff] %v2459
        %2501 = vst [vmem:[#allocation3 + $0xb0] sm:$0xff] %v2460
        %2502 = vst [vmem:[#allocation3 + $0xb8] sm:$0xff] %v2461
        %2503 = vst [vmem:[#allocation3 + $0xc0] sm:$0xff] %v2462
        %2504 = vst [vmem:[#allocation3 + $0xc8] sm:$0xff] %v2463
        %2505 = vst [vmem:[#allocation3 + $0xd0] sm:$0xff] %v2464
        %2506 = vst [vmem:[#allocation3 + $0xd8] sm:$0xff] %v2465
        %2507 = vst [vmem:[#allocation3 + $0xe0] sm:$0xff] %v2466
        %2508 = vst [vmem:[#allocation3 + $0xe8] sm:$0xff] %v2467
        %2509 = vst [vmem:[#allocation3 + $0xf0] sm:$0xff] %v2468
        %2510 = vst [vmem:[#allocation3 + $0xf8] sm:$0xff] %v2469
        %2511 = vst [vmem:[#allocation3 + $0x100] sm:$0xff] %v2470
        %2512 = vst [vmem:[#allocation3 + $0x108] sm:$0xff] %v2471
        %2513 = vst [vmem:[#allocation3 + $0x110] sm:$0xff] %v2472
        %2514 = vst [vmem:[#allocation3 + $0x118] sm:$0xff] %v2473
        %2515 = vst [vmem:[#allocation3 + $0x120] sm:$0xff] %v2474
        %2516 = vst [vmem:[#allocation3 + $0x128] sm:$0xff] %v2475
        %2517 = vst [vmem:[#allocation3 + $0x130] sm:$0xff] %v2476
        %2518 = vst [vmem:[#allocation3 + $0x138] sm:$0xff] %v2477
        %2519 = vst [vmem:[#allocation3 + $0x140] sm:$0xff] %v2478
        %v2520 = vld [vmem:[#allocation2] sm:$0x8]
        %v2521 = vld [vmem:[#allocation2 + $0x4] sm:$0xf]
        %v2522 = vld [vmem:[#allocation2 + $0x8] sm:$0xf]
        %v2523 = vld [vmem:[#allocation2 + $0xc] sm:$0xf]
        %v2524 = vld [vmem:[#allocation2 + $0x10] sm:$0xf]
        %v2525 = vld [vmem:[#allocation2 + $0x14] sm:$0xf]
        %v2526 = vld [vmem:[#allocation2 + $0x18] sm:$0xf]
        %v2527 = vld [vmem:[#allocation2 + $0x1c] sm:$0xf]
        %v2528 = vld [vmem:[#allocation2 + $0x20] sm:$0xf]
        %v2529 = vld [vmem:[#allocation2 + $0x24] sm:$0xf]
        %v2530 = vld [vmem:[#allocation2 + $0x28] sm:$0xf]
        %v2531 = vld [vmem:[#allocation2 + $0x2c] sm:$0xf]
        %v2532 = vld [vmem:[#allocation2 + $0x30] sm:$0xf]
        %v2533 = vld [vmem:[#allocation2 + $0x34] sm:$0xf]
        %v2534 = vld [vmem:[#allocation2 + $0x38] sm:$0xf]
        %v2535 = vld [vmem:[#allocation2 + $0x3c] sm:$0xf]
        %v2536 = vld [vmem:[#allocation2 + $0x40] sm:$0xf]
        %v2537 = vld [vmem:[#allocation2 + $0x44] sm:$0xf]
        %v2538 = vld [vmem:[#allocation2 + $0x48] sm:$0xf]
        %v2539 = vld [vmem:[#allocation2 + $0x4c] sm:$0xf]
        %v2540 = vld [vmem:[#allocation2 + $0x50] sm:$0xf]
        %v2541 = vld [vmem:[#allocation2 + $0x54] sm:$0xf]
        %v2542 = vld [vmem:[#allocation2 + $0x58] sm:$0xf]
        %v2543 = vld [vmem:[#allocation2 + $0x5c] sm:$0xf]
        %v2544 = vld [vmem:[#allocation2 + $0x60] sm:$0xf]
        %v2545 = vld [vmem:[#allocation2 + $0x64] sm:$0xf]
        %v2546 = vld [vmem:[#allocation2 + $0x68] sm:$0xf]
        %v2547 = vld [vmem:[#allocation2 + $0x6c] sm:$0xf]
        %v2548 = vld [vmem:[#allocation2 + $0x70] sm:$0xf]
        %v2549 = vld [vmem:[#allocation2 + $0x74] sm:$0xf]
        %v2550 = vld [vmem:[#allocation2 + $0x78] sm:$0xf]
        %v2551 = vld [vmem:[#allocation2 + $0x7c] sm:$0xf]
        %v2552 = vld [vmem:[#allocation2 + $0x80] sm:$0xf]
        %v2553 = vld [vmem:[#allocation2 + $0x84] sm:$0xf]
        %v2554 = vld [vmem:[#allocation2 + $0x88] sm:$0xf]
        %v2555 = vld [vmem:[#allocation2 + $0x8c] sm:$0xf]
        %v2556 = vld [vmem:[#allocation2 + $0x90] sm:$0xf]
        %v2557 = vld [vmem:[#allocation2 + $0x94] sm:$0xf]
        %v2558 = vld [vmem:[#allocation2 + $0x98] sm:$0xf]
        %v2559 = vld [vmem:[#allocation2 + $0x9c] sm:$0xf]
        %v2560 = vld [vmem:[#allocation2 + $0xa0] sm:$0xf]
        %v2561 = vld [vmem:[#allocation2 + $0xa4] sm:$0xf]
        %s2562 = scalar_lea.vmem [#allocation7], 128
        %v2563 = vld [vmem:[%s2562] sm:$0xf]
        %v2564 = vld [vmem:[%s2562 + $0x4] sm:$0xf]
        %v2565 = vld [vmem:[%s2562 + $0x8] sm:$0xf]
        %v2566 = vld [vmem:[%s2562 + $0xc] sm:$0xf]
        %v2567 = vld [vmem:[%s2562 + $0x10] sm:$0xf]
        %v2568 = vld [vmem:[%s2562 + $0x14] sm:$0xf]
        %v2569 = vld [vmem:[%s2562 + $0x18] sm:$0xf]
        %v2570 = vld [vmem:[%s2562 + $0x1c] sm:$0xf]
        %v2571 = vld [vmem:[%s2562 + $0x20] sm:$0xf]
        %v2572 = vld [vmem:[%s2562 + $0x24] sm:$0xf]
        %v2573 = vld [vmem:[%s2562 + $0x28] sm:$0xf]
        %v2574 = vld [vmem:[%s2562 + $0x2c] sm:$0xf]
        %v2575 = vld [vmem:[%s2562 + $0x30] sm:$0xf]
        %v2576 = vld [vmem:[%s2562 + $0x34] sm:$0xf]
        %v2577 = vld [vmem:[%s2562 + $0x38] sm:$0xf]
        %v2578 = vld [vmem:[%s2562 + $0x3c] sm:$0xf]
        %v2621 = vunpack.c.l.b16 %v2520
        %v2622 = vunpack.c.l.b16 %v2521
        %v2623 = vunpack.c.l.b16 %v2522
        %v2624 = vunpack.c.l.b16 %v2523
        %v2625 = vunpack.c.l.b16 %v2524
        %v2626 = vunpack.c.l.b16 %v2525
        %v2627 = vunpack.c.l.b16 %v2526
        %v2628 = vunpack.c.l.b16 %v2527
        %v2629 = vunpack.c.l.b16 %v2528
        %v2630 = vunpack.c.l.b16 %v2529
        %v2631 = vunpack.c.l.b16 %v2530
        %v2632 = vunpack.c.l.b16 %v2531
        %v2633 = vunpack.c.l.b16 %v2532
        %v2634 = vunpack.c.l.b16 %v2533
        %v2635 = vunpack.c.l.b16 %v2534
        %v2636 = vunpack.c.l.b16 %v2535
        %v2637 = vunpack.c.l.b16 %v2536
        %v2638 = vunpack.c.l.b16 %v2537
        %v2639 = vunpack.c.l.b16 %v2538
        %v2640 = vunpack.c.l.b16 %v2539
        %v2641 = vunpack.c.l.b16 %v2540
        %v2642 = vunpack.c.l.b16 %v2541
        %v2643 = vunpack.c.l.b16 %v2542
        %v2644 = vunpack.c.l.b16 %v2543
        %v2645 = vunpack.c.l.b16 %v2544
        %v2646 = vunpack.c.l.b16 %v2545
        %v2647 = vunpack.c.l.b16 %v2546
        %v2648 = vunpack.c.l.b16 %v2547
        %v2649 = vunpack.c.l.b16 %v2548
        %v2650 = vunpack.c.l.b16 %v2549
        %v2651 = vunpack.c.l.b16 %v2550
        %v2652 = vunpack.c.l.b16 %v2551
        %v2653 = vunpack.c.l.b16 %v2552
        %v2654 = vunpack.c.l.b16 %v2553
        %v2655 = vunpack.c.l.b16 %v2554
        %v2656 = vunpack.c.l.b16 %v2555
        %v2657 = vunpack.c.l.b16 %v2556
        %v2658 = vunpack.c.l.b16 %v2557
        %v2659 = vunpack.c.l.b16 %v2558
        %v2660 = vunpack.c.l.b16 %v2559
        %v2661 = vunpack.c.l.b16 %v2560
        %v2662 = vunpack.c.l.b16 %v2561
        %v2663 = vpack.c.b16 %v2622, %v2621
        %v2664 = vpack.c.b16 %v2624, %v2623
        %v2665 = vpack.c.b16 %v2626, %v2625
        %v2666 = vpack.c.b16 %v2628, %v2627
        %v2667 = vpack.c.b16 %v2630, %v2629
        %v2668 = vpack.c.b16 %v2632, %v2631
        %v2669 = vpack.c.b16 %v2634, %v2633
        %v2670 = vpack.c.b16 %v2636, %v2635
        %v2671 = vpack.c.b16 %v2638, %v2637
        %v2672 = vpack.c.b16 %v2640, %v2639
        %v2673 = vpack.c.b16 %v2642, %v2641
        %v2674 = vpack.c.b16 %v2644, %v2643
        %v2675 = vpack.c.b16 %v2646, %v2645
        %v2676 = vpack.c.b16 %v2648, %v2647
        %v2677 = vpack.c.b16 %v2650, %v2649
        %v2678 = vpack.c.b16 %v2652, %v2651
        %v2679 = vpack.c.b16 %v2654, %v2653
        %v2680 = vpack.c.b16 %v2656, %v2655
        %v2681 = vpack.c.b16 %v2658, %v2657
        %v2682 = vpack.c.b16 %v2660, %v2659
        %v2683 = vpack.c.b16 %v2662, %v2661
        %vm2684 = vsmask.f32 4352
        %v2686 = vshrl.u32 %v2663, 16
        %v2688 = vrot.slane %v2686, 3
        %v2689 = vshll.u32 %v2663, 16
        %v2691 = vrot.slane %v2689, 4
        %v2692 = vor.u32 %v2688, %v2691
        %v2694 = vshrl.u32 %v2664, 16
        %v2696 = vrot.slane %v2694, 3
        %v2697 = vshll.u32 %v2664, 16
        %v2699 = vrot.slane %v2697, 4
        %v2700 = vor.u32 %v2696, %v2699
        %v2701 = vsel %vm2684, %v2692, %v2700
        %v2703 = vshrl.u32 %v2665, 16
        %v2705 = vrot.slane %v2703, 3
        %v2706 = vshll.u32 %v2665, 16
        %v2708 = vrot.slane %v2706, 4
        %v2709 = vor.u32 %v2705, %v2708
        %v2710 = vsel %vm2684, %v2700, %v2709
        %v2712 = vshrl.u32 %v2666, 16
        %v2714 = vrot.slane %v2712, 3
        %v2715 = vshll.u32 %v2666, 16
        %v2717 = vrot.slane %v2715, 4
        %v2718 = vor.u32 %v2714, %v2717
        %v2719 = vsel %vm2684, %v2709, %v2718
        %v2721 = vshrl.u32 %v2667, 16
        %v2723 = vrot.slane %v2721, 3
        %v2724 = vshll.u32 %v2667, 16
        %v2726 = vrot.slane %v2724, 4
        %v2727 = vor.u32 %v2723, %v2726
        %v2728 = vsel %vm2684, %v2718, %v2727
        %v2730 = vshrl.u32 %v2668, 16
        %v2732 = vrot.slane %v2730, 3
        %v2733 = vshll.u32 %v2668, 16
        %v2735 = vrot.slane %v2733, 4
        %v2736 = vor.u32 %v2732, %v2735
        %v2737 = vsel %vm2684, %v2727, %v2736
        %v2739 = vshrl.u32 %v2669, 16
        %v2741 = vrot.slane %v2739, 3
        %v2742 = vshll.u32 %v2669, 16
        %v2744 = vrot.slane %v2742, 4
        %v2745 = vor.u32 %v2741, %v2744
        %v2746 = vsel %vm2684, %v2736, %v2745
        %v2748 = vshrl.u32 %v2670, 16
        %v2750 = vrot.slane %v2748, 3
        %v2751 = vshll.u32 %v2670, 16
        %v2753 = vrot.slane %v2751, 4
        %v2754 = vor.u32 %v2750, %v2753
        %v2755 = vsel %vm2684, %v2745, %v2754
        %v2757 = vshrl.u32 %v2671, 16
        %v2759 = vrot.slane %v2757, 3
        %v2760 = vshll.u32 %v2671, 16
        %v2762 = vrot.slane %v2760, 4
        %v2763 = vor.u32 %v2759, %v2762
        %v2764 = vsel %vm2684, %v2754, %v2763
        %v2766 = vshrl.u32 %v2672, 16
        %v2768 = vrot.slane %v2766, 3
        %v2769 = vshll.u32 %v2672, 16
        %v2771 = vrot.slane %v2769, 4
        %v2772 = vor.u32 %v2768, %v2771
        %v2773 = vsel %vm2684, %v2763, %v2772
        %v2775 = vshrl.u32 %v2673, 16
        %v2777 = vrot.slane %v2775, 3
        %v2778 = vshll.u32 %v2673, 16
        %v2780 = vrot.slane %v2778, 4
        %v2781 = vor.u32 %v2777, %v2780
        %v2782 = vsel %vm2684, %v2772, %v2781
        %v2784 = vshrl.u32 %v2674, 16
        %v2786 = vrot.slane %v2784, 3
        %v2787 = vshll.u32 %v2674, 16
        %v2789 = vrot.slane %v2787, 4
        %v2790 = vor.u32 %v2786, %v2789
        %v2791 = vsel %vm2684, %v2781, %v2790
        %v2793 = vshrl.u32 %v2675, 16
        %v2795 = vrot.slane %v2793, 3
        %v2796 = vshll.u32 %v2675, 16
        %v2798 = vrot.slane %v2796, 4
        %v2799 = vor.u32 %v2795, %v2798
        %v2800 = vsel %vm2684, %v2790, %v2799
        %v2802 = vshrl.u32 %v2676, 16
        %v2804 = vrot.slane %v2802, 3
        %v2805 = vshll.u32 %v2676, 16
        %v2807 = vrot.slane %v2805, 4
        %v2808 = vor.u32 %v2804, %v2807
        %v2809 = vsel %vm2684, %v2799, %v2808
        %v2811 = vshrl.u32 %v2677, 16
        %v2813 = vrot.slane %v2811, 3
        %v2814 = vshll.u32 %v2677, 16
        %v2816 = vrot.slane %v2814, 4
        %v2817 = vor.u32 %v2813, %v2816
        %v2818 = vsel %vm2684, %v2808, %v2817
        %v2820 = vshrl.u32 %v2678, 16
        %v2822 = vrot.slane %v2820, 3
        %v2823 = vshll.u32 %v2678, 16
        %v2825 = vrot.slane %v2823, 4
        %v2826 = vor.u32 %v2822, %v2825
        %v2827 = vsel %vm2684, %v2817, %v2826
        %v2829 = vshrl.u32 %v2679, 16
        %v2831 = vrot.slane %v2829, 3
        %v2832 = vshll.u32 %v2679, 16
        %v2834 = vrot.slane %v2832, 4
        %v2835 = vor.u32 %v2831, %v2834
        %v2836 = vsel %vm2684, %v2826, %v2835
        %v2838 = vshrl.u32 %v2680, 16
        %v2840 = vrot.slane %v2838, 3
        %v2841 = vshll.u32 %v2680, 16
        %v2843 = vrot.slane %v2841, 4
        %v2844 = vor.u32 %v2840, %v2843
        %v2845 = vsel %vm2684, %v2835, %v2844
        %v2847 = vshrl.u32 %v2681, 16
        %v2849 = vrot.slane %v2847, 3
        %v2850 = vshll.u32 %v2681, 16
        %v2852 = vrot.slane %v2850, 4
        %v2853 = vor.u32 %v2849, %v2852
        %v2854 = vsel %vm2684, %v2844, %v2853
        %v2856 = vshrl.u32 %v2682, 16
        %v2858 = vrot.slane %v2856, 3
        %v2859 = vshll.u32 %v2682, 16
        %v2861 = vrot.slane %v2859, 4
        %v2862 = vor.u32 %v2858, %v2861
        %v2863 = vsel %vm2684, %v2853, %v2862
        %v2865 = vshrl.u32 %v2683, 16
        %v2867 = vrot.slane %v2865, 3
        %v2868 = vshll.u32 %v2683, 16
        %v2870 = vrot.slane %v2868, 4
        %v2871 = vor.u32 %v2867, %v2870
        %v2872 = vsel %vm2684, %v2862, %v2871
        %v2910 = vunpack.c.l.b16 %v2563
        %v2911 = vunpack.c.l.b16 %v2564
        %v2912 = vunpack.c.l.b16 %v2565
        %v2913 = vunpack.c.l.b16 %v2566
        %v2914 = vunpack.c.l.b16 %v2567
        %v2915 = vunpack.c.l.b16 %v2568
        %v2916 = vunpack.c.l.b16 %v2569
        %v2917 = vunpack.c.l.b16 %v2570
        %v2918 = vunpack.c.l.b16 %v2571
        %v2919 = vunpack.c.l.b16 %v2572
        %v2920 = vunpack.c.l.b16 %v2573
        %v2921 = vunpack.c.l.b16 %v2574
        %v2922 = vunpack.c.l.b16 %v2575
        %v2923 = vunpack.c.l.b16 %v2576
        %v2924 = vunpack.c.l.b16 %v2577
        %v2925 = vunpack.c.l.b16 %v2578
        %v2926 = vpack.c.b16 %v2911, %v2910
        %v2927 = vpack.c.b16 %v2913, %v2912
        %v2928 = vpack.c.b16 %v2915, %v2914
        %v2929 = vpack.c.b16 %v2917, %v2916
        %v2930 = vpack.c.b16 %v2919, %v2918
        %v2931 = vpack.c.b16 %v2921, %v2920
        %v2932 = vpack.c.b16 %v2923, %v2922
        %v2933 = vpack.c.b16 %v2925, %v2924
        %2942 = vmatprep.subr.bf16.mxu0 0
        %2943 = vmatpush1.bf16.msra.mxu0 %v2926
        %2944 = vmatprep.subr.bf16.mxu0 0
        %2945 = vmatpush1.bf16.msra.mxu0 %v2927
        %2946 = vmatprep.subr.bf16.mxu0 0
        %2947 = vmatpush1.bf16.msra.mxu0 %v2928
        %2948 = vmatprep.subr.bf16.mxu0 0
        %2949 = vmatpush1.bf16.msra.mxu0 %v2929
        %2950 = vmatprep.subr.bf16.mxu0 0
        %2951 = vmatpush1.bf16.msra.mxu0 %v2930
        %2952 = vmatprep.subr.bf16.mxu0 0
        %2953 = vmatpush1.bf16.msra.mxu0 %v2931
        %2954 = vmatprep.subr.bf16.mxu0 0
        %2955 = vmatpush1.bf16.msra.mxu0 %v2932
        %2956 = vmatprep.subr.bf16.mxu0 0
        %2957 = vmatpush1.bf16.msra.mxu0 %v2933
        %2958 = vmatprep.subr.bf16.mxu0 0
        %2959 = vmatpush1.bf16.msra.mxu0 0
        %2960 = vmatprep.subr.bf16.mxu0 0
        %2961 = vmatpush1.bf16.msra.mxu0 0
        %2962 = vmatprep.subr.bf16.mxu0 0
        %2963 = vmatpush1.bf16.msra.mxu0 0
        %2964 = vmatprep.subr.bf16.mxu0 0
        %2965 = vmatpush1.bf16.msra.mxu0 0
        %2966 = vmatprep.subr.bf16.mxu0 0
        %2967 = vmatpush1.bf16.msra.mxu0 0
        %2968 = vmatprep.subr.bf16.mxu0 0
        %2969 = vmatpush1.bf16.msra.mxu0 0
        %2970 = vmatprep.subr.bf16.mxu0 0
        %2971 = vmatpush1.bf16.msra.mxu0 0
        %2972 = vmatprep.subr.bf16.mxu0 0
        %2973 = vmatpush1.bf16.msra.mxu0 0
        %2974 = vmatprep.mubr.bf16.mxu0 0
        %2975 = vmatmul.mubr.bf16.gmra.mrb[0].mxu0 %v2701
        %v2976 = vpop.f32.mrb[0].mxu0
        %v2977 = vadd.f32 0.0, %v2976
        %v2978 = vpop.f32.mrb[0].mxu0
        %v2979 = vpop.f32.mrb[0].mxu0
        %v2980 = vadd.f32 0.0, %v2979
        %v2981 = vpop.f32.mrb[0].mxu0
        %2982 = vmatprep.mubr.bf16.mxu0 0
        %2983 = vmatmul.mubr.bf16.gmra.mrb[0].mxu0 %v2710
        %v2984 = vpop.f32.mrb[0].mxu0
        %v2985 = vadd.f32 0.0, %v2984
        %v2986 = vpop.f32.mrb[0].mxu0
        %v2987 = vpop.f32.mrb[0].mxu0
        %v2988 = vadd.f32 0.0, %v2987
        %v2989 = vpop.f32.mrb[0].mxu0
        %2990 = vmatprep.mubr.bf16.mxu0 0
        %2991 = vmatmul.mubr.bf16.gmra.mrb[0].mxu0 %v2719
        %v2992 = vpop.f32.mrb[0].mxu0
        %v2993 = vadd.f32 0.0, %v2992
        %v2994 = vpop.f32.mrb[0].mxu0
        %v2995 = vpop.f32.mrb[0].mxu0
        %v2996 = vadd.f32 0.0, %v2995
        %v2997 = vpop.f32.mrb[0].mxu0
        %2998 = vmatprep.mubr.bf16.mxu0 0
        %2999 = vmatmul.mubr.bf16.gmra.mrb[0].mxu0 %v2728
        %v3000 = vpop.f32.mrb[0].mxu0
        %v3001 = vadd.f32 0.0, %v3000
        %v3002 = vpop.f32.mrb[0].mxu0
        %v3003 = vpop.f32.mrb[0].mxu0
        %v3004 = vadd.f32 0.0, %v3003
        %v3005 = vpop.f32.mrb[0].mxu0
        %3006 = vmatprep.mubr.bf16.mxu0 0
        %3007 = vmatmul.mubr.bf16.gmra.mrb[0].mxu0 %v2737
        %v3008 = vpop.f32.mrb[0].mxu0
        %v3009 = vadd.f32 0.0, %v3008
        %v3010 = vpop.f32.mrb[0].mxu0
        %v3011 = vpop.f32.mrb[0].mxu0
        %v3012 = vadd.f32 0.0, %v3011
        %v3013 = vpop.f32.mrb[0].mxu0
        %3014 = vmatprep.mubr.bf16.mxu0 0
        %3015 = vmatmul.mubr.bf16.gmra.mrb[0].mxu0 %v2746
        %v3016 = vpop.f32.mrb[0].mxu0
        %v3017 = vadd.f32 0.0, %v3016
        %v3018 = vpop.f32.mrb[0].mxu0
        %v3019 = vpop.f32.mrb[0].mxu0
        %v3020 = vadd.f32 0.0, %v3019
        %v3021 = vpop.f32.mrb[0].mxu0
        %3022 = vmatprep.mubr.bf16.mxu0 0
        %3023 = vmatmul.mubr.bf16.gmra.mrb[0].mxu0 %v2755
        %v3024 = vpop.f32.mrb[0].mxu0
        %v3025 = vadd.f32 0.0, %v3024
        %v3026 = vpop.f32.mrb[0].mxu0
        %v3027 = vpop.f32.mrb[0].mxu0
        %v3028 = vadd.f32 0.0, %v3027
        %v3029 = vpop.f32.mrb[0].mxu0
        %3030 = vmatprep.mubr.bf16.mxu0 0
        %3031 = vmatmul.mubr.bf16.gmra.mrb[0].mxu0 %v2764
        %v3032 = vpop.f32.mrb[0].mxu0
        %v3033 = vadd.f32 0.0, %v3032
        %v3034 = vpop.f32.mrb[0].mxu0
        %v3035 = vpop.f32.mrb[0].mxu0
        %v3036 = vadd.f32 0.0, %v3035
        %v3037 = vpop.f32.mrb[0].mxu0
        %3038 = vmatprep.mubr.bf16.mxu0 0
        %3039 = vmatmul.mubr.bf16.gmra.mrb[0].mxu0 %v2773
        %v3040 = vpop.f32.mrb[0].mxu0
        %v3041 = vadd.f32 0.0, %v3040
        %v3042 = vpop.f32.mrb[0].mxu0
        %v3043 = vpop.f32.mrb[0].mxu0
        %v3044 = vadd.f32 0.0, %v3043
        %v3045 = vpop.f32.mrb[0].mxu0
        %3046 = vmatprep.mubr.bf16.mxu0 0
        %3047 = vmatmul.mubr.bf16.gmra.mrb[0].mxu0 %v2782
        %v3048 = vpop.f32.mrb[0].mxu0
        %v3049 = vadd.f32 0.0, %v3048
        %v3050 = vpop.f32.mrb[0].mxu0
        %v3051 = vpop.f32.mrb[0].mxu0
        %v3052 = vadd.f32 0.0, %v3051
        %v3053 = vpop.f32.mrb[0].mxu0
        %3054 = vmatprep.mubr.bf16.mxu0 0
        %3055 = vmatmul.mubr.bf16.gmra.mrb[0].mxu0 %v2791
        %v3056 = vpop.f32.mrb[0].mxu0
        %v3057 = vadd.f32 0.0, %v3056
        %v3058 = vpop.f32.mrb[0].mxu0
        %v3059 = vpop.f32.mrb[0].mxu0
        %v3060 = vadd.f32 0.0, %v3059
        %v3061 = vpop.f32.mrb[0].mxu0
        %3062 = vmatprep.mubr.bf16.mxu0 0
        %3063 = vmatmul.mubr.bf16.gmra.mrb[0].mxu0 %v2800
        %v3064 = vpop.f32.mrb[0].mxu0
        %v3065 = vadd.f32 0.0, %v3064
        %v3066 = vpop.f32.mrb[0].mxu0
        %v3067 = vpop.f32.mrb[0].mxu0
        %v3068 = vadd.f32 0.0, %v3067
        %v3069 = vpop.f32.mrb[0].mxu0
        %3070 = vmatprep.mubr.bf16.mxu0 0
        %3071 = vmatmul.mubr.bf16.gmra.mrb[0].mxu0 %v2809
        %v3072 = vpop.f32.mrb[0].mxu0
        %v3073 = vadd.f32 0.0, %v3072
        %v3074 = vpop.f32.mrb[0].mxu0
        %v3075 = vpop.f32.mrb[0].mxu0
        %v3076 = vadd.f32 0.0, %v3075
        %v3077 = vpop.f32.mrb[0].mxu0
        %3078 = vmatprep.mubr.bf16.mxu0 0
        %3079 = vmatmul.mubr.bf16.gmra.mrb[0].mxu0 %v2818
        %v3080 = vpop.f32.mrb[0].mxu0
        %v3081 = vadd.f32 0.0, %v3080
        %v3082 = vpop.f32.mrb[0].mxu0
        %v3083 = vpop.f32.mrb[0].mxu0
        %v3084 = vadd.f32 0.0, %v3083
        %v3085 = vpop.f32.mrb[0].mxu0
        %3086 = vmatprep.mubr.bf16.mxu0 0
        %3087 = vmatmul.mubr.bf16.gmra.mrb[0].mxu0 %v2827
        %v3088 = vpop.f32.mrb[0].mxu0
        %v3089 = vadd.f32 0.0, %v3088
        %v3090 = vpop.f32.mrb[0].mxu0
        %v3091 = vpop.f32.mrb[0].mxu0
        %v3092 = vadd.f32 0.0, %v3091
        %v3093 = vpop.f32.mrb[0].mxu0
        %3094 = vmatprep.mubr.bf16.mxu0 0
        %3095 = vmatmul.mubr.bf16.gmra.mrb[0].mxu0 %v2836
        %v3096 = vpop.f32.mrb[0].mxu0
        %v3097 = vadd.f32 0.0, %v3096
        %v3098 = vpop.f32.mrb[0].mxu0
        %v3099 = vpop.f32.mrb[0].mxu0
        %v3100 = vadd.f32 0.0, %v3099
        %v3101 = vpop.f32.mrb[0].mxu0
        %3102 = vmatprep.mubr.bf16.mxu0 0
        %3103 = vmatmul.mubr.bf16.gmra.mrb[0].mxu0 %v2845
        %v3104 = vpop.f32.mrb[0].mxu0
        %v3105 = vadd.f32 0.0, %v3104
        %v3106 = vpop.f32.mrb[0].mxu0
        %v3107 = vpop.f32.mrb[0].mxu0
        %v3108 = vadd.f32 0.0, %v3107
        %v3109 = vpop.f32.mrb[0].mxu0
        %3110 = vmatprep.mubr.bf16.mxu0 0
        %3111 = vmatmul.mubr.bf16.gmra.mrb[0].mxu0 %v2854
        %v3112 = vpop.f32.mrb[0].mxu0
        %v3113 = vadd.f32 0.0, %v3112
        %v3114 = vpop.f32.mrb[0].mxu0
        %v3115 = vpop.f32.mrb[0].mxu0
        %v3116 = vadd.f32 0.0, %v3115
        %v3117 = vpop.f32.mrb[0].mxu0
        %3118 = vmatprep.mubr.bf16.mxu0 0
        %3119 = vmatmul.mubr.bf16.gmra.mrb[0].mxu0 %v2863
        %v3120 = vpop.f32.mrb[0].mxu0
        %v3121 = vadd.f32 0.0, %v3120
        %v3122 = vpop.f32.mrb[0].mxu0
        %v3123 = vpop.f32.mrb[0].mxu0
        %v3124 = vadd.f32 0.0, %v3123
        %v3125 = vpop.f32.mrb[0].mxu0
        %3126 = vmatprep.mubr.bf16.mxu0 0
        %3127 = vmatmul.mubr.bf16.gmra.mrb[0].mxu0 %v2872
        %v3128 = vpop.f32.mrb[0].mxu0
        %v3129 = vadd.f32 0.0, %v3128
        %v3130 = vpop.f32.mrb[0].mxu0
        %v3131 = vpop.f32.mrb[0].mxu0
        %v3132 = vadd.f32 0.0, %v3131
        %v3133 = vpop.f32.mrb[0].mxu0
        %3134 = vmatprep.mubr.bf16.mxu0 0
        %3135 = vmatmul.mubr.bf16.gmra.mrb[0].mxu0 %v2871
        %v3136 = vpop.f32.mrb[0].mxu0
        %v3137 = vadd.f32 0.0, %v3136
        %v3138 = vpop.f32.mrb[0].mxu0
        %v3139 = vpop.f32.mrb[0].mxu0
        %v3140 = vpop.f32.mrb[0].mxu0
        %3141 = vdwg.mxu0
        %v3142 = vld [vmem:[#allocation3] sm:$0xff]
        %v3143 = vld [vmem:[#allocation3 + $0x8] sm:$0xff]
        %v3144 = vld [vmem:[#allocation3 + $0x10] sm:$0xff]
        %v3145 = vld [vmem:[#allocation3 + $0x18] sm:$0xff]
        %v3146 = vld [vmem:[#allocation3 + $0x20] sm:$0xff]
        %v3147 = vld [vmem:[#allocation3 + $0x28] sm:$0xff]
        %v3148 = vld [vmem:[#allocation3 + $0x30] sm:$0xff]
        %v3149 = vld [vmem:[#allocation3 + $0x38] sm:$0xff]
        %v3150 = vld [vmem:[#allocation3 + $0x40] sm:$0xff]
        %v3151 = vld [vmem:[#allocation3 + $0x48] sm:$0xff]
        %v3152 = vld [vmem:[#allocation3 + $0x50] sm:$0xff]
        %v3153 = vld [vmem:[#allocation3 + $0x58] sm:$0xff]
        %v3154 = vld [vmem:[#allocation3 + $0x60] sm:$0xff]
        %v3155 = vld [vmem:[#allocation3 + $0x68] sm:$0xff]
        %v3156 = vld [vmem:[#allocation3 + $0x70] sm:$0xff]
        %v3157 = vld [vmem:[#allocation3 + $0x78] sm:$0xff]
        %v3158 = vld [vmem:[#allocation3 + $0x80] sm:$0xff]
        %v3159 = vld [vmem:[#allocation3 + $0x88] sm:$0xff]
        %v3160 = vld [vmem:[#allocation3 + $0x90] sm:$0xff]
        %v3161 = vld [vmem:[#allocation3 + $0x98] sm:$0xff]
        %v3162 = vld [vmem:[#allocation3 + $0xa0] sm:$0xff]
        %v3163 = vld [vmem:[#allocation3 + $0xa8] sm:$0xff]
        %v3164 = vld [vmem:[#allocation3 + $0xb0] sm:$0xff]
        %v3165 = vld [vmem:[#allocation3 + $0xb8] sm:$0xff]
        %v3166 = vld [vmem:[#allocation3 + $0xc0] sm:$0xff]
        %v3167 = vld [vmem:[#allocation3 + $0xc8] sm:$0xff]
        %v3168 = vld [vmem:[#allocation3 + $0xd0] sm:$0xff]
        %v3169 = vld [vmem:[#allocation3 + $0xd8] sm:$0xff]
        %v3170 = vld [vmem:[#allocation3 + $0xe0] sm:$0xff]
        %v3171 = vld [vmem:[#allocation3 + $0xe8] sm:$0xff]
        %v3172 = vld [vmem:[#allocation3 + $0xf0] sm:$0xff]
        %v3173 = vld [vmem:[#allocation3 + $0xf8] sm:$0xff]
        %v3174 = vld [vmem:[#allocation3 + $0x100] sm:$0xff]
        %v3175 = vld [vmem:[#allocation3 + $0x108] sm:$0xff]
        %v3176 = vld [vmem:[#allocation3 + $0x110] sm:$0xff]
        %v3177 = vld [vmem:[#allocation3 + $0x118] sm:$0xff]
        %v3178 = vld [vmem:[#allocation3 + $0x120] sm:$0xff]
        %v3179 = vld [vmem:[#allocation3 + $0x128] sm:$0xff]
        %v3180 = vld [vmem:[#allocation3 + $0x130] sm:$0xff]
        %v3181 = vld [vmem:[#allocation3 + $0x138] sm:$0xff]
        %v3182 = vld [vmem:[#allocation3 + $0x140] sm:$0xff]
        %v3183 = vadd.f32 %v3142, %v2977
        %v3184 = vadd.f32 %v3143, %v2980
        %v3185 = vadd.f32 %v3144, %v2985
        %v3186 = vadd.f32 %v3145, %v2988
        %v3187 = vadd.f32 %v3146, %v2993
        %v3188 = vadd.f32 %v3147, %v2996
        %v3189 = vadd.f32 %v3148, %v3001
        %v3190 = vadd.f32 %v3149, %v3004
        %v3191 = vadd.f32 %v3150, %v3009
        %v3192 = vadd.f32 %v3151, %v3012
        %v3193 = vadd.f32 %v3152, %v3017
        %v3194 = vadd.f32 %v3153, %v3020
        %v3195 = vadd.f32 %v3154, %v3025
        %v3196 = vadd.f32 %v3155, %v3028
        %v3197 = vadd.f32 %v3156, %v3033
        %v3198 = vadd.f32 %v3157, %v3036
        %v3199 = vadd.f32 %v3158, %v3041
        %v3200 = vadd.f32 %v3159, %v3044
        %v3201 = vadd.f32 %v3160, %v3049
        %v3202 = vadd.f32 %v3161, %v3052
        %v3203 = vadd.f32 %v3162, %v3057
        %v3204 = vadd.f32 %v3163, %v3060
        %v3205 = vadd.f32 %v3164, %v3065
        %v3206 = vadd.f32 %v3165, %v3068
        %v3207 = vadd.f32 %v3166, %v3073
        %v3208 = vadd.f32 %v3167, %v3076
        %v3209 = vadd.f32 %v3168, %v3081
        %v3210 = vadd.f32 %v3169, %v3084
        %v3211 = vadd.f32 %v3170, %v3089
        %v3212 = vadd.f32 %v3171, %v3092
        %v3213 = vadd.f32 %v3172, %v3097
        %v3214 = vadd.f32 %v3173, %v3100
        %v3215 = vadd.f32 %v3174, %v3105
        %v3216 = vadd.f32 %v3175, %v3108
        %v3217 = vadd.f32 %v3176, %v3113
        %v3218 = vadd.f32 %v3177, %v3116
        %v3219 = vadd.f32 %v3178, %v3121
        %v3220 = vadd.f32 %v3179, %v3124
        %v3221 = vadd.f32 %v3180, %v3129
        %v3222 = vadd.f32 %v3181, %v3132
        %v3223 = vadd.f32 %v3182, %v3137
        %3224 = vst [vmem:[#allocation3] sm:$0xff] %v3183
        %3225 = vst [vmem:[#allocation3 + $0x8] sm:$0xff] %v3184
        %3226 = vst [vmem:[#allocation3 + $0x10] sm:$0xff] %v3185
        %3227 = vst [vmem:[#allocation3 + $0x18] sm:$0xff] %v3186
        %3228 = vst [vmem:[#allocation3 + $0x20] sm:$0xff] %v3187
        %3229 = vst [vmem:[#allocation3 + $0x28] sm:$0xff] %v3188
        %3230 = vst [vmem:[#allocation3 + $0x30] sm:$0xff] %v3189
        %3231 = vst [vmem:[#allocation3 + $0x38] sm:$0xff] %v3190
        %3232 = vst [vmem:[#allocation3 + $0x40] sm:$0xff] %v3191
        %3233 = vst [vmem:[#allocation3 + $0x48] sm:$0xff] %v3192
        %3234 = vst [vmem:[#allocation3 + $0x50] sm:$0xff] %v3193
        %3235 = vst [vmem:[#allocation3 + $0x58] sm:$0xff] %v3194
        %3236 = vst [vmem:[#allocation3 + $0x60] sm:$0xff] %v3195
        %3237 = vst [vmem:[#allocation3 + $0x68] sm:$0xff] %v3196
        %3238 = vst [vmem:[#allocation3 + $0x70] sm:$0xff] %v3197
        %3239 = vst [vmem:[#allocation3 + $0x78] sm:$0xff] %v3198
        %3240 = vst [vmem:[#allocation3 + $0x80] sm:$0xff] %v3199
        %3241 = vst [vmem:[#allocation3 + $0x88] sm:$0xff] %v3200
        %3242 = vst [vmem:[#allocation3 + $0x90] sm:$0xff] %v3201
        %3243 = vst [vmem:[#allocation3 + $0x98] sm:$0xff] %v3202
        %3244 = vst [vmem:[#allocation3 + $0xa0] sm:$0xff] %v3203
        %3245 = vst [vmem:[#allocation3 + $0xa8] sm:$0xff] %v3204
        %3246 = vst [vmem:[#allocation3 + $0xb0] sm:$0xff] %v3205
        %3247 = vst [vmem:[#allocation3 + $0xb8] sm:$0xff] %v3206
        %3248 = vst [vmem:[#allocation3 + $0xc0] sm:$0xff] %v3207
        %3249 = vst [vmem:[#allocation3 + $0xc8] sm:$0xff] %v3208
        %3250 = vst [vmem:[#allocation3 + $0xd0] sm:$0xff] %v3209
        %3251 = vst [vmem:[#allocation3 + $0xd8] sm:$0xff] %v3210
        %3252 = vst [vmem:[#allocation3 + $0xe0] sm:$0xff] %v3211
        %3253 = vst [vmem:[#allocation3 + $0xe8] sm:$0xff] %v3212
        %3254 = vst [vmem:[#allocation3 + $0xf0] sm:$0xff] %v3213
        %3255 = vst [vmem:[#allocation3 + $0xf8] sm:$0xff] %v3214
        %3256 = vst [vmem:[#allocation3 + $0x100] sm:$0xff] %v3215
        %3257 = vst [vmem:[#allocation3 + $0x108] sm:$0xff] %v3216
        %3258 = vst [vmem:[#allocation3 + $0x110] sm:$0xff] %v3217
        %3259 = vst [vmem:[#allocation3 + $0x118] sm:$0xff] %v3218
        %3260 = vst [vmem:[#allocation3 + $0x120] sm:$0xff] %v3219
        %3261 = vst [vmem:[#allocation3 + $0x128] sm:$0xff] %v3220
        %3262 = vst [vmem:[#allocation3 + $0x130] sm:$0xff] %v3221
        %3263 = vst [vmem:[#allocation3 + $0x138] sm:$0xff] %v3222
        %3264 = vst [vmem:[#allocation3 + $0x140] sm:$0xff] %v3223
        %v3265 = vld [vmem:[#allocation2 + $0x8] sm:$0x8]
        %v3266 = vld [vmem:[#allocation2 + $0xc] sm:$0xf]
        %v3267 = vld [vmem:[#allocation2 + $0x10] sm:$0xf]
        %v3268 = vld [vmem:[#allocation2 + $0x14] sm:$0xf]
        %v3269 = vld [vmem:[#allocation2 + $0x18] sm:$0xf]
        %v3270 = vld [vmem:[#allocation2 + $0x1c] sm:$0xf]
        %v3271 = vld [vmem:[#allocation2 + $0x20] sm:$0xf]
        %v3272 = vld [vmem:[#allocation2 + $0x24] sm:$0xf]
        %v3273 = vld [vmem:[#allocation2 + $0x28] sm:$0xf]
        %v3274 = vld [vmem:[#allocation2 + $0x2c] sm:$0xf]
        %v3275 = vld [vmem:[#allocation2 + $0x30] sm:$0xf]
        %v3276 = vld [vmem:[#allocation2 + $0x34] sm:$0xf]
        %v3277 = vld [vmem:[#allocation2 + $0x38] sm:$0xf]
        %v3278 = vld [vmem:[#allocation2 + $0x3c] sm:$0xf]
        %v3279 = vld [vmem:[#allocation2 + $0x40] sm:$0xf]
        %v3280 = vld [vmem:[#allocation2 + $0x44] sm:$0xf]
        %v3281 = vld [vmem:[#allocation2 + $0x48] sm:$0xf]
        %v3282 = vld [vmem:[#allocation2 + $0x4c] sm:$0xf]
        %v3283 = vld [vmem:[#allocation2 + $0x50] sm:$0xf]
        %v3284 = vld [vmem:[#allocation2 + $0x54] sm:$0xf]
        %v3285 = vld [vmem:[#allocation2 + $0x58] sm:$0xf]
        %v3286 = vld [vmem:[#allocation2 + $0x5c] sm:$0xf]
        %v3287 = vld [vmem:[#allocation2 + $0x60] sm:$0xf]
        %v3288 = vld [vmem:[#allocation2 + $0x64] sm:$0xf]
        %v3289 = vld [vmem:[#allocation2 + $0x68] sm:$0xf]
        %v3290 = vld [vmem:[#allocation2 + $0x6c] sm:$0xf]
        %v3291 = vld [vmem:[#allocation2 + $0x70] sm:$0xf]
        %v3292 = vld [vmem:[#allocation2 + $0x74] sm:$0xf]
        %v3293 = vld [vmem:[#allocation2 + $0x78] sm:$0xf]
        %v3294 = vld [vmem:[#allocation2 + $0x7c] sm:$0xf]
        %v3295 = vld [vmem:[#allocation2 + $0x80] sm:$0xf]
        %v3296 = vld [vmem:[#allocation2 + $0x84] sm:$0xf]
        %v3297 = vld [vmem:[#allocation2 + $0x88] sm:$0xf]
        %v3298 = vld [vmem:[#allocation2 + $0x8c] sm:$0xf]
        %v3299 = vld [vmem:[#allocation2 + $0x90] sm:$0xf]
        %v3300 = vld [vmem:[#allocation2 + $0x94] sm:$0xf]
        %v3301 = vld [vmem:[#allocation2 + $0x98] sm:$0xf]
        %v3302 = vld [vmem:[#allocation2 + $0x9c] sm:$0xf]
        %v3303 = vld [vmem:[#allocation2 + $0xa0] sm:$0xf]
        %v3304 = vld [vmem:[#allocation2 + $0xa4] sm:$0xf]
        %v3305 = vld [vmem:[#allocation2 + $0xa8] sm:$0xf]
        %v3306 = vld [vmem:[#allocation2 + $0xac] sm:$0xf]
        %s3307 = scalar_lea.vmem [#allocation7], 192
        %v3308 = vld [vmem:[%s3307] sm:$0xf]
        %v3309 = vld [vmem:[%s3307 + $0x4] sm:$0xf]
        %v3310 = vld [vmem:[%s3307 + $0x8] sm:$0xf]
        %v3311 = vld [vmem:[%s3307 + $0xc] sm:$0xf]
        %v3312 = vld [vmem:[%s3307 + $0x10] sm:$0xf]
        %v3313 = vld [vmem:[%s3307 + $0x14] sm:$0xf]
        %v3314 = vld [vmem:[%s3307 + $0x18] sm:$0xf]
        %v3315 = vld [vmem:[%s3307 + $0x1c] sm:$0xf]
        %v3316 = vld [vmem:[%s3307 + $0x20] sm:$0xf]
        %v3317 = vld [vmem:[%s3307 + $0x24] sm:$0xf]
        %v3318 = vld [vmem:[%s3307 + $0x28] sm:$0xf]
        %v3319 = vld [vmem:[%s3307 + $0x2c] sm:$0xf]
        %v3320 = vld [vmem:[%s3307 + $0x30] sm:$0xf]
        %v3321 = vld [vmem:[%s3307 + $0x34] sm:$0xf]
        %v3322 = vld [vmem:[%s3307 + $0x38] sm:$0xf]
        %v3323 = vld [vmem:[%s3307 + $0x3c] sm:$0xf]
        %v3366 = vunpack.c.l.b16 %v3265
        %v3367 = vunpack.c.l.b16 %v3266
        %v3368 = vunpack.c.l.b16 %v3267
        %v3369 = vunpack.c.l.b16 %v3268
        %v3370 = vunpack.c.l.b16 %v3269
        %v3371 = vunpack.c.l.b16 %v3270
        %v3372 = vunpack.c.l.b16 %v3271
        %v3373 = vunpack.c.l.b16 %v3272
        %v3374 = vunpack.c.l.b16 %v3273
        %v3375 = vunpack.c.l.b16 %v3274
        %v3376 = vunpack.c.l.b16 %v3275
        %v3377 = vunpack.c.l.b16 %v3276
        %v3378 = vunpack.c.l.b16 %v3277
        %v3379 = vunpack.c.l.b16 %v3278
        %v3380 = vunpack.c.l.b16 %v3279
        %v3381 = vunpack.c.l.b16 %v3280
        %v3382 = vunpack.c.l.b16 %v3281
        %v3383 = vunpack.c.l.b16 %v3282
        %v3384 = vunpack.c.l.b16 %v3283
        %v3385 = vunpack.c.l.b16 %v3284
        %v3386 = vunpack.c.l.b16 %v3285
        %v3387 = vunpack.c.l.b16 %v3286
        %v3388 = vunpack.c.l.b16 %v3287
        %v3389 = vunpack.c.l.b16 %v3288
        %v3390 = vunpack.c.l.b16 %v3289
        %v3391 = vunpack.c.l.b16 %v3290
        %v3392 = vunpack.c.l.b16 %v3291
        %v3393 = vunpack.c.l.b16 %v3292
        %v3394 = vunpack.c.l.b16 %v3293
        %v3395 = vunpack.c.l.b16 %v3294
        %v3396 = vunpack.c.l.b16 %v3295
        %v3397 = vunpack.c.l.b16 %v3296
        %v3398 = vunpack.c.l.b16 %v3297
        %v3399 = vunpack.c.l.b16 %v3298
        %v3400 = vunpack.c.l.b16 %v3299
        %v3401 = vunpack.c.l.b16 %v3300
        %v3402 = vunpack.c.l.b16 %v3301
        %v3403 = vunpack.c.l.b16 %v3302
        %v3404 = vunpack.c.l.b16 %v3303
        %v3405 = vunpack.c.l.b16 %v3304
        %v3406 = vunpack.c.l.b16 %v3305
        %v3407 = vunpack.c.l.b16 %v3306
        %v3408 = vpack.c.b16 %v3367, %v3366
        %v3409 = vpack.c.b16 %v3369, %v3368
        %v3410 = vpack.c.b16 %v3371, %v3370
        %v3411 = vpack.c.b16 %v3373, %v3372
        %v3412 = vpack.c.b16 %v3375, %v3374
        %v3413 = vpack.c.b16 %v3377, %v3376
        %v3414 = vpack.c.b16 %v3379, %v3378
        %v3415 = vpack.c.b16 %v3381, %v3380
        %v3416 = vpack.c.b16 %v3383, %v3382
        %v3417 = vpack.c.b16 %v3385, %v3384
        %v3418 = vpack.c.b16 %v3387, %v3386
        %v3419 = vpack.c.b16 %v3389, %v3388
        %v3420 = vpack.c.b16 %v3391, %v3390
        %v3421 = vpack.c.b16 %v3393, %v3392
        %v3422 = vpack.c.b16 %v3395, %v3394
        %v3423 = vpack.c.b16 %v3397, %v3396
        %v3424 = vpack.c.b16 %v3399, %v3398
        %v3425 = vpack.c.b16 %v3401, %v3400
        %v3426 = vpack.c.b16 %v3403, %v3402
        %v3427 = vpack.c.b16 %v3405, %v3404
        %v3428 = vpack.c.b16 %v3407, %v3406
        %v3430 = vshrl.u32 %v3408, 16
        %v3432 = vrot.slane %v3430, 3
        %v3433 = vshll.u32 %v3408, 16
        %v3435 = vrot.slane %v3433, 4
        %v3436 = vor.u32 %v3432, %v3435
        %v3438 = vshrl.u32 %v3409, 16
        %v3440 = vrot.slane %v3438, 3
        %v3441 = vshll.u32 %v3409, 16
        %v3443 = vrot.slane %v3441, 4
        %v3444 = vor.u32 %v3440, %v3443
        %v3445 = vsel %vm2684, %v3436, %v3444
        %v3447 = vshrl.u32 %v3410, 16
        %v3449 = vrot.slane %v3447, 3
        %v3450 = vshll.u32 %v3410, 16
        %v3452 = vrot.slane %v3450, 4
        %v3453 = vor.u32 %v3449, %v3452
        %v3454 = vsel %vm2684, %v3444, %v3453
        %v3456 = vshrl.u32 %v3411, 16
        %v3458 = vrot.slane %v3456, 3
        %v3459 = vshll.u32 %v3411, 16
        %v3461 = vrot.slane %v3459, 4
        %v3462 = vor.u32 %v3458, %v3461
        %v3463 = vsel %vm2684, %v3453, %v3462
        %v3465 = vshrl.u32 %v3412, 16
        %v3467 = vrot.slane %v3465, 3
        %v3468 = vshll.u32 %v3412, 16
        %v3470 = vrot.slane %v3468, 4
        %v3471 = vor.u32 %v3467, %v3470
        %v3472 = vsel %vm2684, %v3462, %v3471
        %v3474 = vshrl.u32 %v3413, 16
        %v3476 = vrot.slane %v3474, 3
        %v3477 = vshll.u32 %v3413, 16
        %v3479 = vrot.slane %v3477, 4
        %v3480 = vor.u32 %v3476, %v3479
        %v3481 = vsel %vm2684, %v3471, %v3480
        %v3483 = vshrl.u32 %v3414, 16
        %v3485 = vrot.slane %v3483, 3
        %v3486 = vshll.u32 %v3414, 16
        %v3488 = vrot.slane %v3486, 4
        %v3489 = vor.u32 %v3485, %v3488
        %v3490 = vsel %vm2684, %v3480, %v3489
        %v3492 = vshrl.u32 %v3415, 16
        %v3494 = vrot.slane %v3492, 3
        %v3495 = vshll.u32 %v3415, 16
        %v3497 = vrot.slane %v3495, 4
        %v3498 = vor.u32 %v3494, %v3497
        %v3499 = vsel %vm2684, %v3489, %v3498
        %v3501 = vshrl.u32 %v3416, 16
        %v3503 = vrot.slane %v3501, 3
        %v3504 = vshll.u32 %v3416, 16
        %v3506 = vrot.slane %v3504, 4
        %v3507 = vor.u32 %v3503, %v3506
        %v3508 = vsel %vm2684, %v3498, %v3507
        %v3510 = vshrl.u32 %v3417, 16
        %v3512 = vrot.slane %v3510, 3
        %v3513 = vshll.u32 %v3417, 16
        %v3515 = vrot.slane %v3513, 4
        %v3516 = vor.u32 %v3512, %v3515
        %v3517 = vsel %vm2684, %v3507, %v3516
        %v3519 = vshrl.u32 %v3418, 16
        %v3521 = vrot.slane %v3519, 3
        %v3522 = vshll.u32 %v3418, 16
        %v3524 = vrot.slane %v3522, 4
        %v3525 = vor.u32 %v3521, %v3524
        %v3526 = vsel %vm2684, %v3516, %v3525
        %v3528 = vshrl.u32 %v3419, 16
        %v3530 = vrot.slane %v3528, 3
        %v3531 = vshll.u32 %v3419, 16
        %v3533 = vrot.slane %v3531, 4
        %v3534 = vor.u32 %v3530, %v3533
        %v3535 = vsel %vm2684, %v3525, %v3534
        %v3537 = vshrl.u32 %v3420, 16
        %v3539 = vrot.slane %v3537, 3
        %v3540 = vshll.u32 %v3420, 16
        %v3542 = vrot.slane %v3540, 4
        %v3543 = vor.u32 %v3539, %v3542
        %v3544 = vsel %vm2684, %v3534, %v3543
        %v3546 = vshrl.u32 %v3421, 16
        %v3548 = vrot.slane %v3546, 3
        %v3549 = vshll.u32 %v3421, 16
        %v3551 = vrot.slane %v3549, 4
        %v3552 = vor.u32 %v3548, %v3551
        %v3553 = vsel %vm2684, %v3543, %v3552
        %v3555 = vshrl.u32 %v3422, 16
        %v3557 = vrot.slane %v3555, 3
        %v3558 = vshll.u32 %v3422, 16
        %v3560 = vrot.slane %v3558, 4
        %v3561 = vor.u32 %v3557, %v3560
        %v3562 = vsel %vm2684, %v3552, %v3561
        %v3564 = vshrl.u32 %v3423, 16
        %v3566 = vrot.slane %v3564, 3
        %v3567 = vshll.u32 %v3423, 16
        %v3569 = vrot.slane %v3567, 4
        %v3570 = vor.u32 %v3566, %v3569
        %v3571 = vsel %vm2684, %v3561, %v3570
        %v3573 = vshrl.u32 %v3424, 16
        %v3575 = vrot.slane %v3573, 3
        %v3576 = vshll.u32 %v3424, 16
        %v3578 = vrot.slane %v3576, 4
        %v3579 = vor.u32 %v3575, %v3578
        %v3580 = vsel %vm2684, %v3570, %v3579
        %v3582 = vshrl.u32 %v3425, 16
        %v3584 = vrot.slane %v3582, 3
        %v3585 = vshll.u32 %v3425, 16
        %v3587 = vrot.slane %v3585, 4
        %v3588 = vor.u32 %v3584, %v3587
        %v3589 = vsel %vm2684, %v3579, %v3588
        %v3591 = vshrl.u32 %v3426, 16
        %v3593 = vrot.slane %v3591, 3
        %v3594 = vshll.u32 %v3426, 16
        %v3596 = vrot.slane %v3594, 4
        %v3597 = vor.u32 %v3593, %v3596
        %v3598 = vsel %vm2684, %v3588, %v3597
        %v3600 = vshrl.u32 %v3427, 16
        %v3602 = vrot.slane %v3600, 3
        %v3603 = vshll.u32 %v3427, 16
        %v3605 = vrot.slane %v3603, 4
        %v3606 = vor.u32 %v3602, %v3605
        %v3607 = vsel %vm2684, %v3597, %v3606
        %v3609 = vshrl.u32 %v3428, 16
        %v3611 = vrot.slane %v3609, 3
        %v3612 = vshll.u32 %v3428, 16
        %v3614 = vrot.slane %v3612, 4
        %v3615 = vor.u32 %v3611, %v3614
        %v3616 = vsel %vm2684, %v3606, %v3615
        %v3654 = vunpack.c.l.b16 %v3308
        %v3655 = vunpack.c.l.b16 %v3309
        %v3656 = vunpack.c.l.b16 %v3310
        %v3657 = vunpack.c.l.b16 %v3311
        %v3658 = vunpack.c.l.b16 %v3312
        %v3659 = vunpack.c.l.b16 %v3313
        %v3660 = vunpack.c.l.b16 %v3314
        %v3661 = vunpack.c.l.b16 %v3315
        %v3662 = vunpack.c.l.b16 %v3316
        %v3663 = vunpack.c.l.b16 %v3317
        %v3664 = vunpack.c.l.b16 %v3318
        %v3665 = vunpack.c.l.b16 %v3319
        %v3666 = vunpack.c.l.b16 %v3320
        %v3667 = vunpack.c.l.b16 %v3321
        %v3668 = vunpack.c.l.b16 %v3322
        %v3669 = vunpack.c.l.b16 %v3323
        %v3670 = vpack.c.b16 %v3655, %v3654
        %v3671 = vpack.c.b16 %v3657, %v3656
        %v3672 = vpack.c.b16 %v3659, %v3658
        %v3673 = vpack.c.b16 %v3661, %v3660
        %v3674 = vpack.c.b16 %v3663, %v3662
        %v3675 = vpack.c.b16 %v3665, %v3664
        %v3676 = vpack.c.b16 %v3667, %v3666
        %v3677 = vpack.c.b16 %v3669, %v3668
        %3686 = vmatprep.subr.bf16.mxu0 0
        %3687 = vmatpush1.bf16.msra.mxu0 %v3670
        %3688 = vmatprep.subr.bf16.mxu0 0
        %3689 = vmatpush1.bf16.msra.mxu0 %v3671
        %3690 = vmatprep.subr.bf16.mxu0 0
        %3691 = vmatpush1.bf16.msra.mxu0 %v3672
        %3692 = vmatprep.subr.bf16.mxu0 0
        %3693 = vmatpush1.bf16.msra.mxu0 %v3673
        %3694 = vmatprep.subr.bf16.mxu0 0
        %3695 = vmatpush1.bf16.msra.mxu0 %v3674
        %3696 = vmatprep.subr.bf16.mxu0 0
        %3697 = vmatpush1.bf16.msra.mxu0 %v3675
        %3698 = vmatprep.subr.bf16.mxu0 0
        %3699 = vmatpush1.bf16.msra.mxu0 %v3676
        %3700 = vmatprep.subr.bf16.mxu0 0
        %3701 = vmatpush1.bf16.msra.mxu0 %v3677
        %3702 = vmatprep.subr.bf16.mxu0 0
        %3703 = vmatpush1.bf16.msra.mxu0 0
        %3704 = vmatprep.subr.bf16.mxu0 0
        %3705 = vmatpush1.bf16.msra.mxu0 0
        %3706 = vmatprep.subr.bf16.mxu0 0
        %3707 = vmatpush1.bf16.msra.mxu0 0
        %3708 = vmatprep.subr.bf16.mxu0 0
        %3709 = vmatpush1.bf16.msra.mxu0 0
        %3710 = vmatprep.subr.bf16.mxu0 0
        %3711 = vmatpush1.bf16.msra.mxu0 0
        %3712 = vmatprep.subr.bf16.mxu0 0
        %3713 = vmatpush1.bf16.msra.mxu0 0
        %3714 = vmatprep.subr.bf16.mxu0 0
        %3715 = vmatpush1.bf16.msra.mxu0 0
        %3716 = vmatprep.subr.bf16.mxu0 0
        %3717 = vmatpush1.bf16.msra.mxu0 0
        %3718 = vmatprep.mubr.bf16.mxu0 0
        %3719 = vmatmul.mubr.bf16.gmra.mrb[0].mxu0 %v3445
        %v3720 = vpop.f32.mrb[0].mxu0
        %v3721 = vadd.f32 0.0, %v3720
        %v3722 = vpop.f32.mrb[0].mxu0
        %v3723 = vpop.f32.mrb[0].mxu0
        %v3724 = vadd.f32 0.0, %v3723
        %v3725 = vpop.f32.mrb[0].mxu0
        %3726 = vmatprep.mubr.bf16.mxu0 0
        %3727 = vmatmul.mubr.bf16.gmra.mrb[0].mxu0 %v3454
        %v3728 = vpop.f32.mrb[0].mxu0
        %v3729 = vadd.f32 0.0, %v3728
        %v3730 = vpop.f32.mrb[0].mxu0
        %v3731 = vpop.f32.mrb[0].mxu0
        %v3732 = vadd.f32 0.0, %v3731
        %v3733 = vpop.f32.mrb[0].mxu0
        %3734 = vmatprep.mubr.bf16.mxu0 0
        %3735 = vmatmul.mubr.bf16.gmra.mrb[0].mxu0 %v3463
        %v3736 = vpop.f32.mrb[0].mxu0
        %v3737 = vadd.f32 0.0, %v3736
        %v3738 = vpop.f32.mrb[0].mxu0
        %v3739 = vpop.f32.mrb[0].mxu0
        %v3740 = vadd.f32 0.0, %v3739
        %v3741 = vpop.f32.mrb[0].mxu0
        %3742 = vmatprep.mubr.bf16.mxu0 0
        %3743 = vmatmul.mubr.bf16.gmra.mrb[0].mxu0 %v3472
        %v3744 = vpop.f32.mrb[0].mxu0
        %v3745 = vadd.f32 0.0, %v3744
        %v3746 = vpop.f32.mrb[0].mxu0
        %v3747 = vpop.f32.mrb[0].mxu0
        %v3748 = vadd.f32 0.0, %v3747
        %v3749 = vpop.f32.mrb[0].mxu0
        %3750 = vmatprep.mubr.bf16.mxu0 0
        %3751 = vmatmul.mubr.bf16.gmra.mrb[0].mxu0 %v3481
        %v3752 = vpop.f32.mrb[0].mxu0
        %v3753 = vadd.f32 0.0, %v3752
        %v3754 = vpop.f32.mrb[0].mxu0
        %v3755 = vpop.f32.mrb[0].mxu0
        %v3756 = vadd.f32 0.0, %v3755
        %v3757 = vpop.f32.mrb[0].mxu0
        %3758 = vmatprep.mubr.bf16.mxu0 0
        %3759 = vmatmul.mubr.bf16.gmra.mrb[0].mxu0 %v3490
        %v3760 = vpop.f32.mrb[0].mxu0
        %v3761 = vadd.f32 0.0, %v3760
        %v3762 = vpop.f32.mrb[0].mxu0
        %v3763 = vpop.f32.mrb[0].mxu0
        %v3764 = vadd.f32 0.0, %v3763
        %v3765 = vpop.f32.mrb[0].mxu0
        %3766 = vmatprep.mubr.bf16.mxu0 0
        %3767 = vmatmul.mubr.bf16.gmra.mrb[0].mxu0 %v3499
        %v3768 = vpop.f32.mrb[0].mxu0
        %v3769 = vadd.f32 0.0, %v3768
        %v3770 = vpop.f32.mrb[0].mxu0
        %v3771 = vpop.f32.mrb[0].mxu0
        %v3772 = vadd.f32 0.0, %v3771
        %v3773 = vpop.f32.mrb[0].mxu0
        %3774 = vmatprep.mubr.bf16.mxu0 0
        %3775 = vmatmul.mubr.bf16.gmra.mrb[0].mxu0 %v3508
        %v3776 = vpop.f32.mrb[0].mxu0
        %v3777 = vadd.f32 0.0, %v3776
        %v3778 = vpop.f32.mrb[0].mxu0
        %v3779 = vpop.f32.mrb[0].mxu0
        %v3780 = vadd.f32 0.0, %v3779
        %v3781 = vpop.f32.mrb[0].mxu0
        %3782 = vmatprep.mubr.bf16.mxu0 0
        %3783 = vmatmul.mubr.bf16.gmra.mrb[0].mxu0 %v3517
        %v3784 = vpop.f32.mrb[0].mxu0
        %v3785 = vadd.f32 0.0, %v3784
        %v3786 = vpop.f32.mrb[0].mxu0
        %v3787 = vpop.f32.mrb[0].mxu0
        %v3788 = vadd.f32 0.0, %v3787
        %v3789 = vpop.f32.mrb[0].mxu0
        %3790 = vmatprep.mubr.bf16.mxu0 0
        %3791 = vmatmul.mubr.bf16.gmra.mrb[0].mxu0 %v3526
        %v3792 = vpop.f32.mrb[0].mxu0
        %v3793 = vadd.f32 0.0, %v3792
        %v3794 = vpop.f32.mrb[0].mxu0
        %v3795 = vpop.f32.mrb[0].mxu0
        %v3796 = vadd.f32 0.0, %v3795
        %v3797 = vpop.f32.mrb[0].mxu0
        %3798 = vmatprep.mubr.bf16.mxu0 0
        %3799 = vmatmul.mubr.bf16.gmra.mrb[0].mxu0 %v3535
        %v3800 = vpop.f32.mrb[0].mxu0
        %v3801 = vadd.f32 0.0, %v3800
        %v3802 = vpop.f32.mrb[0].mxu0
        %v3803 = vpop.f32.mrb[0].mxu0
        %v3804 = vadd.f32 0.0, %v3803
        %v3805 = vpop.f32.mrb[0].mxu0
        %3806 = vmatprep.mubr.bf16.mxu0 0
        %3807 = vmatmul.mubr.bf16.gmra.mrb[0].mxu0 %v3544
        %v3808 = vpop.f32.mrb[0].mxu0
        %v3809 = vadd.f32 0.0, %v3808
        %v3810 = vpop.f32.mrb[0].mxu0
        %v3811 = vpop.f32.mrb[0].mxu0
        %v3812 = vadd.f32 0.0, %v3811
        %v3813 = vpop.f32.mrb[0].mxu0
        %3814 = vmatprep.mubr.bf16.mxu0 0
        %3815 = vmatmul.mubr.bf16.gmra.mrb[0].mxu0 %v3553
        %v3816 = vpop.f32.mrb[0].mxu0
        %v3817 = vadd.f32 0.0, %v3816
        %v3818 = vpop.f32.mrb[0].mxu0
        %v3819 = vpop.f32.mrb[0].mxu0
        %v3820 = vadd.f32 0.0, %v3819
        %v3821 = vpop.f32.mrb[0].mxu0
        %3822 = vmatprep.mubr.bf16.mxu0 0
        %3823 = vmatmul.mubr.bf16.gmra.mrb[0].mxu0 %v3562
        %v3824 = vpop.f32.mrb[0].mxu0
        %v3825 = vadd.f32 0.0, %v3824
        %v3826 = vpop.f32.mrb[0].mxu0
        %v3827 = vpop.f32.mrb[0].mxu0
        %v3828 = vadd.f32 0.0, %v3827
        %v3829 = vpop.f32.mrb[0].mxu0
        %3830 = vmatprep.mubr.bf16.mxu0 0
        %3831 = vmatmul.mubr.bf16.gmra.mrb[0].mxu0 %v3571
        %v3832 = vpop.f32.mrb[0].mxu0
        %v3833 = vadd.f32 0.0, %v3832
        %v3834 = vpop.f32.mrb[0].mxu0
        %v3835 = vpop.f32.mrb[0].mxu0
        %v3836 = vadd.f32 0.0, %v3835
        %v3837 = vpop.f32.mrb[0].mxu0
        %3838 = vmatprep.mubr.bf16.mxu0 0
        %3839 = vmatmul.mubr.bf16.gmra.mrb[0].mxu0 %v3580
        %v3840 = vpop.f32.mrb[0].mxu0
        %v3841 = vadd.f32 0.0, %v3840
        %v3842 = vpop.f32.mrb[0].mxu0
        %v3843 = vpop.f32.mrb[0].mxu0
        %v3844 = vadd.f32 0.0, %v3843
        %v3845 = vpop.f32.mrb[0].mxu0
        %3846 = vmatprep.mubr.bf16.mxu0 0
        %3847 = vmatmul.mubr.bf16.gmra.mrb[0].mxu0 %v3589
        %v3848 = vpop.f32.mrb[0].mxu0
        %v3849 = vadd.f32 0.0, %v3848
        %v3850 = vpop.f32.mrb[0].mxu0
        %v3851 = vpop.f32.mrb[0].mxu0
        %v3852 = vadd.f32 0.0, %v3851
        %v3853 = vpop.f32.mrb[0].mxu0
        %3854 = vmatprep.mubr.bf16.mxu0 0
        %3855 = vmatmul.mubr.bf16.gmra.mrb[0].mxu0 %v3598
        %v3856 = vpop.f32.mrb[0].mxu0
        %v3857 = vadd.f32 0.0, %v3856
        %v3858 = vpop.f32.mrb[0].mxu0
        %v3859 = vpop.f32.mrb[0].mxu0
        %v3860 = vadd.f32 0.0, %v3859
        %v3861 = vpop.f32.mrb[0].mxu0
        %3862 = vmatprep.mubr.bf16.mxu0 0
        %3863 = vmatmul.mubr.bf16.gmra.mrb[0].mxu0 %v3607
        %v3864 = vpop.f32.mrb[0].mxu0
        %v3865 = vadd.f32 0.0, %v3864
        %v3866 = vpop.f32.mrb[0].mxu0
        %v3867 = vpop.f32.mrb[0].mxu0
        %v3868 = vadd.f32 0.0, %v3867
        %v3869 = vpop.f32.mrb[0].mxu0
        %3870 = vmatprep.mubr.bf16.mxu0 0
        %3871 = vmatmul.mubr.bf16.gmra.mrb[0].mxu0 %v3616
        %v3872 = vpop.f32.mrb[0].mxu0
        %v3873 = vadd.f32 0.0, %v3872
        %v3874 = vpop.f32.mrb[0].mxu0
        %v3875 = vpop.f32.mrb[0].mxu0
        %v3876 = vadd.f32 0.0, %v3875
        %v3877 = vpop.f32.mrb[0].mxu0
        %3878 = vmatprep.mubr.bf16.mxu0 0
        %3879 = vmatmul.mubr.bf16.gmra.mrb[0].mxu0 %v3615
        %v3880 = vpop.f32.mrb[0].mxu0
        %v3881 = vadd.f32 0.0, %v3880
        %v3882 = vpop.f32.mrb[0].mxu0
        %v3883 = vpop.f32.mrb[0].mxu0
        %v3884 = vpop.f32.mrb[0].mxu0
        %3885 = vdwg.mxu0
        %v3886 = vld [vmem:[#allocation3] sm:$0xff]
        %v3887 = vld [vmem:[#allocation3 + $0x8] sm:$0xff]
        %v3888 = vld [vmem:[#allocation3 + $0x10] sm:$0xff]
        %v3889 = vld [vmem:[#allocation3 + $0x18] sm:$0xff]
        %v3890 = vld [vmem:[#allocation3 + $0x20] sm:$0xff]
        %v3891 = vld [vmem:[#allocation3 + $0x28] sm:$0xff]
        %v3892 = vld [vmem:[#allocation3 + $0x30] sm:$0xff]
        %v3893 = vld [vmem:[#allocation3 + $0x38] sm:$0xff]
        %v3894 = vld [vmem:[#allocation3 + $0x40] sm:$0xff]
        %v3895 = vld [vmem:[#allocation3 + $0x48] sm:$0xff]
        %v3896 = vld [vmem:[#allocation3 + $0x50] sm:$0xff]
        %v3897 = vld [vmem:[#allocation3 + $0x58] sm:$0xff]
        %v3898 = vld [vmem:[#allocation3 + $0x60] sm:$0xff]
        %v3899 = vld [vmem:[#allocation3 + $0x68] sm:$0xff]
        %v3900 = vld [vmem:[#allocation3 + $0x70] sm:$0xff]
        %v3901 = vld [vmem:[#allocation3 + $0x78] sm:$0xff]
        %v3902 = vld [vmem:[#allocation3 + $0x80] sm:$0xff]
        %v3903 = vld [vmem:[#allocation3 + $0x88] sm:$0xff]
        %v3904 = vld [vmem:[#allocation3 + $0x90] sm:$0xff]
        %v3905 = vld [vmem:[#allocation3 + $0x98] sm:$0xff]
        %v3906 = vld [vmem:[#allocation3 + $0xa0] sm:$0xff]
        %v3907 = vld [vmem:[#allocation3 + $0xa8] sm:$0xff]
        %v3908 = vld [vmem:[#allocation3 + $0xb0] sm:$0xff]
        %v3909 = vld [vmem:[#allocation3 + $0xb8] sm:$0xff]
        %v3910 = vld [vmem:[#allocation3 + $0xc0] sm:$0xff]
        %v3911 = vld [vmem:[#allocation3 + $0xc8] sm:$0xff]
        %v3912 = vld [vmem:[#allocation3 + $0xd0] sm:$0xff]
        %v3913 = vld [vmem:[#allocation3 + $0xd8] sm:$0xff]
        %v3914 = vld [vmem:[#allocation3 + $0xe0] sm:$0xff]
        %v3915 = vld [vmem:[#allocation3 + $0xe8] sm:$0xff]
        %v3916 = vld [vmem:[#allocation3 + $0xf0] sm:$0xff]
        %v3917 = vld [vmem:[#allocation3 + $0xf8] sm:$0xff]
        %v3918 = vld [vmem:[#allocation3 + $0x100] sm:$0xff]
        %v3919 = vld [vmem:[#allocation3 + $0x108] sm:$0xff]
        %v3920 = vld [vmem:[#allocation3 + $0x110] sm:$0xff]
        %v3921 = vld [vmem:[#allocation3 + $0x118] sm:$0xff]
        %v3922 = vld [vmem:[#allocation3 + $0x120] sm:$0xff]
        %v3923 = vld [vmem:[#allocation3 + $0x128] sm:$0xff]
        %v3924 = vld [vmem:[#allocation3 + $0x130] sm:$0xff]
        %v3925 = vld [vmem:[#allocation3 + $0x138] sm:$0xff]
        %v3926 = vld [vmem:[#allocation3 + $0x140] sm:$0xff]
        %v3927 = vadd.f32 %v3886, %v3721
        %v3928 = vadd.f32 %v3887, %v3724
        %v3929 = vadd.f32 %v3888, %v3729
        %v3930 = vadd.f32 %v3889, %v3732
        %v3931 = vadd.f32 %v3890, %v3737
        %v3932 = vadd.f32 %v3891, %v3740
        %v3933 = vadd.f32 %v3892, %v3745
        %v3934 = vadd.f32 %v3893, %v3748
        %v3935 = vadd.f32 %v3894, %v3753
        %v3936 = vadd.f32 %v3895, %v3756
        %v3937 = vadd.f32 %v3896, %v3761
        %v3938 = vadd.f32 %v3897, %v3764
        %v3939 = vadd.f32 %v3898, %v3769
        %v3940 = vadd.f32 %v3899, %v3772
        %v3941 = vadd.f32 %v3900, %v3777
        %v3942 = vadd.f32 %v3901, %v3780
        %v3943 = vadd.f32 %v3902, %v3785
        %v3944 = vadd.f32 %v3903, %v3788
        %v3945 = vadd.f32 %v3904, %v3793
        %v3946 = vadd.f32 %v3905, %v3796
        %v3947 = vadd.f32 %v3906, %v3801
        %v3948 = vadd.f32 %v3907, %v3804
        %v3949 = vadd.f32 %v3908, %v3809
        %v3950 = vadd.f32 %v3909, %v3812
        %v3951 = vadd.f32 %v3910, %v3817
        %v3952 = vadd.f32 %v3911, %v3820
        %v3953 = vadd.f32 %v3912, %v3825
        %v3954 = vadd.f32 %v3913, %v3828
        %v3955 = vadd.f32 %v3914, %v3833
        %v3956 = vadd.f32 %v3915, %v3836
        %v3957 = vadd.f32 %v3916, %v3841
        %v3958 = vadd.f32 %v3917, %v3844
        %v3959 = vadd.f32 %v3918, %v3849
        %v3960 = vadd.f32 %v3919, %v3852
        %v3961 = vadd.f32 %v3920, %v3857
        %v3962 = vadd.f32 %v3921, %v3860
        %v3963 = vadd.f32 %v3922, %v3865
        %v3964 = vadd.f32 %v3923, %v3868
        %v3965 = vadd.f32 %v3924, %v3873
        %v3966 = vadd.f32 %v3925, %v3876
        %v3967 = vadd.f32 %v3926, %v3881
        %3968 = vst [vmem:[#allocation3] sm:$0xff] %v3927
        %3969 = vst [vmem:[#allocation3 + $0x8] sm:$0xff] %v3928
        %3970 = vst [vmem:[#allocation3 + $0x10] sm:$0xff] %v3929
        %3971 = vst [vmem:[#allocation3 + $0x18] sm:$0xff] %v3930
        %3972 = vst [vmem:[#allocation3 + $0x20] sm:$0xff] %v3931
        %3973 = vst [vmem:[#allocation3 + $0x28] sm:$0xff] %v3932
        %3974 = vst [vmem:[#allocation3 + $0x30] sm:$0xff] %v3933
        %3975 = vst [vmem:[#allocation3 + $0x38] sm:$0xff] %v3934
        %3976 = vst [vmem:[#allocation3 + $0x40] sm:$0xff] %v3935
        %3977 = vst [vmem:[#allocation3 + $0x48] sm:$0xff] %v3936
        %3978 = vst [vmem:[#allocation3 + $0x50] sm:$0xff] %v3937
        %3979 = vst [vmem:[#allocation3 + $0x58] sm:$0xff] %v3938
        %3980 = vst [vmem:[#allocation3 + $0x60] sm:$0xff] %v3939
        %3981 = vst [vmem:[#allocation3 + $0x68] sm:$0xff] %v3940
        %3982 = vst [vmem:[#allocation3 + $0x70] sm:$0xff] %v3941
        %3983 = vst [vmem:[#allocation3 + $0x78] sm:$0xff] %v3942
        %3984 = vst [vmem:[#allocation3 + $0x80] sm:$0xff] %v3943
        %3985 = vst [vmem:[#allocation3 + $0x88] sm:$0xff] %v3944
        %3986 = vst [vmem:[#allocation3 + $0x90] sm:$0xff] %v3945
        %3987 = vst [vmem:[#allocation3 + $0x98] sm:$0xff] %v3946
        %3988 = vst [vmem:[#allocation3 + $0xa0] sm:$0xff] %v3947
        %3989 = vst [vmem:[#allocation3 + $0xa8] sm:$0xff] %v3948
        %3990 = vst [vmem:[#allocation3 + $0xb0] sm:$0xff] %v3949
        %3991 = vst [vmem:[#allocation3 + $0xb8] sm:$0xff] %v3950
        %3992 = vst [vmem:[#allocation3 + $0xc0] sm:$0xff] %v3951
        %3993 = vst [vmem:[#allocation3 + $0xc8] sm:$0xff] %v3952
        %3994 = vst [vmem:[#allocation3 + $0xd0] sm:$0xff] %v3953
        %3995 = vst [vmem:[#allocation3 + $0xd8] sm:$0xff] %v3954
        %3996 = vst [vmem:[#allocation3 + $0xe0] sm:$0xff] %v3955
        %3997 = vst [vmem:[#allocation3 + $0xe8] sm:$0xff] %v3956
        %3998 = vst [vmem:[#allocation3 + $0xf0] sm:$0xff] %v3957
        %3999 = vst [vmem:[#allocation3 + $0xf8] sm:$0xff] %v3958
        %4000 = vst [vmem:[#allocation3 + $0x100] sm:$0xff] %v3959
        %4001 = vst [vmem:[#allocation3 + $0x108] sm:$0xff] %v3960
        %4002 = vst [vmem:[#allocation3 + $0x110] sm:$0xff] %v3961
        %4003 = vst [vmem:[#allocation3 + $0x118] sm:$0xff] %v3962
        %4004 = vst [vmem:[#allocation3 + $0x120] sm:$0xff] %v3963
        %4005 = vst [vmem:[#allocation3 + $0x128] sm:$0xff] %v3964
        %4006 = vst [vmem:[#allocation3 + $0x130] sm:$0xff] %v3965
        %4007 = vst [vmem:[#allocation3 + $0x138] sm:$0xff] %v3966
        %4008 = vst [vmem:[#allocation3 + $0x140] sm:$0xff] %v3967
        %v4009 = vld [vmem:[#allocation2 + $0xc] sm:$0xf]
        %v4010 = vld [vmem:[#allocation2 + $0x10] sm:$0xf]
        %v4011 = vld [vmem:[#allocation2 + $0x14] sm:$0xf]
        %v4012 = vld [vmem:[#allocation2 + $0x18] sm:$0xf]
        %v4013 = vld [vmem:[#allocation2 + $0x1c] sm:$0xf]
        %v4014 = vld [vmem:[#allocation2 + $0x20] sm:$0xf]
        %v4015 = vld [vmem:[#allocation2 + $0x24] sm:$0xf]
        %v4016 = vld [vmem:[#allocation2 + $0x28] sm:$0xf]
        %v4017 = vld [vmem:[#allocation2 + $0x2c] sm:$0xf]
        %v4018 = vld [vmem:[#allocation2 + $0x30] sm:$0xf]
        %v4019 = vld [vmem:[#allocation2 + $0x34] sm:$0xf]
        %v4020 = vld [vmem:[#allocation2 + $0x38] sm:$0xf]
        %v4021 = vld [vmem:[#allocation2 + $0x3c] sm:$0xf]
        %v4022 = vld [vmem:[#allocation2 + $0x40] sm:$0xf]
        %v4023 = vld [vmem:[#allocation2 + $0x44] sm:$0xf]
        %v4024 = vld [vmem:[#allocation2 + $0x48] sm:$0xf]
        %v4025 = vld [vmem:[#allocation2 + $0x4c] sm:$0xf]
        %v4026 = vld [vmem:[#allocation2 + $0x50] sm:$0xf]
        %v4027 = vld [vmem:[#allocation2 + $0x54] sm:$0xf]
        %v4028 = vld [vmem:[#allocation2 + $0x58] sm:$0xf]
        %v4029 = vld [vmem:[#allocation2 + $0x5c] sm:$0xf]
        %v4030 = vld [vmem:[#allocation2 + $0x60] sm:$0xf]
        %v4031 = vld [vmem:[#allocation2 + $0x64] sm:$0xf]
        %v4032 = vld [vmem:[#allocation2 + $0x68] sm:$0xf]
        %v4033 = vld [vmem:[#allocation2 + $0x6c] sm:$0xf]
        %v4034 = vld [vmem:[#allocation2 + $0x70] sm:$0xf]
        %v4035 = vld [vmem:[#allocation2 + $0x74] sm:$0xf]
        %v4036 = vld [vmem:[#allocation2 + $0x78] sm:$0xf]
        %v4037 = vld [vmem:[#allocation2 + $0x7c] sm:$0xf]
        %v4038 = vld [vmem:[#allocation2 + $0x80] sm:$0xf]
        %v4039 = vld [vmem:[#allocation2 + $0x84] sm:$0xf]
        %v4040 = vld [vmem:[#allocation2 + $0x88] sm:$0xf]
        %v4041 = vld [vmem:[#allocation2 + $0x8c] sm:$0xf]
        %v4042 = vld [vmem:[#allocation2 + $0x90] sm:$0xf]
        %v4043 = vld [vmem:[#allocation2 + $0x94] sm:$0xf]
        %v4044 = vld [vmem:[#allocation2 + $0x98] sm:$0xf]
        %v4045 = vld [vmem:[#allocation2 + $0x9c] sm:$0xf]
        %v4046 = vld [vmem:[#allocation2 + $0xa0] sm:$0xf]
        %v4047 = vld [vmem:[#allocation2 + $0xa4] sm:$0xf]
        %v4048 = vld [vmem:[#allocation2 + $0xa8] sm:$0xf]
        %v4049 = vld [vmem:[#allocation2 + $0xac] sm:$0xf]
        %s4050 = scalar_lea.vmem [#allocation7], 256
        %v4051 = vld [vmem:[%s4050] sm:$0xf]
        %v4052 = vld [vmem:[%s4050 + $0x4] sm:$0xf]
        %v4053 = vld [vmem:[%s4050 + $0x8] sm:$0xf]
        %v4054 = vld [vmem:[%s4050 + $0xc] sm:$0xf]
        %v4055 = vld [vmem:[%s4050 + $0x10] sm:$0xf]
        %v4056 = vld [vmem:[%s4050 + $0x14] sm:$0xf]
        %v4057 = vld [vmem:[%s4050 + $0x18] sm:$0xf]
        %v4058 = vld [vmem:[%s4050 + $0x1c] sm:$0xf]
        %v4059 = vld [vmem:[%s4050 + $0x20] sm:$0xf]
        %v4060 = vld [vmem:[%s4050 + $0x24] sm:$0xf]
        %v4061 = vld [vmem:[%s4050 + $0x28] sm:$0xf]
        %v4062 = vld [vmem:[%s4050 + $0x2c] sm:$0xf]
        %v4063 = vld [vmem:[%s4050 + $0x30] sm:$0xf]
        %v4064 = vld [vmem:[%s4050 + $0x34] sm:$0xf]
        %v4065 = vld [vmem:[%s4050 + $0x38] sm:$0xf]
        %v4066 = vld [vmem:[%s4050 + $0x3c] sm:$0xf]
        %v4108 = vunpack.c.l.b16 %v4009
        %v4109 = vunpack.c.l.b16 %v4010
        %v4110 = vunpack.c.l.b16 %v4011
        %v4111 = vunpack.c.l.b16 %v4012
        %v4112 = vunpack.c.l.b16 %v4013
        %v4113 = vunpack.c.l.b16 %v4014
        %v4114 = vunpack.c.l.b16 %v4015
        %v4115 = vunpack.c.l.b16 %v4016
        %v4116 = vunpack.c.l.b16 %v4017
        %v4117 = vunpack.c.l.b16 %v4018
        %v4118 = vunpack.c.l.b16 %v4019
        %v4119 = vunpack.c.l.b16 %v4020
        %v4120 = vunpack.c.l.b16 %v4021
        %v4121 = vunpack.c.l.b16 %v4022
        %v4122 = vunpack.c.l.b16 %v4023
        %v4123 = vunpack.c.l.b16 %v4024
        %v4124 = vunpack.c.l.b16 %v4025
        %v4125 = vunpack.c.l.b16 %v4026
        %v4126 = vunpack.c.l.b16 %v4027
        %v4127 = vunpack.c.l.b16 %v4028
        %v4128 = vunpack.c.l.b16 %v4029
        %v4129 = vunpack.c.l.b16 %v4030
        %v4130 = vunpack.c.l.b16 %v4031
        %v4131 = vunpack.c.l.b16 %v4032
        %v4132 = vunpack.c.l.b16 %v4033
        %v4133 = vunpack.c.l.b16 %v4034
        %v4134 = vunpack.c.l.b16 %v4035
        %v4135 = vunpack.c.l.b16 %v4036
        %v4136 = vunpack.c.l.b16 %v4037
        %v4137 = vunpack.c.l.b16 %v4038
        %v4138 = vunpack.c.l.b16 %v4039
        %v4139 = vunpack.c.l.b16 %v4040
        %v4140 = vunpack.c.l.b16 %v4041
        %v4141 = vunpack.c.l.b16 %v4042
        %v4142 = vunpack.c.l.b16 %v4043
        %v4143 = vunpack.c.l.b16 %v4044
        %v4144 = vunpack.c.l.b16 %v4045
        %v4145 = vunpack.c.l.b16 %v4046
        %v4146 = vunpack.c.l.b16 %v4047
        %v4147 = vunpack.c.l.b16 %v4048
        %v4148 = vunpack.c.l.b16 %v4049
        %v4149 = vpack.c.b16 %v4109, %v4108
        %v4150 = vpack.c.b16 %v4111, %v4110
        %v4151 = vpack.c.b16 %v4113, %v4112
        %v4152 = vpack.c.b16 %v4115, %v4114
        %v4153 = vpack.c.b16 %v4117, %v4116
        %v4154 = vpack.c.b16 %v4119, %v4118
        %v4155 = vpack.c.b16 %v4121, %v4120
        %v4156 = vpack.c.b16 %v4123, %v4122
        %v4157 = vpack.c.b16 %v4125, %v4124
        %v4158 = vpack.c.b16 %v4127, %v4126
        %v4159 = vpack.c.b16 %v4129, %v4128
        %v4160 = vpack.c.b16 %v4131, %v4130
        %v4161 = vpack.c.b16 %v4133, %v4132
        %v4162 = vpack.c.b16 %v4135, %v4134
        %v4163 = vpack.c.b16 %v4137, %v4136
        %v4164 = vpack.c.b16 %v4139, %v4138
        %v4165 = vpack.c.b16 %v4141, %v4140
        %v4166 = vpack.c.b16 %v4143, %v4142
        %v4167 = vpack.c.b16 %v4145, %v4144
        %v4168 = vpack.c.b16 %v4147, %v4146
        %v4169 = vpack.c.b16 %v4148, %v4148
        %v4207 = vunpack.c.l.b16 %v4051
        %v4208 = vunpack.c.l.b16 %v4052
        %v4209 = vunpack.c.l.b16 %v4053
        %v4210 = vunpack.c.l.b16 %v4054
        %v4211 = vunpack.c.l.b16 %v4055
        %v4212 = vunpack.c.l.b16 %v4056
        %v4213 = vunpack.c.l.b16 %v4057
        %v4214 = vunpack.c.l.b16 %v4058
        %v4215 = vunpack.c.l.b16 %v4059
        %v4216 = vunpack.c.l.b16 %v4060
        %v4217 = vunpack.c.l.b16 %v4061
        %v4218 = vunpack.c.l.b16 %v4062
        %v4219 = vunpack.c.l.b16 %v4063
        %v4220 = vunpack.c.l.b16 %v4064
        %v4221 = vunpack.c.l.b16 %v4065
        %v4222 = vunpack.c.l.b16 %v4066
        %v4223 = vpack.c.b16 %v4208, %v4207
        %v4224 = vpack.c.b16 %v4210, %v4209
        %v4225 = vpack.c.b16 %v4212, %v4211
        %v4226 = vpack.c.b16 %v4214, %v4213
        %v4227 = vpack.c.b16 %v4216, %v4215
        %v4228 = vpack.c.b16 %v4218, %v4217
        %v4229 = vpack.c.b16 %v4220, %v4219
        %v4230 = vpack.c.b16 %v4222, %v4221
        %4239 = vmatprep.subr.bf16.mxu0 0
        %4240 = vmatpush1.bf16.msra.mxu0 %v4223
        %4241 = vmatprep.subr.bf16.mxu0 0
        %4242 = vmatpush1.bf16.msra.mxu0 %v4224
        %4243 = vmatprep.subr.bf16.mxu0 0
        %4244 = vmatpush1.bf16.msra.mxu0 %v4225
        %4245 = vmatprep.subr.bf16.mxu0 0
        %4246 = vmatpush1.bf16.msra.mxu0 %v4226
        %4247 = vmatprep.subr.bf16.mxu0 0
        %4248 = vmatpush1.bf16.msra.mxu0 %v4227
        %4249 = vmatprep.subr.bf16.mxu0 0
        %4250 = vmatpush1.bf16.msra.mxu0 %v4228
        %4251 = vmatprep.subr.bf16.mxu0 0
        %4252 = vmatpush1.bf16.msra.mxu0 %v4229
        %4253 = vmatprep.subr.bf16.mxu0 0
        %4254 = vmatpush1.bf16.msra.mxu0 %v4230
        %4255 = vmatprep.subr.bf16.mxu0 0
        %4256 = vmatpush1.bf16.msra.mxu0 0
        %4257 = vmatprep.subr.bf16.mxu0 0
        %4258 = vmatpush1.bf16.msra.mxu0 0
        %4259 = vmatprep.subr.bf16.mxu0 0
        %4260 = vmatpush1.bf16.msra.mxu0 0
        %4261 = vmatprep.subr.bf16.mxu0 0
        %4262 = vmatpush1.bf16.msra.mxu0 0
        %4263 = vmatprep.subr.bf16.mxu0 0
        %4264 = vmatpush1.bf16.msra.mxu0 0
        %4265 = vmatprep.subr.bf16.mxu0 0
        %4266 = vmatpush1.bf16.msra.mxu0 0
        %4267 = vmatprep.subr.bf16.mxu0 0
        %4268 = vmatpush1.bf16.msra.mxu0 0
        %4269 = vmatprep.subr.bf16.mxu0 0
        %4270 = vmatpush1.bf16.msra.mxu0 0
        %4271 = vmatprep.mubr.bf16.mxu0 0
        %4272 = vmatmul.mubr.bf16.gmra.mrb[0].mxu0 %v4149
        %v4273 = vpop.f32.mrb[0].mxu0
        %v4274 = vadd.f32 0.0, %v4273
        %v4275 = vpop.f32.mrb[0].mxu0
        %v4276 = vpop.f32.mrb[0].mxu0
        %v4277 = vadd.f32 0.0, %v4276
        %v4278 = vpop.f32.mrb[0].mxu0
        %4279 = vmatprep.mubr.bf16.mxu0 0
        %4280 = vmatmul.mubr.bf16.gmra.mrb[0].mxu0 %v4150
        %v4281 = vpop.f32.mrb[0].mxu0
        %v4282 = vadd.f32 0.0, %v4281
        %v4283 = vpop.f32.mrb[0].mxu0
        %v4284 = vpop.f32.mrb[0].mxu0
        %v4285 = vadd.f32 0.0, %v4284
        %v4286 = vpop.f32.mrb[0].mxu0
        %4287 = vmatprep.mubr.bf16.mxu0 0
        %4288 = vmatmul.mubr.bf16.gmra.mrb[0].mxu0 %v4151
        %v4289 = vpop.f32.mrb[0].mxu0
        %v4290 = vadd.f32 0.0, %v4289
        %v4291 = vpop.f32.mrb[0].mxu0
        %v4292 = vpop.f32.mrb[0].mxu0
        %v4293 = vadd.f32 0.0, %v4292
        %v4294 = vpop.f32.mrb[0].mxu0
        %4295 = vmatprep.mubr.bf16.mxu0 0
        %4296 = vmatmul.mubr.bf16.gmra.mrb[0].mxu0 %v4152
        %v4297 = vpop.f32.mrb[0].mxu0
        %v4298 = vadd.f32 0.0, %v4297
        %v4299 = vpop.f32.mrb[0].mxu0
        %v4300 = vpop.f32.mrb[0].mxu0
        %v4301 = vadd.f32 0.0, %v4300
        %v4302 = vpop.f32.mrb[0].mxu0
        %4303 = vmatprep.mubr.bf16.mxu0 0
        %4304 = vmatmul.mubr.bf16.gmra.mrb[0].mxu0 %v4153
        %v4305 = vpop.f32.mrb[0].mxu0
        %v4306 = vadd.f32 0.0, %v4305
        %v4307 = vpop.f32.mrb[0].mxu0
        %v4308 = vpop.f32.mrb[0].mxu0
        %v4309 = vadd.f32 0.0, %v4308
        %v4310 = vpop.f32.mrb[0].mxu0
        %4311 = vmatprep.mubr.bf16.mxu0 0
        %4312 = vmatmul.mubr.bf16.gmra.mrb[0].mxu0 %v4154
        %v4313 = vpop.f32.mrb[0].mxu0
        %v4314 = vadd.f32 0.0, %v4313
        %v4315 = vpop.f32.mrb[0].mxu0
        %v4316 = vpop.f32.mrb[0].mxu0
        %v4317 = vadd.f32 0.0, %v4316
        %v4318 = vpop.f32.mrb[0].mxu0
        %4319 = vmatprep.mubr.bf16.mxu0 0
        %4320 = vmatmul.mubr.bf16.gmra.mrb[0].mxu0 %v4155
        %v4321 = vpop.f32.mrb[0].mxu0
        %v4322 = vadd.f32 0.0, %v4321
        %v4323 = vpop.f32.mrb[0].mxu0
        %v4324 = vpop.f32.mrb[0].mxu0
        %v4325 = vadd.f32 0.0, %v4324
        %v4326 = vpop.f32.mrb[0].mxu0
        %4327 = vmatprep.mubr.bf16.mxu0 0
        %4328 = vmatmul.mubr.bf16.gmra.mrb[0].mxu0 %v4156
        %v4329 = vpop.f32.mrb[0].mxu0
        %v4330 = vadd.f32 0.0, %v4329
        %v4331 = vpop.f32.mrb[0].mxu0
        %v4332 = vpop.f32.mrb[0].mxu0
        %v4333 = vadd.f32 0.0, %v4332
        %v4334 = vpop.f32.mrb[0].mxu0
        %4335 = vmatprep.mubr.bf16.mxu0 0
        %4336 = vmatmul.mubr.bf16.gmra.mrb[0].mxu0 %v4157
        %v4337 = vpop.f32.mrb[0].mxu0
        %v4338 = vadd.f32 0.0, %v4337
        %v4339 = vpop.f32.mrb[0].mxu0
        %v4340 = vpop.f32.mrb[0].mxu0
        %v4341 = vadd.f32 0.0, %v4340
        %v4342 = vpop.f32.mrb[0].mxu0
        %4343 = vmatprep.mubr.bf16.mxu0 0
        %4344 = vmatmul.mubr.bf16.gmra.mrb[0].mxu0 %v4158
        %v4345 = vpop.f32.mrb[0].mxu0
        %v4346 = vadd.f32 0.0, %v4345
        %v4347 = vpop.f32.mrb[0].mxu0
        %v4348 = vpop.f32.mrb[0].mxu0
        %v4349 = vadd.f32 0.0, %v4348
        %v4350 = vpop.f32.mrb[0].mxu0
        %4351 = vmatprep.mubr.bf16.mxu0 0
        %4352 = vmatmul.mubr.bf16.gmra.mrb[0].mxu0 %v4159
        %v4353 = vpop.f32.mrb[0].mxu0
        %v4354 = vadd.f32 0.0, %v4353
        %v4355 = vpop.f32.mrb[0].mxu0
        %v4356 = vpop.f32.mrb[0].mxu0
        %v4357 = vadd.f32 0.0, %v4356
        %v4358 = vpop.f32.mrb[0].mxu0
        %4359 = vmatprep.mubr.bf16.mxu0 0
        %4360 = vmatmul.mubr.bf16.gmra.mrb[0].mxu0 %v4160
        %v4361 = vpop.f32.mrb[0].mxu0
        %v4362 = vadd.f32 0.0, %v4361
        %v4363 = vpop.f32.mrb[0].mxu0
        %v4364 = vpop.f32.mrb[0].mxu0
        %v4365 = vadd.f32 0.0, %v4364
        %v4366 = vpop.f32.mrb[0].mxu0
        %4367 = vmatprep.mubr.bf16.mxu0 0
        %4368 = vmatmul.mubr.bf16.gmra.mrb[0].mxu0 %v4161
        %v4369 = vpop.f32.mrb[0].mxu0
        %v4370 = vadd.f32 0.0, %v4369
        %v4371 = vpop.f32.mrb[0].mxu0
        %v4372 = vpop.f32.mrb[0].mxu0
        %v4373 = vadd.f32 0.0, %v4372
        %v4374 = vpop.f32.mrb[0].mxu0
        %4375 = vmatprep.mubr.bf16.mxu0 0
        %4376 = vmatmul.mubr.bf16.gmra.mrb[0].mxu0 %v4162
        %v4377 = vpop.f32.mrb[0].mxu0
        %v4378 = vadd.f32 0.0, %v4377
        %v4379 = vpop.f32.mrb[0].mxu0
        %v4380 = vpop.f32.mrb[0].mxu0
        %v4381 = vadd.f32 0.0, %v4380
        %v4382 = vpop.f32.mrb[0].mxu0
        %4383 = vmatprep.mubr.bf16.mxu0 0
        %4384 = vmatmul.mubr.bf16.gmra.mrb[0].mxu0 %v4163
        %v4385 = vpop.f32.mrb[0].mxu0
        %v4386 = vadd.f32 0.0, %v4385
        %v4387 = vpop.f32.mrb[0].mxu0
        %v4388 = vpop.f32.mrb[0].mxu0
        %v4389 = vadd.f32 0.0, %v4388
        %v4390 = vpop.f32.mrb[0].mxu0
        %4391 = vmatprep.mubr.bf16.mxu0 0
        %4392 = vmatmul.mubr.bf16.gmra.mrb[0].mxu0 %v4164
        %v4393 = vpop.f32.mrb[0].mxu0
        %v4394 = vadd.f32 0.0, %v4393
        %v4395 = vpop.f32.mrb[0].mxu0
        %v4396 = vpop.f32.mrb[0].mxu0
        %v4397 = vadd.f32 0.0, %v4396
        %v4398 = vpop.f32.mrb[0].mxu0
        %4399 = vmatprep.mubr.bf16.mxu0 0
        %4400 = vmatmul.mubr.bf16.gmra.mrb[0].mxu0 %v4165
        %v4401 = vpop.f32.mrb[0].mxu0
        %v4402 = vadd.f32 0.0, %v4401
        %v4403 = vpop.f32.mrb[0].mxu0
        %v4404 = vpop.f32.mrb[0].mxu0
        %v4405 = vadd.f32 0.0, %v4404
        %v4406 = vpop.f32.mrb[0].mxu0
        %4407 = vmatprep.mubr.bf16.mxu0 0
        %4408 = vmatmul.mubr.bf16.gmra.mrb[0].mxu0 %v4166
        %v4409 = vpop.f32.mrb[0].mxu0
        %v4410 = vadd.f32 0.0, %v4409
        %v4411 = vpop.f32.mrb[0].mxu0
        %v4412 = vpop.f32.mrb[0].mxu0
        %v4413 = vadd.f32 0.0, %v4412
        %v4414 = vpop.f32.mrb[0].mxu0
        %4415 = vmatprep.mubr.bf16.mxu0 0
        %4416 = vmatmul.mubr.bf16.gmra.mrb[0].mxu0 %v4167
        %v4417 = vpop.f32.mrb[0].mxu0
        %v4418 = vadd.f32 0.0, %v4417
        %v4419 = vpop.f32.mrb[0].mxu0
        %v4420 = vpop.f32.mrb[0].mxu0
        %v4421 = vadd.f32 0.0, %v4420
        %v4422 = vpop.f32.mrb[0].mxu0
        %4423 = vmatprep.mubr.bf16.mxu0 0
        %4424 = vmatmul.mubr.bf16.gmra.mrb[0].mxu0 %v4168
        %v4425 = vpop.f32.mrb[0].mxu0
        %v4426 = vadd.f32 0.0, %v4425
        %v4427 = vpop.f32.mrb[0].mxu0
        %v4428 = vpop.f32.mrb[0].mxu0
        %v4429 = vadd.f32 0.0, %v4428
        %v4430 = vpop.f32.mrb[0].mxu0
        %4431 = vmatprep.mubr.bf16.mxu0 0
        %4432 = vmatmul.mubr.bf16.gmra.mrb[0].mxu0 %v4169
        %v4433 = vpop.f32.mrb[0].mxu0
        %v4434 = vadd.f32 0.0, %v4433
        %v4435 = vpop.f32.mrb[0].mxu0
        %v4436 = vpop.f32.mrb[0].mxu0
        %v4437 = vpop.f32.mrb[0].mxu0
        %4438 = vdwg.mxu0
        %v4439 = vld [vmem:[#allocation3] sm:$0xff]
        %v4440 = vld [vmem:[#allocation3 + $0x8] sm:$0xff]
        %v4441 = vld [vmem:[#allocation3 + $0x10] sm:$0xff]
        %v4442 = vld [vmem:[#allocation3 + $0x18] sm:$0xff]
        %v4443 = vld [vmem:[#allocation3 + $0x20] sm:$0xff]
        %v4444 = vld [vmem:[#allocation3 + $0x28] sm:$0xff]
        %v4445 = vld [vmem:[#allocation3 + $0x30] sm:$0xff]
        %v4446 = vld [vmem:[#allocation3 + $0x38] sm:$0xff]
        %v4447 = vld [vmem:[#allocation3 + $0x40] sm:$0xff]
        %v4448 = vld [vmem:[#allocation3 + $0x48] sm:$0xff]
        %v4449 = vld [vmem:[#allocation3 + $0x50] sm:$0xff]
        %v4450 = vld [vmem:[#allocation3 + $0x58] sm:$0xff]
        %v4451 = vld [vmem:[#allocation3 + $0x60] sm:$0xff]
        %v4452 = vld [vmem:[#allocation3 + $0x68] sm:$0xff]
        %v4453 = vld [vmem:[#allocation3 + $0x70] sm:$0xff]
        %v4454 = vld [vmem:[#allocation3 + $0x78] sm:$0xff]
        %v4455 = vld [vmem:[#allocation3 + $0x80] sm:$0xff]
        %v4456 = vld [vmem:[#allocation3 + $0x88] sm:$0xff]
        %v4457 = vld [vmem:[#allocation3 + $0x90] sm:$0xff]
        %v4458 = vld [vmem:[#allocation3 + $0x98] sm:$0xff]
        %v4459 = vld [vmem:[#allocation3 + $0xa0] sm:$0xff]
        %v4460 = vld [vmem:[#allocation3 + $0xa8] sm:$0xff]
        %v4461 = vld [vmem:[#allocation3 + $0xb0] sm:$0xff]
        %v4462 = vld [vmem:[#allocation3 + $0xb8] sm:$0xff]
        %v4463 = vld [vmem:[#allocation3 + $0xc0] sm:$0xff]
        %v4464 = vld [vmem:[#allocation3 + $0xc8] sm:$0xff]
        %v4465 = vld [vmem:[#allocation3 + $0xd0] sm:$0xff]
        %v4466 = vld [vmem:[#allocation3 + $0xd8] sm:$0xff]
        %v4467 = vld [vmem:[#allocation3 + $0xe0] sm:$0xff]
        %v4468 = vld [vmem:[#allocation3 + $0xe8] sm:$0xff]
        %v4469 = vld [vmem:[#allocation3 + $0xf0] sm:$0xff]
        %v4470 = vld [vmem:[#allocation3 + $0xf8] sm:$0xff]
        %v4471 = vld [vmem:[#allocation3 + $0x100] sm:$0xff]
        %v4472 = vld [vmem:[#allocation3 + $0x108] sm:$0xff]
        %v4473 = vld [vmem:[#allocation3 + $0x110] sm:$0xff]
        %v4474 = vld [vmem:[#allocation3 + $0x118] sm:$0xff]
        %v4475 = vld [vmem:[#allocation3 + $0x120] sm:$0xff]
        %v4476 = vld [vmem:[#allocation3 + $0x128] sm:$0xff]
        %v4477 = vld [vmem:[#allocation3 + $0x130] sm:$0xff]
        %v4478 = vld [vmem:[#allocation3 + $0x138] sm:$0xff]
        %v4479 = vld [vmem:[#allocation3 + $0x140] sm:$0xff]
        %v4480 = vadd.f32 %v4439, %v4274
        %v4481 = vadd.f32 %v4440, %v4277
        %v4482 = vadd.f32 %v4441, %v4282
        %v4483 = vadd.f32 %v4442, %v4285
        %v4484 = vadd.f32 %v4443, %v4290
        %v4485 = vadd.f32 %v4444, %v4293
        %v4486 = vadd.f32 %v4445, %v4298
        %v4487 = vadd.f32 %v4446, %v4301
        %v4488 = vadd.f32 %v4447, %v4306
        %v4489 = vadd.f32 %v4448, %v4309
        %v4490 = vadd.f32 %v4449, %v4314
        %v4491 = vadd.f32 %v4450, %v4317
        %v4492 = vadd.f32 %v4451, %v4322
        %v4493 = vadd.f32 %v4452, %v4325
        %v4494 = vadd.f32 %v4453, %v4330
        %v4495 = vadd.f32 %v4454, %v4333
        %v4496 = vadd.f32 %v4455, %v4338
        %v4497 = vadd.f32 %v4456, %v4341
        %v4498 = vadd.f32 %v4457, %v4346
        %v4499 = vadd.f32 %v4458, %v4349
        %v4500 = vadd.f32 %v4459, %v4354
        %v4501 = vadd.f32 %v4460, %v4357
        %v4502 = vadd.f32 %v4461, %v4362
        %v4503 = vadd.f32 %v4462, %v4365
        %v4504 = vadd.f32 %v4463, %v4370
        %v4505 = vadd.f32 %v4464, %v4373
        %v4506 = vadd.f32 %v4465, %v4378
        %v4507 = vadd.f32 %v4466, %v4381
        %v4508 = vadd.f32 %v4467, %v4386
        %v4509 = vadd.f32 %v4468, %v4389
        %v4510 = vadd.f32 %v4469, %v4394
        %v4511 = vadd.f32 %v4470, %v4397
        %v4512 = vadd.f32 %v4471, %v4402
        %v4513 = vadd.f32 %v4472, %v4405
        %v4514 = vadd.f32 %v4473, %v4410
        %v4515 = vadd.f32 %v4474, %v4413
        %v4516 = vadd.f32 %v4475, %v4418
        %v4517 = vadd.f32 %v4476, %v4421
        %v4518 = vadd.f32 %v4477, %v4426
        %v4519 = vadd.f32 %v4478, %v4429
        %v4520 = vadd.f32 %v4479, %v4434
        %4521 = vst [vmem:[#allocation3] sm:$0xff] %v4480
        %4522 = vst [vmem:[#allocation3 + $0x8] sm:$0xff] %v4481
        %4523 = vst [vmem:[#allocation3 + $0x10] sm:$0xff] %v4482
        %4524 = vst [vmem:[#allocation3 + $0x18] sm:$0xff] %v4483
        %4525 = vst [vmem:[#allocation3 + $0x20] sm:$0xff] %v4484
        %4526 = vst [vmem:[#allocation3 + $0x28] sm:$0xff] %v4485
        %4527 = vst [vmem:[#allocation3 + $0x30] sm:$0xff] %v4486
        %4528 = vst [vmem:[#allocation3 + $0x38] sm:$0xff] %v4487
        %4529 = vst [vmem:[#allocation3 + $0x40] sm:$0xff] %v4488
        %4530 = vst [vmem:[#allocation3 + $0x48] sm:$0xff] %v4489
        %4531 = vst [vmem:[#allocation3 + $0x50] sm:$0xff] %v4490
        %4532 = vst [vmem:[#allocation3 + $0x58] sm:$0xff] %v4491
        %4533 = vst [vmem:[#allocation3 + $0x60] sm:$0xff] %v4492
        %4534 = vst [vmem:[#allocation3 + $0x68] sm:$0xff] %v4493
        %4535 = vst [vmem:[#allocation3 + $0x70] sm:$0xff] %v4494
        %4536 = vst [vmem:[#allocation3 + $0x78] sm:$0xff] %v4495
        %4537 = vst [vmem:[#allocation3 + $0x80] sm:$0xff] %v4496
        %4538 = vst [vmem:[#allocation3 + $0x88] sm:$0xff] %v4497
        %4539 = vst [vmem:[#allocation3 + $0x90] sm:$0xff] %v4498
        %4540 = vst [vmem:[#allocation3 + $0x98] sm:$0xff] %v4499
        %4541 = vst [vmem:[#allocation3 + $0xa0] sm:$0xff] %v4500
        %4542 = vst [vmem:[#allocation3 + $0xa8] sm:$0xff] %v4501
        %4543 = vst [vmem:[#allocation3 + $0xb0] sm:$0xff] %v4502
        %4544 = vst [vmem:[#allocation3 + $0xb8] sm:$0xff] %v4503
        %4545 = vst [vmem:[#allocation3 + $0xc0] sm:$0xff] %v4504
        %4546 = vst [vmem:[#allocation3 + $0xc8] sm:$0xff] %v4505
        %4547 = vst [vmem:[#allocation3 + $0xd0] sm:$0xff] %v4506
        %4548 = vst [vmem:[#allocation3 + $0xd8] sm:$0xff] %v4507
        %4549 = vst [vmem:[#allocation3 + $0xe0] sm:$0xff] %v4508
        %4550 = vst [vmem:[#allocation3 + $0xe8] sm:$0xff] %v4509
        %4551 = vst [vmem:[#allocation3 + $0xf0] sm:$0xff] %v4510
        %4552 = vst [vmem:[#allocation3 + $0xf8] sm:$0xff] %v4511
        %4553 = vst [vmem:[#allocation3 + $0x100] sm:$0xff] %v4512
        %4554 = vst [vmem:[#allocation3 + $0x108] sm:$0xff] %v4513
        %4555 = vst [vmem:[#allocation3 + $0x110] sm:$0xff] %v4514
        %4556 = vst [vmem:[#allocation3 + $0x118] sm:$0xff] %v4515
        %4557 = vst [vmem:[#allocation3 + $0x120] sm:$0xff] %v4516
        %4558 = vst [vmem:[#allocation3 + $0x128] sm:$0xff] %v4517
        %4559 = vst [vmem:[#allocation3 + $0x130] sm:$0xff] %v4518
        %4560 = vst [vmem:[#allocation3 + $0x138] sm:$0xff] %v4519
        %4561 = vst [vmem:[#allocation3 + $0x140] sm:$0xff] %v4520
        %v4562 = vld [vmem:[#allocation2 + $0xc] sm:$0xf]
        %v4563 = vld [vmem:[#allocation2 + $0x10] sm:$0xf]
        %v4564 = vld [vmem:[#allocation2 + $0x14] sm:$0xf]
        %v4565 = vld [vmem:[#allocation2 + $0x18] sm:$0xf]
        %v4566 = vld [vmem:[#allocation2 + $0x1c] sm:$0xf]
        %v4567 = vld [vmem:[#allocation2 + $0x20] sm:$0xf]
        %v4568 = vld [vmem:[#allocation2 + $0x24] sm:$0xf]
        %v4569 = vld [vmem:[#allocation2 + $0x28] sm:$0xf]
        %v4570 = vld [vmem:[#allocation2 + $0x2c] sm:$0xf]
        %v4571 = vld [vmem:[#allocation2 + $0x30] sm:$0xf]
        %v4572 = vld [vmem:[#allocation2 + $0x34] sm:$0xf]
        %v4573 = vld [vmem:[#allocation2 + $0x38] sm:$0xf]
        %v4574 = vld [vmem:[#allocation2 + $0x3c] sm:$0xf]
        %v4575 = vld [vmem:[#allocation2 + $0x40] sm:$0xf]
        %v4576 = vld [vmem:[#allocation2 + $0x44] sm:$0xf]
        %v4577 = vld [vmem:[#allocation2 + $0x48] sm:$0xf]
        %v4578 = vld [vmem:[#allocation2 + $0x4c] sm:$0xf]
        %v4579 = vld [vmem:[#allocation2 + $0x50] sm:$0xf]
        %v4580 = vld [vmem:[#allocation2 + $0x54] sm:$0xf]
        %v4581 = vld [vmem:[#allocation2 + $0x58] sm:$0xf]
        %v4582 = vld [vmem:[#allocation2 + $0x5c] sm:$0xf]
        %v4583 = vld [vmem:[#allocation2 + $0x60] sm:$0xf]
        %v4584 = vld [vmem:[#allocation2 + $0x64] sm:$0xf]
        %v4585 = vld [vmem:[#allocation2 + $0x68] sm:$0xf]
        %v4586 = vld [vmem:[#allocation2 + $0x6c] sm:$0xf]
        %v4587 = vld [vmem:[#allocation2 + $0x70] sm:$0xf]
        %v4588 = vld [vmem:[#allocation2 + $0x74] sm:$0xf]
        %v4589 = vld [vmem:[#allocation2 + $0x78] sm:$0xf]
        %v4590 = vld [vmem:[#allocation2 + $0x7c] sm:$0xf]
        %v4591 = vld [vmem:[#allocation2 + $0x80] sm:$0xf]
        %v4592 = vld [vmem:[#allocation2 + $0x84] sm:$0xf]
        %v4593 = vld [vmem:[#allocation2 + $0x88] sm:$0xf]
        %v4594 = vld [vmem:[#allocation2 + $0x8c] sm:$0xf]
        %v4595 = vld [vmem:[#allocation2 + $0x90] sm:$0xf]
        %v4596 = vld [vmem:[#allocation2 + $0x94] sm:$0xf]
        %v4597 = vld [vmem:[#allocation2 + $0x98] sm:$0xf]
        %v4598 = vld [vmem:[#allocation2 + $0x9c] sm:$0xf]
        %v4599 = vld [vmem:[#allocation2 + $0xa0] sm:$0xf]
        %v4600 = vld [vmem:[#allocation2 + $0xa4] sm:$0xf]
        %v4601 = vld [vmem:[#allocation2 + $0xa8] sm:$0xf]
        %v4602 = vld [vmem:[#allocation2 + $0xac] sm:$0xf]
        %v4603 = vld [vmem:[#allocation2 + $0xb0] sm:$0x1]
        %s4604 = scalar_lea.vmem [#allocation7], 320
        %v4605 = vld [vmem:[%s4604] sm:$0xf]
        %v4606 = vld [vmem:[%s4604 + $0x4] sm:$0xf]
        %v4607 = vld [vmem:[%s4604 + $0x8] sm:$0xf]
        %v4608 = vld [vmem:[%s4604 + $0xc] sm:$0xf]
        %v4609 = vld [vmem:[%s4604 + $0x10] sm:$0xf]
        %v4610 = vld [vmem:[%s4604 + $0x14] sm:$0xf]
        %v4611 = vld [vmem:[%s4604 + $0x18] sm:$0xf]
        %v4612 = vld [vmem:[%s4604 + $0x1c] sm:$0xf]
        %v4613 = vld [vmem:[%s4604 + $0x20] sm:$0xf]
        %v4614 = vld [vmem:[%s4604 + $0x24] sm:$0xf]
        %v4615 = vld [vmem:[%s4604 + $0x28] sm:$0xf]
        %v4616 = vld [vmem:[%s4604 + $0x2c] sm:$0xf]
        %v4617 = vld [vmem:[%s4604 + $0x30] sm:$0xf]
        %v4618 = vld [vmem:[%s4604 + $0x34] sm:$0xf]
        %v4619 = vld [vmem:[%s4604 + $0x38] sm:$0xf]
        %v4620 = vld [vmem:[%s4604 + $0x3c] sm:$0xf]
        %v4663 = vunpack.c.l.b16 %v4562
        %v4664 = vunpack.c.l.b16 %v4563
        %v4665 = vunpack.c.l.b16 %v4564
        %v4666 = vunpack.c.l.b16 %v4565
        %v4667 = vunpack.c.l.b16 %v4566
        %v4668 = vunpack.c.l.b16 %v4567
        %v4669 = vunpack.c.l.b16 %v4568
        %v4670 = vunpack.c.l.b16 %v4569
        %v4671 = vunpack.c.l.b16 %v4570
        %v4672 = vunpack.c.l.b16 %v4571
        %v4673 = vunpack.c.l.b16 %v4572
        %v4674 = vunpack.c.l.b16 %v4573
        %v4675 = vunpack.c.l.b16 %v4574
        %v4676 = vunpack.c.l.b16 %v4575
        %v4677 = vunpack.c.l.b16 %v4576
        %v4678 = vunpack.c.l.b16 %v4577
        %v4679 = vunpack.c.l.b16 %v4578
        %v4680 = vunpack.c.l.b16 %v4579
        %v4681 = vunpack.c.l.b16 %v4580
        %v4682 = vunpack.c.l.b16 %v4581
        %v4683 = vunpack.c.l.b16 %v4582
        %v4684 = vunpack.c.l.b16 %v4583
        %v4685 = vunpack.c.l.b16 %v4584
        %v4686 = vunpack.c.l.b16 %v4585
        %v4687 = vunpack.c.l.b16 %v4586
        %v4688 = vunpack.c.l.b16 %v4587
        %v4689 = vunpack.c.l.b16 %v4588
        %v4690 = vunpack.c.l.b16 %v4589
        %v4691 = vunpack.c.l.b16 %v4590
        %v4692 = vunpack.c.l.b16 %v4591
        %v4693 = vunpack.c.l.b16 %v4592
        %v4694 = vunpack.c.l.b16 %v4593
        %v4695 = vunpack.c.l.b16 %v4594
        %v4696 = vunpack.c.l.b16 %v4595
        %v4697 = vunpack.c.l.b16 %v4596
        %v4698 = vunpack.c.l.b16 %v4597
        %v4699 = vunpack.c.l.b16 %v4598
        %v4700 = vunpack.c.l.b16 %v4599
        %v4701 = vunpack.c.l.b16 %v4600
        %v4702 = vunpack.c.l.b16 %v4601
        %v4703 = vunpack.c.l.b16 %v4602
        %v4704 = vunpack.c.l.b16 %v4603
        %v4705 = vpack.c.b16 %v4664, %v4663
        %v4706 = vpack.c.b16 %v4666, %v4665
        %v4707 = vpack.c.b16 %v4668, %v4667
        %v4708 = vpack.c.b16 %v4670, %v4669
        %v4709 = vpack.c.b16 %v4672, %v4671
        %v4710 = vpack.c.b16 %v4674, %v4673
        %v4711 = vpack.c.b16 %v4676, %v4675
        %v4712 = vpack.c.b16 %v4678, %v4677
        %v4713 = vpack.c.b16 %v4680, %v4679
        %v4714 = vpack.c.b16 %v4682, %v4681
        %v4715 = vpack.c.b16 %v4684, %v4683
        %v4716 = vpack.c.b16 %v4686, %v4685
        %v4717 = vpack.c.b16 %v4688, %v4687
        %v4718 = vpack.c.b16 %v4690, %v4689
        %v4719 = vpack.c.b16 %v4692, %v4691
        %v4720 = vpack.c.b16 %v4694, %v4693
        %v4721 = vpack.c.b16 %v4696, %v4695
        %v4722 = vpack.c.b16 %v4698, %v4697
        %v4723 = vpack.c.b16 %v4700, %v4699
        %v4724 = vpack.c.b16 %v4702, %v4701
        %v4725 = vpack.c.b16 %v4704, %v4703
        %vm4726 = vsmask.f32 7424
        %v4728 = vshrl.u32 %v4705, 16
        %v4730 = vshll.u32 %v4705, 16
        %v4732 = vrot.slane %v4730, 1
        %v4733 = vor.u32 %v4728, %v4732
        %v4735 = vshll.u32 %v4706, 16
        %v4737 = vrot.slane %v4735, 1
        %v4738 = vsel %vm4726, %v4733, %v4737
        %v4739 = vshrl.u32 %v4706, 16
        %v4741 = vor.u32 %v4739, %v4737
        %v4743 = vshll.u32 %v4707, 16
        %v4745 = vrot.slane %v4743, 1
        %v4746 = vsel %vm4726, %v4741, %v4745
        %v4747 = vshrl.u32 %v4707, 16
        %v4749 = vor.u32 %v4747, %v4745
        %v4751 = vshll.u32 %v4708, 16
        %v4753 = vrot.slane %v4751, 1
        %v4754 = vsel %vm4726, %v4749, %v4753
        %v4755 = vshrl.u32 %v4708, 16
        %v4757 = vor.u32 %v4755, %v4753
        %v4759 = vshll.u32 %v4709, 16
        %v4761 = vrot.slane %v4759, 1
        %v4762 = vsel %vm4726, %v4757, %v4761
        %v4763 = vshrl.u32 %v4709, 16
        %v4765 = vor.u32 %v4763, %v4761
        %v4767 = vshll.u32 %v4710, 16
        %v4769 = vrot.slane %v4767, 1
        %v4770 = vsel %vm4726, %v4765, %v4769
        %v4771 = vshrl.u32 %v4710, 16
        %v4773 = vor.u32 %v4771, %v4769
        %v4775 = vshll.u32 %v4711, 16
        %v4777 = vrot.slane %v4775, 1
        %v4778 = vsel %vm4726, %v4773, %v4777
        %v4779 = vshrl.u32 %v4711, 16
        %v4781 = vor.u32 %v4779, %v4777
        %v4783 = vshll.u32 %v4712, 16
        %v4785 = vrot.slane %v4783, 1
        %v4786 = vsel %vm4726, %v4781, %v4785
        %v4787 = vshrl.u32 %v4712, 16
        %v4789 = vor.u32 %v4787, %v4785
        %v4791 = vshll.u32 %v4713, 16
        %v4793 = vrot.slane %v4791, 1
        %v4794 = vsel %vm4726, %v4789, %v4793
        %v4795 = vshrl.u32 %v4713, 16
        %v4797 = vor.u32 %v4795, %v4793
        %v4799 = vshll.u32 %v4714, 16
        %v4801 = vrot.slane %v4799, 1
        %v4802 = vsel %vm4726, %v4797, %v4801
        %v4803 = vshrl.u32 %v4714, 16
        %v4805 = vor.u32 %v4803, %v4801
        %v4807 = vshll.u32 %v4715, 16
        %v4809 = vrot.slane %v4807, 1
        %v4810 = vsel %vm4726, %v4805, %v4809
        %v4811 = vshrl.u32 %v4715, 16
        %v4813 = vor.u32 %v4811, %v4809
        %v4815 = vshll.u32 %v4716, 16
        %v4817 = vrot.slane %v4815, 1
        %v4818 = vsel %vm4726, %v4813, %v4817
        %v4819 = vshrl.u32 %v4716, 16
        %v4821 = vor.u32 %v4819, %v4817
        %v4823 = vshll.u32 %v4717, 16
        %v4825 = vrot.slane %v4823, 1
        %v4826 = vsel %vm4726, %v4821, %v4825
        %v4827 = vshrl.u32 %v4717, 16
        %v4829 = vor.u32 %v4827, %v4825
        %v4831 = vshll.u32 %v4718, 16
        %v4833 = vrot.slane %v4831, 1
        %v4834 = vsel %vm4726, %v4829, %v4833
        %v4835 = vshrl.u32 %v4718, 16
        %v4837 = vor.u32 %v4835, %v4833
        %v4839 = vshll.u32 %v4719, 16
        %v4841 = vrot.slane %v4839, 1
        %v4842 = vsel %vm4726, %v4837, %v4841
        %v4843 = vshrl.u32 %v4719, 16
        %v4845 = vor.u32 %v4843, %v4841
        %v4847 = vshll.u32 %v4720, 16
        %v4849 = vrot.slane %v4847, 1
        %v4850 = vsel %vm4726, %v4845, %v4849
        %v4851 = vshrl.u32 %v4720, 16
        %v4853 = vor.u32 %v4851, %v4849
        %v4855 = vshll.u32 %v4721, 16
        %v4857 = vrot.slane %v4855, 1
        %v4858 = vsel %vm4726, %v4853, %v4857
        %v4859 = vshrl.u32 %v4721, 16
        %v4861 = vor.u32 %v4859, %v4857
        %v4863 = vshll.u32 %v4722, 16
        %v4865 = vrot.slane %v4863, 1
        %v4866 = vsel %vm4726, %v4861, %v4865
        %v4867 = vshrl.u32 %v4722, 16
        %v4869 = vor.u32 %v4867, %v4865
        %v4871 = vshll.u32 %v4723, 16
        %v4873 = vrot.slane %v4871, 1
        %v4874 = vsel %vm4726, %v4869, %v4873
        %v4875 = vshrl.u32 %v4723, 16
        %v4877 = vor.u32 %v4875, %v4873
        %v4879 = vshll.u32 %v4724, 16
        %v4881 = vrot.slane %v4879, 1
        %v4882 = vsel %vm4726, %v4877, %v4881
        %v4883 = vshrl.u32 %v4724, 16
        %v4885 = vor.u32 %v4883, %v4881
        %v4887 = vshll.u32 %v4725, 16
        %v4889 = vrot.slane %v4887, 1
        %v4890 = vsel %vm4726, %v4885, %v4889
        %v4891 = vshrl.u32 %v4725, 16
        %v4893 = vor.u32 %v4891, %v4889
        %v4931 = vunpack.c.l.b16 %v4605
        %v4932 = vunpack.c.l.b16 %v4606
        %v4933 = vunpack.c.l.b16 %v4607
        %v4934 = vunpack.c.l.b16 %v4608
        %v4935 = vunpack.c.l.b16 %v4609
        %v4936 = vunpack.c.l.b16 %v4610
        %v4937 = vunpack.c.l.b16 %v4611
        %v4938 = vunpack.c.l.b16 %v4612
        %v4939 = vunpack.c.l.b16 %v4613
        %v4940 = vunpack.c.l.b16 %v4614
        %v4941 = vunpack.c.l.b16 %v4615
        %v4942 = vunpack.c.l.b16 %v4616
        %v4943 = vunpack.c.l.b16 %v4617
        %v4944 = vunpack.c.l.b16 %v4618
        %v4945 = vunpack.c.l.b16 %v4619
        %v4946 = vunpack.c.l.b16 %v4620
        %v4947 = vpack.c.b16 %v4932, %v4931
        %v4948 = vpack.c.b16 %v4934, %v4933
        %v4949 = vpack.c.b16 %v4936, %v4935
        %v4950 = vpack.c.b16 %v4938, %v4937
        %v4951 = vpack.c.b16 %v4940, %v4939
        %v4952 = vpack.c.b16 %v4942, %v4941
        %v4953 = vpack.c.b16 %v4944, %v4943
        %v4954 = vpack.c.b16 %v4946, %v4945
        %4963 = vmatprep.subr.bf16.mxu0 0
        %4964 = vmatpush1.bf16.msra.mxu0 %v4947
        %4965 = vmatprep.subr.bf16.mxu0 0
        %4966 = vmatpush1.bf16.msra.mxu0 %v4948
        %4967 = vmatprep.subr.bf16.mxu0 0
        %4968 = vmatpush1.bf16.msra.mxu0 %v4949
        %4969 = vmatprep.subr.bf16.mxu0 0
        %4970 = vmatpush1.bf16.msra.mxu0 %v4950
        %4971 = vmatprep.subr.bf16.mxu0 0
        %4972 = vmatpush1.bf16.msra.mxu0 %v4951
        %4973 = vmatprep.subr.bf16.mxu0 0
        %4974 = vmatpush1.bf16.msra.mxu0 %v4952
        %4975 = vmatprep.subr.bf16.mxu0 0
        %4976 = vmatpush1.bf16.msra.mxu0 %v4953
        %4977 = vmatprep.subr.bf16.mxu0 0
        %4978 = vmatpush1.bf16.msra.mxu0 %v4954
        %4979 = vmatprep.subr.bf16.mxu0 0
        %4980 = vmatpush1.bf16.msra.mxu0 0
        %4981 = vmatprep.subr.bf16.mxu0 0
        %4982 = vmatpush1.bf16.msra.mxu0 0
        %4983 = vmatprep.subr.bf16.mxu0 0
        %4984 = vmatpush1.bf16.msra.mxu0 0
        %4985 = vmatprep.subr.bf16.mxu0 0
        %4986 = vmatpush1.bf16.msra.mxu0 0
        %4987 = vmatprep.subr.bf16.mxu0 0
        %4988 = vmatpush1.bf16.msra.mxu0 0
        %4989 = vmatprep.subr.bf16.mxu0 0
        %4990 = vmatpush1.bf16.msra.mxu0 0
        %4991 = vmatprep.subr.bf16.mxu0 0
        %4992 = vmatpush1.bf16.msra.mxu0 0
        %4993 = vmatprep.subr.bf16.mxu0 0
        %4994 = vmatpush1.bf16.msra.mxu0 0
        %4995 = vmatprep.mubr.bf16.mxu0 0
        %4996 = vmatmul.mubr.bf16.gmra.mrb[0].mxu0 %v4738
        %v4997 = vpop.f32.mrb[0].mxu0
        %v4998 = vadd.f32 0.0, %v4997
        %v4999 = vpop.f32.mrb[0].mxu0
        %v5000 = vpop.f32.mrb[0].mxu0
        %v5001 = vadd.f32 0.0, %v5000
        %v5002 = vpop.f32.mrb[0].mxu0
        %5003 = vmatprep.mubr.bf16.mxu0 0
        %5004 = vmatmul.mubr.bf16.gmra.mrb[0].mxu0 %v4746
        %v5005 = vpop.f32.mrb[0].mxu0
        %v5006 = vadd.f32 0.0, %v5005
        %v5007 = vpop.f32.mrb[0].mxu0
        %v5008 = vpop.f32.mrb[0].mxu0
        %v5009 = vadd.f32 0.0, %v5008
        %v5010 = vpop.f32.mrb[0].mxu0
        %5011 = vmatprep.mubr.bf16.mxu0 0
        %5012 = vmatmul.mubr.bf16.gmra.mrb[0].mxu0 %v4754
        %v5013 = vpop.f32.mrb[0].mxu0
        %v5014 = vadd.f32 0.0, %v5013
        %v5015 = vpop.f32.mrb[0].mxu0
        %v5016 = vpop.f32.mrb[0].mxu0
        %v5017 = vadd.f32 0.0, %v5016
        %v5018 = vpop.f32.mrb[0].mxu0
        %5019 = vmatprep.mubr.bf16.mxu0 0
        %5020 = vmatmul.mubr.bf16.gmra.mrb[0].mxu0 %v4762
        %v5021 = vpop.f32.mrb[0].mxu0
        %v5022 = vadd.f32 0.0, %v5021
        %v5023 = vpop.f32.mrb[0].mxu0
        %v5024 = vpop.f32.mrb[0].mxu0
        %v5025 = vadd.f32 0.0, %v5024
        %v5026 = vpop.f32.mrb[0].mxu0
        %5027 = vmatprep.mubr.bf16.mxu0 0
        %5028 = vmatmul.mubr.bf16.gmra.mrb[0].mxu0 %v4770
        %v5029 = vpop.f32.mrb[0].mxu0
        %v5030 = vadd.f32 0.0, %v5029
        %v5031 = vpop.f32.mrb[0].mxu0
        %v5032 = vpop.f32.mrb[0].mxu0
        %v5033 = vadd.f32 0.0, %v5032
        %v5034 = vpop.f32.mrb[0].mxu0
        %5035 = vmatprep.mubr.bf16.mxu0 0
        %5036 = vmatmul.mubr.bf16.gmra.mrb[0].mxu0 %v4778
        %v5037 = vpop.f32.mrb[0].mxu0
        %v5038 = vadd.f32 0.0, %v5037
        %v5039 = vpop.f32.mrb[0].mxu0
        %v5040 = vpop.f32.mrb[0].mxu0
        %v5041 = vadd.f32 0.0, %v5040
        %v5042 = vpop.f32.mrb[0].mxu0
        %5043 = vmatprep.mubr.bf16.mxu0 0
        %5044 = vmatmul.mubr.bf16.gmra.mrb[0].mxu0 %v4786
        %v5045 = vpop.f32.mrb[0].mxu0
        %v5046 = vadd.f32 0.0, %v5045
        %v5047 = vpop.f32.mrb[0].mxu0
        %v5048 = vpop.f32.mrb[0].mxu0
        %v5049 = vadd.f32 0.0, %v5048
        %v5050 = vpop.f32.mrb[0].mxu0
        %5051 = vmatprep.mubr.bf16.mxu0 0
        %5052 = vmatmul.mubr.bf16.gmra.mrb[0].mxu0 %v4794
        %v5053 = vpop.f32.mrb[0].mxu0
        %v5054 = vadd.f32 0.0, %v5053
        %v5055 = vpop.f32.mrb[0].mxu0
        %v5056 = vpop.f32.mrb[0].mxu0
        %v5057 = vadd.f32 0.0, %v5056
        %v5058 = vpop.f32.mrb[0].mxu0
        %5059 = vmatprep.mubr.bf16.mxu0 0
        %5060 = vmatmul.mubr.bf16.gmra.mrb[0].mxu0 %v4802
        %v5061 = vpop.f32.mrb[0].mxu0
        %v5062 = vadd.f32 0.0, %v5061
        %v5063 = vpop.f32.mrb[0].mxu0
        %v5064 = vpop.f32.mrb[0].mxu0
        %v5065 = vadd.f32 0.0, %v5064
        %v5066 = vpop.f32.mrb[0].mxu0
        %5067 = vmatprep.mubr.bf16.mxu0 0
        %5068 = vmatmul.mubr.bf16.gmra.mrb[0].mxu0 %v4810
        %v5069 = vpop.f32.mrb[0].mxu0
        %v5070 = vadd.f32 0.0, %v5069
        %v5071 = vpop.f32.mrb[0].mxu0
        %v5072 = vpop.f32.mrb[0].mxu0
        %v5073 = vadd.f32 0.0, %v5072
        %v5074 = vpop.f32.mrb[0].mxu0
        %5075 = vmatprep.mubr.bf16.mxu0 0
        %5076 = vmatmul.mubr.bf16.gmra.mrb[0].mxu0 %v4818
        %v5077 = vpop.f32.mrb[0].mxu0
        %v5078 = vadd.f32 0.0, %v5077
        %v5079 = vpop.f32.mrb[0].mxu0
        %v5080 = vpop.f32.mrb[0].mxu0
        %v5081 = vadd.f32 0.0, %v5080
        %v5082 = vpop.f32.mrb[0].mxu0
        %5083 = vmatprep.mubr.bf16.mxu0 0
        %5084 = vmatmul.mubr.bf16.gmra.mrb[0].mxu0 %v4826
        %v5085 = vpop.f32.mrb[0].mxu0
        %v5086 = vadd.f32 0.0, %v5085
        %v5087 = vpop.f32.mrb[0].mxu0
        %v5088 = vpop.f32.mrb[0].mxu0
        %v5089 = vadd.f32 0.0, %v5088
        %v5090 = vpop.f32.mrb[0].mxu0
        %5091 = vmatprep.mubr.bf16.mxu0 0
        %5092 = vmatmul.mubr.bf16.gmra.mrb[0].mxu0 %v4834
        %v5093 = vpop.f32.mrb[0].mxu0
        %v5094 = vadd.f32 0.0, %v5093
        %v5095 = vpop.f32.mrb[0].mxu0
        %v5096 = vpop.f32.mrb[0].mxu0
        %v5097 = vadd.f32 0.0, %v5096
        %v5098 = vpop.f32.mrb[0].mxu0
        %5099 = vmatprep.mubr.bf16.mxu0 0
        %5100 = vmatmul.mubr.bf16.gmra.mrb[0].mxu0 %v4842
        %v5101 = vpop.f32.mrb[0].mxu0
        %v5102 = vadd.f32 0.0, %v5101
        %v5103 = vpop.f32.mrb[0].mxu0
        %v5104 = vpop.f32.mrb[0].mxu0
        %v5105 = vadd.f32 0.0, %v5104
        %v5106 = vpop.f32.mrb[0].mxu0
        %5107 = vmatprep.mubr.bf16.mxu0 0
        %5108 = vmatmul.mubr.bf16.gmra.mrb[0].mxu0 %v4850
        %v5109 = vpop.f32.mrb[0].mxu0
        %v5110 = vadd.f32 0.0, %v5109
        %v5111 = vpop.f32.mrb[0].mxu0
        %v5112 = vpop.f32.mrb[0].mxu0
        %v5113 = vadd.f32 0.0, %v5112
        %v5114 = vpop.f32.mrb[0].mxu0
        %5115 = vmatprep.mubr.bf16.mxu0 0
        %5116 = vmatmul.mubr.bf16.gmra.mrb[0].mxu0 %v4858
        %v5117 = vpop.f32.mrb[0].mxu0
        %v5118 = vadd.f32 0.0, %v5117
        %v5119 = vpop.f32.mrb[0].mxu0
        %v5120 = vpop.f32.mrb[0].mxu0
        %v5121 = vadd.f32 0.0, %v5120
        %v5122 = vpop.f32.mrb[0].mxu0
        %5123 = vmatprep.mubr.bf16.mxu0 0
        %5124 = vmatmul.mubr.bf16.gmra.mrb[0].mxu0 %v4866
        %v5125 = vpop.f32.mrb[0].mxu0
        %v5126 = vadd.f32 0.0, %v5125
        %v5127 = vpop.f32.mrb[0].mxu0
        %v5128 = vpop.f32.mrb[0].mxu0
        %v5129 = vadd.f32 0.0, %v5128
        %v5130 = vpop.f32.mrb[0].mxu0
        %5131 = vmatprep.mubr.bf16.mxu0 0
        %5132 = vmatmul.mubr.bf16.gmra.mrb[0].mxu0 %v4874
        %v5133 = vpop.f32.mrb[0].mxu0
        %v5134 = vadd.f32 0.0, %v5133
        %v5135 = vpop.f32.mrb[0].mxu0
        %v5136 = vpop.f32.mrb[0].mxu0
        %v5137 = vadd.f32 0.0, %v5136
        %v5138 = vpop.f32.mrb[0].mxu0
        %5139 = vmatprep.mubr.bf16.mxu0 0
        %5140 = vmatmul.mubr.bf16.gmra.mrb[0].mxu0 %v4882
        %v5141 = vpop.f32.mrb[0].mxu0
        %v5142 = vadd.f32 0.0, %v5141
        %v5143 = vpop.f32.mrb[0].mxu0
        %v5144 = vpop.f32.mrb[0].mxu0
        %v5145 = vadd.f32 0.0, %v5144
        %v5146 = vpop.f32.mrb[0].mxu0
        %5147 = vmatprep.mubr.bf16.mxu0 0
        %5148 = vmatmul.mubr.bf16.gmra.mrb[0].mxu0 %v4890
        %v5149 = vpop.f32.mrb[0].mxu0
        %v5150 = vadd.f32 0.0, %v5149
        %v5151 = vpop.f32.mrb[0].mxu0
        %v5152 = vpop.f32.mrb[0].mxu0
        %v5153 = vadd.f32 0.0, %v5152
        %v5154 = vpop.f32.mrb[0].mxu0
        %5155 = vmatprep.mubr.bf16.mxu0 0
        %5156 = vmatmul.mubr.bf16.gmra.mrb[0].mxu0 %v4893
        %v5157 = vpop.f32.mrb[0].mxu0
        %v5158 = vadd.f32 0.0, %v5157
        %v5159 = vpop.f32.mrb[0].mxu0
        %v5160 = vpop.f32.mrb[0].mxu0
        %v5161 = vpop.f32.mrb[0].mxu0
        %5162 = vdwg.mxu0
        %v5163 = vld [vmem:[#allocation3] sm:$0xff]
        %v5164 = vld [vmem:[#allocation3 + $0x8] sm:$0xff]
        %v5165 = vld [vmem:[#allocation3 + $0x10] sm:$0xff]
        %v5166 = vld [vmem:[#allocation3 + $0x18] sm:$0xff]
        %v5167 = vld [vmem:[#allocation3 + $0x20] sm:$0xff]
        %v5168 = vld [vmem:[#allocation3 + $0x28] sm:$0xff]
        %v5169 = vld [vmem:[#allocation3 + $0x30] sm:$0xff]
        %v5170 = vld [vmem:[#allocation3 + $0x38] sm:$0xff]
        %v5171 = vld [vmem:[#allocation3 + $0x40] sm:$0xff]
        %v5172 = vld [vmem:[#allocation3 + $0x48] sm:$0xff]
        %v5173 = vld [vmem:[#allocation3 + $0x50] sm:$0xff]
        %v5174 = vld [vmem:[#allocation3 + $0x58] sm:$0xff]
        %v5175 = vld [vmem:[#allocation3 + $0x60] sm:$0xff]
        %v5176 = vld [vmem:[#allocation3 + $0x68] sm:$0xff]
        %v5177 = vld [vmem:[#allocation3 + $0x70] sm:$0xff]
        %v5178 = vld [vmem:[#allocation3 + $0x78] sm:$0xff]
        %v5179 = vld [vmem:[#allocation3 + $0x80] sm:$0xff]
        %v5180 = vld [vmem:[#allocation3 + $0x88] sm:$0xff]
        %v5181 = vld [vmem:[#allocation3 + $0x90] sm:$0xff]
        %v5182 = vld [vmem:[#allocation3 + $0x98] sm:$0xff]
        %v5183 = vld [vmem:[#allocation3 + $0xa0] sm:$0xff]
        %v5184 = vld [vmem:[#allocation3 + $0xa8] sm:$0xff]
        %v5185 = vld [vmem:[#allocation3 + $0xb0] sm:$0xff]
        %v5186 = vld [vmem:[#allocation3 + $0xb8] sm:$0xff]
        %v5187 = vld [vmem:[#allocation3 + $0xc0] sm:$0xff]
        %v5188 = vld [vmem:[#allocation3 + $0xc8] sm:$0xff]
        %v5189 = vld [vmem:[#allocation3 + $0xd0] sm:$0xff]
        %v5190 = vld [vmem:[#allocation3 + $0xd8] sm:$0xff]
        %v5191 = vld [vmem:[#allocation3 + $0xe0] sm:$0xff]
        %v5192 = vld [vmem:[#allocation3 + $0xe8] sm:$0xff]
        %v5193 = vld [vmem:[#allocation3 + $0xf0] sm:$0xff]
        %v5194 = vld [vmem:[#allocation3 + $0xf8] sm:$0xff]
        %v5195 = vld [vmem:[#allocation3 + $0x100] sm:$0xff]
        %v5196 = vld [vmem:[#allocation3 + $0x108] sm:$0xff]
        %v5197 = vld [vmem:[#allocation3 + $0x110] sm:$0xff]
        %v5198 = vld [vmem:[#allocation3 + $0x118] sm:$0xff]
        %v5199 = vld [vmem:[#allocation3 + $0x120] sm:$0xff]
        %v5200 = vld [vmem:[#allocation3 + $0x128] sm:$0xff]
        %v5201 = vld [vmem:[#allocation3 + $0x130] sm:$0xff]
        %v5202 = vld [vmem:[#allocation3 + $0x138] sm:$0xff]
        %v5203 = vld [vmem:[#allocation3 + $0x140] sm:$0xff]
        %v5204 = vadd.f32 %v5163, %v4998
        %v5205 = vadd.f32 %v5164, %v5001
        %v5206 = vadd.f32 %v5165, %v5006
        %v5207 = vadd.f32 %v5166, %v5009
        %v5208 = vadd.f32 %v5167, %v5014
        %v5209 = vadd.f32 %v5168, %v5017
        %v5210 = vadd.f32 %v5169, %v5022
        %v5211 = vadd.f32 %v5170, %v5025
        %v5212 = vadd.f32 %v5171, %v5030
        %v5213 = vadd.f32 %v5172, %v5033
        %v5214 = vadd.f32 %v5173, %v5038
        %v5215 = vadd.f32 %v5174, %v5041
        %v5216 = vadd.f32 %v5175, %v5046
        %v5217 = vadd.f32 %v5176, %v5049
        %v5218 = vadd.f32 %v5177, %v5054
        %v5219 = vadd.f32 %v5178, %v5057
        %v5220 = vadd.f32 %v5179, %v5062
        %v5221 = vadd.f32 %v5180, %v5065
        %v5222 = vadd.f32 %v5181, %v5070
        %v5223 = vadd.f32 %v5182, %v5073
        %v5224 = vadd.f32 %v5183, %v5078
        %v5225 = vadd.f32 %v5184, %v5081
        %v5226 = vadd.f32 %v5185, %v5086
        %v5227 = vadd.f32 %v5186, %v5089
        %v5228 = vadd.f32 %v5187, %v5094
        %v5229 = vadd.f32 %v5188, %v5097
        %v5230 = vadd.f32 %v5189, %v5102
        %v5231 = vadd.f32 %v5190, %v5105
        %v5232 = vadd.f32 %v5191, %v5110
        %v5233 = vadd.f32 %v5192, %v5113
        %v5234 = vadd.f32 %v5193, %v5118
        %v5235 = vadd.f32 %v5194, %v5121
        %v5236 = vadd.f32 %v5195, %v5126
        %v5237 = vadd.f32 %v5196, %v5129
        %v5238 = vadd.f32 %v5197, %v5134
        %v5239 = vadd.f32 %v5198, %v5137
        %v5240 = vadd.f32 %v5199, %v5142
        %v5241 = vadd.f32 %v5200, %v5145
        %v5242 = vadd.f32 %v5201, %v5150
        %v5243 = vadd.f32 %v5202, %v5153
        %v5244 = vadd.f32 %v5203, %v5158
        %5245 = vst [vmem:[#allocation3] sm:$0xff] %v5204
        %5246 = vst [vmem:[#allocation3 + $0x8] sm:$0xff] %v5205
        %5247 = vst [vmem:[#allocation3 + $0x10] sm:$0xff] %v5206
        %5248 = vst [vmem:[#allocation3 + $0x18] sm:$0xff] %v5207
        %5249 = vst [vmem:[#allocation3 + $0x20] sm:$0xff] %v5208
        %5250 = vst [vmem:[#allocation3 + $0x28] sm:$0xff] %v5209
        %5251 = vst [vmem:[#allocation3 + $0x30] sm:$0xff] %v5210
        %5252 = vst [vmem:[#allocation3 + $0x38] sm:$0xff] %v5211
        %5253 = vst [vmem:[#allocation3 + $0x40] sm:$0xff] %v5212
        %5254 = vst [vmem:[#allocation3 + $0x48] sm:$0xff] %v5213
        %5255 = vst [vmem:[#allocation3 + $0x50] sm:$0xff] %v5214
        %5256 = vst [vmem:[#allocation3 + $0x58] sm:$0xff] %v5215
        %5257 = vst [vmem:[#allocation3 + $0x60] sm:$0xff] %v5216
        %5258 = vst [vmem:[#allocation3 + $0x68] sm:$0xff] %v5217
        %5259 = vst [vmem:[#allocation3 + $0x70] sm:$0xff] %v5218
        %5260 = vst [vmem:[#allocation3 + $0x78] sm:$0xff] %v5219
        %5261 = vst [vmem:[#allocation3 + $0x80] sm:$0xff] %v5220
        %5262 = vst [vmem:[#allocation3 + $0x88] sm:$0xff] %v5221
        %5263 = vst [vmem:[#allocation3 + $0x90] sm:$0xff] %v5222
        %5264 = vst [vmem:[#allocation3 + $0x98] sm:$0xff] %v5223
        %5265 = vst [vmem:[#allocation3 + $0xa0] sm:$0xff] %v5224
        %5266 = vst [vmem:[#allocation3 + $0xa8] sm:$0xff] %v5225
        %5267 = vst [vmem:[#allocation3 + $0xb0] sm:$0xff] %v5226
        %5268 = vst [vmem:[#allocation3 + $0xb8] sm:$0xff] %v5227
        %5269 = vst [vmem:[#allocation3 + $0xc0] sm:$0xff] %v5228
        %5270 = vst [vmem:[#allocation3 + $0xc8] sm:$0xff] %v5229
        %5271 = vst [vmem:[#allocation3 + $0xd0] sm:$0xff] %v5230
        %5272 = vst [vmem:[#allocation3 + $0xd8] sm:$0xff] %v5231
        %5273 = vst [vmem:[#allocation3 + $0xe0] sm:$0xff] %v5232
        %5274 = vst [vmem:[#allocation3 + $0xe8] sm:$0xff] %v5233
        %5275 = vst [vmem:[#allocation3 + $0xf0] sm:$0xff] %v5234
        %5276 = vst [vmem:[#allocation3 + $0xf8] sm:$0xff] %v5235
        %5277 = vst [vmem:[#allocation3 + $0x100] sm:$0xff] %v5236
        %5278 = vst [vmem:[#allocation3 + $0x108] sm:$0xff] %v5237
        %5279 = vst [vmem:[#allocation3 + $0x110] sm:$0xff] %v5238
        %5280 = vst [vmem:[#allocation3 + $0x118] sm:$0xff] %v5239
        %5281 = vst [vmem:[#allocation3 + $0x120] sm:$0xff] %v5240
        %5282 = vst [vmem:[#allocation3 + $0x128] sm:$0xff] %v5241
        %5283 = vst [vmem:[#allocation3 + $0x130] sm:$0xff] %v5242
        %5284 = vst [vmem:[#allocation3 + $0x138] sm:$0xff] %v5243
        %5285 = vst [vmem:[#allocation3 + $0x140] sm:$0xff] %v5244
        %v5286 = vld [vmem:[#allocation2 + $0x14] sm:$0xf]
        %v5287 = vld [vmem:[#allocation2 + $0x18] sm:$0xf]
        %v5288 = vld [vmem:[#allocation2 + $0x1c] sm:$0xf]
        %v5289 = vld [vmem:[#allocation2 + $0x20] sm:$0xf]
        %v5290 = vld [vmem:[#allocation2 + $0x24] sm:$0xf]
        %v5291 = vld [vmem:[#allocation2 + $0x28] sm:$0xf]
        %v5292 = vld [vmem:[#allocation2 + $0x2c] sm:$0xf]
        %v5293 = vld [vmem:[#allocation2 + $0x30] sm:$0xf]
        %v5294 = vld [vmem:[#allocation2 + $0x34] sm:$0xf]
        %v5295 = vld [vmem:[#allocation2 + $0x38] sm:$0xf]
        %v5296 = vld [vmem:[#allocation2 + $0x3c] sm:$0xf]
        %v5297 = vld [vmem:[#allocation2 + $0x40] sm:$0xf]
        %v5298 = vld [vmem:[#allocation2 + $0x44] sm:$0xf]
        %v5299 = vld [vmem:[#allocation2 + $0x48] sm:$0xf]
        %v5300 = vld [vmem:[#allocation2 + $0x4c] sm:$0xf]
        %v5301 = vld [vmem:[#allocation2 + $0x50] sm:$0xf]
        %v5302 = vld [vmem:[#allocation2 + $0x54] sm:$0xf]
        %v5303 = vld [vmem:[#allocation2 + $0x58] sm:$0xf]
        %v5304 = vld [vmem:[#allocation2 + $0x5c] sm:$0xf]
        %v5305 = vld [vmem:[#allocation2 + $0x60] sm:$0xf]
        %v5306 = vld [vmem:[#allocation2 + $0x64] sm:$0xf]
        %v5307 = vld [vmem:[#allocation2 + $0x68] sm:$0xf]
        %v5308 = vld [vmem:[#allocation2 + $0x6c] sm:$0xf]
        %v5309 = vld [vmem:[#allocation2 + $0x70] sm:$0xf]
        %v5310 = vld [vmem:[#allocation2 + $0x74] sm:$0xf]
        %v5311 = vld [vmem:[#allocation2 + $0x78] sm:$0xf]
        %v5312 = vld [vmem:[#allocation2 + $0x7c] sm:$0xf]
        %v5313 = vld [vmem:[#allocation2 + $0x80] sm:$0xf]
        %v5314 = vld [vmem:[#allocation2 + $0x84] sm:$0xf]
        %v5315 = vld [vmem:[#allocation2 + $0x88] sm:$0xf]
        %v5316 = vld [vmem:[#allocation2 + $0x8c] sm:$0xf]
        %v5317 = vld [vmem:[#allocation2 + $0x90] sm:$0xf]
        %v5318 = vld [vmem:[#allocation2 + $0x94] sm:$0xf]
        %v5319 = vld [vmem:[#allocation2 + $0x98] sm:$0xf]
        %v5320 = vld [vmem:[#allocation2 + $0x9c] sm:$0xf]
        %v5321 = vld [vmem:[#allocation2 + $0xa0] sm:$0xf]
        %v5322 = vld [vmem:[#allocation2 + $0xa4] sm:$0xf]
        %v5323 = vld [vmem:[#allocation2 + $0xa8] sm:$0xf]
        %v5324 = vld [vmem:[#allocation2 + $0xac] sm:$0xf]
        %v5325 = vld [vmem:[#allocation2 + $0xb0] sm:$0xf]
        %v5326 = vld [vmem:[#allocation2 + $0xb4] sm:$0xf]
        %v5327 = vld [vmem:[#allocation2 + $0xb8] sm:$0x1]
        %s5328 = scalar_lea.vmem [#allocation7], 384
        %v5329 = vld [vmem:[%s5328] sm:$0xf]
        %v5330 = vld [vmem:[%s5328 + $0x4] sm:$0xf]
        %v5331 = vld [vmem:[%s5328 + $0x8] sm:$0xf]
        %v5332 = vld [vmem:[%s5328 + $0xc] sm:$0xf]
        %v5333 = vld [vmem:[%s5328 + $0x10] sm:$0xf]
        %v5334 = vld [vmem:[%s5328 + $0x14] sm:$0xf]
        %v5335 = vld [vmem:[%s5328 + $0x18] sm:$0xf]
        %v5336 = vld [vmem:[%s5328 + $0x1c] sm:$0xf]
        %v5337 = vld [vmem:[%s5328 + $0x20] sm:$0xf]
        %v5338 = vld [vmem:[%s5328 + $0x24] sm:$0xf]
        %v5339 = vld [vmem:[%s5328 + $0x28] sm:$0xf]
        %v5340 = vld [vmem:[%s5328 + $0x2c] sm:$0xf]
        %v5341 = vld [vmem:[%s5328 + $0x30] sm:$0xf]
        %v5342 = vld [vmem:[%s5328 + $0x34] sm:$0xf]
        %v5343 = vld [vmem:[%s5328 + $0x38] sm:$0xf]
        %v5344 = vld [vmem:[%s5328 + $0x3c] sm:$0xf]
        %v5387 = vunpack.c.l.b16 %v5286
        %v5388 = vunpack.c.l.b16 %v5287
        %v5389 = vunpack.c.l.b16 %v5288
        %v5390 = vunpack.c.l.b16 %v5289
        %v5391 = vunpack.c.l.b16 %v5290
        %v5392 = vunpack.c.l.b16 %v5291
        %v5393 = vunpack.c.l.b16 %v5292
        %v5394 = vunpack.c.l.b16 %v5293
        %v5395 = vunpack.c.l.b16 %v5294
        %v5396 = vunpack.c.l.b16 %v5295
        %v5397 = vunpack.c.l.b16 %v5296
        %v5398 = vunpack.c.l.b16 %v5297
        %v5399 = vunpack.c.l.b16 %v5298
        %v5400 = vunpack.c.l.b16 %v5299
        %v5401 = vunpack.c.l.b16 %v5300
        %v5402 = vunpack.c.l.b16 %v5301
        %v5403 = vunpack.c.l.b16 %v5302
        %v5404 = vunpack.c.l.b16 %v5303
        %v5405 = vunpack.c.l.b16 %v5304
        %v5406 = vunpack.c.l.b16 %v5305
        %v5407 = vunpack.c.l.b16 %v5306
        %v5408 = vunpack.c.l.b16 %v5307
        %v5409 = vunpack.c.l.b16 %v5308
        %v5410 = vunpack.c.l.b16 %v5309
        %v5411 = vunpack.c.l.b16 %v5310
        %v5412 = vunpack.c.l.b16 %v5311
        %v5413 = vunpack.c.l.b16 %v5312
        %v5414 = vunpack.c.l.b16 %v5313
        %v5415 = vunpack.c.l.b16 %v5314
        %v5416 = vunpack.c.l.b16 %v5315
        %v5417 = vunpack.c.l.b16 %v5316
        %v5418 = vunpack.c.l.b16 %v5317
        %v5419 = vunpack.c.l.b16 %v5318
        %v5420 = vunpack.c.l.b16 %v5319
        %v5421 = vunpack.c.l.b16 %v5320
        %v5422 = vunpack.c.l.b16 %v5321
        %v5423 = vunpack.c.l.b16 %v5322
        %v5424 = vunpack.c.l.b16 %v5323
        %v5425 = vunpack.c.l.b16 %v5324
        %v5426 = vunpack.c.l.b16 %v5325
        %v5427 = vunpack.c.l.b16 %v5326
        %v5428 = vunpack.c.l.b16 %v5327
        %v5429 = vpack.c.b16 %v5388, %v5387
        %v5430 = vpack.c.b16 %v5390, %v5389
        %v5431 = vpack.c.b16 %v5392, %v5391
        %v5432 = vpack.c.b16 %v5394, %v5393
        %v5433 = vpack.c.b16 %v5396, %v5395
        %v5434 = vpack.c.b16 %v5398, %v5397
        %v5435 = vpack.c.b16 %v5400, %v5399
        %v5436 = vpack.c.b16 %v5402, %v5401
        %v5437 = vpack.c.b16 %v5404, %v5403
        %v5438 = vpack.c.b16 %v5406, %v5405
        %v5439 = vpack.c.b16 %v5408, %v5407
        %v5440 = vpack.c.b16 %v5410, %v5409
        %v5441 = vpack.c.b16 %v5412, %v5411
        %v5442 = vpack.c.b16 %v5414, %v5413
        %v5443 = vpack.c.b16 %v5416, %v5415
        %v5444 = vpack.c.b16 %v5418, %v5417
        %v5445 = vpack.c.b16 %v5420, %v5419
        %v5446 = vpack.c.b16 %v5422, %v5421
        %v5447 = vpack.c.b16 %v5424, %v5423
        %v5448 = vpack.c.b16 %v5426, %v5425
        %v5449 = vpack.c.b16 %v5428, %v5427
        %v5451 = vshrl.u32 %v5429, 16
        %v5453 = vshll.u32 %v5429, 16
        %v5455 = vrot.slane %v5453, 1
        %v5456 = vor.u32 %v5451, %v5455
        %v5458 = vshll.u32 %v5430, 16
        %v5460 = vrot.slane %v5458, 1
        %v5461 = vsel %vm4726, %v5456, %v5460
        %v5462 = vshrl.u32 %v5430, 16
        %v5464 = vor.u32 %v5462, %v5460
        %v5466 = vshll.u32 %v5431, 16
        %v5468 = vrot.slane %v5466, 1
        %v5469 = vsel %vm4726, %v5464, %v5468
        %v5470 = vshrl.u32 %v5431, 16
        %v5472 = vor.u32 %v5470, %v5468
        %v5474 = vshll.u32 %v5432, 16
        %v5476 = vrot.slane %v5474, 1
        %v5477 = vsel %vm4726, %v5472, %v5476
        %v5478 = vshrl.u32 %v5432, 16
        %v5480 = vor.u32 %v5478, %v5476
        %v5482 = vshll.u32 %v5433, 16
        %v5484 = vrot.slane %v5482, 1
        %v5485 = vsel %vm4726, %v5480, %v5484
        %v5486 = vshrl.u32 %v5433, 16
        %v5488 = vor.u32 %v5486, %v5484
        %v5490 = vshll.u32 %v5434, 16
        %v5492 = vrot.slane %v5490, 1
        %v5493 = vsel %vm4726, %v5488, %v5492
        %v5494 = vshrl.u32 %v5434, 16
        %v5496 = vor.u32 %v5494, %v5492
        %v5498 = vshll.u32 %v5435, 16
        %v5500 = vrot.slane %v5498, 1
        %v5501 = vsel %vm4726, %v5496, %v5500
        %v5502 = vshrl.u32 %v5435, 16
        %v5504 = vor.u32 %v5502, %v5500
        %v5506 = vshll.u32 %v5436, 16
        %v5508 = vrot.slane %v5506, 1
        %v5509 = vsel %vm4726, %v5504, %v5508
        %v5510 = vshrl.u32 %v5436, 16
        %v5512 = vor.u32 %v5510, %v5508
        %v5514 = vshll.u32 %v5437, 16
        %v5516 = vrot.slane %v5514, 1
        %v5517 = vsel %vm4726, %v5512, %v5516
        %v5518 = vshrl.u32 %v5437, 16
        %v5520 = vor.u32 %v5518, %v5516
        %v5522 = vshll.u32 %v5438, 16
        %v5524 = vrot.slane %v5522, 1
        %v5525 = vsel %vm4726, %v5520, %v5524
        %v5526 = vshrl.u32 %v5438, 16
        %v5528 = vor.u32 %v5526, %v5524
        %v5530 = vshll.u32 %v5439, 16
        %v5532 = vrot.slane %v5530, 1
        %v5533 = vsel %vm4726, %v5528, %v5532
        %v5534 = vshrl.u32 %v5439, 16
        %v5536 = vor.u32 %v5534, %v5532
        %v5538 = vshll.u32 %v5440, 16
        %v5540 = vrot.slane %v5538, 1
        %v5541 = vsel %vm4726, %v5536, %v5540
        %v5542 = vshrl.u32 %v5440, 16
        %v5544 = vor.u32 %v5542, %v5540
        %v5546 = vshll.u32 %v5441, 16
        %v5548 = vrot.slane %v5546, 1
        %v5549 = vsel %vm4726, %v5544, %v5548
        %v5550 = vshrl.u32 %v5441, 16
        %v5552 = vor.u32 %v5550, %v5548
        %v5554 = vshll.u32 %v5442, 16
        %v5556 = vrot.slane %v5554, 1
        %v5557 = vsel %vm4726, %v5552, %v5556
        %v5558 = vshrl.u32 %v5442, 16
        %v5560 = vor.u32 %v5558, %v5556
        %v5562 = vshll.u32 %v5443, 16
        %v5564 = vrot.slane %v5562, 1
        %v5565 = vsel %vm4726, %v5560, %v5564
        %v5566 = vshrl.u32 %v5443, 16
        %v5568 = vor.u32 %v5566, %v5564
        %v5570 = vshll.u32 %v5444, 16
        %v5572 = vrot.slane %v5570, 1
        %v5573 = vsel %vm4726, %v5568, %v5572
        %v5574 = vshrl.u32 %v5444, 16
        %v5576 = vor.u32 %v5574, %v5572
        %v5578 = vshll.u32 %v5445, 16
        %v5580 = vrot.slane %v5578, 1
        %v5581 = vsel %vm4726, %v5576, %v5580
        %v5582 = vshrl.u32 %v5445, 16
        %v5584 = vor.u32 %v5582, %v5580
        %v5586 = vshll.u32 %v5446, 16
        %v5588 = vrot.slane %v5586, 1
        %v5589 = vsel %vm4726, %v5584, %v5588
        %v5590 = vshrl.u32 %v5446, 16
        %v5592 = vor.u32 %v5590, %v5588
        %v5594 = vshll.u32 %v5447, 16
        %v5596 = vrot.slane %v5594, 1
        %v5597 = vsel %vm4726, %v5592, %v5596
        %v5598 = vshrl.u32 %v5447, 16
        %v5600 = vor.u32 %v5598, %v5596
        %v5602 = vshll.u32 %v5448, 16
        %v5604 = vrot.slane %v5602, 1
        %v5605 = vsel %vm4726, %v5600, %v5604
        %v5606 = vshrl.u32 %v5448, 16
        %v5608 = vor.u32 %v5606, %v5604
        %v5610 = vshll.u32 %v5449, 16
        %v5612 = vrot.slane %v5610, 1
        %v5613 = vsel %vm4726, %v5608, %v5612
        %v5614 = vshrl.u32 %v5449, 16
        %v5616 = vor.u32 %v5614, %v5612
        %v5654 = vunpack.c.l.b16 %v5329
        %v5655 = vunpack.c.l.b16 %v5330
        %v5656 = vunpack.c.l.b16 %v5331
        %v5657 = vunpack.c.l.b16 %v5332
        %v5658 = vunpack.c.l.b16 %v5333
        %v5659 = vunpack.c.l.b16 %v5334
        %v5660 = vunpack.c.l.b16 %v5335
        %v5661 = vunpack.c.l.b16 %v5336
        %v5662 = vunpack.c.l.b16 %v5337
        %v5663 = vunpack.c.l.b16 %v5338
        %v5664 = vunpack.c.l.b16 %v5339
        %v5665 = vunpack.c.l.b16 %v5340
        %v5666 = vunpack.c.l.b16 %v5341
        %v5667 = vunpack.c.l.b16 %v5342
        %v5668 = vunpack.c.l.b16 %v5343
        %v5669 = vunpack.c.l.b16 %v5344
        %v5670 = vpack.c.b16 %v5655, %v5654
        %v5671 = vpack.c.b16 %v5657, %v5656
        %v5672 = vpack.c.b16 %v5659, %v5658
        %v5673 = vpack.c.b16 %v5661, %v5660
        %v5674 = vpack.c.b16 %v5663, %v5662
        %v5675 = vpack.c.b16 %v5665, %v5664
        %v5676 = vpack.c.b16 %v5667, %v5666
        %v5677 = vpack.c.b16 %v5669, %v5668
        %5686 = vmatprep.subr.bf16.mxu0 0
        %5687 = vmatpush1.bf16.msra.mxu0 %v5670
        %5688 = vmatprep.subr.bf16.mxu0 0
        %5689 = vmatpush1.bf16.msra.mxu0 %v5671
        %5690 = vmatprep.subr.bf16.mxu0 0
        %5691 = vmatpush1.bf16.msra.mxu0 %v5672
        %5692 = vmatprep.subr.bf16.mxu0 0
        %5693 = vmatpush1.bf16.msra.mxu0 %v5673
        %5694 = vmatprep.subr.bf16.mxu0 0
        %5695 = vmatpush1.bf16.msra.mxu0 %v5674
        %5696 = vmatprep.subr.bf16.mxu0 0
        %5697 = vmatpush1.bf16.msra.mxu0 %v5675
        %5698 = vmatprep.subr.bf16.mxu0 0
        %5699 = vmatpush1.bf16.msra.mxu0 %v5676
        %5700 = vmatprep.subr.bf16.mxu0 0
        %5701 = vmatpush1.bf16.msra.mxu0 %v5677
        %5702 = vmatprep.subr.bf16.mxu0 0
        %5703 = vmatpush1.bf16.msra.mxu0 0
        %5704 = vmatprep.subr.bf16.mxu0 0
        %5705 = vmatpush1.bf16.msra.mxu0 0
        %5706 = vmatprep.subr.bf16.mxu0 0
        %5707 = vmatpush1.bf16.msra.mxu0 0
        %5708 = vmatprep.subr.bf16.mxu0 0
        %5709 = vmatpush1.bf16.msra.mxu0 0
        %5710 = vmatprep.subr.bf16.mxu0 0
        %5711 = vmatpush1.bf16.msra.mxu0 0
        %5712 = vmatprep.subr.bf16.mxu0 0
        %5713 = vmatpush1.bf16.msra.mxu0 0
        %5714 = vmatprep.subr.bf16.mxu0 0
        %5715 = vmatpush1.bf16.msra.mxu0 0
        %5716 = vmatprep.subr.bf16.mxu0 0
        %5717 = vmatpush1.bf16.msra.mxu0 0
        %5718 = vmatprep.mubr.bf16.mxu0 0
        %5719 = vmatmul.mubr.bf16.gmra.mrb[0].mxu0 %v5461
        %v5720 = vpop.f32.mrb[0].mxu0
        %v5721 = vadd.f32 0.0, %v5720
        %v5722 = vpop.f32.mrb[0].mxu0
        %v5723 = vpop.f32.mrb[0].mxu0
        %v5724 = vadd.f32 0.0, %v5723
        %v5725 = vpop.f32.mrb[0].mxu0
        %5726 = vmatprep.mubr.bf16.mxu0 0
        %5727 = vmatmul.mubr.bf16.gmra.mrb[0].mxu0 %v5469
        %v5728 = vpop.f32.mrb[0].mxu0
        %v5729 = vadd.f32 0.0, %v5728
        %v5730 = vpop.f32.mrb[0].mxu0
        %v5731 = vpop.f32.mrb[0].mxu0
        %v5732 = vadd.f32 0.0, %v5731
        %v5733 = vpop.f32.mrb[0].mxu0
        %5734 = vmatprep.mubr.bf16.mxu0 0
        %5735 = vmatmul.mubr.bf16.gmra.mrb[0].mxu0 %v5477
        %v5736 = vpop.f32.mrb[0].mxu0
        %v5737 = vadd.f32 0.0, %v5736
        %v5738 = vpop.f32.mrb[0].mxu0
        %v5739 = vpop.f32.mrb[0].mxu0
        %v5740 = vadd.f32 0.0, %v5739
        %v5741 = vpop.f32.mrb[0].mxu0
        %5742 = vmatprep.mubr.bf16.mxu0 0
        %5743 = vmatmul.mubr.bf16.gmra.mrb[0].mxu0 %v5485
        %v5744 = vpop.f32.mrb[0].mxu0
        %v5745 = vadd.f32 0.0, %v5744
        %v5746 = vpop.f32.mrb[0].mxu0
        %v5747 = vpop.f32.mrb[0].mxu0
        %v5748 = vadd.f32 0.0, %v5747
        %v5749 = vpop.f32.mrb[0].mxu0
        %5750 = vmatprep.mubr.bf16.mxu0 0
        %5751 = vmatmul.mubr.bf16.gmra.mrb[0].mxu0 %v5493
        %v5752 = vpop.f32.mrb[0].mxu0
        %v5753 = vadd.f32 0.0, %v5752
        %v5754 = vpop.f32.mrb[0].mxu0
        %v5755 = vpop.f32.mrb[0].mxu0
        %v5756 = vadd.f32 0.0, %v5755
        %v5757 = vpop.f32.mrb[0].mxu0
        %5758 = vmatprep.mubr.bf16.mxu0 0
        %5759 = vmatmul.mubr.bf16.gmra.mrb[0].mxu0 %v5501
        %v5760 = vpop.f32.mrb[0].mxu0
        %v5761 = vadd.f32 0.0, %v5760
        %v5762 = vpop.f32.mrb[0].mxu0
        %v5763 = vpop.f32.mrb[0].mxu0
        %v5764 = vadd.f32 0.0, %v5763
        %v5765 = vpop.f32.mrb[0].mxu0
        %5766 = vmatprep.mubr.bf16.mxu0 0
        %5767 = vmatmul.mubr.bf16.gmra.mrb[0].mxu0 %v5509
        %v5768 = vpop.f32.mrb[0].mxu0
        %v5769 = vadd.f32 0.0, %v5768
        %v5770 = vpop.f32.mrb[0].mxu0
        %v5771 = vpop.f32.mrb[0].mxu0
        %v5772 = vadd.f32 0.0, %v5771
        %v5773 = vpop.f32.mrb[0].mxu0
        %5774 = vmatprep.mubr.bf16.mxu0 0
        %5775 = vmatmul.mubr.bf16.gmra.mrb[0].mxu0 %v5517
        %v5776 = vpop.f32.mrb[0].mxu0
        %v5777 = vadd.f32 0.0, %v5776
        %v5778 = vpop.f32.mrb[0].mxu0
        %v5779 = vpop.f32.mrb[0].mxu0
        %v5780 = vadd.f32 0.0, %v5779
        %v5781 = vpop.f32.mrb[0].mxu0
        %5782 = vmatprep.mubr.bf16.mxu0 0
        %5783 = vmatmul.mubr.bf16.gmra.mrb[0].mxu0 %v5525
        %v5784 = vpop.f32.mrb[0].mxu0
        %v5785 = vadd.f32 0.0, %v5784
        %v5786 = vpop.f32.mrb[0].mxu0
        %v5787 = vpop.f32.mrb[0].mxu0
        %v5788 = vadd.f32 0.0, %v5787
        %v5789 = vpop.f32.mrb[0].mxu0
        %5790 = vmatprep.mubr.bf16.mxu0 0
        %5791 = vmatmul.mubr.bf16.gmra.mrb[0].mxu0 %v5533
        %v5792 = vpop.f32.mrb[0].mxu0
        %v5793 = vadd.f32 0.0, %v5792
        %v5794 = vpop.f32.mrb[0].mxu0
        %v5795 = vpop.f32.mrb[0].mxu0
        %v5796 = vadd.f32 0.0, %v5795
        %v5797 = vpop.f32.mrb[0].mxu0
        %5798 = vmatprep.mubr.bf16.mxu0 0
        %5799 = vmatmul.mubr.bf16.gmra.mrb[0].mxu0 %v5541
        %v5800 = vpop.f32.mrb[0].mxu0
        %v5801 = vadd.f32 0.0, %v5800
        %v5802 = vpop.f32.mrb[0].mxu0
        %v5803 = vpop.f32.mrb[0].mxu0
        %v5804 = vadd.f32 0.0, %v5803
        %v5805 = vpop.f32.mrb[0].mxu0
        %5806 = vmatprep.mubr.bf16.mxu0 0
        %5807 = vmatmul.mubr.bf16.gmra.mrb[0].mxu0 %v5549
        %v5808 = vpop.f32.mrb[0].mxu0
        %v5809 = vadd.f32 0.0, %v5808
        %v5810 = vpop.f32.mrb[0].mxu0
        %v5811 = vpop.f32.mrb[0].mxu0
        %v5812 = vadd.f32 0.0, %v5811
        %v5813 = vpop.f32.mrb[0].mxu0
        %5814 = vmatprep.mubr.bf16.mxu0 0
        %5815 = vmatmul.mubr.bf16.gmra.mrb[0].mxu0 %v5557
        %v5816 = vpop.f32.mrb[0].mxu0
        %v5817 = vadd.f32 0.0, %v5816
        %v5818 = vpop.f32.mrb[0].mxu0
        %v5819 = vpop.f32.mrb[0].mxu0
        %v5820 = vadd.f32 0.0, %v5819
        %v5821 = vpop.f32.mrb[0].mxu0
        %5822 = vmatprep.mubr.bf16.mxu0 0
        %5823 = vmatmul.mubr.bf16.gmra.mrb[0].mxu0 %v5565
        %v5824 = vpop.f32.mrb[0].mxu0
        %v5825 = vadd.f32 0.0, %v5824
        %v5826 = vpop.f32.mrb[0].mxu0
        %v5827 = vpop.f32.mrb[0].mxu0
        %v5828 = vadd.f32 0.0, %v5827
        %v5829 = vpop.f32.mrb[0].mxu0
        %5830 = vmatprep.mubr.bf16.mxu0 0
        %5831 = vmatmul.mubr.bf16.gmra.mrb[0].mxu0 %v5573
        %v5832 = vpop.f32.mrb[0].mxu0
        %v5833 = vadd.f32 0.0, %v5832
        %v5834 = vpop.f32.mrb[0].mxu0
        %v5835 = vpop.f32.mrb[0].mxu0
        %v5836 = vadd.f32 0.0, %v5835
        %v5837 = vpop.f32.mrb[0].mxu0
        %5838 = vmatprep.mubr.bf16.mxu0 0
        %5839 = vmatmul.mubr.bf16.gmra.mrb[0].mxu0 %v5581
        %v5840 = vpop.f32.mrb[0].mxu0
        %v5841 = vadd.f32 0.0, %v5840
        %v5842 = vpop.f32.mrb[0].mxu0
        %v5843 = vpop.f32.mrb[0].mxu0
        %v5844 = vadd.f32 0.0, %v5843
        %v5845 = vpop.f32.mrb[0].mxu0
        %5846 = vmatprep.mubr.bf16.mxu0 0
        %5847 = vmatmul.mubr.bf16.gmra.mrb[0].mxu0 %v5589
        %v5848 = vpop.f32.mrb[0].mxu0
        %v5849 = vadd.f32 0.0, %v5848
        %v5850 = vpop.f32.mrb[0].mxu0
        %v5851 = vpop.f32.mrb[0].mxu0
        %v5852 = vadd.f32 0.0, %v5851
        %v5853 = vpop.f32.mrb[0].mxu0
        %5854 = vmatprep.mubr.bf16.mxu0 0
        %5855 = vmatmul.mubr.bf16.gmra.mrb[0].mxu0 %v5597
        %v5856 = vpop.f32.mrb[0].mxu0
        %v5857 = vadd.f32 0.0, %v5856
        %v5858 = vpop.f32.mrb[0].mxu0
        %v5859 = vpop.f32.mrb[0].mxu0
        %v5860 = vadd.f32 0.0, %v5859
        %v5861 = vpop.f32.mrb[0].mxu0
        %5862 = vmatprep.mubr.bf16.mxu0 0
        %5863 = vmatmul.mubr.bf16.gmra.mrb[0].mxu0 %v5605
        %v5864 = vpop.f32.mrb[0].mxu0
        %v5865 = vadd.f32 0.0, %v5864
        %v5866 = vpop.f32.mrb[0].mxu0
        %v5867 = vpop.f32.mrb[0].mxu0
        %v5868 = vadd.f32 0.0, %v5867
        %v5869 = vpop.f32.mrb[0].mxu0
        %5870 = vmatprep.mubr.bf16.mxu0 0
        %5871 = vmatmul.mubr.bf16.gmra.mrb[0].mxu0 %v5613
        %v5872 = vpop.f32.mrb[0].mxu0
        %v5873 = vadd.f32 0.0, %v5872
        %v5874 = vpop.f32.mrb[0].mxu0
        %v5875 = vpop.f32.mrb[0].mxu0
        %v5876 = vadd.f32 0.0, %v5875
        %v5877 = vpop.f32.mrb[0].mxu0
        %5878 = vmatprep.mubr.bf16.mxu0 0
        %5879 = vmatmul.mubr.bf16.gmra.mrb[0].mxu0 %v5616
        %v5880 = vpop.f32.mrb[0].mxu0
        %v5881 = vadd.f32 0.0, %v5880
        %v5882 = vpop.f32.mrb[0].mxu0
        %v5883 = vpop.f32.mrb[0].mxu0
        %v5884 = vpop.f32.mrb[0].mxu0
        %5885 = vdwg.mxu0
        %v5886 = vld [vmem:[#allocation3] sm:$0xff]
        %v5887 = vld [vmem:[#allocation3 + $0x8] sm:$0xff]
        %v5888 = vld [vmem:[#allocation3 + $0x10] sm:$0xff]
        %v5889 = vld [vmem:[#allocation3 + $0x18] sm:$0xff]
        %v5890 = vld [vmem:[#allocation3 + $0x20] sm:$0xff]
        %v5891 = vld [vmem:[#allocation3 + $0x28] sm:$0xff]
        %v5892 = vld [vmem:[#allocation3 + $0x30] sm:$0xff]
        %v5893 = vld [vmem:[#allocation3 + $0x38] sm:$0xff]
        %v5894 = vld [vmem:[#allocation3 + $0x40] sm:$0xff]
        %v5895 = vld [vmem:[#allocation3 + $0x48] sm:$0xff]
        %v5896 = vld [vmem:[#allocation3 + $0x50] sm:$0xff]
        %v5897 = vld [vmem:[#allocation3 + $0x58] sm:$0xff]
        %v5898 = vld [vmem:[#allocation3 + $0x60] sm:$0xff]
        %v5899 = vld [vmem:[#allocation3 + $0x68] sm:$0xff]
        %v5900 = vld [vmem:[#allocation3 + $0x70] sm:$0xff]
        %v5901 = vld [vmem:[#allocation3 + $0x78] sm:$0xff]
        %v5902 = vld [vmem:[#allocation3 + $0x80] sm:$0xff]
        %v5903 = vld [vmem:[#allocation3 + $0x88] sm:$0xff]
        %v5904 = vld [vmem:[#allocation3 + $0x90] sm:$0xff]
        %v5905 = vld [vmem:[#allocation3 + $0x98] sm:$0xff]
        %v5906 = vld [vmem:[#allocation3 + $0xa0] sm:$0xff]
        %v5907 = vld [vmem:[#allocation3 + $0xa8] sm:$0xff]
        %v5908 = vld [vmem:[#allocation3 + $0xb0] sm:$0xff]
        %v5909 = vld [vmem:[#allocation3 + $0xb8] sm:$0xff]
        %v5910 = vld [vmem:[#allocation3 + $0xc0] sm:$0xff]
        %v5911 = vld [vmem:[#allocation3 + $0xc8] sm:$0xff]
        %v5912 = vld [vmem:[#allocation3 + $0xd0] sm:$0xff]
        %v5913 = vld [vmem:[#allocation3 + $0xd8] sm:$0xff]
        %v5914 = vld [vmem:[#allocation3 + $0xe0] sm:$0xff]
        %v5915 = vld [vmem:[#allocation3 + $0xe8] sm:$0xff]
        %v5916 = vld [vmem:[#allocation3 + $0xf0] sm:$0xff]
        %v5917 = vld [vmem:[#allocation3 + $0xf8] sm:$0xff]
        %v5918 = vld [vmem:[#allocation3 + $0x100] sm:$0xff]
        %v5919 = vld [vmem:[#allocation3 + $0x108] sm:$0xff]
        %v5920 = vld [vmem:[#allocation3 + $0x110] sm:$0xff]
        %v5921 = vld [vmem:[#allocation3 + $0x118] sm:$0xff]
        %v5922 = vld [vmem:[#allocation3 + $0x120] sm:$0xff]
        %v5923 = vld [vmem:[#allocation3 + $0x128] sm:$0xff]
        %v5924 = vld [vmem:[#allocation3 + $0x130] sm:$0xff]
        %v5925 = vld [vmem:[#allocation3 + $0x138] sm:$0xff]
        %v5926 = vld [vmem:[#allocation3 + $0x140] sm:$0xff]
        %v5927 = vadd.f32 %v5886, %v5721
        %v5928 = vadd.f32 %v5887, %v5724
        %v5929 = vadd.f32 %v5888, %v5729
        %v5930 = vadd.f32 %v5889, %v5732
        %v5931 = vadd.f32 %v5890, %v5737
        %v5932 = vadd.f32 %v5891, %v5740
        %v5933 = vadd.f32 %v5892, %v5745
        %v5934 = vadd.f32 %v5893, %v5748
        %v5935 = vadd.f32 %v5894, %v5753
        %v5936 = vadd.f32 %v5895, %v5756
        %v5937 = vadd.f32 %v5896, %v5761
        %v5938 = vadd.f32 %v5897, %v5764
        %v5939 = vadd.f32 %v5898, %v5769
        %v5940 = vadd.f32 %v5899, %v5772
        %v5941 = vadd.f32 %v5900, %v5777
        %v5942 = vadd.f32 %v5901, %v5780
        %v5943 = vadd.f32 %v5902, %v5785
        %v5944 = vadd.f32 %v5903, %v5788
        %v5945 = vadd.f32 %v5904, %v5793
        %v5946 = vadd.f32 %v5905, %v5796
        %v5947 = vadd.f32 %v5906, %v5801
        %v5948 = vadd.f32 %v5907, %v5804
        %v5949 = vadd.f32 %v5908, %v5809
        %v5950 = vadd.f32 %v5909, %v5812
        %v5951 = vadd.f32 %v5910, %v5817
        %v5952 = vadd.f32 %v5911, %v5820
        %v5953 = vadd.f32 %v5912, %v5825
        %v5954 = vadd.f32 %v5913, %v5828
        %v5955 = vadd.f32 %v5914, %v5833
        %v5956 = vadd.f32 %v5915, %v5836
        %v5957 = vadd.f32 %v5916, %v5841
        %v5958 = vadd.f32 %v5917, %v5844
        %v5959 = vadd.f32 %v5918, %v5849
        %v5960 = vadd.f32 %v5919, %v5852
        %v5961 = vadd.f32 %v5920, %v5857
        %v5962 = vadd.f32 %v5921, %v5860
        %v5963 = vadd.f32 %v5922, %v5865
        %v5964 = vadd.f32 %v5923, %v5868
        %v5965 = vadd.f32 %v5924, %v5873
        %v5966 = vadd.f32 %v5925, %v5876
        %v5967 = vadd.f32 %v5926, %v5881
        %5968 = vst [vmem:[#allocation3] sm:$0xff] %v5927
        %5969 = vst [vmem:[#allocation3 + $0x8] sm:$0xff] %v5928
        %5970 = vst [vmem:[#allocation3 + $0x10] sm:$0xff] %v5929
        %5971 = vst [vmem:[#allocation3 + $0x18] sm:$0xff] %v5930
        %5972 = vst [vmem:[#allocation3 + $0x20] sm:$0xff] %v5931
        %5973 = vst [vmem:[#allocation3 + $0x28] sm:$0xff] %v5932
        %5974 = vst [vmem:[#allocation3 + $0x30] sm:$0xff] %v5933
        %5975 = vst [vmem:[#allocation3 + $0x38] sm:$0xff] %v5934
        %5976 = vst [vmem:[#allocation3 + $0x40] sm:$0xff] %v5935
        %5977 = vst [vmem:[#allocation3 + $0x48] sm:$0xff] %v5936
        %5978 = vst [vmem:[#allocation3 + $0x50] sm:$0xff] %v5937
        %5979 = vst [vmem:[#allocation3 + $0x58] sm:$0xff] %v5938
        %5980 = vst [vmem:[#allocation3 + $0x60] sm:$0xff] %v5939
        %5981 = vst [vmem:[#allocation3 + $0x68] sm:$0xff] %v5940
        %5982 = vst [vmem:[#allocation3 + $0x70] sm:$0xff] %v5941
        %5983 = vst [vmem:[#allocation3 + $0x78] sm:$0xff] %v5942
        %5984 = vst [vmem:[#allocation3 + $0x80] sm:$0xff] %v5943
        %5985 = vst [vmem:[#allocation3 + $0x88] sm:$0xff] %v5944
        %5986 = vst [vmem:[#allocation3 + $0x90] sm:$0xff] %v5945
        %5987 = vst [vmem:[#allocation3 + $0x98] sm:$0xff] %v5946
        %5988 = vst [vmem:[#allocation3 + $0xa0] sm:$0xff] %v5947
        %5989 = vst [vmem:[#allocation3 + $0xa8] sm:$0xff] %v5948
        %5990 = vst [vmem:[#allocation3 + $0xb0] sm:$0xff] %v5949
        %5991 = vst [vmem:[#allocation3 + $0xb8] sm:$0xff] %v5950
        %5992 = vst [vmem:[#allocation3 + $0xc0] sm:$0xff] %v5951
        %5993 = vst [vmem:[#allocation3 + $0xc8] sm:$0xff] %v5952
        %5994 = vst [vmem:[#allocation3 + $0xd0] sm:$0xff] %v5953
        %5995 = vst [vmem:[#allocation3 + $0xd8] sm:$0xff] %v5954
        %5996 = vst [vmem:[#allocation3 + $0xe0] sm:$0xff] %v5955
        %5997 = vst [vmem:[#allocation3 + $0xe8] sm:$0xff] %v5956
        %5998 = vst [vmem:[#allocation3 + $0xf0] sm:$0xff] %v5957
        %5999 = vst [vmem:[#allocation3 + $0xf8] sm:$0xff] %v5958
        %6000 = vst [vmem:[#allocation3 + $0x100] sm:$0xff] %v5959
        %6001 = vst [vmem:[#allocation3 + $0x108] sm:$0xff] %v5960
        %6002 = vst [vmem:[#allocation3 + $0x110] sm:$0xff] %v5961
        %6003 = vst [vmem:[#allocation3 + $0x118] sm:$0xff] %v5962
        %6004 = vst [vmem:[#allocation3 + $0x120] sm:$0xff] %v5963
        %6005 = vst [vmem:[#allocation3 + $0x128] sm:$0xff] %v5964
        %6006 = vst [vmem:[#allocation3 + $0x130] sm:$0xff] %v5965
        %6007 = vst [vmem:[#allocation3 + $0x138] sm:$0xff] %v5966
        %6008 = vst [vmem:[#allocation3 + $0x140] sm:$0xff] %v5967
        %v6009 = vld [vmem:[#allocation2 + $0x14] sm:$0xe]
        %v6010 = vld [vmem:[#allocation2 + $0x18] sm:$0xf]
        %v6011 = vld [vmem:[#allocation2 + $0x1c] sm:$0xf]
        %v6012 = vld [vmem:[#allocation2 + $0x20] sm:$0xf]
        %v6013 = vld [vmem:[#allocation2 + $0x24] sm:$0xf]
        %v6014 = vld [vmem:[#allocation2 + $0x28] sm:$0xf]
        %v6015 = vld [vmem:[#allocation2 + $0x2c] sm:$0xf]
        %v6016 = vld [vmem:[#allocation2 + $0x30] sm:$0xf]
        %v6017 = vld [vmem:[#allocation2 + $0x34] sm:$0xf]
        %v6018 = vld [vmem:[#allocation2 + $0x38] sm:$0xf]
        %v6019 = vld [vmem:[#allocation2 + $0x3c] sm:$0xf]
        %v6020 = vld [vmem:[#allocation2 + $0x40] sm:$0xf]
        %v6021 = vld [vmem:[#allocation2 + $0x44] sm:$0xf]
        %v6022 = vld [vmem:[#allocation2 + $0x48] sm:$0xf]
        %v6023 = vld [vmem:[#allocation2 + $0x4c] sm:$0xf]
        %v6024 = vld [vmem:[#allocation2 + $0x50] sm:$0xf]
        %v6025 = vld [vmem:[#allocation2 + $0x54] sm:$0xf]
        %v6026 = vld [vmem:[#allocation2 + $0x58] sm:$0xf]
        %v6027 = vld [vmem:[#allocation2 + $0x5c] sm:$0xf]
        %v6028 = vld [vmem:[#allocation2 + $0x60] sm:$0xf]
        %v6029 = vld [vmem:[#allocation2 + $0x64] sm:$0xf]
        %v6030 = vld [vmem:[#allocation2 + $0x68] sm:$0xf]
        %v6031 = vld [vmem:[#allocation2 + $0x6c] sm:$0xf]
        %v6032 = vld [vmem:[#allocation2 + $0x70] sm:$0xf]
        %v6033 = vld [vmem:[#allocation2 + $0x74] sm:$0xf]
        %v6034 = vld [vmem:[#allocation2 + $0x78] sm:$0xf]
        %v6035 = vld [vmem:[#allocation2 + $0x7c] sm:$0xf]
        %v6036 = vld [vmem:[#allocation2 + $0x80] sm:$0xf]
        %v6037 = vld [vmem:[#allocation2 + $0x84] sm:$0xf]
        %v6038 = vld [vmem:[#allocation2 + $0x88] sm:$0xf]
        %v6039 = vld [vmem:[#allocation2 + $0x8c] sm:$0xf]
        %v6040 = vld [vmem:[#allocation2 + $0x90] sm:$0xf]
        %v6041 = vld [vmem:[#allocation2 + $0x94] sm:$0xf]
        %v6042 = vld [vmem:[#allocation2 + $0x98] sm:$0xf]
        %v6043 = vld [vmem:[#allocation2 + $0x9c] sm:$0xf]
        %v6044 = vld [vmem:[#allocation2 + $0xa0] sm:$0xf]
        %v6045 = vld [vmem:[#allocation2 + $0xa4] sm:$0xf]
        %v6046 = vld [vmem:[#allocation2 + $0xa8] sm:$0xf]
        %v6047 = vld [vmem:[#allocation2 + $0xac] sm:$0xf]
        %v6048 = vld [vmem:[#allocation2 + $0xb0] sm:$0xf]
        %v6049 = vld [vmem:[#allocation2 + $0xb4] sm:$0xf]
        %v6050 = vld [vmem:[#allocation2 + $0xb8] sm:$0x1]
        %s6051 = scalar_lea.vmem [#allocation7], 448
        %v6052 = vld [vmem:[%s6051] sm:$0xf]
        %v6053 = vld [vmem:[%s6051 + $0x4] sm:$0xf]
        %v6054 = vld [vmem:[%s6051 + $0x8] sm:$0xf]
        %v6055 = vld [vmem:[%s6051 + $0xc] sm:$0xf]
        %v6056 = vld [vmem:[%s6051 + $0x10] sm:$0xf]
        %v6057 = vld [vmem:[%s6051 + $0x14] sm:$0xf]
        %v6058 = vld [vmem:[%s6051 + $0x18] sm:$0xf]
        %v6059 = vld [vmem:[%s6051 + $0x1c] sm:$0xf]
        %v6060 = vld [vmem:[%s6051 + $0x20] sm:$0xf]
        %v6061 = vld [vmem:[%s6051 + $0x24] sm:$0xf]
        %v6062 = vld [vmem:[%s6051 + $0x28] sm:$0xf]
        %v6063 = vld [vmem:[%s6051 + $0x2c] sm:$0xf]
        %v6064 = vld [vmem:[%s6051 + $0x30] sm:$0xf]
        %v6065 = vld [vmem:[%s6051 + $0x34] sm:$0xf]
        %v6066 = vld [vmem:[%s6051 + $0x38] sm:$0xf]
        %v6067 = vld [vmem:[%s6051 + $0x3c] sm:$0xf]
        %v6110 = vunpack.c.l.b16 %v6009
        %v6111 = vunpack.c.l.b16 %v6010
        %v6112 = vunpack.c.l.b16 %v6011
        %v6113 = vunpack.c.l.b16 %v6012
        %v6114 = vunpack.c.l.b16 %v6013
        %v6115 = vunpack.c.l.b16 %v6014
        %v6116 = vunpack.c.l.b16 %v6015
        %v6117 = vunpack.c.l.b16 %v6016
        %v6118 = vunpack.c.l.b16 %v6017
        %v6119 = vunpack.c.l.b16 %v6018
        %v6120 = vunpack.c.l.b16 %v6019
        %v6121 = vunpack.c.l.b16 %v6020
        %v6122 = vunpack.c.l.b16 %v6021
        %v6123 = vunpack.c.l.b16 %v6022
        %v6124 = vunpack.c.l.b16 %v6023
        %v6125 = vunpack.c.l.b16 %v6024
        %v6126 = vunpack.c.l.b16 %v6025
        %v6127 = vunpack.c.l.b16 %v6026
        %v6128 = vunpack.c.l.b16 %v6027
        %v6129 = vunpack.c.l.b16 %v6028
        %v6130 = vunpack.c.l.b16 %v6029
        %v6131 = vunpack.c.l.b16 %v6030
        %v6132 = vunpack.c.l.b16 %v6031
        %v6133 = vunpack.c.l.b16 %v6032
        %v6134 = vunpack.c.l.b16 %v6033
        %v6135 = vunpack.c.l.b16 %v6034
        %v6136 = vunpack.c.l.b16 %v6035
        %v6137 = vunpack.c.l.b16 %v6036
        %v6138 = vunpack.c.l.b16 %v6037
        %v6139 = vunpack.c.l.b16 %v6038
        %v6140 = vunpack.c.l.b16 %v6039
        %v6141 = vunpack.c.l.b16 %v6040
        %v6142 = vunpack.c.l.b16 %v6041
        %v6143 = vunpack.c.l.b16 %v6042
        %v6144 = vunpack.c.l.b16 %v6043
        %v6145 = vunpack.c.l.b16 %v6044
        %v6146 = vunpack.c.l.b16 %v6045
        %v6147 = vunpack.c.l.b16 %v6046
        %v6148 = vunpack.c.l.b16 %v6047
        %v6149 = vunpack.c.l.b16 %v6048
        %v6150 = vunpack.c.l.b16 %v6049
        %v6151 = vunpack.c.l.b16 %v6050
        %v6152 = vpack.c.b16 %v6111, %v6110
        %v6153 = vpack.c.b16 %v6113, %v6112
        %v6154 = vpack.c.b16 %v6115, %v6114
        %v6155 = vpack.c.b16 %v6117, %v6116
        %v6156 = vpack.c.b16 %v6119, %v6118
        %v6157 = vpack.c.b16 %v6121, %v6120
        %v6158 = vpack.c.b16 %v6123, %v6122
        %v6159 = vpack.c.b16 %v6125, %v6124
        %v6160 = vpack.c.b16 %v6127, %v6126
        %v6161 = vpack.c.b16 %v6129, %v6128
        %v6162 = vpack.c.b16 %v6131, %v6130
        %v6163 = vpack.c.b16 %v6133, %v6132
        %v6164 = vpack.c.b16 %v6135, %v6134
        %v6165 = vpack.c.b16 %v6137, %v6136
        %v6166 = vpack.c.b16 %v6139, %v6138
        %v6167 = vpack.c.b16 %v6141, %v6140
        %v6168 = vpack.c.b16 %v6143, %v6142
        %v6169 = vpack.c.b16 %v6145, %v6144
        %v6170 = vpack.c.b16 %v6147, %v6146
        %v6171 = vpack.c.b16 %v6149, %v6148
        %v6172 = vpack.c.b16 %v6151, %v6150
        %vm6173 = vcmask 1046528
        %v6174 = vrot.slane %v6152, 1
        %v6175 = vrot.slane %v6153, 1
        %v6176 = vsel %vm6173, %v6174, %v6175
        %v6177 = vrot.slane %v6154, 1
        %v6178 = vsel %vm6173, %v6175, %v6177
        %v6179 = vrot.slane %v6155, 1
        %v6180 = vsel %vm6173, %v6177, %v6179
        %v6181 = vrot.slane %v6156, 1
        %v6182 = vsel %vm6173, %v6179, %v6181
        %v6183 = vrot.slane %v6157, 1
        %v6184 = vsel %vm6173, %v6181, %v6183
        %v6185 = vrot.slane %v6158, 1
        %v6186 = vsel %vm6173, %v6183, %v6185
        %v6187 = vrot.slane %v6159, 1
        %v6188 = vsel %vm6173, %v6185, %v6187
        %v6189 = vrot.slane %v6160, 1
        %v6190 = vsel %vm6173, %v6187, %v6189
        %v6191 = vrot.slane %v6161, 1
        %v6192 = vsel %vm6173, %v6189, %v6191
        %v6193 = vrot.slane %v6162, 1
        %v6194 = vsel %vm6173, %v6191, %v6193
        %v6195 = vrot.slane %v6163, 1
        %v6196 = vsel %vm6173, %v6193, %v6195
        %v6197 = vrot.slane %v6164, 1
        %v6198 = vsel %vm6173, %v6195, %v6197
        %v6199 = vrot.slane %v6165, 1
        %v6200 = vsel %vm6173, %v6197, %v6199
        %v6201 = vrot.slane %v6166, 1
        %v6202 = vsel %vm6173, %v6199, %v6201
        %v6203 = vrot.slane %v6167, 1
        %v6204 = vsel %vm6173, %v6201, %v6203
        %v6205 = vrot.slane %v6168, 1
        %v6206 = vsel %vm6173, %v6203, %v6205
        %v6207 = vrot.slane %v6169, 1
        %v6208 = vsel %vm6173, %v6205, %v6207
        %v6209 = vrot.slane %v6170, 1
        %v6210 = vsel %vm6173, %v6207, %v6209
        %v6211 = vrot.slane %v6171, 1
        %v6212 = vsel %vm6173, %v6209, %v6211
        %v6213 = vrot.slane %v6172, 1
        %v6214 = vsel %vm6173, %v6211, %v6213
        %v6252 = vunpack.c.l.b16 %v6052
        %v6253 = vunpack.c.l.b16 %v6053
        %v6254 = vunpack.c.l.b16 %v6054
        %v6255 = vunpack.c.l.b16 %v6055
        %v6256 = vunpack.c.l.b16 %v6056
        %v6257 = vunpack.c.l.b16 %v6057
        %v6258 = vunpack.c.l.b16 %v6058
        %v6259 = vunpack.c.l.b16 %v6059
        %v6260 = vunpack.c.l.b16 %v6060
        %v6261 = vunpack.c.l.b16 %v6061
        %v6262 = vunpack.c.l.b16 %v6062
        %v6263 = vunpack.c.l.b16 %v6063
        %v6264 = vunpack.c.l.b16 %v6064
        %v6265 = vunpack.c.l.b16 %v6065
        %v6266 = vunpack.c.l.b16 %v6066
        %v6267 = vunpack.c.l.b16 %v6067
        %v6268 = vpack.c.b16 %v6253, %v6252
        %v6269 = vpack.c.b16 %v6255, %v6254
        %v6270 = vpack.c.b16 %v6257, %v6256
        %v6271 = vpack.c.b16 %v6259, %v6258
        %v6272 = vpack.c.b16 %v6261, %v6260
        %v6273 = vpack.c.b16 %v6263, %v6262
        %v6274 = vpack.c.b16 %v6265, %v6264
        %v6275 = vpack.c.b16 %v6267, %v6266
        %6284 = vmatprep.subr.bf16.mxu0 0
        %6285 = vmatpush1.bf16.msra.mxu0 %v6268
        %6286 = vmatprep.subr.bf16.mxu0 0
        %6287 = vmatpush1.bf16.msra.mxu0 %v6269
        %6288 = vmatprep.subr.bf16.mxu0 0
        %6289 = vmatpush1.bf16.msra.mxu0 %v6270
        %6290 = vmatprep.subr.bf16.mxu0 0
        %6291 = vmatpush1.bf16.msra.mxu0 %v6271
        %6292 = vmatprep.subr.bf16.mxu0 0
        %6293 = vmatpush1.bf16.msra.mxu0 %v6272
        %6294 = vmatprep.subr.bf16.mxu0 0
        %6295 = vmatpush1.bf16.msra.mxu0 %v6273
        %6296 = vmatprep.subr.bf16.mxu0 0
        %6297 = vmatpush1.bf16.msra.mxu0 %v6274
        %6298 = vmatprep.subr.bf16.mxu0 0
        %6299 = vmatpush1.bf16.msra.mxu0 %v6275
        %6300 = vmatprep.subr.bf16.mxu0 0
        %6301 = vmatpush1.bf16.msra.mxu0 0
        %6302 = vmatprep.subr.bf16.mxu0 0
        %6303 = vmatpush1.bf16.msra.mxu0 0
        %6304 = vmatprep.subr.bf16.mxu0 0
        %6305 = vmatpush1.bf16.msra.mxu0 0
        %6306 = vmatprep.subr.bf16.mxu0 0
        %6307 = vmatpush1.bf16.msra.mxu0 0
        %6308 = vmatprep.subr.bf16.mxu0 0
        %6309 = vmatpush1.bf16.msra.mxu0 0
        %6310 = vmatprep.subr.bf16.mxu0 0
        %6311 = vmatpush1.bf16.msra.mxu0 0
        %6312 = vmatprep.subr.bf16.mxu0 0
        %6313 = vmatpush1.bf16.msra.mxu0 0
        %6314 = vmatprep.subr.bf16.mxu0 0
        %6315 = vmatpush1.bf16.msra.mxu0 0
        %6316 = vmatprep.mubr.bf16.mxu0 0
        %6317 = vmatmul.mubr.bf16.gmra.mrb[0].mxu0 %v6176
        %v6318 = vpop.f32.mrb[0].mxu0
        %v6319 = vadd.f32 0.0, %v6318
        %v6320 = vpop.f32.mrb[0].mxu0
        %v6321 = vpop.f32.mrb[0].mxu0
        %v6322 = vadd.f32 0.0, %v6321
        %v6323 = vpop.f32.mrb[0].mxu0
        %6324 = vmatprep.mubr.bf16.mxu0 0
        %6325 = vmatmul.mubr.bf16.gmra.mrb[0].mxu0 %v6178
        %v6326 = vpop.f32.mrb[0].mxu0
        %v6327 = vadd.f32 0.0, %v6326
        %v6328 = vpop.f32.mrb[0].mxu0
        %v6329 = vpop.f32.mrb[0].mxu0
        %v6330 = vadd.f32 0.0, %v6329
        %v6331 = vpop.f32.mrb[0].mxu0
        %6332 = vmatprep.mubr.bf16.mxu0 0
        %6333 = vmatmul.mubr.bf16.gmra.mrb[0].mxu0 %v6180
        %v6334 = vpop.f32.mrb[0].mxu0
        %v6335 = vadd.f32 0.0, %v6334
        %v6336 = vpop.f32.mrb[0].mxu0
        %v6337 = vpop.f32.mrb[0].mxu0
        %v6338 = vadd.f32 0.0, %v6337
        %v6339 = vpop.f32.mrb[0].mxu0
        %6340 = vmatprep.mubr.bf16.mxu0 0
        %6341 = vmatmul.mubr.bf16.gmra.mrb[0].mxu0 %v6182
        %v6342 = vpop.f32.mrb[0].mxu0
        %v6343 = vadd.f32 0.0, %v6342
        %v6344 = vpop.f32.mrb[0].mxu0
        %v6345 = vpop.f32.mrb[0].mxu0
        %v6346 = vadd.f32 0.0, %v6345
        %v6347 = vpop.f32.mrb[0].mxu0
        %6348 = vmatprep.mubr.bf16.mxu0 0
        %6349 = vmatmul.mubr.bf16.gmra.mrb[0].mxu0 %v6184
        %v6350 = vpop.f32.mrb[0].mxu0
        %v6351 = vadd.f32 0.0, %v6350
        %v6352 = vpop.f32.mrb[0].mxu0
        %v6353 = vpop.f32.mrb[0].mxu0
        %v6354 = vadd.f32 0.0, %v6353
        %v6355 = vpop.f32.mrb[0].mxu0
        %6356 = vmatprep.mubr.bf16.mxu0 0
        %6357 = vmatmul.mubr.bf16.gmra.mrb[0].mxu0 %v6186
        %v6358 = vpop.f32.mrb[0].mxu0
        %v6359 = vadd.f32 0.0, %v6358
        %v6360 = vpop.f32.mrb[0].mxu0
        %v6361 = vpop.f32.mrb[0].mxu0
        %v6362 = vadd.f32 0.0, %v6361
        %v6363 = vpop.f32.mrb[0].mxu0
        %6364 = vmatprep.mubr.bf16.mxu0 0
        %6365 = vmatmul.mubr.bf16.gmra.mrb[0].mxu0 %v6188
        %v6366 = vpop.f32.mrb[0].mxu0
        %v6367 = vadd.f32 0.0, %v6366
        %v6368 = vpop.f32.mrb[0].mxu0
        %v6369 = vpop.f32.mrb[0].mxu0
        %v6370 = vadd.f32 0.0, %v6369
        %v6371 = vpop.f32.mrb[0].mxu0
        %6372 = vmatprep.mubr.bf16.mxu0 0
        %6373 = vmatmul.mubr.bf16.gmra.mrb[0].mxu0 %v6190
        %v6374 = vpop.f32.mrb[0].mxu0
        %v6375 = vadd.f32 0.0, %v6374
        %v6376 = vpop.f32.mrb[0].mxu0
        %v6377 = vpop.f32.mrb[0].mxu0
        %v6378 = vadd.f32 0.0, %v6377
        %v6379 = vpop.f32.mrb[0].mxu0
        %6380 = vmatprep.mubr.bf16.mxu0 0
        %6381 = vmatmul.mubr.bf16.gmra.mrb[0].mxu0 %v6192
        %v6382 = vpop.f32.mrb[0].mxu0
        %v6383 = vadd.f32 0.0, %v6382
        %v6384 = vpop.f32.mrb[0].mxu0
        %v6385 = vpop.f32.mrb[0].mxu0
        %v6386 = vadd.f32 0.0, %v6385
        %v6387 = vpop.f32.mrb[0].mxu0
        %6388 = vmatprep.mubr.bf16.mxu0 0
        %6389 = vmatmul.mubr.bf16.gmra.mrb[0].mxu0 %v6194
        %v6390 = vpop.f32.mrb[0].mxu0
        %v6391 = vadd.f32 0.0, %v6390
        %v6392 = vpop.f32.mrb[0].mxu0
        %v6393 = vpop.f32.mrb[0].mxu0
        %v6394 = vadd.f32 0.0, %v6393
        %v6395 = vpop.f32.mrb[0].mxu0
        %6396 = vmatprep.mubr.bf16.mxu0 0
        %6397 = vmatmul.mubr.bf16.gmra.mrb[0].mxu0 %v6196
        %v6398 = vpop.f32.mrb[0].mxu0
        %v6399 = vadd.f32 0.0, %v6398
        %v6400 = vpop.f32.mrb[0].mxu0
        %v6401 = vpop.f32.mrb[0].mxu0
        %v6402 = vadd.f32 0.0, %v6401
        %v6403 = vpop.f32.mrb[0].mxu0
        %6404 = vmatprep.mubr.bf16.mxu0 0
        %6405 = vmatmul.mubr.bf16.gmra.mrb[0].mxu0 %v6198
        %v6406 = vpop.f32.mrb[0].mxu0
        %v6407 = vadd.f32 0.0, %v6406
        %v6408 = vpop.f32.mrb[0].mxu0
        %v6409 = vpop.f32.mrb[0].mxu0
        %v6410 = vadd.f32 0.0, %v6409
        %v6411 = vpop.f32.mrb[0].mxu0
        %6412 = vmatprep.mubr.bf16.mxu0 0
        %6413 = vmatmul.mubr.bf16.gmra.mrb[0].mxu0 %v6200
        %v6414 = vpop.f32.mrb[0].mxu0
        %v6415 = vadd.f32 0.0, %v6414
        %v6416 = vpop.f32.mrb[0].mxu0
        %v6417 = vpop.f32.mrb[0].mxu0
        %v6418 = vadd.f32 0.0, %v6417
        %v6419 = vpop.f32.mrb[0].mxu0
        %6420 = vmatprep.mubr.bf16.mxu0 0
        %6421 = vmatmul.mubr.bf16.gmra.mrb[0].mxu0 %v6202
        %v6422 = vpop.f32.mrb[0].mxu0
        %v6423 = vadd.f32 0.0, %v6422
        %v6424 = vpop.f32.mrb[0].mxu0
        %v6425 = vpop.f32.mrb[0].mxu0
        %v6426 = vadd.f32 0.0, %v6425
        %v6427 = vpop.f32.mrb[0].mxu0
        %6428 = vmatprep.mubr.bf16.mxu0 0
        %6429 = vmatmul.mubr.bf16.gmra.mrb[0].mxu0 %v6204
        %v6430 = vpop.f32.mrb[0].mxu0
        %v6431 = vadd.f32 0.0, %v6430
        %v6432 = vpop.f32.mrb[0].mxu0
        %v6433 = vpop.f32.mrb[0].mxu0
        %v6434 = vadd.f32 0.0, %v6433
        %v6435 = vpop.f32.mrb[0].mxu0
        %6436 = vmatprep.mubr.bf16.mxu0 0
        %6437 = vmatmul.mubr.bf16.gmra.mrb[0].mxu0 %v6206
        %v6438 = vpop.f32.mrb[0].mxu0
        %v6439 = vadd.f32 0.0, %v6438
        %v6440 = vpop.f32.mrb[0].mxu0
        %v6441 = vpop.f32.mrb[0].mxu0
        %v6442 = vadd.f32 0.0, %v6441
        %v6443 = vpop.f32.mrb[0].mxu0
        %6444 = vmatprep.mubr.bf16.mxu0 0
        %6445 = vmatmul.mubr.bf16.gmra.mrb[0].mxu0 %v6208
        %v6446 = vpop.f32.mrb[0].mxu0
        %v6447 = vadd.f32 0.0, %v6446
        %v6448 = vpop.f32.mrb[0].mxu0
        %v6449 = vpop.f32.mrb[0].mxu0
        %v6450 = vadd.f32 0.0, %v6449
        %v6451 = vpop.f32.mrb[0].mxu0
        %6452 = vmatprep.mubr.bf16.mxu0 0
        %6453 = vmatmul.mubr.bf16.gmra.mrb[0].mxu0 %v6210
        %v6454 = vpop.f32.mrb[0].mxu0
        %v6455 = vadd.f32 0.0, %v6454
        %v6456 = vpop.f32.mrb[0].mxu0
        %v6457 = vpop.f32.mrb[0].mxu0
        %v6458 = vadd.f32 0.0, %v6457
        %v6459 = vpop.f32.mrb[0].mxu0
        %6460 = vmatprep.mubr.bf16.mxu0 0
        %6461 = vmatmul.mubr.bf16.gmra.mrb[0].mxu0 %v6212
        %v6462 = vpop.f32.mrb[0].mxu0
        %v6463 = vadd.f32 0.0, %v6462
        %v6464 = vpop.f32.mrb[0].mxu0
        %v6465 = vpop.f32.mrb[0].mxu0
        %v6466 = vadd.f32 0.0, %v6465
        %v6467 = vpop.f32.mrb[0].mxu0
        %6468 = vmatprep.mubr.bf16.mxu0 0
        %6469 = vmatmul.mubr.bf16.gmra.mrb[0].mxu0 %v6214
        %v6470 = vpop.f32.mrb[0].mxu0
        %v6471 = vadd.f32 0.0, %v6470
        %v6472 = vpop.f32.mrb[0].mxu0
        %v6473 = vpop.f32.mrb[0].mxu0
        %v6474 = vadd.f32 0.0, %v6473
        %v6475 = vpop.f32.mrb[0].mxu0
        %6476 = vmatprep.mubr.bf16.mxu0 0
        %6477 = vmatmul.mubr.bf16.gmra.mrb[0].mxu0 %v6213
        %v6478 = vpop.f32.mrb[0].mxu0
        %v6479 = vadd.f32 0.0, %v6478
        %v6480 = vpop.f32.mrb[0].mxu0
        %v6481 = vpop.f32.mrb[0].mxu0
        %v6482 = vpop.f32.mrb[0].mxu0
        %6483 = vdwg.mxu0
        %v6484 = vld [vmem:[#allocation3] sm:$0xff]
        %v6485 = vld [vmem:[#allocation3 + $0x8] sm:$0xff]
        %v6486 = vld [vmem:[#allocation3 + $0x10] sm:$0xff]
        %v6487 = vld [vmem:[#allocation3 + $0x18] sm:$0xff]
        %v6488 = vld [vmem:[#allocation3 + $0x20] sm:$0xff]
        %v6489 = vld [vmem:[#allocation3 + $0x28] sm:$0xff]
        %v6490 = vld [vmem:[#allocation3 + $0x30] sm:$0xff]
        %v6491 = vld [vmem:[#allocation3 + $0x38] sm:$0xff]
        %v6492 = vld [vmem:[#allocation3 + $0x40] sm:$0xff]
        %v6493 = vld [vmem:[#allocation3 + $0x48] sm:$0xff]
        %v6494 = vld [vmem:[#allocation3 + $0x50] sm:$0xff]
        %v6495 = vld [vmem:[#allocation3 + $0x58] sm:$0xff]
        %v6496 = vld [vmem:[#allocation3 + $0x60] sm:$0xff]
        %v6497 = vld [vmem:[#allocation3 + $0x68] sm:$0xff]
        %v6498 = vld [vmem:[#allocation3 + $0x70] sm:$0xff]
        %v6499 = vld [vmem:[#allocation3 + $0x78] sm:$0xff]
        %v6500 = vld [vmem:[#allocation3 + $0x80] sm:$0xff]
        %v6501 = vld [vmem:[#allocation3 + $0x88] sm:$0xff]
        %v6502 = vld [vmem:[#allocation3 + $0x90] sm:$0xff]
        %v6503 = vld [vmem:[#allocation3 + $0x98] sm:$0xff]
        %v6504 = vld [vmem:[#allocation3 + $0xa0] sm:$0xff]
        %v6505 = vld [vmem:[#allocation3 + $0xa8] sm:$0xff]
        %v6506 = vld [vmem:[#allocation3 + $0xb0] sm:$0xff]
        %v6507 = vld [vmem:[#allocation3 + $0xb8] sm:$0xff]
        %v6508 = vld [vmem:[#allocation3 + $0xc0] sm:$0xff]
        %v6509 = vld [vmem:[#allocation3 + $0xc8] sm:$0xff]
        %v6510 = vld [vmem:[#allocation3 + $0xd0] sm:$0xff]
        %v6511 = vld [vmem:[#allocation3 + $0xd8] sm:$0xff]
        %v6512 = vld [vmem:[#allocation3 + $0xe0] sm:$0xff]
        %v6513 = vld [vmem:[#allocation3 + $0xe8] sm:$0xff]
        %v6514 = vld [vmem:[#allocation3 + $0xf0] sm:$0xff]
        %v6515 = vld [vmem:[#allocation3 + $0xf8] sm:$0xff]
        %v6516 = vld [vmem:[#allocation3 + $0x100] sm:$0xff]
        %v6517 = vld [vmem:[#allocation3 + $0x108] sm:$0xff]
        %v6518 = vld [vmem:[#allocation3 + $0x110] sm:$0xff]
        %v6519 = vld [vmem:[#allocation3 + $0x118] sm:$0xff]
        %v6520 = vld [vmem:[#allocation3 + $0x120] sm:$0xff]
        %v6521 = vld [vmem:[#allocation3 + $0x128] sm:$0xff]
        %v6522 = vld [vmem:[#allocation3 + $0x130] sm:$0xff]
        %v6523 = vld [vmem:[#allocation3 + $0x138] sm:$0xff]
        %v6524 = vld [vmem:[#allocation3 + $0x140] sm:$0xff]
        %v6525 = vadd.f32 %v6484, %v6319
        %v6526 = vadd.f32 %v6485, %v6322
        %v6527 = vadd.f32 %v6486, %v6327
        %v6528 = vadd.f32 %v6487, %v6330
        %v6529 = vadd.f32 %v6488, %v6335
        %v6530 = vadd.f32 %v6489, %v6338
        %v6531 = vadd.f32 %v6490, %v6343
        %v6532 = vadd.f32 %v6491, %v6346
        %v6533 = vadd.f32 %v6492, %v6351
        %v6534 = vadd.f32 %v6493, %v6354
        %v6535 = vadd.f32 %v6494, %v6359
        %v6536 = vadd.f32 %v6495, %v6362
        %v6537 = vadd.f32 %v6496, %v6367
        %v6538 = vadd.f32 %v6497, %v6370
        %v6539 = vadd.f32 %v6498, %v6375
        %v6540 = vadd.f32 %v6499, %v6378
        %v6541 = vadd.f32 %v6500, %v6383
        %v6542 = vadd.f32 %v6501, %v6386
        %v6543 = vadd.f32 %v6502, %v6391
        %v6544 = vadd.f32 %v6503, %v6394
        %v6545 = vadd.f32 %v6504, %v6399
        %v6546 = vadd.f32 %v6505, %v6402
        %v6547 = vadd.f32 %v6506, %v6407
        %v6548 = vadd.f32 %v6507, %v6410
        %v6549 = vadd.f32 %v6508, %v6415
        %v6550 = vadd.f32 %v6509, %v6418
        %v6551 = vadd.f32 %v6510, %v6423
        %v6552 = vadd.f32 %v6511, %v6426
        %v6553 = vadd.f32 %v6512, %v6431
        %v6554 = vadd.f32 %v6513, %v6434
        %v6555 = vadd.f32 %v6514, %v6439
        %v6556 = vadd.f32 %v6515, %v6442
        %v6557 = vadd.f32 %v6516, %v6447
        %v6558 = vadd.f32 %v6517, %v6450
        %v6559 = vadd.f32 %v6518, %v6455
        %v6560 = vadd.f32 %v6519, %v6458
        %v6561 = vadd.f32 %v6520, %v6463
        %v6562 = vadd.f32 %v6521, %v6466
        %v6563 = vadd.f32 %v6522, %v6471
        %v6564 = vadd.f32 %v6523, %v6474
        %v6565 = vadd.f32 %v6524, %v6479
        %6566 = vst [vmem:[#allocation3] sm:$0xff] %v6525
        %6567 = vst [vmem:[#allocation3 + $0x8] sm:$0xff] %v6526
        %6568 = vst [vmem:[#allocation3 + $0x10] sm:$0xff] %v6527
        %6569 = vst [vmem:[#allocation3 + $0x18] sm:$0xff] %v6528
        %6570 = vst [vmem:[#allocation3 + $0x20] sm:$0xff] %v6529
        %6571 = vst [vmem:[#allocation3 + $0x28] sm:$0xff] %v6530
        %6572 = vst [vmem:[#allocation3 + $0x30] sm:$0xff] %v6531
        %6573 = vst [vmem:[#allocation3 + $0x38] sm:$0xff] %v6532
        %6574 = vst [vmem:[#allocation3 + $0x40] sm:$0xff] %v6533
        %6575 = vst [vmem:[#allocation3 + $0x48] sm:$0xff] %v6534
        %6576 = vst [vmem:[#allocation3 + $0x50] sm:$0xff] %v6535
        %6577 = vst [vmem:[#allocation3 + $0x58] sm:$0xff] %v6536
        %6578 = vst [vmem:[#allocation3 + $0x60] sm:$0xff] %v6537
        %6579 = vst [vmem:[#allocation3 + $0x68] sm:$0xff] %v6538
        %6580 = vst [vmem:[#allocation3 + $0x70] sm:$0xff] %v6539
        %6581 = vst [vmem:[#allocation3 + $0x78] sm:$0xff] %v6540
        %6582 = vst [vmem:[#allocation3 + $0x80] sm:$0xff] %v6541
        %6583 = vst [vmem:[#allocation3 + $0x88] sm:$0xff] %v6542
        %6584 = vst [vmem:[#allocation3 + $0x90] sm:$0xff] %v6543
        %6585 = vst [vmem:[#allocation3 + $0x98] sm:$0xff] %v6544
        %6586 = vst [vmem:[#allocation3 + $0xa0] sm:$0xff] %v6545
        %6587 = vst [vmem:[#allocation3 + $0xa8] sm:$0xff] %v6546
        %6588 = vst [vmem:[#allocation3 + $0xb0] sm:$0xff] %v6547
        %6589 = vst [vmem:[#allocation3 + $0xb8] sm:$0xff] %v6548
        %6590 = vst [vmem:[#allocation3 + $0xc0] sm:$0xff] %v6549
        %6591 = vst [vmem:[#allocation3 + $0xc8] sm:$0xff] %v6550
        %6592 = vst [vmem:[#allocation3 + $0xd0] sm:$0xff] %v6551
        %6593 = vst [vmem:[#allocation3 + $0xd8] sm:$0xff] %v6552
        %6594 = vst [vmem:[#allocation3 + $0xe0] sm:$0xff] %v6553
        %6595 = vst [vmem:[#allocation3 + $0xe8] sm:$0xff] %v6554
        %6596 = vst [vmem:[#allocation3 + $0xf0] sm:$0xff] %v6555
        %6597 = vst [vmem:[#allocation3 + $0xf8] sm:$0xff] %v6556
        %6598 = vst [vmem:[#allocation3 + $0x100] sm:$0xff] %v6557
        %6599 = vst [vmem:[#allocation3 + $0x108] sm:$0xff] %v6558
        %6600 = vst [vmem:[#allocation3 + $0x110] sm:$0xff] %v6559
        %6601 = vst [vmem:[#allocation3 + $0x118] sm:$0xff] %v6560
        %6602 = vst [vmem:[#allocation3 + $0x120] sm:$0xff] %v6561
        %6603 = vst [vmem:[#allocation3 + $0x128] sm:$0xff] %v6562
        %6604 = vst [vmem:[#allocation3 + $0x130] sm:$0xff] %v6563
        %6605 = vst [vmem:[#allocation3 + $0x138] sm:$0xff] %v6564
        %6606 = vst [vmem:[#allocation3 + $0x140] sm:$0xff] %v6565
        %v6607 = vld [vmem:[#allocation2 + $0x14] sm:$0xe]
        %v6608 = vld [vmem:[#allocation2 + $0x18] sm:$0xf]
        %v6609 = vld [vmem:[#allocation2 + $0x1c] sm:$0xf]
        %v6610 = vld [vmem:[#allocation2 + $0x20] sm:$0xf]
        %v6611 = vld [vmem:[#allocation2 + $0x24] sm:$0xf]
        %v6612 = vld [vmem:[#allocation2 + $0x28] sm:$0xf]
        %v6613 = vld [vmem:[#allocation2 + $0x2c] sm:$0xf]
        %v6614 = vld [vmem:[#allocation2 + $0x30] sm:$0xf]
        %v6615 = vld [vmem:[#allocation2 + $0x34] sm:$0xf]
        %v6616 = vld [vmem:[#allocation2 + $0x38] sm:$0xf]
        %v6617 = vld [vmem:[#allocation2 + $0x3c] sm:$0xf]
        %v6618 = vld [vmem:[#allocation2 + $0x40] sm:$0xf]
        %v6619 = vld [vmem:[#allocation2 + $0x44] sm:$0xf]
        %v6620 = vld [vmem:[#allocation2 + $0x48] sm:$0xf]
        %v6621 = vld [vmem:[#allocation2 + $0x4c] sm:$0xf]
        %v6622 = vld [vmem:[#allocation2 + $0x50] sm:$0xf]
        %v6623 = vld [vmem:[#allocation2 + $0x54] sm:$0xf]
        %v6624 = vld [vmem:[#allocation2 + $0x58] sm:$0xf]
        %v6625 = vld [vmem:[#allocation2 + $0x5c] sm:$0xf]
        %v6626 = vld [vmem:[#allocation2 + $0x60] sm:$0xf]
        %v6627 = vld [vmem:[#allocation2 + $0x64] sm:$0xf]
        %v6628 = vld [vmem:[#allocation2 + $0x68] sm:$0xf]
        %v6629 = vld [vmem:[#allocation2 + $0x6c] sm:$0xf]
        %v6630 = vld [vmem:[#allocation2 + $0x70] sm:$0xf]
        %v6631 = vld [vmem:[#allocation2 + $0x74] sm:$0xf]
        %v6632 = vld [vmem:[#allocation2 + $0x78] sm:$0xf]
        %v6633 = vld [vmem:[#allocation2 + $0x7c] sm:$0xf]
        %v6634 = vld [vmem:[#allocation2 + $0x80] sm:$0xf]
        %v6635 = vld [vmem:[#allocation2 + $0x84] sm:$0xf]
        %v6636 = vld [vmem:[#allocation2 + $0x88] sm:$0xf]
        %v6637 = vld [vmem:[#allocation2 + $0x8c] sm:$0xf]
        %v6638 = vld [vmem:[#allocation2 + $0x90] sm:$0xf]
        %v6639 = vld [vmem:[#allocation2 + $0x94] sm:$0xf]
        %v6640 = vld [vmem:[#allocation2 + $0x98] sm:$0xf]
        %v6641 = vld [vmem:[#allocation2 + $0x9c] sm:$0xf]
        %v6642 = vld [vmem:[#allocation2 + $0xa0] sm:$0xf]
        %v6643 = vld [vmem:[#allocation2 + $0xa4] sm:$0xf]
        %v6644 = vld [vmem:[#allocation2 + $0xa8] sm:$0xf]
        %v6645 = vld [vmem:[#allocation2 + $0xac] sm:$0xf]
        %v6646 = vld [vmem:[#allocation2 + $0xb0] sm:$0xf]
        %v6647 = vld [vmem:[#allocation2 + $0xb4] sm:$0xf]
        %v6648 = vld [vmem:[#allocation2 + $0xb8] sm:$0x3]
        %s6649 = scalar_lea.vmem [#allocation7], 512
        %v6650 = vld [vmem:[%s6649] sm:$0xf]
        %v6651 = vld [vmem:[%s6649 + $0x4] sm:$0xf]
        %v6652 = vld [vmem:[%s6649 + $0x8] sm:$0xf]
        %v6653 = vld [vmem:[%s6649 + $0xc] sm:$0xf]
        %v6654 = vld [vmem:[%s6649 + $0x10] sm:$0xf]
        %v6655 = vld [vmem:[%s6649 + $0x14] sm:$0xf]
        %v6656 = vld [vmem:[%s6649 + $0x18] sm:$0xf]
        %v6657 = vld [vmem:[%s6649 + $0x1c] sm:$0xf]
        %v6658 = vld [vmem:[%s6649 + $0x20] sm:$0xf]
        %v6659 = vld [vmem:[%s6649 + $0x24] sm:$0xf]
        %v6660 = vld [vmem:[%s6649 + $0x28] sm:$0xf]
        %v6661 = vld [vmem:[%s6649 + $0x2c] sm:$0xf]
        %v6662 = vld [vmem:[%s6649 + $0x30] sm:$0xf]
        %v6663 = vld [vmem:[%s6649 + $0x34] sm:$0xf]
        %v6664 = vld [vmem:[%s6649 + $0x38] sm:$0xf]
        %v6665 = vld [vmem:[%s6649 + $0x3c] sm:$0xf]
        %v6708 = vunpack.c.l.b16 %v6607
        %v6709 = vunpack.c.l.b16 %v6608
        %v6710 = vunpack.c.l.b16 %v6609
        %v6711 = vunpack.c.l.b16 %v6610
        %v6712 = vunpack.c.l.b16 %v6611
        %v6713 = vunpack.c.l.b16 %v6612
        %v6714 = vunpack.c.l.b16 %v6613
        %v6715 = vunpack.c.l.b16 %v6614
        %v6716 = vunpack.c.l.b16 %v6615
        %v6717 = vunpack.c.l.b16 %v6616
        %v6718 = vunpack.c.l.b16 %v6617
        %v6719 = vunpack.c.l.b16 %v6618
        %v6720 = vunpack.c.l.b16 %v6619
        %v6721 = vunpack.c.l.b16 %v6620
        %v6722 = vunpack.c.l.b16 %v6621
        %v6723 = vunpack.c.l.b16 %v6622
        %v6724 = vunpack.c.l.b16 %v6623
        %v6725 = vunpack.c.l.b16 %v6624
        %v6726 = vunpack.c.l.b16 %v6625
        %v6727 = vunpack.c.l.b16 %v6626
        %v6728 = vunpack.c.l.b16 %v6627
        %v6729 = vunpack.c.l.b16 %v6628
        %v6730 = vunpack.c.l.b16 %v6629
        %v6731 = vunpack.c.l.b16 %v6630
        %v6732 = vunpack.c.l.b16 %v6631
        %v6733 = vunpack.c.l.b16 %v6632
        %v6734 = vunpack.c.l.b16 %v6633
        %v6735 = vunpack.c.l.b16 %v6634
        %v6736 = vunpack.c.l.b16 %v6635
        %v6737 = vunpack.c.l.b16 %v6636
        %v6738 = vunpack.c.l.b16 %v6637
        %v6739 = vunpack.c.l.b16 %v6638
        %v6740 = vunpack.c.l.b16 %v6639
        %v6741 = vunpack.c.l.b16 %v6640
        %v6742 = vunpack.c.l.b16 %v6641
        %v6743 = vunpack.c.l.b16 %v6642
        %v6744 = vunpack.c.l.b16 %v6643
        %v6745 = vunpack.c.l.b16 %v6644
        %v6746 = vunpack.c.l.b16 %v6645
        %v6747 = vunpack.c.l.b16 %v6646
        %v6748 = vunpack.c.l.b16 %v6647
        %v6749 = vunpack.c.l.b16 %v6648
        %v6750 = vpack.c.b16 %v6709, %v6708
        %v6751 = vpack.c.b16 %v6711, %v6710
        %v6752 = vpack.c.b16 %v6713, %v6712
        %v6753 = vpack.c.b16 %v6715, %v6714
        %v6754 = vpack.c.b16 %v6717, %v6716
        %v6755 = vpack.c.b16 %v6719, %v6718
        %v6756 = vpack.c.b16 %v6721, %v6720
        %v6757 = vpack.c.b16 %v6723, %v6722
        %v6758 = vpack.c.b16 %v6725, %v6724
        %v6759 = vpack.c.b16 %v6727, %v6726
        %v6760 = vpack.c.b16 %v6729, %v6728
        %v6761 = vpack.c.b16 %v6731, %v6730
        %v6762 = vpack.c.b16 %v6733, %v6732
        %v6763 = vpack.c.b16 %v6735, %v6734
        %v6764 = vpack.c.b16 %v6737, %v6736
        %v6765 = vpack.c.b16 %v6739, %v6738
        %v6766 = vpack.c.b16 %v6741, %v6740
        %v6767 = vpack.c.b16 %v6743, %v6742
        %v6768 = vpack.c.b16 %v6745, %v6744
        %v6769 = vpack.c.b16 %v6747, %v6746
        %v6770 = vpack.c.b16 %v6749, %v6748
        %vm6771 = vsmask.f32 6400
        %v6773 = vshrl.u32 %v6750, 16
        %v6775 = vrot.slane %v6773, 1
        %v6776 = vshll.u32 %v6750, 16
        %v6778 = vrot.slane %v6776, 2
        %v6779 = vor.u32 %v6775, %v6778
        %v6781 = vshrl.u32 %v6751, 16
        %v6783 = vrot.slane %v6781, 1
        %v6784 = vshll.u32 %v6751, 16
        %v6786 = vrot.slane %v6784, 2
        %v6787 = vor.u32 %v6783, %v6786
        %v6788 = vsel %vm6771, %v6779, %v6787
        %v6790 = vshrl.u32 %v6752, 16
        %v6792 = vrot.slane %v6790, 1
        %v6793 = vshll.u32 %v6752, 16
        %v6795 = vrot.slane %v6793, 2
        %v6796 = vor.u32 %v6792, %v6795
        %v6797 = vsel %vm6771, %v6787, %v6796
        %v6799 = vshrl.u32 %v6753, 16
        %v6801 = vrot.slane %v6799, 1
        %v6802 = vshll.u32 %v6753, 16
        %v6804 = vrot.slane %v6802, 2
        %v6805 = vor.u32 %v6801, %v6804
        %v6806 = vsel %vm6771, %v6796, %v6805
        %v6808 = vshrl.u32 %v6754, 16
        %v6810 = vrot.slane %v6808, 1
        %v6811 = vshll.u32 %v6754, 16
        %v6813 = vrot.slane %v6811, 2
        %v6814 = vor.u32 %v6810, %v6813
        %v6815 = vsel %vm6771, %v6805, %v6814
        %v6817 = vshrl.u32 %v6755, 16
        %v6819 = vrot.slane %v6817, 1
        %v6820 = vshll.u32 %v6755, 16
        %v6822 = vrot.slane %v6820, 2
        %v6823 = vor.u32 %v6819, %v6822
        %v6824 = vsel %vm6771, %v6814, %v6823
        %v6826 = vshrl.u32 %v6756, 16
        %v6828 = vrot.slane %v6826, 1
        %v6829 = vshll.u32 %v6756, 16
        %v6831 = vrot.slane %v6829, 2
        %v6832 = vor.u32 %v6828, %v6831
        %v6833 = vsel %vm6771, %v6823, %v6832
        %v6835 = vshrl.u32 %v6757, 16
        %v6837 = vrot.slane %v6835, 1
        %v6838 = vshll.u32 %v6757, 16
        %v6840 = vrot.slane %v6838, 2
        %v6841 = vor.u32 %v6837, %v6840
        %v6842 = vsel %vm6771, %v6832, %v6841
        %v6844 = vshrl.u32 %v6758, 16
        %v6846 = vrot.slane %v6844, 1
        %v6847 = vshll.u32 %v6758, 16
        %v6849 = vrot.slane %v6847, 2
        %v6850 = vor.u32 %v6846, %v6849
        %v6851 = vsel %vm6771, %v6841, %v6850
        %v6853 = vshrl.u32 %v6759, 16
        %v6855 = vrot.slane %v6853, 1
        %v6856 = vshll.u32 %v6759, 16
        %v6858 = vrot.slane %v6856, 2
        %v6859 = vor.u32 %v6855, %v6858
        %v6860 = vsel %vm6771, %v6850, %v6859
        %v6862 = vshrl.u32 %v6760, 16
        %v6864 = vrot.slane %v6862, 1
        %v6865 = vshll.u32 %v6760, 16
        %v6867 = vrot.slane %v6865, 2
        %v6868 = vor.u32 %v6864, %v6867
        %v6869 = vsel %vm6771, %v6859, %v6868
        %v6871 = vshrl.u32 %v6761, 16
        %v6873 = vrot.slane %v6871, 1
        %v6874 = vshll.u32 %v6761, 16
        %v6876 = vrot.slane %v6874, 2
        %v6877 = vor.u32 %v6873, %v6876
        %v6878 = vsel %vm6771, %v6868, %v6877
        %v6880 = vshrl.u32 %v6762, 16
        %v6882 = vrot.slane %v6880, 1
        %v6883 = vshll.u32 %v6762, 16
        %v6885 = vrot.slane %v6883, 2
        %v6886 = vor.u32 %v6882, %v6885
        %v6887 = vsel %vm6771, %v6877, %v6886
        %v6889 = vshrl.u32 %v6763, 16
        %v6891 = vrot.slane %v6889, 1
        %v6892 = vshll.u32 %v6763, 16
        %v6894 = vrot.slane %v6892, 2
        %v6895 = vor.u32 %v6891, %v6894
        %v6896 = vsel %vm6771, %v6886, %v6895
        %v6898 = vshrl.u32 %v6764, 16
        %v6900 = vrot.slane %v6898, 1
        %v6901 = vshll.u32 %v6764, 16
        %v6903 = vrot.slane %v6901, 2
        %v6904 = vor.u32 %v6900, %v6903
        %v6905 = vsel %vm6771, %v6895, %v6904
        %v6907 = vshrl.u32 %v6765, 16
        %v6909 = vrot.slane %v6907, 1
        %v6910 = vshll.u32 %v6765, 16
        %v6912 = vrot.slane %v6910, 2
        %v6913 = vor.u32 %v6909, %v6912
        %v6914 = vsel %vm6771, %v6904, %v6913
        %v6916 = vshrl.u32 %v6766, 16
        %v6918 = vrot.slane %v6916, 1
        %v6919 = vshll.u32 %v6766, 16
        %v6921 = vrot.slane %v6919, 2
        %v6922 = vor.u32 %v6918, %v6921
        %v6923 = vsel %vm6771, %v6913, %v6922
        %v6925 = vshrl.u32 %v6767, 16
        %v6927 = vrot.slane %v6925, 1
        %v6928 = vshll.u32 %v6767, 16
        %v6930 = vrot.slane %v6928, 2
        %v6931 = vor.u32 %v6927, %v6930
        %v6932 = vsel %vm6771, %v6922, %v6931
        %v6934 = vshrl.u32 %v6768, 16
        %v6936 = vrot.slane %v6934, 1
        %v6937 = vshll.u32 %v6768, 16
        %v6939 = vrot.slane %v6937, 2
        %v6940 = vor.u32 %v6936, %v6939
        %v6941 = vsel %vm6771, %v6931, %v6940
        %v6943 = vshrl.u32 %v6769, 16
        %v6945 = vrot.slane %v6943, 1
        %v6946 = vshll.u32 %v6769, 16
        %v6948 = vrot.slane %v6946, 2
        %v6949 = vor.u32 %v6945, %v6948
        %v6950 = vsel %vm6771, %v6940, %v6949
        %v6952 = vshrl.u32 %v6770, 16
        %v6954 = vrot.slane %v6952, 1
        %v6955 = vshll.u32 %v6770, 16
        %v6957 = vrot.slane %v6955, 2
        %v6958 = vor.u32 %v6954, %v6957
        %v6959 = vsel %vm6771, %v6949, %v6958
        %v6997 = vunpack.c.l.b16 %v6650
        %v6998 = vunpack.c.l.b16 %v6651
        %v6999 = vunpack.c.l.b16 %v6652
        %v7000 = vunpack.c.l.b16 %v6653
        %v7001 = vunpack.c.l.b16 %v6654
        %v7002 = vunpack.c.l.b16 %v6655
        %v7003 = vunpack.c.l.b16 %v6656
        %v7004 = vunpack.c.l.b16 %v6657
        %v7005 = vunpack.c.l.b16 %v6658
        %v7006 = vunpack.c.l.b16 %v6659
        %v7007 = vunpack.c.l.b16 %v6660
        %v7008 = vunpack.c.l.b16 %v6661
        %v7009 = vunpack.c.l.b16 %v6662
        %v7010 = vunpack.c.l.b16 %v6663
        %v7011 = vunpack.c.l.b16 %v6664
        %v7012 = vunpack.c.l.b16 %v6665
        %v7013 = vpack.c.b16 %v6998, %v6997
        %v7014 = vpack.c.b16 %v7000, %v6999
        %v7015 = vpack.c.b16 %v7002, %v7001
        %v7016 = vpack.c.b16 %v7004, %v7003
        %v7017 = vpack.c.b16 %v7006, %v7005
        %v7018 = vpack.c.b16 %v7008, %v7007
        %v7019 = vpack.c.b16 %v7010, %v7009
        %v7020 = vpack.c.b16 %v7012, %v7011
        %7029 = vmatprep.subr.bf16.mxu0 0
        %7030 = vmatpush1.bf16.msra.mxu0 %v7013
        %7031 = vmatprep.subr.bf16.mxu0 0
        %7032 = vmatpush1.bf16.msra.mxu0 %v7014
        %7033 = vmatprep.subr.bf16.mxu0 0
        %7034 = vmatpush1.bf16.msra.mxu0 %v7015
        %7035 = vmatprep.subr.bf16.mxu0 0
        %7036 = vmatpush1.bf16.msra.mxu0 %v7016
        %7037 = vmatprep.subr.bf16.mxu0 0
        %7038 = vmatpush1.bf16.msra.mxu0 %v7017
        %7039 = vmatprep.subr.bf16.mxu0 0
        %7040 = vmatpush1.bf16.msra.mxu0 %v7018
        %7041 = vmatprep.subr.bf16.mxu0 0
        %7042 = vmatpush1.bf16.msra.mxu0 %v7019
        %7043 = vmatprep.subr.bf16.mxu0 0
        %7044 = vmatpush1.bf16.msra.mxu0 %v7020
        %7045 = vmatprep.subr.bf16.mxu0 0
        %7046 = vmatpush1.bf16.msra.mxu0 0
        %7047 = vmatprep.subr.bf16.mxu0 0
        %7048 = vmatpush1.bf16.msra.mxu0 0
        %7049 = vmatprep.subr.bf16.mxu0 0
        %7050 = vmatpush1.bf16.msra.mxu0 0
        %7051 = vmatprep.subr.bf16.mxu0 0
        %7052 = vmatpush1.bf16.msra.mxu0 0
        %7053 = vmatprep.subr.bf16.mxu0 0
        %7054 = vmatpush1.bf16.msra.mxu0 0
        %7055 = vmatprep.subr.bf16.mxu0 0
        %7056 = vmatpush1.bf16.msra.mxu0 0
        %7057 = vmatprep.subr.bf16.mxu0 0
        %7058 = vmatpush1.bf16.msra.mxu0 0
        %7059 = vmatprep.subr.bf16.mxu0 0
        %7060 = vmatpush1.bf16.msra.mxu0 0
        %7061 = vmatprep.mubr.bf16.mxu0 0
        %7062 = vmatmul.mubr.bf16.gmra.mrb[0].mxu0 %v6788
        %v7063 = vpop.f32.mrb[0].mxu0
        %v7064 = vadd.f32 0.0, %v7063
        %v7065 = vpop.f32.mrb[0].mxu0
        %v7066 = vpop.f32.mrb[0].mxu0
        %v7067 = vadd.f32 0.0, %v7066
        %v7068 = vpop.f32.mrb[0].mxu0
        %7069 = vmatprep.mubr.bf16.mxu0 0
        %7070 = vmatmul.mubr.bf16.gmra.mrb[0].mxu0 %v6797
        %v7071 = vpop.f32.mrb[0].mxu0
        %v7072 = vadd.f32 0.0, %v7071
        %v7073 = vpop.f32.mrb[0].mxu0
        %v7074 = vpop.f32.mrb[0].mxu0
        %v7075 = vadd.f32 0.0, %v7074
        %v7076 = vpop.f32.mrb[0].mxu0
        %7077 = vmatprep.mubr.bf16.mxu0 0
        %7078 = vmatmul.mubr.bf16.gmra.mrb[0].mxu0 %v6806
        %v7079 = vpop.f32.mrb[0].mxu0
        %v7080 = vadd.f32 0.0, %v7079
        %v7081 = vpop.f32.mrb[0].mxu0
        %v7082 = vpop.f32.mrb[0].mxu0
        %v7083 = vadd.f32 0.0, %v7082
        %v7084 = vpop.f32.mrb[0].mxu0
        %7085 = vmatprep.mubr.bf16.mxu0 0
        %7086 = vmatmul.mubr.bf16.gmra.mrb[0].mxu0 %v6815
        %v7087 = vpop.f32.mrb[0].mxu0
        %v7088 = vadd.f32 0.0, %v7087
        %v7089 = vpop.f32.mrb[0].mxu0
        %v7090 = vpop.f32.mrb[0].mxu0
        %v7091 = vadd.f32 0.0, %v7090
        %v7092 = vpop.f32.mrb[0].mxu0
        %7093 = vmatprep.mubr.bf16.mxu0 0
        %7094 = vmatmul.mubr.bf16.gmra.mrb[0].mxu0 %v6824
        %v7095 = vpop.f32.mrb[0].mxu0
        %v7096 = vadd.f32 0.0, %v7095
        %v7097 = vpop.f32.mrb[0].mxu0
        %v7098 = vpop.f32.mrb[0].mxu0
        %v7099 = vadd.f32 0.0, %v7098
        %v7100 = vpop.f32.mrb[0].mxu0
        %7101 = vmatprep.mubr.bf16.mxu0 0
        %7102 = vmatmul.mubr.bf16.gmra.mrb[0].mxu0 %v6833
        %v7103 = vpop.f32.mrb[0].mxu0
        %v7104 = vadd.f32 0.0, %v7103
        %v7105 = vpop.f32.mrb[0].mxu0
        %v7106 = vpop.f32.mrb[0].mxu0
        %v7107 = vadd.f32 0.0, %v7106
        %v7108 = vpop.f32.mrb[0].mxu0
        %7109 = vmatprep.mubr.bf16.mxu0 0
        %7110 = vmatmul.mubr.bf16.gmra.mrb[0].mxu0 %v6842
        %v7111 = vpop.f32.mrb[0].mxu0
        %v7112 = vadd.f32 0.0, %v7111
        %v7113 = vpop.f32.mrb[0].mxu0
        %v7114 = vpop.f32.mrb[0].mxu0
        %v7115 = vadd.f32 0.0, %v7114
        %v7116 = vpop.f32.mrb[0].mxu0
        %7117 = vmatprep.mubr.bf16.mxu0 0
        %7118 = vmatmul.mubr.bf16.gmra.mrb[0].mxu0 %v6851
        %v7119 = vpop.f32.mrb[0].mxu0
        %v7120 = vadd.f32 0.0, %v7119
        %v7121 = vpop.f32.mrb[0].mxu0
        %v7122 = vpop.f32.mrb[0].mxu0
        %v7123 = vadd.f32 0.0, %v7122
        %v7124 = vpop.f32.mrb[0].mxu0
        %7125 = vmatprep.mubr.bf16.mxu0 0
        %7126 = vmatmul.mubr.bf16.gmra.mrb[0].mxu0 %v6860
        %v7127 = vpop.f32.mrb[0].mxu0
        %v7128 = vadd.f32 0.0, %v7127
        %v7129 = vpop.f32.mrb[0].mxu0
        %v7130 = vpop.f32.mrb[0].mxu0
        %v7131 = vadd.f32 0.0, %v7130
        %v7132 = vpop.f32.mrb[0].mxu0
        %7133 = vmatprep.mubr.bf16.mxu0 0
        %7134 = vmatmul.mubr.bf16.gmra.mrb[0].mxu0 %v6869
        %v7135 = vpop.f32.mrb[0].mxu0
        %v7136 = vadd.f32 0.0, %v7135
        %v7137 = vpop.f32.mrb[0].mxu0
        %v7138 = vpop.f32.mrb[0].mxu0
        %v7139 = vadd.f32 0.0, %v7138
        %v7140 = vpop.f32.mrb[0].mxu0
        %7141 = vmatprep.mubr.bf16.mxu0 0
        %7142 = vmatmul.mubr.bf16.gmra.mrb[0].mxu0 %v6878
        %v7143 = vpop.f32.mrb[0].mxu0
        %v7144 = vadd.f32 0.0, %v7143
        %v7145 = vpop.f32.mrb[0].mxu0
        %v7146 = vpop.f32.mrb[0].mxu0
        %v7147 = vadd.f32 0.0, %v7146
        %v7148 = vpop.f32.mrb[0].mxu0
        %7149 = vmatprep.mubr.bf16.mxu0 0
        %7150 = vmatmul.mubr.bf16.gmra.mrb[0].mxu0 %v6887
        %v7151 = vpop.f32.mrb[0].mxu0
        %v7152 = vadd.f32 0.0, %v7151
        %v7153 = vpop.f32.mrb[0].mxu0
        %v7154 = vpop.f32.mrb[0].mxu0
        %v7155 = vadd.f32 0.0, %v7154
        %v7156 = vpop.f32.mrb[0].mxu0
        %7157 = vmatprep.mubr.bf16.mxu0 0
        %7158 = vmatmul.mubr.bf16.gmra.mrb[0].mxu0 %v6896
        %v7159 = vpop.f32.mrb[0].mxu0
        %v7160 = vadd.f32 0.0, %v7159
        %v7161 = vpop.f32.mrb[0].mxu0
        %v7162 = vpop.f32.mrb[0].mxu0
        %v7163 = vadd.f32 0.0, %v7162
        %v7164 = vpop.f32.mrb[0].mxu0
        %7165 = vmatprep.mubr.bf16.mxu0 0
        %7166 = vmatmul.mubr.bf16.gmra.mrb[0].mxu0 %v6905
        %v7167 = vpop.f32.mrb[0].mxu0
        %v7168 = vadd.f32 0.0, %v7167
        %v7169 = vpop.f32.mrb[0].mxu0
        %v7170 = vpop.f32.mrb[0].mxu0
        %v7171 = vadd.f32 0.0, %v7170
        %v7172 = vpop.f32.mrb[0].mxu0
        %7173 = vmatprep.mubr.bf16.mxu0 0
        %7174 = vmatmul.mubr.bf16.gmra.mrb[0].mxu0 %v6914
        %v7175 = vpop.f32.mrb[0].mxu0
        %v7176 = vadd.f32 0.0, %v7175
        %v7177 = vpop.f32.mrb[0].mxu0
        %v7178 = vpop.f32.mrb[0].mxu0
        %v7179 = vadd.f32 0.0, %v7178
        %v7180 = vpop.f32.mrb[0].mxu0
        %7181 = vmatprep.mubr.bf16.mxu0 0
        %7182 = vmatmul.mubr.bf16.gmra.mrb[0].mxu0 %v6923
        %v7183 = vpop.f32.mrb[0].mxu0
        %v7184 = vadd.f32 0.0, %v7183
        %v7185 = vpop.f32.mrb[0].mxu0
        %v7186 = vpop.f32.mrb[0].mxu0
        %v7187 = vadd.f32 0.0, %v7186
        %v7188 = vpop.f32.mrb[0].mxu0
        %7189 = vmatprep.mubr.bf16.mxu0 0
        %7190 = vmatmul.mubr.bf16.gmra.mrb[0].mxu0 %v6932
        %v7191 = vpop.f32.mrb[0].mxu0
        %v7192 = vadd.f32 0.0, %v7191
        %v7193 = vpop.f32.mrb[0].mxu0
        %v7194 = vpop.f32.mrb[0].mxu0
        %v7195 = vadd.f32 0.0, %v7194
        %v7196 = vpop.f32.mrb[0].mxu0
        %7197 = vmatprep.mubr.bf16.mxu0 0
        %7198 = vmatmul.mubr.bf16.gmra.mrb[0].mxu0 %v6941
        %v7199 = vpop.f32.mrb[0].mxu0
        %v7200 = vadd.f32 0.0, %v7199
        %v7201 = vpop.f32.mrb[0].mxu0
        %v7202 = vpop.f32.mrb[0].mxu0
        %v7203 = vadd.f32 0.0, %v7202
        %v7204 = vpop.f32.mrb[0].mxu0
        %7205 = vmatprep.mubr.bf16.mxu0 0
        %7206 = vmatmul.mubr.bf16.gmra.mrb[0].mxu0 %v6950
        %v7207 = vpop.f32.mrb[0].mxu0
        %v7208 = vadd.f32 0.0, %v7207
        %v7209 = vpop.f32.mrb[0].mxu0
        %v7210 = vpop.f32.mrb[0].mxu0
        %v7211 = vadd.f32 0.0, %v7210
        %v7212 = vpop.f32.mrb[0].mxu0
        %7213 = vmatprep.mubr.bf16.mxu0 0
        %7214 = vmatmul.mubr.bf16.gmra.mrb[0].mxu0 %v6959
        %v7215 = vpop.f32.mrb[0].mxu0
        %v7216 = vadd.f32 0.0, %v7215
        %v7217 = vpop.f32.mrb[0].mxu0
        %v7218 = vpop.f32.mrb[0].mxu0
        %v7219 = vadd.f32 0.0, %v7218
        %v7220 = vpop.f32.mrb[0].mxu0
        %7221 = vmatprep.mubr.bf16.mxu0 0
        %7222 = vmatmul.mubr.bf16.gmra.mrb[0].mxu0 %v6958
        %v7223 = vpop.f32.mrb[0].mxu0
        %v7224 = vadd.f32 0.0, %v7223
        %v7225 = vpop.f32.mrb[0].mxu0
        %v7226 = vpop.f32.mrb[0].mxu0
        %v7227 = vpop.f32.mrb[0].mxu0
        %7228 = vdwg.mxu0
        %v7229 = vld [vmem:[#allocation3] sm:$0xff]
        %v7230 = vld [vmem:[#allocation3 + $0x8] sm:$0xff]
        %v7231 = vld [vmem:[#allocation3 + $0x10] sm:$0xff]
        %v7232 = vld [vmem:[#allocation3 + $0x18] sm:$0xff]
        %v7233 = vld [vmem:[#allocation3 + $0x20] sm:$0xff]
        %v7234 = vld [vmem:[#allocation3 + $0x28] sm:$0xff]
        %v7235 = vld [vmem:[#allocation3 + $0x30] sm:$0xff]
        %v7236 = vld [vmem:[#allocation3 + $0x38] sm:$0xff]
        %v7237 = vld [vmem:[#allocation3 + $0x40] sm:$0xff]
        %v7238 = vld [vmem:[#allocation3 + $0x48] sm:$0xff]
        %v7239 = vld [vmem:[#allocation3 + $0x50] sm:$0xff]
        %v7240 = vld [vmem:[#allocation3 + $0x58] sm:$0xff]
        %v7241 = vld [vmem:[#allocation3 + $0x60] sm:$0xff]
        %v7242 = vld [vmem:[#allocation3 + $0x68] sm:$0xff]
        %v7243 = vld [vmem:[#allocation3 + $0x70] sm:$0xff]
        %v7244 = vld [vmem:[#allocation3 + $0x78] sm:$0xff]
        %v7245 = vld [vmem:[#allocation3 + $0x80] sm:$0xff]
        %v7246 = vld [vmem:[#allocation3 + $0x88] sm:$0xff]
        %v7247 = vld [vmem:[#allocation3 + $0x90] sm:$0xff]
        %v7248 = vld [vmem:[#allocation3 + $0x98] sm:$0xff]
        %v7249 = vld [vmem:[#allocation3 + $0xa0] sm:$0xff]
        %v7250 = vld [vmem:[#allocation3 + $0xa8] sm:$0xff]
        %v7251 = vld [vmem:[#allocation3 + $0xb0] sm:$0xff]
        %v7252 = vld [vmem:[#allocation3 + $0xb8] sm:$0xff]
        %v7253 = vld [vmem:[#allocation3 + $0xc0] sm:$0xff]
        %v7254 = vld [vmem:[#allocation3 + $0xc8] sm:$0xff]
        %v7255 = vld [vmem:[#allocation3 + $0xd0] sm:$0xff]
        %v7256 = vld [vmem:[#allocation3 + $0xd8] sm:$0xff]
        %v7257 = vld [vmem:[#allocation3 + $0xe0] sm:$0xff]
        %v7258 = vld [vmem:[#allocation3 + $0xe8] sm:$0xff]
        %v7259 = vld [vmem:[#allocation3 + $0xf0] sm:$0xff]
        %v7260 = vld [vmem:[#allocation3 + $0xf8] sm:$0xff]
        %v7261 = vld [vmem:[#allocation3 + $0x100] sm:$0xff]
        %v7262 = vld [vmem:[#allocation3 + $0x108] sm:$0xff]
        %v7263 = vld [vmem:[#allocation3 + $0x110] sm:$0xff]
        %v7264 = vld [vmem:[#allocation3 + $0x118] sm:$0xff]
        %v7265 = vld [vmem:[#allocation3 + $0x120] sm:$0xff]
        %v7266 = vld [vmem:[#allocation3 + $0x128] sm:$0xff]
        %v7267 = vld [vmem:[#allocation3 + $0x130] sm:$0xff]
        %v7268 = vld [vmem:[#allocation3 + $0x138] sm:$0xff]
        %v7269 = vld [vmem:[#allocation3 + $0x140] sm:$0xff]
        %v7270 = vadd.f32 %v7229, %v7064
        %v7271 = vadd.f32 %v7230, %v7067
        %v7272 = vadd.f32 %v7231, %v7072
        %v7273 = vadd.f32 %v7232, %v7075
        %v7274 = vadd.f32 %v7233, %v7080
        %v7275 = vadd.f32 %v7234, %v7083
        %v7276 = vadd.f32 %v7235, %v7088
        %v7277 = vadd.f32 %v7236, %v7091
        %v7278 = vadd.f32 %v7237, %v7096
        %v7279 = vadd.f32 %v7238, %v7099
        %v7280 = vadd.f32 %v7239, %v7104
        %v7281 = vadd.f32 %v7240, %v7107
        %v7282 = vadd.f32 %v7241, %v7112
        %v7283 = vadd.f32 %v7242, %v7115
        %v7284 = vadd.f32 %v7243, %v7120
        %v7285 = vadd.f32 %v7244, %v7123
        %v7286 = vadd.f32 %v7245, %v7128
        %v7287 = vadd.f32 %v7246, %v7131
        %v7288 = vadd.f32 %v7247, %v7136
        %v7289 = vadd.f32 %v7248, %v7139
        %v7290 = vadd.f32 %v7249, %v7144
        %v7291 = vadd.f32 %v7250, %v7147
        %v7292 = vadd.f32 %v7251, %v7152
        %v7293 = vadd.f32 %v7252, %v7155
        %v7294 = vadd.f32 %v7253, %v7160
        %v7295 = vadd.f32 %v7254, %v7163
        %v7296 = vadd.f32 %v7255, %v7168
        %v7297 = vadd.f32 %v7256, %v7171
        %v7298 = vadd.f32 %v7257, %v7176
        %v7299 = vadd.f32 %v7258, %v7179
        %v7300 = vadd.f32 %v7259, %v7184
        %v7301 = vadd.f32 %v7260, %v7187
        %v7302 = vadd.f32 %v7261, %v7192
        %v7303 = vadd.f32 %v7262, %v7195
        %v7304 = vadd.f32 %v7263, %v7200
        %v7305 = vadd.f32 %v7264, %v7203
        %v7306 = vadd.f32 %v7265, %v7208
        %v7307 = vadd.f32 %v7266, %v7211
        %v7308 = vadd.f32 %v7267, %v7216
        %v7309 = vadd.f32 %v7268, %v7219
        %v7310 = vadd.f32 %v7269, %v7224
        %7311 = vst [vmem:[#allocation3] sm:$0xff] %v7270
        %7312 = vst [vmem:[#allocation3 + $0x8] sm:$0xff] %v7271
        %7313 = vst [vmem:[#allocation3 + $0x10] sm:$0xff] %v7272
        %7314 = vst [vmem:[#allocation3 + $0x18] sm:$0xff] %v7273
        %7315 = vst [vmem:[#allocation3 + $0x20] sm:$0xff] %v7274
        %7316 = vst [vmem:[#allocation3 + $0x28] sm:$0xff] %v7275
        %7317 = vst [vmem:[#allocation3 + $0x30] sm:$0xff] %v7276
        %7318 = vst [vmem:[#allocation3 + $0x38] sm:$0xff] %v7277
        %7319 = vst [vmem:[#allocation3 + $0x40] sm:$0xff] %v7278
        %7320 = vst [vmem:[#allocation3 + $0x48] sm:$0xff] %v7279
        %7321 = vst [vmem:[#allocation3 + $0x50] sm:$0xff] %v7280
        %7322 = vst [vmem:[#allocation3 + $0x58] sm:$0xff] %v7281
        %7323 = vst [vmem:[#allocation3 + $0x60] sm:$0xff] %v7282
        %7324 = vst [vmem:[#allocation3 + $0x68] sm:$0xff] %v7283
        %7325 = vst [vmem:[#allocation3 + $0x70] sm:$0xff] %v7284
        %7326 = vst [vmem:[#allocation3 + $0x78] sm:$0xff] %v7285
        %7327 = vst [vmem:[#allocation3 + $0x80] sm:$0xff] %v7286
        %7328 = vst [vmem:[#allocation3 + $0x88] sm:$0xff] %v7287
        %7329 = vst [vmem:[#allocation3 + $0x90] sm:$0xff] %v7288
        %7330 = vst [vmem:[#allocation3 + $0x98] sm:$0xff] %v7289
        %7331 = vst [vmem:[#allocation3 + $0xa0] sm:$0xff] %v7290
        %7332 = vst [vmem:[#allocation3 + $0xa8] sm:$0xff] %v7291
        %7333 = vst [vmem:[#allocation3 + $0xb0] sm:$0xff] %v7292
        %7334 = vst [vmem:[#allocation3 + $0xb8] sm:$0xff] %v7293
        %7335 = vst [vmem:[#allocation3 + $0xc0] sm:$0xff] %v7294
        %7336 = vst [vmem:[#allocation3 + $0xc8] sm:$0xff] %v7295
        %7337 = vst [vmem:[#allocation3 + $0xd0] sm:$0xff] %v7296
        %7338 = vst [vmem:[#allocation3 + $0xd8] sm:$0xff] %v7297
        %7339 = vst [vmem:[#allocation3 + $0xe0] sm:$0xff] %v7298
        %7340 = vst [vmem:[#allocation3 + $0xe8] sm:$0xff] %v7299
        %7341 = vst [vmem:[#allocation3 + $0xf0] sm:$0xff] %v7300
        %7342 = vst [vmem:[#allocation3 + $0xf8] sm:$0xff] %v7301
        %7343 = vst [vmem:[#allocation3 + $0x100] sm:$0xff] %v7302
        %7344 = vst [vmem:[#allocation3 + $0x108] sm:$0xff] %v7303
        %7345 = vst [vmem:[#allocation3 + $0x110] sm:$0xff] %v7304
        %7346 = vst [vmem:[#allocation3 + $0x118] sm:$0xff] %v7305
        %7347 = vst [vmem:[#allocation3 + $0x120] sm:$0xff] %v7306
        %7348 = vst [vmem:[#allocation3 + $0x128] sm:$0xff] %v7307
        %7349 = vst [vmem:[#allocation3 + $0x130] sm:$0xff] %v7308
        %7350 = vst [vmem:[#allocation3 + $0x138] sm:$0xff] %v7309
        %7351 = vst [vmem:[#allocation3 + $0x140] sm:$0xff] %v7310
        %v7352 = vld [vmem:[#allocation3] sm:$0xff]
        %v7353 = vld [vmem:[#allocation3 + $0x8] sm:$0xff]
        %v7354 = vld [vmem:[#allocation3 + $0x10] sm:$0xff]
        %v7355 = vld [vmem:[#allocation3 + $0x18] sm:$0xff]
        %v7356 = vld [vmem:[#allocation3 + $0x20] sm:$0xff]
        %v7357 = vld [vmem:[#allocation3 + $0x28] sm:$0xff]
        %v7358 = vld [vmem:[#allocation3 + $0x30] sm:$0xff]
        %v7359 = vld [vmem:[#allocation3 + $0x38] sm:$0xff]
        %v7360 = vld [vmem:[#allocation3 + $0x40] sm:$0xff]
        %v7361 = vld [vmem:[#allocation3 + $0x48] sm:$0xff]
        %v7362 = vld [vmem:[#allocation3 + $0x50] sm:$0xff]
        %v7363 = vld [vmem:[#allocation3 + $0x58] sm:$0xff]
        %v7364 = vld [vmem:[#allocation3 + $0x60] sm:$0xff]
        %v7365 = vld [vmem:[#allocation3 + $0x68] sm:$0xff]
        %v7366 = vld [vmem:[#allocation3 + $0x70] sm:$0xff]
        %v7367 = vld [vmem:[#allocation3 + $0x78] sm:$0xff]
        %v7368 = vld [vmem:[#allocation3 + $0x80] sm:$0xff]
        %v7369 = vld [vmem:[#allocation3 + $0x88] sm:$0xff]
        %v7370 = vld [vmem:[#allocation3 + $0x90] sm:$0xff]
        %v7371 = vld [vmem:[#allocation3 + $0x98] sm:$0xff]
        %v7372 = vld [vmem:[#allocation3 + $0xa0] sm:$0xff]
        %v7373 = vld [vmem:[#allocation3 + $0xa8] sm:$0xff]
        %v7374 = vld [vmem:[#allocation3 + $0xb0] sm:$0xff]
        %v7375 = vld [vmem:[#allocation3 + $0xb8] sm:$0xff]
        %v7376 = vld [vmem:[#allocation3 + $0xc0] sm:$0xff]
        %v7377 = vld [vmem:[#allocation3 + $0xc8] sm:$0xff]
        %v7378 = vld [vmem:[#allocation3 + $0xd0] sm:$0xff]
        %v7379 = vld [vmem:[#allocation3 + $0xd8] sm:$0xff]
        %v7380 = vld [vmem:[#allocation3 + $0xe0] sm:$0xff]
        %v7381 = vld [vmem:[#allocation3 + $0xe8] sm:$0xff]
        %v7382 = vld [vmem:[#allocation3 + $0xf0] sm:$0xff]
        %v7383 = vld [vmem:[#allocation3 + $0xf8] sm:$0xff]
        %v7384 = vld [vmem:[#allocation3 + $0x100] sm:$0xff]
        %v7385 = vld [vmem:[#allocation3 + $0x108] sm:$0xff]
        %v7386 = vld [vmem:[#allocation3 + $0x110] sm:$0xff]
        %v7387 = vld [vmem:[#allocation3 + $0x118] sm:$0xff]
        %v7388 = vld [vmem:[#allocation3 + $0x120] sm:$0xff]
        %v7389 = vld [vmem:[#allocation3 + $0x128] sm:$0xff]
        %v7390 = vld [vmem:[#allocation3 + $0x130] sm:$0xff]
        %v7391 = vld [vmem:[#allocation3 + $0x138] sm:$0xff]
        %v7392 = vld [vmem:[#allocation3 + $0x140] sm:$0xff]
        %v7393 = vld [vmem:[%s4] sm:$0x1]
        %v7395 = vlaneseq
        %v7396 = vshrl.u32 %v7395, 7
        %v7397 = vsub.s32 0, %v7396
        %v7398 = vrot.slane %v7393, %v7397
        %v7400 = vadd.f32 %v7352, %v7398
        %v7401 = vadd.f32 %v7353, %v7398
        %v7402 = vadd.f32 %v7354, %v7398
        %v7403 = vadd.f32 %v7355, %v7398
        %v7404 = vadd.f32 %v7356, %v7398
        %v7405 = vadd.f32 %v7357, %v7398
        %v7406 = vadd.f32 %v7358, %v7398
        %v7407 = vadd.f32 %v7359, %v7398
        %v7408 = vadd.f32 %v7360, %v7398
        %v7409 = vadd.f32 %v7361, %v7398
        %v7410 = vadd.f32 %v7362, %v7398
        %v7411 = vadd.f32 %v7363, %v7398
        %v7412 = vadd.f32 %v7364, %v7398
        %v7413 = vadd.f32 %v7365, %v7398
        %v7414 = vadd.f32 %v7366, %v7398
        %v7415 = vadd.f32 %v7367, %v7398
        %v7416 = vadd.f32 %v7368, %v7398
        %v7417 = vadd.f32 %v7369, %v7398
        %v7418 = vadd.f32 %v7370, %v7398
        %v7419 = vadd.f32 %v7371, %v7398
        %v7420 = vadd.f32 %v7372, %v7398
        %v7421 = vadd.f32 %v7373, %v7398
        %v7422 = vadd.f32 %v7374, %v7398
        %v7423 = vadd.f32 %v7375, %v7398
        %v7424 = vadd.f32 %v7376, %v7398
        %v7425 = vadd.f32 %v7377, %v7398
        %v7426 = vadd.f32 %v7378, %v7398
        %v7427 = vadd.f32 %v7379, %v7398
        %v7428 = vadd.f32 %v7380, %v7398
        %v7429 = vadd.f32 %v7381, %v7398
        %v7430 = vadd.f32 %v7382, %v7398
        %v7431 = vadd.f32 %v7383, %v7398
        %v7432 = vadd.f32 %v7384, %v7398
        %v7433 = vadd.f32 %v7385, %v7398
        %v7434 = vadd.f32 %v7386, %v7398
        %v7435 = vadd.f32 %v7387, %v7398
        %v7436 = vadd.f32 %v7388, %v7398
        %v7437 = vadd.f32 %v7389, %v7398
        %v7438 = vadd.f32 %v7390, %v7398
        %v7439 = vadd.f32 %v7391, %v7398
        %v7440 = vadd.f32 %v7392, %v7398
        %v7441 = vmax.f32 %v7400, 0.0
        %v7442 = vmax.f32 %v7401, 0.0
        %v7443 = vmax.f32 %v7402, 0.0
        %v7444 = vmax.f32 %v7403, 0.0
        %v7445 = vmax.f32 %v7404, 0.0
        %v7446 = vmax.f32 %v7405, 0.0
        %v7447 = vmax.f32 %v7406, 0.0
        %v7448 = vmax.f32 %v7407, 0.0
        %v7449 = vmax.f32 %v7408, 0.0
        %v7450 = vmax.f32 %v7409, 0.0
        %v7451 = vmax.f32 %v7410, 0.0
        %v7452 = vmax.f32 %v7411, 0.0
        %v7453 = vmax.f32 %v7412, 0.0
        %v7454 = vmax.f32 %v7413, 0.0
        %v7455 = vmax.f32 %v7414, 0.0
        %v7456 = vmax.f32 %v7415, 0.0
        %v7457 = vmax.f32 %v7416, 0.0
        %v7458 = vmax.f32 %v7417, 0.0
        %v7459 = vmax.f32 %v7418, 0.0
        %v7460 = vmax.f32 %v7419, 0.0
        %v7461 = vmax.f32 %v7420, 0.0
        %v7462 = vmax.f32 %v7421, 0.0
        %v7463 = vmax.f32 %v7422, 0.0
        %v7464 = vmax.f32 %v7423, 0.0
        %v7465 = vmax.f32 %v7424, 0.0
        %v7466 = vmax.f32 %v7425, 0.0
        %v7467 = vmax.f32 %v7426, 0.0
        %v7468 = vmax.f32 %v7427, 0.0
        %v7469 = vmax.f32 %v7428, 0.0
        %v7470 = vmax.f32 %v7429, 0.0
        %v7471 = vmax.f32 %v7430, 0.0
        %v7472 = vmax.f32 %v7431, 0.0
        %v7473 = vmax.f32 %v7432, 0.0
        %v7474 = vmax.f32 %v7433, 0.0
        %v7475 = vmax.f32 %v7434, 0.0
        %v7476 = vmax.f32 %v7435, 0.0
        %v7477 = vmax.f32 %v7436, 0.0
        %v7478 = vmax.f32 %v7437, 0.0
        %v7479 = vmax.f32 %v7438, 0.0
        %v7480 = vmax.f32 %v7439, 0.0
        %v7481 = vmax.f32 %v7440, 0.0
        %7482 = vst [vmem:[%s275] sm:$0xff] %v7441
        %7483 = vst [vmem:[%s275 + $0x8] sm:$0xff] %v7442
        %7484 = vst [vmem:[%s275 + $0x10] sm:$0xff] %v7443
        %7485 = vst [vmem:[%s275 + $0x18] sm:$0xff] %v7444
        %7486 = vst [vmem:[%s275 + $0x20] sm:$0xff] %v7445
        %7487 = vst [vmem:[%s275 + $0x28] sm:$0xff] %v7446
        %7488 = vst [vmem:[%s275 + $0x30] sm:$0xff] %v7447
        %7489 = vst [vmem:[%s275 + $0x38] sm:$0xff] %v7448
        %7490 = vst [vmem:[%s275 + $0x40] sm:$0xff] %v7449
        %7491 = vst [vmem:[%s275 + $0x48] sm:$0xff] %v7450
        %7492 = vst [vmem:[%s275 + $0x50] sm:$0xff] %v7451
        %7493 = vst [vmem:[%s275 + $0x58] sm:$0xff] %v7452
        %7494 = vst [vmem:[%s275 + $0x60] sm:$0xff] %v7453
        %7495 = vst [vmem:[%s275 + $0x68] sm:$0xff] %v7454
        %7496 = vst [vmem:[%s275 + $0x70] sm:$0xff] %v7455
        %7497 = vst [vmem:[%s275 + $0x78] sm:$0xff] %v7456
        %7498 = vst [vmem:[%s275 + $0x80] sm:$0xff] %v7457
        %7499 = vst [vmem:[%s275 + $0x88] sm:$0xff] %v7458
        %7500 = vst [vmem:[%s275 + $0x90] sm:$0xff] %v7459
        %7501 = vst [vmem:[%s275 + $0x98] sm:$0xff] %v7460
        %7502 = vst [vmem:[%s275 + $0xa0] sm:$0xff] %v7461
        %7503 = vst [vmem:[%s275 + $0xa8] sm:$0xff] %v7462
        %7504 = vst [vmem:[%s275 + $0xb0] sm:$0xff] %v7463
        %7505 = vst [vmem:[%s275 + $0xb8] sm:$0xff] %v7464
        %7506 = vst [vmem:[%s275 + $0xc0] sm:$0xff] %v7465
        %7507 = vst [vmem:[%s275 + $0xc8] sm:$0xff] %v7466
        %7508 = vst [vmem:[%s275 + $0xd0] sm:$0xff] %v7467
        %7509 = vst [vmem:[%s275 + $0xd8] sm:$0xff] %v7468
        %7510 = vst [vmem:[%s275 + $0xe0] sm:$0xff] %v7469
        %7511 = vst [vmem:[%s275 + $0xe8] sm:$0xff] %v7470
        %7512 = vst [vmem:[%s275 + $0xf0] sm:$0xff] %v7471
        %7513 = vst [vmem:[%s275 + $0xf8] sm:$0xff] %v7472
        %7514 = vst [vmem:[%s275 + $0x100] sm:$0xff] %v7473
        %7515 = vst [vmem:[%s275 + $0x108] sm:$0xff] %v7474
        %7516 = vst [vmem:[%s275 + $0x110] sm:$0xff] %v7475
        %7517 = vst [vmem:[%s275 + $0x118] sm:$0xff] %v7476
        %7518 = vst [vmem:[%s275 + $0x120] sm:$0xff] %v7477
        %7519 = vst [vmem:[%s275 + $0x128] sm:$0xff] %v7478
        %7520 = vst [vmem:[%s275 + $0x130] sm:$0xff] %v7479
        %7521 = vst [vmem:[%s275 + $0x138] sm:$0xff] %v7480
        %7522 = vst [vmem:[%s275 + $0x140] sm:$0xff] %v7481
        %s7523 = sand.u32 %s161, 1
        %s7524 = scalar_lea.sflag [#allocation6], %s7523
        %s7525 = sand.u32 %s161, 1
        %s7526 = smul.addr %s7525, 328
        %s7527 = scalar_lea.vmem [#allocation9], %s7526
        // Predicated region
        $region53: #{tpu_custom_call.1} parent=43 // pred_check
          %p7528 = pneg %p171
        $region54: #{tpu_custom_call.1} parent=43 // pred_check_branch
          %7530 = sbr.rel (%p7528) target = $region56
        $region55: #{tpu_custom_call.1} parent=43 // pred_region
          %s7531 = smul.u32 41, %s22
          %s7533 = ssub.s32 5248, 5248
          %7534 = vsyncadd %s7524, %s7533
          %s7535 = smul.addr %s7531, 128
          %s7536 = scalar_lea.hbm %s6, %s7535
          %s7537 = sshll.u32 %s7527, 4
          %s7538 = int_to_ptr.vmem [resolvable:$true] %s7537
          %7543 = dma.vmem_to_hbm [thread:$0]  %s7538, 5248, %s7536, %s7524, 128, 128, 8
        $region56: #{tpu_custom_call.1} parent=43 // pred_fallthru
          _
      $region44: #{tpu_custom_call.1} parent=5 // pred_fallthru
        _
      %p7544 = scmp.le.s32.totalorder 2, %s17
      // Predicated region
      $region57: #{tpu_custom_call.1} parent=5 // pred_check
        %p7545 = pneg %p7544
      $region58: #{tpu_custom_call.1} parent=5 // pred_check_branch
        %7547 = sbr.rel (%p7545) target = $region60
      $region59: #{tpu_custom_call.1} parent=5 // pred_region
        %s7548 = ssub.s32 %s17, 2
        // Predicated region
        $region61: #{tpu_custom_call.1} parent=59 // pred_check
          %p7549 = pneg %p177
        $region62: #{tpu_custom_call.1} parent=59 // pred_check_branch
          %7551 = sbr.rel (%p7549) target = $region64
        $region63: #{tpu_custom_call.1} parent=59 // pred_region
          %s7552 = sand.u32 %s162, 1
          %s7553 = scalar_lea.sflag [#allocation6], %s7552
          %s7554 = sand.u32 %s162, 1
          %s7555 = smul.addr %s7554, 328
          %s7556 = scalar_lea.vmem [#allocation9], %s7555
          %7557 = dma.done %s7553, 5248
        $region64: #{tpu_custom_call.1} parent=59 // pred_fallthru
          _
      $region60: #{tpu_custom_call.1} parent=5 // pred_fallthru
        _
    $region6: #{tpu_custom_call.1} parent=1 // loop_footer
      %s21 = sadd.s32 1, %s17
    $region7: #{tpu_custom_call.1} parent=1 // loop_footer_branch
      %16 = sbr.rel target = $region3
    $region8: #{tpu_custom_call.1} parent=1 // loop_exit
      _
    %7558 = vsyncpa [#allocation5], 1
    %s7559 = scalar_lea.sflag [#allocation5], 1
    %7560 = vsyncpa %s7559, 1
    %7561 = vsyncpa [#allocation8], 1
    %7562 = vsyncpa [#allocation6], 1
    %s7563 = scalar_lea.sflag [#allocation6], 1
    %7564 = vsyncpa %s7563, 1

</llo_original>
